<compile_context>
chip_gen: v7x
topology: tpu7x:2x2x1
jax: 0.10.0
libtpu: 0.0.40
codegen_flags: <defaults>
</compile_context>

<pallas_src>
import functools
import math

import jax
import jax.numpy as jnp
from jax import lax
from jax.experimental import pallas as pl
from jax.experimental.pallas import tpu as pltpu

# Module-level constants from the PyTorch source.
D_K = 64
D_V = 64
N_HEADS = 8
D_EMBEDDING = 512
D_FF = 2048
LN_EPS = 1e-5  # nn.LayerNorm default
H_GRP = 2      # heads processed per attention grid step (2*64 = 128-wide lane-dense blocks)


# ----------------------------- small helpers ---------------------------------

def _pick_sublane_tile(dim, target):
    """Largest tile <= target that is the full dim or a multiple of 8 dividing dim."""
    if dim <= target:
        return dim
    for t in range(target, 7, -8):
        if dim % t == 0:
            return t
    return dim


def _default_vmem_limit():
    """~half of physical VMEM, capped at 64 MiB (=> 64 MiB on v5e/v6e, 32 MiB on v7x)."""
    try:
        cap = int(pltpu.get_tpu_info().vmem_capacity_bytes)
        return int(min(cap // 2, 64 * 1024 * 1024))
    except Exception:
        return 32 * 1024 * 1024


def _ln_f32(x, g, b):
    """PyTorch LayerNorm over the last dim (biased variance), all f32."""
    mu = jnp.mean(x, axis=-1, keepdims=True)
    xc = x - mu
    var = jnp.mean(xc * xc, axis=-1, keepdims=True)
    return xc * lax.rsqrt(var + LN_EPS) * g + b


# --------------------- scaled dot-product attention kernel -------------------

def _attn_kernel(*refs, causal, h_grp):
    # causal:   q_ref, k_ref, v_ref, o_ref
    # explicit: q_ref, k_ref, v_ref, m_ref, o_ref
    if causal:
        q_ref, k_ref, v_ref, o_ref = refs
        m_ref = None
    else:
        q_ref, k_ref, v_ref, m_ref, o_ref = refs

    TQ = q_ref.shape[1]
    Lk = k_ref.shape[1]

    # Build the mask once per tile (shared by both heads in the group).
    if causal:
        row = pl.program_id(2) * TQ + lax.broadcasted_iota(jnp.int32, (TQ, Lk), 0)
        col = lax.broadcasted_iota(jnp.int32, (TQ, Lk), 1)
        masked = col > row                      # "subsequent" mask: col > row is hidden
    else:
        masked = m_ref[0] != 0                  # nonzero => masked out

    ctxs = []
    for hh in range(h_grp):                     # static, unrolled
        lo = hh * D_K
        q = q_ref[0, :, lo:lo + D_K]            # (TQ, 64)  (scale already folded into W_Q)
        k = k_ref[0, :, lo:lo + D_K]            # (Lk, 64)
        v = v_ref[0, :, lo:lo + D_V]            # (Lk, 64)

        # scores = Q @ K^T without materializing K^T: contract the last dims.
        scores = lax.dot_general(
            q, k, dimension_numbers=(((1,), (1,)), ((), ())),
            preferred_element_type=jnp.float32)
        scores = jnp.where(masked, jnp.float32(-1e9), scores)   # masked_fill_(-1e9)

        # Numerically-stable softmax over Lk (f32); EUP reciprocal keeps the VPU slot free.
        m = jnp.max(scores, axis=-1, keepdims=True)
        e = jnp.exp(scores - m)
        denom = jnp.sum(e, axis=-1, keepdims=True)
        w = e * pl.reciprocal(denom, approx=True)

        ctxs.append(jnp.dot(w.astype(v.dtype), v, preferred_element_type=jnp.float32))

    # Lane-dense 128-wide store (two heads' contexts side by side).
    o_ref[0] = jnp.concatenate(ctxs, axis=-1).astype(o_ref.dtype)


def sdpa_context(qkv3d, attn_mask_i8=None, *, causal=False, tq_target=None):
    """qkv3d: [B, L, 3*H*D] laid out as [Q(h0..h7) | K(h0..h7) | V(h0..h7)].

    Returns context [B, L, H*D_V] (heads concatenated, ready for the output projection).
    Attention weights are intentionally NOT materialized (DecoderLayer discards them).
    """
    B, L, three_hd = qkv3d.shape
    assert three_hd == 3 * N_HEADS * D_K
    Lk = L
    limit = _default_vmem_limit()
    if tq_target is None:
        tq_target = 512 if limit >= 64 * 1024 * 1024 else 256   # v5e/v6e vs v7x
    TQ = _pick_sublane_tile(L, tq_target)
    GW = H_GRP * D_K                      # 128: head-group width (lane-dense)
    n_groups = N_HEADS // H_GRP           # also = number of 128-wide blocks per Q/K/V section
    grid = (B, n_groups, L // TQ)         # q-tile axis innermost => K/V panels stay resident

    # TODO(synk): for Lk >= ~4K on v7x, add an Lk grid axis with online softmax (flash-style
    # running m/l/acc scratch) so the (TQ, Lk) temporaries stay within 64 MiB VMEM.

    q_spec = pl.BlockSpec((1, TQ, GW), lambda b, h, qi: (b, qi, h))
    k_spec = pl.BlockSpec((1, Lk, GW), lambda b, h, qi: (b, 0, n_groups + h))
    v_spec = pl.BlockSpec((1, Lk, GW), lambda b, h, qi: (b, 0, 2 * n_groups + h))
    out_spec = pl.BlockSpec((1, TQ, GW), lambda b, h, qi: (b, qi, h))

    in_specs = [q_spec, k_spec, v_spec]
    args = [qkv3d, qkv3d, qkv3d]
    mask_bytes = 0
    if not causal:
        assert attn_mask_i8 is not None
        in_specs.append(pl.BlockSpec((1, TQ, Lk), lambda b, h, qi: (b, qi, 0)))
        args.append(attn_mask_i8)
        mask_bytes = int(attn_mask_i8.size)

    itemsize = qkv3d.dtype.itemsize
    cost = pl.CostEstimate(
        flops=int(4 * B * N_HEADS * L * Lk * D_K),
        transcendentals=int(B * N_HEADS * L * Lk),
        bytes_accessed=int((qkv3d.size + B * L * N_HEADS * D_V) * itemsize + mask_bytes),
    )

    return pl.pallas_call(
        functools.partial(_attn_kernel, causal=causal, h_grp=H_GRP),
        out_shape=jax.ShapeDtypeStruct((B, L, N_HEADS * D_V), qkv3d.dtype),
        grid_spec=pltpu.PrefetchScalarGridSpec(
            num_scalar_prefetch=0,
            grid=grid,
            in_specs=in_specs,
            out_specs=out_spec,
        ),
        compiler_params=pltpu.CompilerParams(
            dimension_semantics=("parallel", "parallel", "parallel"),
            vmem_limit_bytes=limit,
        ),
        cost_estimate=cost,
    )(*args)


# ----------------- matmul + bias (+ ReLU), weight resident in VMEM -----------

def _linear_kernel(x_ref, w_ref, b_ref, o_ref, *, relu):
    y = jnp.dot(x_ref[...], w_ref[...], preferred_element_type=jnp.float32)
    y = y + b_ref[...].astype(jnp.float32)
    if relu:
        y = jnp.maximum(y, 0.0)
    o_ref[...] = y.astype(o_ref.dtype)


def linear(x, w, b, *, relu=False, tm_target=256):
    """x: [M, K]; w: [K, N]; b: [N].  Weight stays VMEM-resident (constant index_map)."""
    M, K = x.shape
    K2, N = w.shape
    assert K == K2
    TM = _pick_sublane_tile(M, tm_target)
    limit = _default_vmem_limit()
    cost = pl.CostEstimate(
        flops=int(2 * M * N * K), transcendentals=0,
        bytes_accessed=int((x.size + w.size + b.size + M * N) * x.dtype.itemsize))
    return pl.pallas_call(
        functools.partial(_linear_kernel, relu=relu),
        out_shape=jax.ShapeDtypeStruct((M, N), x.dtype),
        grid_spec=pltpu.PrefetchScalarGridSpec(
            num_scalar_prefetch=0,
            grid=(M // TM,),
            in_specs=[
                pl.BlockSpec((TM, K), lambda i: (i, 0)),
                pl.BlockSpec((K, N), lambda i: (0, 0)),   # resident weight: DMA'd once
                pl.BlockSpec((1, N), lambda i: (0, 0)),
            ],
            out_specs=pl.BlockSpec((TM, N), lambda i: (i, 0)),
        ),
        compiler_params=pltpu.CompilerParams(
            dimension_semantics=("parallel",),
            vmem_limit_bytes=limit,
        ),
        cost_estimate=cost,
    )(x, w, b.reshape(1, N))


# ---------- matmul + bias + (residual-add + LayerNorm) x2 fused epilogue -----

def _linear_dual_ln_kernel(x_ref, w_ref, b_ref, r_ref, g1_ref, bb1_ref, g2_ref, bb2_ref, o_ref):
    # y = x @ W + b ; a = LN1(y + r) ; out = LN2(r + a).  Only `out` is written to HBM.
    y = jnp.dot(x_ref[...], w_ref[...], preferred_element_type=jnp.float32)
    y = y + b_ref[...].astype(jnp.float32)
    r = r_ref[...].astype(jnp.float32)
    a = _ln_f32(y + r, g1_ref[...].astype(jnp.float32), bb1_ref[...].astype(jnp.float32))
    o = _ln_f32(r + a, g2_ref[...].astype(jnp.float32), bb2_ref[...].astype(jnp.float32))
    o_ref[...] = o.astype(o_ref.dtype)


def linear_dual_ln(x, w, b, resid, g1, b1, g2, b2, *, tm_target=256):
    """(x @ w + b) -> LN1(. + resid) -> LN2(resid + .).  Requires full feature row per tile."""
    M, K = x.shape
    K2, N = w.shape
    assert K == K2 and resid.shape == (M, N)
    assert N == D_EMBEDDING  # full normalized dim lives in one output tile
    TM = _pick_sublane_tile(M, tm_target)
    limit = _default_vmem_limit()
    cost = pl.CostEstimate(
        flops=int(2 * M * N * K + 16 * M * N), transcendentals=0,
        bytes_accessed=int((x.size + w.size + resid.size + M * N + 5 * N) * x.dtype.itemsize))
    return pl.pallas_call(
        _linear_dual_ln_kernel,
        out_shape=jax.ShapeDtypeStruct((M, N), x.dtype),
        grid_spec=pltpu.PrefetchScalarGridSpec(
            num_scalar_prefetch=0,
            grid=(M // TM,),
            in_specs=[
                pl.BlockSpec((TM, K), lambda i: (i, 0)),
                pl.BlockSpec((K, N), lambda i: (0, 0)),   # resident weight
                pl.BlockSpec((1, N), lambda i: (0, 0)),
                pl.BlockSpec((TM, N), lambda i: (i, 0)),  # residual
                pl.BlockSpec((1, N), lambda i: (0, 0)),
                pl.BlockSpec((1, N), lambda i: (0, 0)),
                pl.BlockSpec((1, N), lambda i: (0, 0)),
                pl.BlockSpec((1, N), lambda i: (0, 0)),
            ],
            out_specs=pl.BlockSpec((TM, N), lambda i: (i, 0)),
        ),
        compiler_params=pltpu.CompilerParams(
            dimension_semantics=("parallel",),
            vmem_limit_bytes=limit,
        ),
        cost_estimate=cost,
    )(x, w, b.reshape(1, N), resid,
      g1.reshape(1, N), b1.reshape(1, N), g2.reshape(1, N), b2.reshape(1, N))


# ------------------------------ DecoderLayer ----------------------------------

def decoder_layer_forward(params, dec_inputs, attn_mask=None, *, causal=False):
    """dec_inputs: [B, L, d_embedding]; attn_mask: bool [B, L, L] (True => masked out).

    If `causal=True`, the standard GPT "subsequent" mask is generated inside the attention
    kernel and `attn_mask` is ignored (no O(L^2) mask traffic from HBM).
    """
    B, L, E = dec_inputs.shape
    x2d = dec_inputs.reshape(B * L, E)

    # Fused QKV projection; fold 1/sqrt(d_k) into the Q weights/bias (zero runtime cost).
    scale = jnp.float32(1.0 / math.sqrt(D_K))
    W_qkv = jnp.concatenate([params["W_Q"] * scale, params["W_K"], params["W_V"]], axis=1)
    b_qkv = jnp.concatenate([params["b_Q"] * scale, params["b_K"], params["b_V"]])
    qkv = linear(x2d, W_qkv, b_qkv)                       # [B*L, 3*H*D]
    qkv3d = qkv.reshape(B, L, 3 * N_HEADS * D_K)          # free reshape, no transpose

    if causal:
        ctx = sdpa_context(qkv3d, causal=True)
    else:
        assert attn_mask is not None
        ctx = sdpa_context(qkv3d, attn_mask.astype(jnp.int8), causal=False)
    ctx2d = ctx.reshape(B * L, N_HEADS * D_V)              # free reshape, no transpose

    # W_O projection + MHA LayerNorm(output + residual) + DecoderLayer.norm1 fused.
    n1 = linear_dual_ln(ctx2d, params["W_O"], params["b_O"], x2d,
                        params["g_attn"], params["b_attn"], params["g_n1"], params["b_n1"])

    # PoswiseFeedForwardNet (Conv1d kernel_size=1 == Linear over features).
    h = linear(n1, params["W_F1"], params["b_F1"], relu=True)
    # FFN second projection + FFN LayerNorm(output + residual) + DecoderLayer.norm2 fused.
    out = linear_dual_ln(h, params["W_F2"], params["b_F2"], n1,
                         params["g_ffn"], params["b_ffn"], params["g_n2"], params["b_n2"])
    return out.reshape(B, L, E)


def init_decoder_layer_params(key):
    ks = jax.random.split(key, 20)

    def w(kk, fan_in, fan_out):
        return jax.random.normal(kk, (fan_in, fan_out), jnp.float32) / math.sqrt(fan_in)

    def bv(kk, n):
        return 0.01 * jax.random.normal(kk, (n,), jnp.float32)

    def lng(kk, n):
        return 1.0 + 0.1 * jax.random.normal(kk, (n,), jnp.float32)

    def lnb(kk, n):
        return 0.1 * jax.random.normal(kk, (n,), jnp.float32)

    return dict(
        W_Q=w(ks[0], D_EMBEDDING, N_HEADS * D_K), b_Q=bv(ks[1], N_HEADS * D_K),
        W_K=w(ks[2], D_EMBEDDING, N_HEADS * D_K), b_K=bv(ks[3], N_HEADS * D_K),
        W_V=w(ks[4], D_EMBEDDING, N_HEADS * D_V), b_V=bv(ks[5], N_HEADS * D_V),
        W_O=w(ks[6], N_HEADS * D_V, D_EMBEDDING), b_O=bv(ks[7], D_EMBEDDING),
        W_F1=w(ks[8], D_EMBEDDING, D_FF),         b_F1=bv(ks[9], D_FF),
        W_F2=w(ks[10], D_FF, D_EMBEDDING),        b_F2=bv(ks[11], D_EMBEDDING),
        g_attn=lng(ks[12], D_EMBEDDING), b_attn=lnb(ks[13], D_EMBEDDING),
        g_n1=lng(ks[14], D_EMBEDDING),   b_n1=lnb(ks[15], D_EMBEDDING),
        g_ffn=lng(ks[16], D_EMBEDDING),  b_ffn=lnb(ks[17], D_EMBEDDING),
        g_n2=lng(ks[18], D_EMBEDDING),   b_n2=lnb(ks[19], D_EMBEDDING),
    )


# ------------------------------ pure-JAX reference ----------------------------

def _reference_decoder_layer(params, dec_inputs, attn_mask):
    x = dec_inputs
    B, L, _ = x.shape

    def lin(t, W, b):
        return t @ W + b

    def ln(t, g, b):
        mu = jnp.mean(t, axis=-1, keepdims=True)
        var = jnp.mean((t - mu) ** 2, axis=-1, keepdims=True)
        return (t - mu) * lax.rsqrt(var + LN_EPS) * g + b

    q = lin(x, params["W_Q"], params["b_Q"]).reshape(B, L, N_HEADS, D_K).transpose(0, 2, 1, 3)
    k = lin(x, params["W_K"], params["b_K"]).reshape(B, L, N_HEADS, D_K).transpose(0, 2, 1, 3)
    v = lin(x, params["W_V"], params["b_V"]).reshape(B, L, N_HEADS, D_V).transpose(0, 2, 1, 3)
    scores = jnp.einsum("bhqd,bhkd->bhqk", q, k) / math.sqrt(D_K)
    scores = jnp.where(attn_mask[:, None, :, :], -1e9, scores)
    wts = jax.nn.softmax(scores, axis=-1)
    ctx = jnp.einsum("bhqk,bhkd->bhqd", wts, v).transpose(0, 2, 1, 3).reshape(B, L, N_HEADS * D_V)
    attn_out = ln(lin(ctx, params["W_O"], params["b_O"]) + x, params["g_attn"], params["b_attn"])
    n1 = ln(x + attn_out, params["g_n1"], params["b_n1"])
    h = jax.nn.relu(lin(n1, params["W_F1"], params["b_F1"]))
    f = lin(h, params["W_F2"], params["b_F2"])
    ff = ln(f + n1, params["g_ffn"], params["b_ffn"])
    return ln(n1 + ff, params["g_n2"], params["b_n2"])


# ----------------------------------- main -------------------------------------

if __name__ == "__main__":
    key = jax.random.PRNGKey(0)
    kp, kx = jax.random.split(key)
    params = init_decoder_layer_params(kp)

    B, L = 2, 8
    dec_inputs = jax.random.normal(kx, (B, L, D_EMBEDDING), dtype=jnp.float32)
    # Causal ("subsequent") mask, True => masked out, as in the GPT decoder.
    attn_mask = jnp.broadcast_to(jnp.triu(jnp.ones((L, L), jnp.bool_), k=1), (B, L, L))

    ref = _reference_decoder_layer(params, dec_inputs, attn_mask)

    # Fast path: mask generated in-kernel (no O(L^2) HBM mask traffic).
    fwd_causal = jax.jit(functools.partial(decoder_layer_forward, causal=True))
    out = jax.block_until_ready(fwd_causal(params, dec_inputs))
    assert out.shape == (B, L, D_EMBEDDING)
    assert bool(jnp.all(jnp.isfinite(out)))
    err = float(jnp.max(jnp.abs(out - ref)))
    assert jnp.allclose(out, ref, atol=2e-3, rtol=2e-3), f"causal path mismatch, max abs err={err}"

    # General path: explicit mask streamed as int8 (module accepts arbitrary masks).
    fwd_masked = jax.jit(decoder_layer_forward)
    out2 = jax.block_until_ready(fwd_masked(params, dec_inputs, attn_mask))
    err2 = float(jnp.max(jnp.abs(out2 - ref)))
    assert jnp.allclose(out2, ref, atol=2e-3, rtol=2e-3), f"masked path mismatch, max abs err={err2}"

    print("KERNEL_OK")
</pallas_src>

<mosaic_0001>
module attributes {stable_mosaic.version = 11 : i64} {
  func.func @_attn_kernel(%arg0: i32, %arg1: i32, %arg2: i32, %arg3: memref<1x8x128xf32, #tpu.memory_space<vmem>>, %arg4: memref<1x8x128xf32, #tpu.memory_space<vmem>>, %arg5: memref<1x8x128xf32, #tpu.memory_space<vmem>>, %arg6: memref<1x8x128xf32, #tpu.memory_space<vmem>>) attributes {dimension_semantics = [#tpu.dimension_semantics<parallel>, #tpu.dimension_semantics<parallel>, #tpu.dimension_semantics<parallel>], iteration_bounds = array<i64: 2, 4, 1>, scalar_prefetch = 0 : i64, scratch_operands = 0 : i64, tpu.core_type = #tpu.core_type<tc>, window_params = [{transform_indices = @transform_0, window_bounds = array<i64: 1, 8, 128>}, {transform_indices = @transform_1, window_bounds = array<i64: 1, 8, 128>}, {transform_indices = @transform_2, window_bounds = array<i64: 1, 8, 128>}, {transform_indices = @transform_3, window_bounds = array<i64: 1, 8, 128>}]} {
    %c8_i32 = arith.constant 8 : i32
    %0 = arith.muli %arg2, %c8_i32 : i32
    %1 = tpu.iota {dimensions = array<i32: 0>} : vector<8x8xi32>
    %2 = vector.broadcast %0 : i32 to vector<8x8xi32>
    %3 = arith.addi %2, %1 : vector<8x8xi32>
    %4 = tpu.iota {dimensions = array<i32: 1>} : vector<8x8xi32>
    %5 = arith.cmpi sgt, %4, %3 : vector<8x8xi32>
    %c0 = arith.constant 0 : index
    %c0_0 = arith.constant 0 : index
    %c0_1 = arith.constant 0 : index
    %6 = vector.load %arg3[%c0, %c0_0, %c0_1] : memref<1x8x128xf32, #tpu.memory_space<vmem>>, vector<1x8x64xf32>
    %7 = vector.shape_cast %6 : vector<1x8x64xf32> to vector<8x64xf32>
    %c0_2 = arith.constant 0 : index
    %c0_3 = arith.constant 0 : index
    %c0_4 = arith.constant 0 : index
    %8 = vector.load %arg4[%c0_2, %c0_3, %c0_4] : memref<1x8x128xf32, #tpu.memory_space<vmem>>, vector<1x8x64xf32>
    %9 = vector.shape_cast %8 : vector<1x8x64xf32> to vector<8x64xf32>
    %c0_5 = arith.constant 0 : index
    %c0_6 = arith.constant 0 : index
    %c0_7 = arith.constant 0 : index
    %10 = vector.load %arg5[%c0_5, %c0_6, %c0_7] : memref<1x8x128xf32, #tpu.memory_space<vmem>>, vector<1x8x64xf32>
    %11 = vector.shape_cast %10 : vector<1x8x64xf32> to vector<8x64xf32>
    %cst = arith.constant dense<0.000000e+00> : vector<8x8xf32>
    %12 = tpu.matmul %7, %9, %cst {dimension_numbers = #tpu.dot_dimension_numbers<[1], [1], [0], [0], [0, 0, 1, 0], [], []>} : vector<8x64xf32>, vector<8x64xf32>, vector<8x8xf32> -> vector<8x8xf32>
    %cst_8 = arith.constant -1.000000e+09 : f32
    %13 = vector.broadcast %cst_8 : f32 to vector<8x8xf32>
    %14 = arith.select %5, %13, %12 : vector<8x8xi1>, vector<8x8xf32>
    %cst_9 = arith.constant dense<0xFF800000> : vector<8xf32>
    %15 = vector.multi_reduction <maximumf>, %14, %cst_9 [1] : vector<8x8xf32> to vector<8xf32>
    %16 = vector.shape_cast %15 : vector<8xf32> to vector<8x1xf32>
    %17 = vector.broadcast %16 : vector<8x1xf32> to vector<8x8xf32>
    %18 = arith.subf %14, %17 : vector<8x8xf32>
    %19 = math.exp %18 : vector<8x8xf32>
    %cst_10 = arith.constant dense<0.000000e+00> : vector<8xf32>
    %20 = vector.multi_reduction <add>, %19, %cst_10 [1] : vector<8x8xf32> to vector<8xf32>
    %21 = vector.shape_cast %20 : vector<8xf32> to vector<8x1xf32>
    %22 = tpu.reciprocal %21 {approx = true} : vector<8x1xf32> -> vector<8x1xf32>
    %23 = vector.broadcast %22 : vector<8x1xf32> to vector<8x8xf32>
    %24 = arith.mulf %19, %23 : vector<8x8xf32>
    %cst_11 = arith.constant dense<0.000000e+00> : vector<8x64xf32>
    %25 = tpu.matmul %24, %11, %cst_11 {dimension_numbers = #tpu.dot_dimension_numbers<[1], [0], [0], [1], [0, 0, 1, 1], [], []>} : vector<8x8xf32>, vector<8x64xf32>, vector<8x64xf32> -> vector<8x64xf32>
    %c0_12 = arith.constant 0 : index
    %c0_13 = arith.constant 0 : index
    %c64 = arith.constant 64 : index
    %26 = vector.load %arg3[%c0_12, %c0_13, %c64] : memref<1x8x128xf32, #tpu.memory_space<vmem>>, vector<1x8x64xf32>
    %27 = vector.shape_cast %26 : vector<1x8x64xf32> to vector<8x64xf32>
    %c0_14 = arith.constant 0 : index
    %c0_15 = arith.constant 0 : index
    %c64_16 = arith.constant 64 : index
    %28 = vector.load %arg4[%c0_14, %c0_15, %c64_16] : memref<1x8x128xf32, #tpu.memory_space<vmem>>, vector<1x8x64xf32>
    %29 = vector.shape_cast %28 : vector<1x8x64xf32> to vector<8x64xf32>
    %c0_17 = arith.constant 0 : index
    %c0_18 = arith.constant 0 : index
    %c64_19 = arith.constant 64 : index
    %30 = vector.load %arg5[%c0_17, %c0_18, %c64_19] : memref<1x8x128xf32, #tpu.memory_space<vmem>>, vector<1x8x64xf32>
    %31 = vector.shape_cast %30 : vector<1x8x64xf32> to vector<8x64xf32>
    %cst_20 = arith.constant dense<0.000000e+00> : vector<8x8xf32>
    %32 = tpu.matmul %27, %29, %cst_20 {dimension_numbers = #tpu.dot_dimension_numbers<[1], [1], [0], [0], [0, 0, 1, 0], [], []>} : vector<8x64xf32>, vector<8x64xf32>, vector<8x8xf32> -> vector<8x8xf32>
    %cst_21 = arith.constant -1.000000e+09 : f32
    %33 = vector.broadcast %cst_21 : f32 to vector<8x8xf32>
    %34 = arith.select %5, %33, %32 : vector<8x8xi1>, vector<8x8xf32>
    %cst_22 = arith.constant dense<0xFF800000> : vector<8xf32>
    %35 = vector.multi_reduction <maximumf>, %34, %cst_22 [1] : vector<8x8xf32> to vector<8xf32>
    %36 = vector.shape_cast %35 : vector<8xf32> to vector<8x1xf32>
    %37 = vector.broadcast %36 : vector<8x1xf32> to vector<8x8xf32>
    %38 = arith.subf %34, %37 : vector<8x8xf32>
    %39 = math.exp %38 : vector<8x8xf32>
    %cst_23 = arith.constant dense<0.000000e+00> : vector<8xf32>
    %40 = vector.multi_reduction <add>, %39, %cst_23 [1] : vector<8x8xf32> to vector<8xf32>
    %41 = vector.shape_cast %40 : vector<8xf32> to vector<8x1xf32>
    %42 = tpu.reciprocal %41 {approx = true} : vector<8x1xf32> -> vector<8x1xf32>
    %43 = vector.broadcast %42 : vector<8x1xf32> to vector<8x8xf32>
    %44 = arith.mulf %39, %43 : vector<8x8xf32>
    %cst_24 = arith.constant dense<0.000000e+00> : vector<8x64xf32>
    %45 = tpu.matmul %44, %31, %cst_24 {dimension_numbers = #tpu.dot_dimension_numbers<[1], [0], [0], [1], [0, 0, 1, 1], [], []>} : vector<8x8xf32>, vector<8x64xf32>, vector<8x64xf32> -> vector<8x64xf32>
    %46 = tpu.concatenate %25, %45 in 1 : vector<8x64xf32>, vector<8x64xf32> -> vector<8x128xf32>
    %c0_25 = arith.constant 0 : index
    %c0_26 = arith.constant 0 : index
    %c0_27 = arith.constant 0 : index
    %47 = vector.load %arg6[%c0_25, %c0_26, %c0_27] : memref<1x8x128xf32, #tpu.memory_space<vmem>>, vector<1x8x128xf32>
    %48 = vector.shape_cast %47 : vector<1x8x128xf32> to vector<8x128xf32>
    %49 = vector.shape_cast %46 : vector<8x128xf32> to vector<1x8x128xf32>
    tpu.vector_store %arg6[%c0_25, %c0_26, %c0_27], %49 {strides = array<i32>} : memref<1x8x128xf32, #tpu.memory_space<vmem>>, vector<1x8x128xf32>,
    return
  }
  func.func @transform_0(%arg0: i32, %arg1: i32, %arg2: i32) -> (i32, i32, i32) {
    %c0_i32 = arith.constant 0 : i32
    return %arg0, %arg2, %arg1 : i32, i32, i32
  }
  func.func @transform_1(%arg0: i32, %arg1: i32, %arg2: i32) -> (i32, i32, i32) {
    %c4_i32 = arith.constant 4 : i32
    %0 = arith.addi %c4_i32, %arg1 : i32
    %c0_i32 = arith.constant 0 : i32
    %c0_i32_0 = arith.constant 0 : i32
    return %arg0, %c0_i32, %0 : i32, i32, i32
  }
  func.func @transform_2(%arg0: i32, %arg1: i32, %arg2: i32) -> (i32, i32, i32) {
    %c8_i32 = arith.constant 8 : i32
    %0 = arith.addi %c8_i32, %arg1 : i32
    %c0_i32 = arith.constant 0 : i32
    %c0_i32_0 = arith.constant 0 : i32
    return %arg0, %c0_i32, %0 : i32, i32, i32
  }
  func.func @transform_3(%arg0: i32, %arg1: i32, %arg2: i32) -> (i32, i32, i32) {
    %c0_i32 = arith.constant 0 : i32
    return %arg0, %arg2, %arg1 : i32, i32, i32
  }
}

module attributes {stable_mosaic.version = 11 : i64} {
  func.func @_linear_kernel(%arg0: i32, %arg1: memref<16x512xf32, #tpu.memory_space<vmem>>, %arg2: memref<512x1536xf32, #tpu.memory_space<vmem>>, %arg3: memref<1x1536xf32, #tpu.memory_space<vmem>>, %arg4: memref<16x1536xf32, #tpu.memory_space<vmem>>) attributes {dimension_semantics = [#tpu.dimension_semantics<parallel>], iteration_bounds = array<i64: 1>, scalar_prefetch = 0 : i64, scratch_operands = 0 : i64, tpu.core_type = #tpu.core_type<tc>, window_params = [{transform_indices = @transform_0, window_bounds = array<i64: 16, 512>}, {pipeline_mode = #tpu.pipeline_mode<synchronous>, transform_indices = @transform_1, window_bounds = array<i64: 512, 1536>}, {pipeline_mode = #tpu.pipeline_mode<synchronous>, transform_indices = @transform_2, window_bounds = array<i64: 1, 1536>}, {transform_indices = @transform_3, window_bounds = array<i64: 16, 1536>}]} {
    %c0 = arith.constant 0 : index
    %c0_0 = arith.constant 0 : index
    %0 = vector.load %arg1[%c0, %c0_0] : memref<16x512xf32, #tpu.memory_space<vmem>>, vector<16x512xf32>
    %c0_1 = arith.constant 0 : index
    %c0_2 = arith.constant 0 : index
    %1 = vector.load %arg2[%c0_1, %c0_2] : memref<512x1536xf32, #tpu.memory_space<vmem>>, vector<512x1536xf32>
    %cst = arith.constant dense<0.000000e+00> : vector<16x1536xf32>
    %2 = tpu.matmul %0, %1, %cst {dimension_numbers = #tpu.dot_dimension_numbers<[1], [0], [0], [1], [0, 0, 1, 1], [], []>} : vector<16x512xf32>, vector<512x1536xf32>, vector<16x1536xf32> -> vector<16x1536xf32>
    %c0_3 = arith.constant 0 : index
    %c0_4 = arith.constant 0 : index
    %3 = vector.load %arg3[%c0_3, %c0_4] : memref<1x1536xf32, #tpu.memory_space<vmem>>, vector<1x1536xf32>
    %4 = vector.broadcast %3 : vector<1x1536xf32> to vector<16x1536xf32>
    %5 = arith.addf %2, %4 : vector<16x1536xf32>
    %c0_5 = arith.constant 0 : index
    %c0_6 = arith.constant 0 : index
    %6 = vector.load %arg4[%c0_5, %c0_6] : memref<16x1536xf32, #tpu.memory_space<vmem>>, vector<16x1536xf32>
    tpu.vector_store %arg4[%c0_5, %c0_6], %5 {strides = array<i32>} : memref<16x1536xf32, #tpu.memory_space<vmem>>, vector<16x1536xf32>,
    return
  }
  func.func @transform_0(%arg0: i32) -> (i32, i32) {
    %c0_i32 = arith.constant 0 : i32
    %c0_i32_0 = arith.constant 0 : i32
    return %arg0, %c0_i32 : i32, i32
  }
  func.func @transform_1(%arg0: i32) -> (i32, i32) {
    %c0_i32 = arith.constant 0 : i32
    %c0_i32_0 = arith.constant 0 : i32
    %c0_i32_1 = arith.constant 0 : i32
    return %c0_i32, %c0_i32_0 : i32, i32
  }
  func.func @transform_2(%arg0: i32) -> (i32, i32) {
    %c0_i32 = arith.constant 0 : i32
    %c0_i32_0 = arith.constant 0 : i32
    %c0_i32_1 = arith.constant 0 : i32
    return %c0_i32, %c0_i32_0 : i32, i32
  }
  func.func @transform_3(%arg0: i32) -> (i32, i32) {
    %c0_i32 = arith.constant 0 : i32
    %c0_i32_0 = arith.constant 0 : i32
    return %arg0, %c0_i32 : i32, i32
  }
}

module attributes {stable_mosaic.version = 11 : i64} {
  func.func @_linear_dual_ln_kernel(%arg0: i32, %arg1: memref<16x512xf32, #tpu.memory_space<vmem>>, %arg2: memref<512x512xf32, #tpu.memory_space<vmem>>, %arg3: memref<1x512xf32, #tpu.memory_space<vmem>>, %arg4: memref<16x512xf32, #tpu.memory_space<vmem>>, %arg5: memref<1x512xf32, #tpu.memory_space<vmem>>, %arg6: memref<1x512xf32, #tpu.memory_space<vmem>>, %arg7: memref<1x512xf32, #tpu.memory_space<vmem>>, %arg8: memref<1x512xf32, #tpu.memory_space<vmem>>, %arg9: memref<16x512xf32, #tpu.memory_space<vmem>>) attributes {dimension_semantics = [#tpu.dimension_semantics<parallel>], iteration_bounds = array<i64: 1>, scalar_prefetch = 0 : i64, scratch_operands = 0 : i64, tpu.core_type = #tpu.core_type<tc>, window_params = [{transform_indices = @transform_0, window_bounds = array<i64: 16, 512>}, {pipeline_mode = #tpu.pipeline_mode<synchronous>, transform_indices = @transform_1, window_bounds = array<i64: 512, 512>}, {pipeline_mode = #tpu.pipeline_mode<synchronous>, transform_indices = @transform_2, window_bounds = array<i64: 1, 512>}, {transform_indices = @transform_3, window_bounds = array<i64: 16, 512>}, {pipeline_mode = #tpu.pipeline_mode<synchronous>, transform_indices = @transform_4, window_bounds = array<i64: 1, 512>}, {pipeline_mode = #tpu.pipeline_mode<synchronous>, transform_indices = @transform_5, window_bounds = array<i64: 1, 512>}, {pipeline_mode = #tpu.pipeline_mode<synchronous>, transform_indices = @transform_6, window_bounds = array<i64: 1, 512>}, {pipeline_mode = #tpu.pipeline_mode<synchronous>, transform_indices = @transform_7, window_bounds = array<i64: 1, 512>}, {transform_indices = @transform_8, window_bounds = array<i64: 16, 512>}]} {
    %c0 = arith.constant 0 : index
    %c0_0 = arith.constant 0 : index
    %0 = vector.load %arg1[%c0, %c0_0] : memref<16x512xf32, #tpu.memory_space<vmem>>, vector<16x512xf32>
    %c0_1 = arith.constant 0 : index
    %c0_2 = arith.constant 0 : index
    %1 = vector.load %arg2[%c0_1, %c0_2] : memref<512x512xf32, #tpu.memory_space<vmem>>, vector<512x512xf32>
    %cst = arith.constant dense<0.000000e+00> : vector<16x512xf32>
    %2 = tpu.matmul %0, %1, %cst {dimension_numbers = #tpu.dot_dimension_numbers<[1], [0], [0], [1], [0, 0, 1, 1], [], []>} : vector<16x512xf32>, vector<512x512xf32>, vector<16x512xf32> -> vector<16x512xf32>
    %c0_3 = arith.constant 0 : index
    %c0_4 = arith.constant 0 : index
    %3 = vector.load %arg3[%c0_3, %c0_4] : memref<1x512xf32, #tpu.memory_space<vmem>>, vector<1x512xf32>
    %4 = vector.broadcast %3 : vector<1x512xf32> to vector<16x512xf32>
    %5 = arith.addf %2, %4 : vector<16x512xf32>
    %c0_5 = arith.constant 0 : index
    %c0_6 = arith.constant 0 : index
    %6 = vector.load %arg4[%c0_5, %c0_6] : memref<16x512xf32, #tpu.memory_space<vmem>>, vector<16x512xf32>
    %7 = arith.addf %5, %6 : vector<16x512xf32>
    %c0_7 = arith.constant 0 : index
    %c0_8 = arith.constant 0 : index
    %8 = vector.load %arg5[%c0_7, %c0_8] : memref<1x512xf32, #tpu.memory_space<vmem>>, vector<1x512xf32>
    %c0_9 = arith.constant 0 : index
    %c0_10 = arith.constant 0 : index
    %9 = vector.load %arg6[%c0_9, %c0_10] : memref<1x512xf32, #tpu.memory_space<vmem>>, vector<1x512xf32>
    %cst_11 = arith.constant dense<0.000000e+00> : vector<16xf32>
    %10 = vector.multi_reduction <add>, %7, %cst_11 [1] : vector<16x512xf32> to vector<16xf32>
    %11 = vector.shape_cast %10 : vector<16xf32> to vector<16x1xf32>
    %cst_12 = arith.constant 5.120000e+02 : f32
    %12 = vector.broadcast %cst_12 : f32 to vector<16x1xf32>
    %13 = arith.divf %11, %12 : vector<16x1xf32>
    %14 = vector.broadcast %13 : vector<16x1xf32> to vector<16x512xf32>
    %15 = arith.subf %7, %14 : vector<16x512xf32>
    %16 = arith.mulf %15, %15 : vector<16x512xf32>
    %cst_13 = arith.constant dense<0.000000e+00> : vector<16xf32>
    %17 = vector.multi_reduction <add>, %16, %cst_13 [1] : vector<16x512xf32> to vector<16xf32>
    %18 = vector.shape_cast %17 : vector<16xf32> to vector<16x1xf32>
    %cst_14 = arith.constant 5.120000e+02 : f32
    %19 = vector.broadcast %cst_14 : f32 to vector<16x1xf32>
    %20 = arith.divf %18, %19 : vector<16x1xf32>
    %cst_15 = arith.constant 9.99999974E-6 : f32
    %21 = vector.broadcast %cst_15 : f32 to vector<16x1xf32>
    %22 = arith.addf %20, %21 : vector<16x1xf32>
    %23 = math.rsqrt %22 : vector<16x1xf32>
    %24 = vector.broadcast %23 : vector<16x1xf32> to vector<16x512xf32>
    %25 = arith.mulf %15, %24 : vector<16x512xf32>
    %26 = vector.broadcast %8 : vector<1x512xf32> to vector<16x512xf32>
    %27 = arith.mulf %25, %26 : vector<16x512xf32>
    %28 = vector.broadcast %9 : vector<1x512xf32> to vector<16x512xf32>
    %29 = arith.addf %27, %28 : vector<16x512xf32>
    %30 = arith.addf %6, %29 : vector<16x512xf32>
    %c0_16 = arith.constant 0 : index
    %c0_17 = arith.constant 0 : index
    %31 = vector.load %arg7[%c0_16, %c0_17] : memref<1x512xf32, #tpu.memory_space<vmem>>, vector<1x512xf32>
    %c0_18 = arith.constant 0 : index
    %c0_19 = arith.constant 0 : index
    %32 = vector.load %arg8[%c0_18, %c0_19] : memref<1x512xf32, #tpu.memory_space<vmem>>, vector<1x512xf32>
    %cst_20 = arith.constant dense<0.000000e+00> : vector<16xf32>
    %33 = vector.multi_reduction <add>, %30, %cst_20 [1] : vector<16x512xf32> to vector<16xf32>
    %34 = vector.shape_cast %33 : vector<16xf32> to vector<16x1xf32>
    %cst_21 = arith.constant 5.120000e+02 : f32
    %35 = vector.broadcast %cst_21 : f32 to vector<16x1xf32>
    %36 = arith.divf %34, %35 : vector<16x1xf32>
    %37 = vector.broadcast %36 : vector<16x1xf32> to vector<16x512xf32>
    %38 = arith.subf %30, %37 : vector<16x512xf32>
    %39 = arith.mulf %38, %38 : vector<16x512xf32>
    %cst_22 = arith.constant dense<0.000000e+00> : vector<16xf32>
    %40 = vector.multi_reduction <add>, %39, %cst_22 [1] : vector<16x512xf32> to vector<16xf32>
    %41 = vector.shape_cast %40 : vector<16xf32> to vector<16x1xf32>
    %cst_23 = arith.constant 5.120000e+02 : f32
    %42 = vector.broadcast %cst_23 : f32 to vector<16x1xf32>
    %43 = arith.divf %41, %42 : vector<16x1xf32>
    %cst_24 = arith.constant 9.99999974E-6 : f32
    %44 = vector.broadcast %cst_24 : f32 to vector<16x1xf32>
    %45 = arith.addf %43, %44 : vector<16x1xf32>
    %46 = math.rsqrt %45 : vector<16x1xf32>
    %47 = vector.broadcast %46 : vector<16x1xf32> to vector<16x512xf32>
    %48 = arith.mulf %38, %47 : vector<16x512xf32>
    %49 = vector.broadcast %31 : vector<1x512xf32> to vector<16x512xf32>
    %50 = arith.mulf %48, %49 : vector<16x512xf32>
    %51 = vector.broadcast %32 : vector<1x512xf32> to vector<16x512xf32>
    %52 = arith.addf %50, %51 : vector<16x512xf32>
    %c0_25 = arith.constant 0 : index
    %c0_26 = arith.constant 0 : index
    %53 = vector.load %arg9[%c0_25, %c0_26] : memref<16x512xf32, #tpu.memory_space<vmem>>, vector<16x512xf32>
    tpu.vector_store %arg9[%c0_25, %c0_26], %52 {strides = array<i32>} : memref<16x512xf32, #tpu.memory_space<vmem>>, vector<16x512xf32>,
    return
  }
  func.func @transform_0(%arg0: i32) -> (i32, i32) {
    %c0_i32 = arith.constant 0 : i32
    %c0_i32_0 = arith.constant 0 : i32
    return %arg0, %c0_i32 : i32, i32
  }
  func.func @transform_1(%arg0: i32) -> (i32, i32) {
    %c0_i32 = arith.constant 0 : i32
    %c0_i32_0 = arith.constant 0 : i32
    %c0_i32_1 = arith.constant 0 : i32
    return %c0_i32, %c0_i32_0 : i32, i32
  }
  func.func @transform_2(%arg0: i32) -> (i32, i32) {
    %c0_i32 = arith.constant 0 : i32
    %c0_i32_0 = arith.constant 0 : i32
    %c0_i32_1 = arith.constant 0 : i32
    return %c0_i32, %c0_i32_0 : i32, i32
  }
  func.func @transform_3(%arg0: i32) -> (i32, i32) {
    %c0_i32 = arith.constant 0 : i32
    %c0_i32_0 = arith.constant 0 : i32
    return %arg0, %c0_i32 : i32, i32
  }
  func.func @transform_4(%arg0: i32) -> (i32, i32) {
    %c0_i32 = arith.constant 0 : i32
    %c0_i32_0 = arith.constant 0 : i32
    %c0_i32_1 = arith.constant 0 : i32
    return %c0_i32, %c0_i32_0 : i32, i32
  }
  func.func @transform_5(%arg0: i32) -> (i32, i32) {
    %c0_i32 = arith.constant 0 : i32
    %c0_i32_0 = arith.constant 0 : i32
    %c0_i32_1 = arith.constant 0 : i32
    return %c0_i32, %c0_i32_0 : i32, i32
  }
  func.func @transform_6(%arg0: i32) -> (i32, i32) {
    %c0_i32 = arith.constant 0 : i32
    %c0_i32_0 = arith.constant 0 : i32
    %c0_i32_1 = arith.constant 0 : i32
    return %c0_i32, %c0_i32_0 : i32, i32
  }
  func.func @transform_7(%arg0: i32) -> (i32, i32) {
    %c0_i32 = arith.constant 0 : i32
    %c0_i32_0 = arith.constant 0 : i32
    %c0_i32_1 = arith.constant 0 : i32
    return %c0_i32, %c0_i32_0 : i32, i32
  }
  func.func @transform_8(%arg0: i32) -> (i32, i32) {
    %c0_i32 = arith.constant 0 : i32
    %c0_i32_0 = arith.constant 0 : i32
    return %arg0, %c0_i32 : i32, i32
  }
}

module attributes {stable_mosaic.version = 11 : i64} {
  func.func @_linear_kernel(%arg0: i32, %arg1: memref<16x512xf32, #tpu.memory_space<vmem>>, %arg2: memref<512x2048xf32, #tpu.memory_space<vmem>>, %arg3: memref<1x2048xf32, #tpu.memory_space<vmem>>, %arg4: memref<16x2048xf32, #tpu.memory_space<vmem>>) attributes {dimension_semantics = [#tpu.dimension_semantics<parallel>], iteration_bounds = array<i64: 1>, scalar_prefetch = 0 : i64, scratch_operands = 0 : i64, tpu.core_type = #tpu.core_type<tc>, window_params = [{transform_indices = @transform_0, window_bounds = array<i64: 16, 512>}, {pipeline_mode = #tpu.pipeline_mode<synchronous>, transform_indices = @transform_1, window_bounds = array<i64: 512, 2048>}, {pipeline_mode = #tpu.pipeline_mode<synchronous>, transform_indices = @transform_2, window_bounds = array<i64: 1, 2048>}, {transform_indices = @transform_3, window_bounds = array<i64: 16, 2048>}]} {
    %c0 = arith.constant 0 : index
    %c0_0 = arith.constant 0 : index
    %0 = vector.load %arg1[%c0, %c0_0] : memref<16x512xf32, #tpu.memory_space<vmem>>, vector<16x512xf32>
    %c0_1 = arith.constant 0 : index
    %c0_2 = arith.constant 0 : index
    %1 = vector.load %arg2[%c0_1, %c0_2] : memref<512x2048xf32, #tpu.memory_space<vmem>>, vector<512x2048xf32>
    %cst = arith.constant dense<0.000000e+00> : vector<16x2048xf32>
    %2 = tpu.matmul %0, %1, %cst {dimension_numbers = #tpu.dot_dimension_numbers<[1], [0], [0], [1], [0, 0, 1, 1], [], []>} : vector<16x512xf32>, vector<512x2048xf32>, vector<16x2048xf32> -> vector<16x2048xf32>
    %c0_3 = arith.constant 0 : index
    %c0_4 = arith.constant 0 : index
    %3 = vector.load %arg3[%c0_3, %c0_4] : memref<1x2048xf32, #tpu.memory_space<vmem>>, vector<1x2048xf32>
    %4 = vector.broadcast %3 : vector<1x2048xf32> to vector<16x2048xf32>
    %5 = arith.addf %2, %4 : vector<16x2048xf32>
    %cst_5 = arith.constant 0.000000e+00 : f32
    %6 = vector.broadcast %cst_5 : f32 to vector<16x2048xf32>
    %7 = arith.maximumf %5, %6 : vector<16x2048xf32>
    %c0_6 = arith.constant 0 : index
    %c0_7 = arith.constant 0 : index
    %8 = vector.load %arg4[%c0_6, %c0_7] : memref<16x2048xf32, #tpu.memory_space<vmem>>, vector<16x2048xf32>
    tpu.vector_store %arg4[%c0_6, %c0_7], %7 {strides = array<i32>} : memref<16x2048xf32, #tpu.memory_space<vmem>>, vector<16x2048xf32>,
    return
  }
  func.func @transform_0(%arg0: i32) -> (i32, i32) {
    %c0_i32 = arith.constant 0 : i32
    %c0_i32_0 = arith.constant 0 : i32
    return %arg0, %c0_i32 : i32, i32
  }
  func.func @transform_1(%arg0: i32) -> (i32, i32) {
    %c0_i32 = arith.constant 0 : i32
    %c0_i32_0 = arith.constant 0 : i32
    %c0_i32_1 = arith.constant 0 : i32
    return %c0_i32, %c0_i32_0 : i32, i32
  }
  func.func @transform_2(%arg0: i32) -> (i32, i32) {
    %c0_i32 = arith.constant 0 : i32
    %c0_i32_0 = arith.constant 0 : i32
    %c0_i32_1 = arith.constant 0 : i32
    return %c0_i32, %c0_i32_0 : i32, i32
  }
  func.func @transform_3(%arg0: i32) -> (i32, i32) {
    %c0_i32 = arith.constant 0 : i32
    %c0_i32_0 = arith.constant 0 : i32
    return %arg0, %c0_i32 : i32, i32
  }
}

module attributes {stable_mosaic.version = 11 : i64} {
  func.func @_linear_dual_ln_kernel(%arg0: i32, %arg1: memref<16x2048xf32, #tpu.memory_space<vmem>>, %arg2: memref<2048x512xf32, #tpu.memory_space<vmem>>, %arg3: memref<1x512xf32, #tpu.memory_space<vmem>>, %arg4: memref<16x512xf32, #tpu.memory_space<vmem>>, %arg5: memref<1x512xf32, #tpu.memory_space<vmem>>, %arg6: memref<1x512xf32, #tpu.memory_space<vmem>>, %arg7: memref<1x512xf32, #tpu.memory_space<vmem>>, %arg8: memref<1x512xf32, #tpu.memory_space<vmem>>, %arg9: memref<16x512xf32, #tpu.memory_space<vmem>>) attributes {dimension_semantics = [#tpu.dimension_semantics<parallel>], iteration_bounds = array<i64: 1>, scalar_prefetch = 0 : i64, scratch_operands = 0 : i64, tpu.core_type = #tpu.core_type<tc>, window_params = [{transform_indices = @transform_0, window_bounds = array<i64: 16, 2048>}, {pipeline_mode = #tpu.pipeline_mode<synchronous>, transform_indices = @transform_1, window_bounds = array<i64: 2048, 512>}, {pipeline_mode = #tpu.pipeline_mode<synchronous>, transform_indices = @transform_2, window_bounds = array<i64: 1, 512>}, {transform_indices = @transform_3, window_bounds = array<i64: 16, 512>}, {pipeline_mode = #tpu.pipeline_mode<synchronous>, transform_indices = @transform_4, window_bounds = array<i64: 1, 512>}, {pipeline_mode = #tpu.pipeline_mode<synchronous>, transform_indices = @transform_5, window_bounds = array<i64: 1, 512>}, {pipeline_mode = #tpu.pipeline_mode<synchronous>, transform_indices = @transform_6, window_bounds = array<i64: 1, 512>}, {pipeline_mode = #tpu.pipeline_mode<synchronous>, transform_indices = @transform_7, window_bounds = array<i64: 1, 512>}, {transform_indices = @transform_8, window_bounds = array<i64: 16, 512>}]} {
    %c0 = arith.constant 0 : index
    %c0_0 = arith.constant 0 : index
    %0 = vector.load %arg1[%c0, %c0_0] : memref<16x2048xf32, #tpu.memory_space<vmem>>, vector<16x2048xf32>
    %c0_1 = arith.constant 0 : index
    %c0_2 = arith.constant 0 : index
    %1 = vector.load %arg2[%c0_1, %c0_2] : memref<2048x512xf32, #tpu.memory_space<vmem>>, vector<2048x512xf32>
    %cst = arith.constant dense<0.000000e+00> : vector<16x512xf32>
    %2 = tpu.matmul %0, %1, %cst {dimension_numbers = #tpu.dot_dimension_numbers<[1], [0], [0], [1], [0, 0, 1, 1], [], []>} : vector<16x2048xf32>, vector<2048x512xf32>, vector<16x512xf32> -> vector<16x512xf32>
    %c0_3 = arith.constant 0 : index
    %c0_4 = arith.constant 0 : index
    %3 = vector.load %arg3[%c0_3, %c0_4] : memref<1x512xf32, #tpu.memory_space<vmem>>, vector<1x512xf32>
    %4 = vector.broadcast %3 : vector<1x512xf32> to vector<16x512xf32>
    %5 = arith.addf %2, %4 : vector<16x512xf32>
    %c0_5 = arith.constant 0 : index
    %c0_6 = arith.constant 0 : index
    %6 = vector.load %arg4[%c0_5, %c0_6] : memref<16x512xf32, #tpu.memory_space<vmem>>, vector<16x512xf32>
    %7 = arith.addf %5, %6 : vector<16x512xf32>
    %c0_7 = arith.constant 0 : index
    %c0_8 = arith.constant 0 : index
    %8 = vector.load %arg5[%c0_7, %c0_8] : memref<1x512xf32, #tpu.memory_space<vmem>>, vector<1x512xf32>
    %c0_9 = arith.constant 0 : index
    %c0_10 = arith.constant 0 : index
    %9 = vector.load %arg6[%c0_9, %c0_10] : memref<1x512xf32, #tpu.memory_space<vmem>>, vector<1x512xf32>
    %cst_11 = arith.constant dense<0.000000e+00> : vector<16xf32>
    %10 = vector.multi_reduction <add>, %7, %cst_11 [1] : vector<16x512xf32> to vector<16xf32>
    %11 = vector.shape_cast %10 : vector<16xf32> to vector<16x1xf32>
    %cst_12 = arith.constant 5.120000e+02 : f32
    %12 = vector.broadcast %cst_12 : f32 to vector<16x1xf32>
    %13 = arith.divf %11, %12 : vector<16x1xf32>
    %14 = vector.broadcast %13 : vector<16x1xf32> to vector<16x512xf32>
    %15 = arith.subf %7, %14 : vector<16x512xf32>
    %16 = arith.mulf %15, %15 : vector<16x512xf32>
    %cst_13 = arith.constant dense<0.000000e+00> : vector<16xf32>
    %17 = vector.multi_reduction <add>, %16, %cst_13 [1] : vector<16x512xf32> to vector<16xf32>
    %18 = vector.shape_cast %17 : vector<16xf32> to vector<16x1xf32>
    %cst_14 = arith.constant 5.120000e+02 : f32
    %19 = vector.broadcast %cst_14 : f32 to vector<16x1xf32>
    %20 = arith.divf %18, %19 : vector<16x1xf32>
    %cst_15 = arith.constant 9.99999974E-6 : f32
    %21 = vector.broadcast %cst_15 : f32 to vector<16x1xf32>
    %22 = arith.addf %20, %21 : vector<16x1xf32>
    %23 = math.rsqrt %22 : vector<16x1xf32>
    %24 = vector.broadcast %23 : vector<16x1xf32> to vector<16x512xf32>
    %25 = arith.mulf %15, %24 : vector<16x512xf32>
    %26 = vector.broadcast %8 : vector<1x512xf32> to vector<16x512xf32>
    %27 = arith.mulf %25, %26 : vector<16x512xf32>
    %28 = vector.broadcast %9 : vector<1x512xf32> to vector<16x512xf32>
    %29 = arith.addf %27, %28 : vector<16x512xf32>
    %30 = arith.addf %6, %29 : vector<16x512xf32>
    %c0_16 = arith.constant 0 : index
    %c0_17 = arith.constant 0 : index
    %31 = vector.load %arg7[%c0_16, %c0_17] : memref<1x512xf32, #tpu.memory_space<vmem>>, vector<1x512xf32>
    %c0_18 = arith.constant 0 : index
    %c0_19 = arith.constant 0 : index
    %32 = vector.load %arg8[%c0_18, %c0_19] : memref<1x512xf32, #tpu.memory_space<vmem>>, vector<1x512xf32>
    %cst_20 = arith.constant dense<0.000000e+00> : vector<16xf32>
    %33 = vector.multi_reduction <add>, %30, %cst_20 [1] : vector<16x512xf32> to vector<16xf32>
    %34 = vector.shape_cast %33 : vector<16xf32> to vector<16x1xf32>
    %cst_21 = arith.constant 5.120000e+02 : f32
    %35 = vector.broadcast %cst_21 : f32 to vector<16x1xf32>
    %36 = arith.divf %34, %35 : vector<16x1xf32>
    %37 = vector.broadcast %36 : vector<16x1xf32> to vector<16x512xf32>
    %38 = arith.subf %30, %37 : vector<16x512xf32>
    %39 = arith.mulf %38, %38 : vector<16x512xf32>
    %cst_22 = arith.constant dense<0.000000e+00> : vector<16xf32>
    %40 = vector.multi_reduction <add>, %39, %cst_22 [1] : vector<16x512xf32> to vector<16xf32>
    %41 = vector.shape_cast %40 : vector<16xf32> to vector<16x1xf32>
    %cst_23 = arith.constant 5.120000e+02 : f32
    %42 = vector.broadcast %cst_23 : f32 to vector<16x1xf32>
    %43 = arith.divf %41, %42 : vector<16x1xf32>
    %cst_24 = arith.constant 9.99999974E-6 : f32
    %44 = vector.broadcast %cst_24 : f32 to vector<16x1xf32>
    %45 = arith.addf %43, %44 : vector<16x1xf32>
    %46 = math.rsqrt %45 : vector<16x1xf32>
    %47 = vector.broadcast %46 : vector<16x1xf32> to vector<16x512xf32>
    %48 = arith.mulf %38, %47 : vector<16x512xf32>
    %49 = vector.broadcast %31 : vector<1x512xf32> to vector<16x512xf32>
    %50 = arith.mulf %48, %49 : vector<16x512xf32>
    %51 = vector.broadcast %32 : vector<1x512xf32> to vector<16x512xf32>
    %52 = arith.addf %50, %51 : vector<16x512xf32>
    %c0_25 = arith.constant 0 : index
    %c0_26 = arith.constant 0 : index
    %53 = vector.load %arg9[%c0_25, %c0_26] : memref<16x512xf32, #tpu.memory_space<vmem>>, vector<16x512xf32>
    tpu.vector_store %arg9[%c0_25, %c0_26], %52 {strides = array<i32>} : memref<16x512xf32, #tpu.memory_space<vmem>>, vector<16x512xf32>,
    return
  }
  func.func @transform_0(%arg0: i32) -> (i32, i32) {
    %c0_i32 = arith.constant 0 : i32
    %c0_i32_0 = arith.constant 0 : i32
    return %arg0, %c0_i32 : i32, i32
  }
  func.func @transform_1(%arg0: i32) -> (i32, i32) {
    %c0_i32 = arith.constant 0 : i32
    %c0_i32_0 = arith.constant 0 : i32
    %c0_i32_1 = arith.constant 0 : i32
    return %c0_i32, %c0_i32_0 : i32, i32
  }
  func.func @transform_2(%arg0: i32) -> (i32, i32) {
    %c0_i32 = arith.constant 0 : i32
    %c0_i32_0 = arith.constant 0 : i32
    %c0_i32_1 = arith.constant 0 : i32
    return %c0_i32, %c0_i32_0 : i32, i32
  }
  func.func @transform_3(%arg0: i32) -> (i32, i32) {
    %c0_i32 = arith.constant 0 : i32
    %c0_i32_0 = arith.constant 0 : i32
    return %arg0, %c0_i32 : i32, i32
  }
  func.func @transform_4(%arg0: i32) -> (i32, i32) {
    %c0_i32 = arith.constant 0 : i32
    %c0_i32_0 = arith.constant 0 : i32
    %c0_i32_1 = arith.constant 0 : i32
    return %c0_i32, %c0_i32_0 : i32, i32
  }
  func.func @transform_5(%arg0: i32) -> (i32, i32) {
    %c0_i32 = arith.constant 0 : i32
    %c0_i32_0 = arith.constant 0 : i32
    %c0_i32_1 = arith.constant 0 : i32
    return %c0_i32, %c0_i32_0 : i32, i32
  }
  func.func @transform_6(%arg0: i32) -> (i32, i32) {
    %c0_i32 = arith.constant 0 : i32
    %c0_i32_0 = arith.constant 0 : i32
    %c0_i32_1 = arith.constant 0 : i32
    return %c0_i32, %c0_i32_0 : i32, i32
  }
  func.func @transform_7(%arg0: i32) -> (i32, i32) {
    %c0_i32 = arith.constant 0 : i32
    %c0_i32_0 = arith.constant 0 : i32
    %c0_i32_1 = arith.constant 0 : i32
    return %c0_i32, %c0_i32_0 : i32, i32
  }
  func.func @transform_8(%arg0: i32) -> (i32, i32) {
    %c0_i32 = arith.constant 0 : i32
    %c0_i32_0 = arith.constant 0 : i32
    return %arg0, %c0_i32 : i32, i32
  }
}

</mosaic_0001>

<llo_original>
// kernel: decoder_layer_forward.6
$region0: #{decoder_layer_forward.6}
  #allocation0 [shape = 'u32[]', space=smem, size = 0x4, offset = 0x4, fixed_abs, tag = 'smem constant byte address 0x4 - core index']
  #allocation1 [shape = 'u32[144,128]{1,0:T(1,128)}', space=vmem, size = 0x12000, scoped, tag = 'internal scratch']
  %s0 = inlined_call_operand.vmem [shape: f32[2,8,1536], index: 0, kind: input, shape index: {}, may-alias: {0,1,2}]
  %s1 = inlined_call_operand.vmem [shape: f32[2,8,1536], index: 1, kind: input, shape index: {}, may-alias: {0,1,2}]
  %s2 = inlined_call_operand.vmem [shape: f32[2,8,1536], index: 2, kind: input, shape index: {}, may-alias: {0,1,2}]
  %s3 = inlined_call_operand.vmem [shape: f32[2,8,512], index: 3, kind: output, shape index: {}]
  %s4 = sld [smem:[#allocation0]]
  $region45: #{decoder_layer_forward.6} parent=0
    _
  %s6 = ssub.s32 1, %s4
  %s7 = scalar_select 0, %s6, %s4
  loop: start=0, step=1, limit=10
  $region2: #{decoder_layer_forward.6} parent=0 // loop_pre_header
    _
  $region3: #{decoder_layer_forward.6} parent=0 // loop_header
    %s9 = sphi 0, %s13
    %p10 = scmp.ge.s32.totalorder %s9, 10
    %s16 = sphi 0, %s35
    %s17 = sphi 0, %s31
    %s18 = sphi 0, %s27
    %s19 = sphi 0, %s16
    %s20 = sphi 0, %s17
    %s21 = sphi 0, %s18
    %s22 = sphi 0, %s19
    %s23 = sphi 0, %s20
    %s24 = sphi 0, %s21
    %s42 = sphi 0, %s44
    %s45 = sphi 0, %s42
    %s46 = sphi 0, %s45
    %s62 = sphi 0, %s46
    %s72 = sphi 0, %s74
    %s75 = sphi 0, %s72
    %s76 = sphi 0, %s75
    %s92 = sphi 0, %s76
    %s102 = sphi 0, %s104
    %s105 = sphi 0, %s102
    %s106 = sphi 0, %s105
    %s122 = sphi 0, %s106
    %s132 = sphi 0, %s134
    %s135 = sphi 0, %s132
    %s136 = sphi 0, %s135
    %s152 = sphi 0, %s136
  $region4: #{decoder_layer_forward.6} parent=0 // loop_header_branch
    %12 = sbr.rel (%p10) target = $region8
  $region5: #{decoder_layer_forward.6} parent=0 // loop_body
    %s14 = ssub.s32 %s9, 1
    %s15 = ssub.s32 %s9, 2
    %s25 = sadd.s32 1, %s18
    %p26 = scmp.ge.s32.totalorder %s25, 1
    %s27 = scalar_select %p26, 0, %s25
    %s28 = sadd.s32 1, %s17
    %s29 = scalar_select %p26, %s28, %s17
    %p30 = scmp.ge.s32.totalorder %s29, 4
    %s31 = scalar_select %p30, 0, %s29
    %s32 = sadd.s32 1, %s16
    %s33 = scalar_select %p30, %s32, %s16
    %p34 = scmp.ge.s32.totalorder %s33, 2
    %s35 = scalar_select %p34, 0, %s33
    %s36 = ssub.s32 %s16, %s35
    %s37 = ssub.s32 %s18, %s27
    %s38 = sor.u32 %s36, %s37
    %s39 = ssub.s32 %s17, %s31
    %s40 = sor.u32 %s38, %s39
    %p41 = scmp.eq.s32.totalorder %s40, 0
    %s43 = sadd.s32 %s42, 1
    %s44 = scalar_select %p41, %s42, %s43
    %p47 = pneg %p41
    %p48 = scmp.eq.s32.totalorder %s9, 7
    %p49 = por %p47, %p48
    %p50 = scmp.ne.s32.totalorder %s42, %s45
    %p51 = scmp.eq.s32.totalorder %s9, 0
    %p52 = por %p50, %p51
    %p53 = scmp.ne.s32.totalorder %s42, %s45
    %p54 = scmp.eq.s32.totalorder %s14, 7
    %p55 = por %p53, %p54
    %p56 = scmp.ne.s32.totalorder %s45, %s46
    %p57 = scmp.eq.s32.totalorder %s14, 0
    %p58 = por %p56, %p57
    %p59 = scmp.ne.s32.totalorder %s45, %s46
    %p60 = scmp.eq.s32.totalorder %s15, 7
    %p61 = por %p59, %p60
    %p63 = scmp.ne.s32.totalorder %s46, %s62
    %p64 = scmp.eq.s32.totalorder %s15, 0
    %p65 = por %p63, %p64
    %s66 = sadd.s32 %s17, 4
    %s67 = sadd.s32 %s31, 4
    %s68 = ssub.s32 %s16, %s35
    %s69 = ssub.s32 %s66, %s67
    %s70 = sor.u32 %s68, %s69
    %p71 = scmp.eq.s32.totalorder %s70, 0
    %s73 = sadd.s32 %s72, 1
    %s74 = scalar_select %p71, %s72, %s73
    %p77 = pneg %p71
    %p78 = scmp.eq.s32.totalorder %s9, 7
    %p79 = por %p77, %p78
    %p80 = scmp.ne.s32.totalorder %s72, %s75
    %p81 = scmp.eq.s32.totalorder %s9, 0
    %p82 = por %p80, %p81
    %p83 = scmp.ne.s32.totalorder %s72, %s75
    %p84 = scmp.eq.s32.totalorder %s14, 7
    %p85 = por %p83, %p84
    %p86 = scmp.ne.s32.totalorder %s75, %s76
    %p87 = scmp.eq.s32.totalorder %s14, 0
    %p88 = por %p86, %p87
    %p89 = scmp.ne.s32.totalorder %s75, %s76
    %p90 = scmp.eq.s32.totalorder %s15, 7
    %p91 = por %p89, %p90
    %p93 = scmp.ne.s32.totalorder %s76, %s92
    %p94 = scmp.eq.s32.totalorder %s15, 0
    %p95 = por %p93, %p94
    %s96 = sadd.s32 %s17, 8
    %s97 = sadd.s32 %s31, 8
    %s98 = ssub.s32 %s16, %s35
    %s99 = ssub.s32 %s96, %s97
    %s100 = sor.u32 %s98, %s99
    %p101 = scmp.eq.s32.totalorder %s100, 0
    %s103 = sadd.s32 %s102, 1
    %s104 = scalar_select %p101, %s102, %s103
    %p107 = pneg %p101
    %p108 = scmp.eq.s32.totalorder %s9, 7
    %p109 = por %p107, %p108
    %p110 = scmp.ne.s32.totalorder %s102, %s105
    %p111 = scmp.eq.s32.totalorder %s9, 0
    %p112 = por %p110, %p111
    %p113 = scmp.ne.s32.totalorder %s102, %s105
    %p114 = scmp.eq.s32.totalorder %s14, 7
    %p115 = por %p113, %p114
    %p116 = scmp.ne.s32.totalorder %s105, %s106
    %p117 = scmp.eq.s32.totalorder %s14, 0
    %p118 = por %p116, %p117
    %p119 = scmp.ne.s32.totalorder %s105, %s106
    %p120 = scmp.eq.s32.totalorder %s15, 7
    %p121 = por %p119, %p120
    %p123 = scmp.ne.s32.totalorder %s106, %s122
    %p124 = scmp.eq.s32.totalorder %s15, 0
    %p125 = por %p123, %p124
    %s126 = ssub.s32 %s16, %s35
    %s127 = ssub.s32 %s18, %s27
    %s128 = sor.u32 %s126, %s127
    %s129 = ssub.s32 %s17, %s31
    %s130 = sor.u32 %s128, %s129
    %p131 = scmp.eq.s32.totalorder %s130, 0
    %s133 = sadd.s32 %s132, 1
    %s134 = scalar_select %p131, %s132, %s133
    %p137 = pneg %p131
    %p138 = scmp.eq.s32.totalorder %s9, 7
    %p139 = por %p137, %p138
    %p140 = scmp.ne.s32.totalorder %s132, %s135
    %p141 = scmp.eq.s32.totalorder %s9, 0
    %p142 = por %p140, %p141
    %p143 = scmp.ne.s32.totalorder %s132, %s135
    %p144 = scmp.eq.s32.totalorder %s14, 7
    %p145 = por %p143, %p144
    %p146 = scmp.ne.s32.totalorder %s135, %s136
    %p147 = scmp.eq.s32.totalorder %s14, 0
    %p148 = por %p146, %p147
    %p149 = scmp.ne.s32.totalorder %s135, %s136
    %p150 = scmp.eq.s32.totalorder %s15, 7
    %p151 = por %p149, %p150
    %p153 = scmp.ne.s32.totalorder %s136, %s152
    %p154 = scmp.eq.s32.totalorder %s15, 0
    %p155 = por %p153, %p154
    %p156 = scmp.le.s32.totalorder 1, %s9
    %p157 = scmp.lt.s32.totalorder %s9, 9
    %p158 = pnand %p156, %p157
    %p159 = pneg %p158
    // Predicated region
    $region9: #{decoder_layer_forward.6} parent=5 // pred_check
      _
    $region10: #{decoder_layer_forward.6} parent=5 // pred_check_branch
      %161 = sbr.rel (%p158) target = $region12
    $region11: #{decoder_layer_forward.6} parent=5 // pred_region
      %s162 = ssub.s32 %s9, 1
    $region12: #{decoder_layer_forward.6} parent=5 // pred_fallthru
      _
    %p163 = scmp.lt.s32.totalorder %s9, 8
    // Predicated region
    $region13: #{decoder_layer_forward.6} parent=5 // pred_check
      %p164 = pneg %p163
    $region14: #{decoder_layer_forward.6} parent=5 // pred_check_branch
      %166 = sbr.rel (%p164) target = $region16
    $region15: #{decoder_layer_forward.6} parent=5 // pred_region
      // Predicated region
      $region17: #{decoder_layer_forward.6} parent=15 // pred_check
        %p167 = pneg %p52
      $region18: #{decoder_layer_forward.6} parent=15 // pred_check_branch
        %169 = sbr.rel (%p167) target = $region20
      $region19: #{decoder_layer_forward.6} parent=15 // pred_region
        %p170 = scmp.lt.s32.totalorder %s16, 1
        %s171 = scalar_select %p170, %s16, 1
        %p172 = scmp.lt.s32.totalorder %s18, 0
        %s173 = scalar_select %p172, %s18, 0
        %p174 = scmp.lt.s32.totalorder %s17, 11
        %s175 = scalar_select %p174, %s17, 11
        %s176 = smul.addr %s173, 12
        %s177 = sadd.s32 %s175, %s176
        %s178 = smul.addr %s171, 12
        %s179 = sadd.s32 %s177, %s178
        %s180 = smul.addr %s179, 8
        %s181 = scalar_lea.vmem %s0, %s180
      $region20: #{decoder_layer_forward.6} parent=15 // pred_fallthru
        _
      // Predicated region
      $region21: #{decoder_layer_forward.6} parent=15 // pred_check
        %p182 = pneg %p82
      $region22: #{decoder_layer_forward.6} parent=15 // pred_check_branch
        %184 = sbr.rel (%p182) target = $region24
      $region23: #{decoder_layer_forward.6} parent=15 // pred_region
        %s185 = sadd.s32 %s17, 4
        %p186 = scmp.lt.s32.totalorder %s16, 1
        %s187 = scalar_select %p186, %s16, 1
        %p188 = scmp.lt.s32.totalorder %s185, 11
        %s189 = scalar_select %p188, %s185, 11
        %s190 = smul.addr %s187, 12
        %s191 = sadd.s32 %s189, %s190
        %s192 = smul.addr %s191, 8
        %s193 = scalar_lea.vmem %s1, %s192
        %s194 = sadd.s32 %s17, 4
      $region24: #{decoder_layer_forward.6} parent=15 // pred_fallthru
        _
      // Predicated region
      $region25: #{decoder_layer_forward.6} parent=15 // pred_check
        %p195 = pneg %p112
      $region26: #{decoder_layer_forward.6} parent=15 // pred_check_branch
        %197 = sbr.rel (%p195) target = $region28
      $region27: #{decoder_layer_forward.6} parent=15 // pred_region
        %s198 = sadd.s32 %s17, 8
        %p199 = scmp.lt.s32.totalorder %s16, 1
        %s200 = scalar_select %p199, %s16, 1
        %p201 = scmp.lt.s32.totalorder %s198, 11
        %s202 = scalar_select %p201, %s198, 11
        %s203 = smul.addr %s200, 12
        %s204 = sadd.s32 %s202, %s203
        %s205 = smul.addr %s204, 8
        %s206 = scalar_lea.vmem %s2, %s205
        %s207 = sadd.s32 %s17, 8
      $region28: #{decoder_layer_forward.6} parent=15 // pred_fallthru
        _
    $region16: #{decoder_layer_forward.6} parent=5 // pred_fallthru
      _
    %p208 = scmp.le.s32.totalorder 1, %s9
    %p209 = scmp.lt.s32.totalorder %s9, 9
    %p210 = pnand %p208, %p209
    %p211 = pneg %p210
    // Predicated region
    $region29: #{decoder_layer_forward.6} parent=5 // pred_check
      _
    $region30: #{decoder_layer_forward.6} parent=5 // pred_check_branch
      %213 = sbr.rel (%p210) target = $region32
    $region31: #{decoder_layer_forward.6} parent=5 // pred_region
      %s214 = ssub.s32 %s9, 1
      %p215 = scmp.lt.s32.totalorder %s19, 1
      %s216 = scalar_select %p215, %s19, 1
      %p217 = scmp.lt.s32.totalorder %s21, 0
      %s218 = scalar_select %p217, %s21, 0
      %p219 = scmp.lt.s32.totalorder %s20, 11
      %s220 = scalar_select %p219, %s20, 11
      %s221 = smul.addr %s218, 12
      %s222 = sadd.s32 %s220, %s221
      %s223 = smul.addr %s216, 12
      %s224 = sadd.s32 %s222, %s223
      %s225 = smul.addr %s224, 8
      %s226 = scalar_lea.vmem %s0, %s225
      %p227 = pneg %p58
      %p228 = pneg %p55
      %s229 = sadd.s32 %s20, 4
      %p230 = scmp.lt.s32.totalorder %s19, 1
      %s231 = scalar_select %p230, %s19, 1
      %p232 = scmp.lt.s32.totalorder %s229, 11
      %s233 = scalar_select %p232, %s229, 11
      %s234 = smul.addr %s231, 12
      %s235 = sadd.s32 %s233, %s234
      %s236 = smul.addr %s235, 8
      %s237 = scalar_lea.vmem %s1, %s236
      %p238 = pneg %p88
      %p239 = pneg %p85
      %s240 = sadd.s32 %s20, 8
      %p241 = scmp.lt.s32.totalorder %s19, 1
      %s242 = scalar_select %p241, %s19, 1
      %p243 = scmp.lt.s32.totalorder %s240, 11
      %s244 = scalar_select %p243, %s240, 11
      %s245 = smul.addr %s242, 12
      %s246 = sadd.s32 %s244, %s245
      %s247 = smul.addr %s246, 8
      %s248 = scalar_lea.vmem %s2, %s247
      %p249 = pneg %p118
      %p250 = pneg %p115
      %p251 = pneg %p148
      %p252 = pneg %p145
      %p253 = scmp.lt.s32.totalorder %s19, 1
      %s254 = scalar_select %p253, %s19, 1
      %p255 = scmp.lt.s32.totalorder %s21, 0
      %s256 = scalar_select %p255, %s21, 0
      %p257 = scmp.lt.s32.totalorder %s20, 3
      %s258 = scalar_select %p257, %s20, 3
      %s259 = smul.addr %s256, 4
      %s260 = sadd.s32 %s258, %s259
      %s261 = smul.addr %s254, 4
      %s262 = sadd.s32 %s260, %s261
      %s263 = smul.addr %s262, 8
      %s264 = scalar_lea.vmem %s3, %s263
      %p265 = scmp.lt.s32.totalorder %s19, 1
      %s266 = scalar_select %p265, %s19, 1
      %p267 = scmp.lt.s32.totalorder %s21, 0
      %s268 = scalar_select %p267, %s21, 0
      %p269 = scmp.lt.s32.totalorder %s20, 11
      %s270 = scalar_select %p269, %s20, 11
      %s271 = smul.addr %s268, 12
      %s272 = sadd.s32 %s270, %s271
      %s273 = smul.addr %s266, 12
      %s274 = sadd.s32 %s272, %s273
      %s275 = smul.addr %s274, 8
      %s276 = scalar_lea.vmem %s0, %s275
      %s277 = sadd.s32 %s20, 4
      %p278 = scmp.lt.s32.totalorder %s19, 1
      %s279 = scalar_select %p278, %s19, 1
      %p280 = scmp.lt.s32.totalorder %s277, 11
      %s281 = scalar_select %p280, %s277, 11
      %s282 = smul.addr %s279, 12
      %s283 = sadd.s32 %s281, %s282
      %s284 = smul.addr %s283, 8
      %s285 = scalar_lea.vmem %s1, %s284
      %s286 = sadd.s32 %s20, 4
      %s287 = sadd.s32 %s20, 8
      %p288 = scmp.lt.s32.totalorder %s19, 1
      %s289 = scalar_select %p288, %s19, 1
      %p290 = scmp.lt.s32.totalorder %s287, 11
      %s291 = scalar_select %p290, %s287, 11
      %s292 = smul.addr %s289, 12
      %s293 = sadd.s32 %s291, %s292
      %s294 = smul.addr %s293, 8
      %s295 = scalar_lea.vmem %s2, %s294
      %s296 = sadd.s32 %s20, 8
      %p297 = scmp.lt.s32.totalorder %s19, 1
      %s298 = scalar_select %p297, %s19, 1
      %p299 = scmp.lt.s32.totalorder %s21, 0
      %s300 = scalar_select %p299, %s21, 0
      %p301 = scmp.lt.s32.totalorder %s20, 3
      %s302 = scalar_select %p301, %s20, 3
      %s303 = smul.addr %s300, 4
      %s304 = sadd.s32 %s302, %s303
      %s305 = smul.addr %s298, 4
      %s306 = sadd.s32 %s304, %s305
      %s307 = smul.addr %s306, 8
      %s308 = scalar_lea.vmem %s3, %s307
      %s309 = smul.u32 %s21, 8
      %v310 = vlaneseq
      %v311 = vshrl.u32 %v310, 7
      %v312 = vstv %s309
      %v313 = vadd.s32 %v312, %v311
      %v314 = vlaneseq
      %v315 = vand.u32 %v314, 127
      %vm316 = vcmp.gt.s32.totalorder %v315, %v313
      %v317 = vld [vmem:[%s276] sm:$0xff]
      %v318 = vld [vmem:[%s285] sm:$0xff]
      %v319 = vld [vmem:[%s295] sm:$0xff]
      %vm320 = vcmask 523264
      %v322 = vsel %vm320, %v317, 0
      %v325 = vsel %vm320, %v318, 0
      %327 = vmatprep.subr.mxu0 0.0
      %328 = vmatpush1.xpose.msra.mxu0 %v325
      %329 = vmatprep.subr.mxu0 0.0
      %330 = vmatpush1.xpose.msra.mxu0 0.0
      %331 = vmatprep.subr.mxu0 0.0
      %332 = vmatpush1.xpose.msra.mxu0 0.0
      %333 = vmatprep.subr.mxu0 0.0
      %334 = vmatpush1.xpose.msra.mxu0 0.0
      %335 = vmatprep.subr.mxu0 0.0
      %336 = vmatpush1.xpose.msra.mxu0 0.0
      %337 = vmatprep.subr.mxu0 0.0
      %338 = vmatpush1.xpose.msra.mxu0 0.0
      %339 = vmatprep.subr.mxu0 0.0
      %340 = vmatpush1.xpose.msra.mxu0 0.0
      %341 = vmatprep.subr.mxu0 0.0
      %342 = vmatpush1.xpose.msra.mxu0 0.0
      %343 = vmatprep.subr.mxu0 0.0
      %344 = vmatpush1.xpose.msra.mxu0 0.0
      %345 = vmatprep.subr.mxu0 0.0
      %346 = vmatpush1.xpose.msra.mxu0 0.0
      %347 = vmatprep.subr.mxu0 0.0
      %348 = vmatpush1.xpose.msra.mxu0 0.0
      %349 = vmatprep.subr.mxu0 0.0
      %350 = vmatpush1.xpose.msra.mxu0 0.0
      %351 = vmatprep.subr.mxu0 0.0
      %352 = vmatpush1.xpose.msra.mxu0 0.0
      %353 = vmatprep.subr.mxu0 0.0
      %354 = vmatpush1.xpose.msra.mxu0 0.0
      %355 = vmatprep.subr.mxu0 0.0
      %356 = vmatpush1.xpose.msra.mxu0 0.0
      %357 = vmatprep.subr.mxu0 0.0
      %358 = vmatpush1.xpose.msra.mxu0 0.0
      %359 = vmatprep.subr.mxu0 0.0
      %360 = vmatpush1.xpose.msra.mxu0 0.0
      %361 = vmatprep.subr.mxu0 0.0
      %362 = vmatpush1.xpose.msra.mxu0 0.0
      %363 = vmatprep.subr.mxu0 0.0
      %364 = vmatpush1.xpose.msra.mxu0 0.0
      %365 = vmatprep.subr.mxu0 0.0
      %366 = vmatpush1.xpose.msra.mxu0 0.0
      %367 = vmatprep.subr.mxu0 0.0
      %368 = vmatpush1.xpose.msra.mxu0 0.0
      %369 = vmatprep.subr.mxu0 0.0
      %370 = vmatpush1.xpose.msra.mxu0 0.0
      %371 = vmatprep.subr.mxu0 0.0
      %372 = vmatpush1.xpose.msra.mxu0 0.0
      %373 = vmatprep.subr.mxu0 0.0
      %374 = vmatpush1.xpose.msra.mxu0 0.0
      %375 = vmatprep.subr.mxu0 0.0
      %376 = vmatpush1.xpose.msra.mxu0 0.0
      %377 = vmatprep.subr.mxu0 0.0
      %378 = vmatpush1.xpose.msra.mxu0 0.0
      %379 = vmatprep.subr.mxu0 0.0
      %380 = vmatpush1.xpose.msra.mxu0 0.0
      %381 = vmatprep.subr.mxu0 0.0
      %382 = vmatpush1.xpose.msra.mxu0 0.0
      %383 = vmatprep.subr.mxu0 0.0
      %384 = vmatpush1.xpose.msra.mxu0 0.0
      %385 = vmatprep.subr.mxu0 0.0
      %386 = vmatpush1.xpose.msra.mxu0 0.0
      %387 = vmatprep.subr.mxu0 0.0
      %388 = vmatpush1.xpose.msra.mxu0 0.0
      %389 = vmatprep.subr.mxu0 0.0
      %390 = vmatpush1.xpose.msra.mxu0 0.0
      %391 = vmatprep.mubr.f32.mxu0 0.0
      %392 = vmatmul.mubr.f32.gmra.mrb[0].mxu0 %v322
      %v393 = vpop.f32.mrb[0].mxu0
      %v394 = vadd.f32 0.0, %v393
      %v395 = vpop.f32.mrb[0].mxu0
      %396 = vdwg.mxu0
      %v397 = vsel %vm316, -1e+09, %v394
      %vm398 = vcmask 64512
      %v399 = vsel %vm398, %v397, -inf
      %400 = vmax.xlane.f32.xlu0 %v399
      %v401 = vpop.xlane.xlu0 %400
      %v402 = vsub.f32 %v397, %v401
      %v403 = vmul.f32 %v402, 1.442695
      %v404 = vpow.pop %v403
      %v405 = vsel %vm398, %v404, 0.0
      %406 = vadd.xlane.f32.xlu0 %v405
      %v407 = vpop.xlane.xlu0 %406
      %v408 = vrcp.pop %v407
      %v409 = vmul.f32 %v404, %v408
      %v411 = vsel %vm398, %v409, 0
      %413 = vmatprep.subr.mxu0 0.0
      %414 = vmatpush1.msra.mxu0 %v319
      %415 = vmatprep.subr.mxu0 0.0
      %416 = vmatpush1.msra.mxu0 0.0
      %417 = vmatprep.subr.mxu0 0.0
      %418 = vmatpush1.msra.mxu0 0.0
      %419 = vmatprep.subr.mxu0 0.0
      %420 = vmatpush1.msra.mxu0 0.0
      %421 = vmatprep.subr.mxu0 0.0
      %422 = vmatpush1.msra.mxu0 0.0
      %423 = vmatprep.subr.mxu0 0.0
      %424 = vmatpush1.msra.mxu0 0.0
      %425 = vmatprep.subr.mxu0 0.0
      %426 = vmatpush1.msra.mxu0 0.0
      %427 = vmatprep.subr.mxu0 0.0
      %428 = vmatpush1.msra.mxu0 0.0
      %429 = vmatprep.subr.mxu0 0.0
      %430 = vmatpush1.msra.mxu0 0.0
      %431 = vmatprep.subr.mxu0 0.0
      %432 = vmatpush1.msra.mxu0 0.0
      %433 = vmatprep.subr.mxu0 0.0
      %434 = vmatpush1.msra.mxu0 0.0
      %435 = vmatprep.subr.mxu0 0.0
      %436 = vmatpush1.msra.mxu0 0.0
      %437 = vmatprep.subr.mxu0 0.0
      %438 = vmatpush1.msra.mxu0 0.0
      %439 = vmatprep.subr.mxu0 0.0
      %440 = vmatpush1.msra.mxu0 0.0
      %441 = vmatprep.subr.mxu0 0.0
      %442 = vmatpush1.msra.mxu0 0.0
      %443 = vmatprep.subr.mxu0 0.0
      %444 = vmatpush1.msra.mxu0 0.0
      %445 = vmatprep.subr.mxu0 0.0
      %446 = vmatpush1.msra.mxu0 0.0
      %447 = vmatprep.subr.mxu0 0.0
      %448 = vmatpush1.msra.mxu0 0.0
      %449 = vmatprep.subr.mxu0 0.0
      %450 = vmatpush1.msra.mxu0 0.0
      %451 = vmatprep.subr.mxu0 0.0
      %452 = vmatpush1.msra.mxu0 0.0
      %453 = vmatprep.subr.mxu0 0.0
      %454 = vmatpush1.msra.mxu0 0.0
      %455 = vmatprep.subr.mxu0 0.0
      %456 = vmatpush1.msra.mxu0 0.0
      %457 = vmatprep.subr.mxu0 0.0
      %458 = vmatpush1.msra.mxu0 0.0
      %459 = vmatprep.subr.mxu0 0.0
      %460 = vmatpush1.msra.mxu0 0.0
      %461 = vmatprep.subr.mxu0 0.0
      %462 = vmatpush1.msra.mxu0 0.0
      %463 = vmatprep.subr.mxu0 0.0
      %464 = vmatpush1.msra.mxu0 0.0
      %465 = vmatprep.subr.mxu0 0.0
      %466 = vmatpush1.msra.mxu0 0.0
      %467 = vmatprep.subr.mxu0 0.0
      %468 = vmatpush1.msra.mxu0 0.0
      %469 = vmatprep.subr.mxu0 0.0
      %470 = vmatpush1.msra.mxu0 0.0
      %471 = vmatprep.subr.mxu0 0.0
      %472 = vmatpush1.msra.mxu0 0.0
      %473 = vmatprep.subr.mxu0 0.0
      %474 = vmatpush1.msra.mxu0 0.0
      %475 = vmatprep.subr.mxu0 0.0
      %476 = vmatpush1.msra.mxu0 0.0
      %477 = vmatprep.mubr.f32.mxu0 0.0
      %478 = vmatmul.mubr.f32.gmra.mrb[0].mxu0 %v411
      %v479 = vpop.f32.mrb[0].mxu0
      %v480 = vadd.f32 0.0, %v479
      %v481 = vpop.f32.mrb[0].mxu0
      %482 = vdwg.mxu0
      %483 = vrot.lane.b32.xlu0 %v317, 64
      %v484 = vpop.permute.xlu0 %483
      %485 = vrot.lane.b32.xlu0 %v318, 64
      %v486 = vpop.permute.xlu0 %485
      %v487 = vsel %vm320, %v484, 0
      %v489 = vsel %vm320, %v486, 0
      %491 = vmatprep.subr.mxu0 0.0
      %492 = vmatpush1.xpose.msra.mxu0 %v489
      %493 = vmatprep.subr.mxu0 0.0
      %494 = vmatpush1.xpose.msra.mxu0 0.0
      %495 = vmatprep.subr.mxu0 0.0
      %496 = vmatpush1.xpose.msra.mxu0 0.0
      %497 = vmatprep.subr.mxu0 0.0
      %498 = vmatpush1.xpose.msra.mxu0 0.0
      %499 = vmatprep.subr.mxu0 0.0
      %500 = vmatpush1.xpose.msra.mxu0 0.0
      %501 = vmatprep.subr.mxu0 0.0
      %502 = vmatpush1.xpose.msra.mxu0 0.0
      %503 = vmatprep.subr.mxu0 0.0
      %504 = vmatpush1.xpose.msra.mxu0 0.0
      %505 = vmatprep.subr.mxu0 0.0
      %506 = vmatpush1.xpose.msra.mxu0 0.0
      %507 = vmatprep.subr.mxu0 0.0
      %508 = vmatpush1.xpose.msra.mxu0 0.0
      %509 = vmatprep.subr.mxu0 0.0
      %510 = vmatpush1.xpose.msra.mxu0 0.0
      %511 = vmatprep.subr.mxu0 0.0
      %512 = vmatpush1.xpose.msra.mxu0 0.0
      %513 = vmatprep.subr.mxu0 0.0
      %514 = vmatpush1.xpose.msra.mxu0 0.0
      %515 = vmatprep.subr.mxu0 0.0
      %516 = vmatpush1.xpose.msra.mxu0 0.0
      %517 = vmatprep.subr.mxu0 0.0
      %518 = vmatpush1.xpose.msra.mxu0 0.0
      %519 = vmatprep.subr.mxu0 0.0
      %520 = vmatpush1.xpose.msra.mxu0 0.0
      %521 = vmatprep.subr.mxu0 0.0
      %522 = vmatpush1.xpose.msra.mxu0 0.0
      %523 = vmatprep.subr.mxu0 0.0
      %524 = vmatpush1.xpose.msra.mxu0 0.0
      %525 = vmatprep.subr.mxu0 0.0
      %526 = vmatpush1.xpose.msra.mxu0 0.0
      %527 = vmatprep.subr.mxu0 0.0
      %528 = vmatpush1.xpose.msra.mxu0 0.0
      %529 = vmatprep.subr.mxu0 0.0
      %530 = vmatpush1.xpose.msra.mxu0 0.0
      %531 = vmatprep.subr.mxu0 0.0
      %532 = vmatpush1.xpose.msra.mxu0 0.0
      %533 = vmatprep.subr.mxu0 0.0
      %534 = vmatpush1.xpose.msra.mxu0 0.0
      %535 = vmatprep.subr.mxu0 0.0
      %536 = vmatpush1.xpose.msra.mxu0 0.0
      %537 = vmatprep.subr.mxu0 0.0
      %538 = vmatpush1.xpose.msra.mxu0 0.0
      %539 = vmatprep.subr.mxu0 0.0
      %540 = vmatpush1.xpose.msra.mxu0 0.0
      %541 = vmatprep.subr.mxu0 0.0
      %542 = vmatpush1.xpose.msra.mxu0 0.0
      %543 = vmatprep.subr.mxu0 0.0
      %544 = vmatpush1.xpose.msra.mxu0 0.0
      %545 = vmatprep.subr.mxu0 0.0
      %546 = vmatpush1.xpose.msra.mxu0 0.0
      %547 = vmatprep.subr.mxu0 0.0
      %548 = vmatpush1.xpose.msra.mxu0 0.0
      %549 = vmatprep.subr.mxu0 0.0
      %550 = vmatpush1.xpose.msra.mxu0 0.0
      %551 = vmatprep.subr.mxu0 0.0
      %552 = vmatpush1.xpose.msra.mxu0 0.0
      %553 = vmatprep.subr.mxu0 0.0
      %554 = vmatpush1.xpose.msra.mxu0 0.0
      %555 = vmatprep.mubr.f32.mxu0 0.0
      %556 = vmatmul.mubr.f32.gmra.mrb[0].mxu0 %v487
      %v557 = vpop.f32.mrb[0].mxu0
      %v558 = vadd.f32 0.0, %v557
      %v559 = vpop.f32.mrb[0].mxu0
      %560 = vdwg.mxu0
      %v561 = vsel %vm316, -1e+09, %v558
      %v562 = vsel %vm398, %v561, -inf
      %563 = vmax.xlane.f32.xlu0 %v562
      %v564 = vpop.xlane.xlu0 %563
      %v565 = vsub.f32 %v561, %v564
      %v566 = vmul.f32 %v565, 1.442695
      %v567 = vpow.pop %v566
      %v568 = vsel %vm398, %v567, 0.0
      %569 = vadd.xlane.f32.xlu0 %v568
      %v570 = vpop.xlane.xlu0 %569
      %v571 = vrcp.pop %v570
      %v572 = vmul.f32 %v567, %v571
      %574 = vrot.lane.b32.xlu0 %v319, 64
      %v575 = vpop.permute.xlu0 %574
      %v578 = vsel %vm398, %v572, 0
      %580 = vmatprep.subr.mxu0 0.0
      %581 = vmatpush1.msra.mxu0 %v575
      %582 = vmatprep.subr.mxu0 0.0
      %583 = vmatpush1.msra.mxu0 0.0
      %584 = vmatprep.subr.mxu0 0.0
      %585 = vmatpush1.msra.mxu0 0.0
      %586 = vmatprep.subr.mxu0 0.0
      %587 = vmatpush1.msra.mxu0 0.0
      %588 = vmatprep.subr.mxu0 0.0
      %589 = vmatpush1.msra.mxu0 0.0
      %590 = vmatprep.subr.mxu0 0.0
      %591 = vmatpush1.msra.mxu0 0.0
      %592 = vmatprep.subr.mxu0 0.0
      %593 = vmatpush1.msra.mxu0 0.0
      %594 = vmatprep.subr.mxu0 0.0
      %595 = vmatpush1.msra.mxu0 0.0
      %596 = vmatprep.subr.mxu0 0.0
      %597 = vmatpush1.msra.mxu0 0.0
      %598 = vmatprep.subr.mxu0 0.0
      %599 = vmatpush1.msra.mxu0 0.0
      %600 = vmatprep.subr.mxu0 0.0
      %601 = vmatpush1.msra.mxu0 0.0
      %602 = vmatprep.subr.mxu0 0.0
      %603 = vmatpush1.msra.mxu0 0.0
      %604 = vmatprep.subr.mxu0 0.0
      %605 = vmatpush1.msra.mxu0 0.0
      %606 = vmatprep.subr.mxu0 0.0
      %607 = vmatpush1.msra.mxu0 0.0
      %608 = vmatprep.subr.mxu0 0.0
      %609 = vmatpush1.msra.mxu0 0.0
      %610 = vmatprep.subr.mxu0 0.0
      %611 = vmatpush1.msra.mxu0 0.0
      %612 = vmatprep.subr.mxu0 0.0
      %613 = vmatpush1.msra.mxu0 0.0
      %614 = vmatprep.subr.mxu0 0.0
      %615 = vmatpush1.msra.mxu0 0.0
      %616 = vmatprep.subr.mxu0 0.0
      %617 = vmatpush1.msra.mxu0 0.0
      %618 = vmatprep.subr.mxu0 0.0
      %619 = vmatpush1.msra.mxu0 0.0
      %620 = vmatprep.subr.mxu0 0.0
      %621 = vmatpush1.msra.mxu0 0.0
      %622 = vmatprep.subr.mxu0 0.0
      %623 = vmatpush1.msra.mxu0 0.0
      %624 = vmatprep.subr.mxu0 0.0
      %625 = vmatpush1.msra.mxu0 0.0
      %626 = vmatprep.subr.mxu0 0.0
      %627 = vmatpush1.msra.mxu0 0.0
      %628 = vmatprep.subr.mxu0 0.0
      %629 = vmatpush1.msra.mxu0 0.0
      %630 = vmatprep.subr.mxu0 0.0
      %631 = vmatpush1.msra.mxu0 0.0
      %632 = vmatprep.subr.mxu0 0.0
      %633 = vmatpush1.msra.mxu0 0.0
      %634 = vmatprep.subr.mxu0 0.0
      %635 = vmatpush1.msra.mxu0 0.0
      %636 = vmatprep.subr.mxu0 0.0
      %637 = vmatpush1.msra.mxu0 0.0
      %638 = vmatprep.subr.mxu0 0.0
      %639 = vmatpush1.msra.mxu0 0.0
      %640 = vmatprep.subr.mxu0 0.0
      %641 = vmatpush1.msra.mxu0 0.0
      %642 = vmatprep.subr.mxu0 0.0
      %643 = vmatpush1.msra.mxu0 0.0
      %644 = vmatprep.mubr.f32.mxu0 0.0
      %645 = vmatmul.mubr.f32.gmra.mrb[0].mxu0 %v578
      %v646 = vpop.f32.mrb[0].mxu0
      %v647 = vadd.f32 0.0, %v646
      %v648 = vpop.f32.mrb[0].mxu0
      %649 = vdwg.mxu0
      %651 = vrot.lane.b32.xlu0 %v647, 64
      %v652 = vpop.permute.xlu0 %651
      %v654 = vsel %vm320, %v480, %v652
      %655 = vst [vmem:[%s308] sm:$0xff] %v654
      %p656 = scmp.lt.s32.totalorder %s19, 1
      %s657 = scalar_select %p656, %s19, 1
      %p658 = scmp.lt.s32.totalorder %s21, 0
      %s659 = scalar_select %p658, %s21, 0
      %p660 = scmp.lt.s32.totalorder %s20, 3
      %s661 = scalar_select %p660, %s20, 3
      %s662 = smul.addr %s659, 4
      %s663 = sadd.s32 %s661, %s662
      %s664 = smul.addr %s657, 4
      %s665 = sadd.s32 %s663, %s664
      %s666 = smul.addr %s665, 8
      %s667 = scalar_lea.vmem %s3, %s666
      // Predicated region
      $region33: #{decoder_layer_forward.6} parent=31 // pred_check
        %p668 = pneg %p145
      $region34: #{decoder_layer_forward.6} parent=31 // pred_check_branch
        %670 = sbr.rel (%p668) target = $region36
      $region35: #{decoder_layer_forward.6} parent=31 // pred_region
        _
      $region36: #{decoder_layer_forward.6} parent=31 // pred_fallthru
        _
    $region32: #{decoder_layer_forward.6} parent=5 // pred_fallthru
      _
    %p671 = scmp.le.s32.totalorder 2, %s9
    // Predicated region
    $region37: #{decoder_layer_forward.6} parent=5 // pred_check
      %p672 = pneg %p671
    $region38: #{decoder_layer_forward.6} parent=5 // pred_check_branch
      %674 = sbr.rel (%p672) target = $region40
    $region39: #{decoder_layer_forward.6} parent=5 // pred_region
      %s675 = ssub.s32 %s9, 2
      // Predicated region
      $region41: #{decoder_layer_forward.6} parent=39 // pred_check
        %p676 = pneg %p151
      $region42: #{decoder_layer_forward.6} parent=39 // pred_check_branch
        %678 = sbr.rel (%p676) target = $region44
      $region43: #{decoder_layer_forward.6} parent=39 // pred_region
        %p679 = scmp.lt.s32.totalorder %s22, 1
        %s680 = scalar_select %p679, %s22, 1
        %p681 = scmp.lt.s32.totalorder %s24, 0
        %s682 = scalar_select %p681, %s24, 0
        %p683 = scmp.lt.s32.totalorder %s23, 3
        %s684 = scalar_select %p683, %s23, 3
        %s685 = smul.addr %s682, 4
        %s686 = sadd.s32 %s684, %s685
        %s687 = smul.addr %s680, 4
        %s688 = sadd.s32 %s686, %s687
        %s689 = smul.addr %s688, 8
        %s690 = scalar_lea.vmem %s3, %s689
      $region44: #{decoder_layer_forward.6} parent=39 // pred_fallthru
        _
    $region40: #{decoder_layer_forward.6} parent=5 // pred_fallthru
      _
  $region6: #{decoder_layer_forward.6} parent=0 // loop_footer
    %s13 = sadd.s32 1, %s9
  $region7: #{decoder_layer_forward.6} parent=0 // loop_footer_branch
    %8 = sbr.rel target = $region3
  $region8: #{decoder_layer_forward.6} parent=0 // loop_exit
    _

// kernel: decoder_layer_forward.7
$region0: #{decoder_layer_forward.7}
  #allocation0 [shape = 'u32[]', space=smem, size = 0x4, offset = 0x4, fixed_abs, tag = 'smem constant byte address 0x4 - core index']
  #allocation1 [shape = 'u32[144,128]{1,0:T(1,128)}', space=vmem, size = 0x12000, scoped, tag = 'internal scratch']
  %s0 = inlined_call_operand.vmem [shape: f32[16,512], index: 0, kind: input, shape index: {}]
  %s1 = inlined_call_operand.vmem [shape: f32[512,512], index: 1, kind: input, shape index: {}]
  %s2 = inlined_call_operand.vmem [shape: f32[1,512], index: 2, kind: input, shape index: {}]
  %s3 = inlined_call_operand.vmem [shape: f32[16,512], index: 3, kind: input, shape index: {}]
  %s4 = inlined_call_operand.vmem [shape: f32[1,512], index: 4, kind: input, shape index: {}]
  %s5 = inlined_call_operand.vmem [shape: f32[1,512], index: 5, kind: input, shape index: {}]
  %s6 = inlined_call_operand.vmem [shape: f32[1,512], index: 6, kind: input, shape index: {}]
  %s7 = inlined_call_operand.vmem [shape: f32[1,512], index: 7, kind: input, shape index: {}]
  %s8 = inlined_call_operand.vmem [shape: f32[16,512], index: 8, kind: output, shape index: {}]
  %s9 = sld [smem:[#allocation0]]
  $region42: #{decoder_layer_forward.7} parent=0
    _
  %s11 = ssub.s32 1, %s9
  %s12 = scalar_select 0, %s11, %s9
  // Predicated region
  $region2: #{decoder_layer_forward.7} parent=0 // pred_check
    _
  $region3: #{decoder_layer_forward.7} parent=0 // pred_check_branch
    %14 = sbr.rel (0) target = $region5
  $region4: #{decoder_layer_forward.7} parent=0 // pred_region
    _
  $region5: #{decoder_layer_forward.7} parent=0 // pred_fallthru
    _
  // Predicated region
  $region6: #{decoder_layer_forward.7} parent=0 // pred_check
    _
  $region7: #{decoder_layer_forward.7} parent=0 // pred_check_branch
    %16 = sbr.rel (0) target = $region9
  $region8: #{decoder_layer_forward.7} parent=0 // pred_region
    _
  $region9: #{decoder_layer_forward.7} parent=0 // pred_fallthru
    _
  // Predicated region
  $region10: #{decoder_layer_forward.7} parent=0 // pred_check
    _
  $region11: #{decoder_layer_forward.7} parent=0 // pred_check_branch
    %18 = sbr.rel (0) target = $region13
  $region12: #{decoder_layer_forward.7} parent=0 // pred_region
    _
  $region13: #{decoder_layer_forward.7} parent=0 // pred_fallthru
    _
  // Predicated region
  $region14: #{decoder_layer_forward.7} parent=0 // pred_check
    _
  $region15: #{decoder_layer_forward.7} parent=0 // pred_check_branch
    %20 = sbr.rel (0) target = $region17
  $region16: #{decoder_layer_forward.7} parent=0 // pred_region
    _
  $region17: #{decoder_layer_forward.7} parent=0 // pred_fallthru
    _
  // Predicated region
  $region18: #{decoder_layer_forward.7} parent=0 // pred_check
    _
  $region19: #{decoder_layer_forward.7} parent=0 // pred_check_branch
    %22 = sbr.rel (0) target = $region21
  $region20: #{decoder_layer_forward.7} parent=0 // pred_region
    _
  $region21: #{decoder_layer_forward.7} parent=0 // pred_fallthru
    _
  // Predicated region
  $region22: #{decoder_layer_forward.7} parent=0 // pred_check
    _
  $region23: #{decoder_layer_forward.7} parent=0 // pred_check_branch
    %24 = sbr.rel (0) target = $region25
  $region24: #{decoder_layer_forward.7} parent=0 // pred_region
    _
  $region25: #{decoder_layer_forward.7} parent=0 // pred_fallthru
    _
  // Predicated region
  $region26: #{decoder_layer_forward.7} parent=0 // pred_check
    _
  $region27: #{decoder_layer_forward.7} parent=0 // pred_check_branch
    %26 = sbr.rel (0) target = $region29
  $region28: #{decoder_layer_forward.7} parent=0 // pred_region
    _
  $region29: #{decoder_layer_forward.7} parent=0 // pred_fallthru
    _
  // Predicated region
  $region30: #{decoder_layer_forward.7} parent=0 // pred_check
    _
  $region31: #{decoder_layer_forward.7} parent=0 // pred_check_branch
    %28 = sbr.rel (0) target = $region33
  $region32: #{decoder_layer_forward.7} parent=0 // pred_region
    _
  $region33: #{decoder_layer_forward.7} parent=0 // pred_fallthru
    _
  %v29 = vld [vmem:[%s0] sm:$0xff]
  %v30 = vld [vmem:[%s0 + $0x8] sm:$0xff]
  %v31 = vld [vmem:[%s0 + $0x10] sm:$0xff]
  %v32 = vld [vmem:[%s0 + $0x18] sm:$0xff]
  %v33 = vld [vmem:[%s0 + $0x20] sm:$0xff]
  %v34 = vld [vmem:[%s0 + $0x28] sm:$0xff]
  %v35 = vld [vmem:[%s0 + $0x30] sm:$0xff]
  %v36 = vld [vmem:[%s0 + $0x38] sm:$0xff]
  %v37 = vld [vmem:[%s1] sm:$0xff]
  %v38 = vld [vmem:[%s1 + $0x8] sm:$0xff]
  %v39 = vld [vmem:[%s1 + $0x10] sm:$0xff]
  %v40 = vld [vmem:[%s1 + $0x18] sm:$0xff]
  %v41 = vld [vmem:[%s1 + $0x20] sm:$0xff]
  %v42 = vld [vmem:[%s1 + $0x28] sm:$0xff]
  %v43 = vld [vmem:[%s1 + $0x30] sm:$0xff]
  %v44 = vld [vmem:[%s1 + $0x38] sm:$0xff]
  %v45 = vld [vmem:[%s1 + $0x40] sm:$0xff]
  %v46 = vld [vmem:[%s1 + $0x48] sm:$0xff]
  %v47 = vld [vmem:[%s1 + $0x50] sm:$0xff]
  %v48 = vld [vmem:[%s1 + $0x58] sm:$0xff]
  %v49 = vld [vmem:[%s1 + $0x60] sm:$0xff]
  %v50 = vld [vmem:[%s1 + $0x68] sm:$0xff]
  %v51 = vld [vmem:[%s1 + $0x70] sm:$0xff]
  %v52 = vld [vmem:[%s1 + $0x78] sm:$0xff]
  %v53 = vld [vmem:[%s1 + $0x80] sm:$0xff]
  %v54 = vld [vmem:[%s1 + $0x88] sm:$0xff]
  %v55 = vld [vmem:[%s1 + $0x90] sm:$0xff]
  %v56 = vld [vmem:[%s1 + $0x98] sm:$0xff]
  %v57 = vld [vmem:[%s1 + $0xa0] sm:$0xff]
  %v58 = vld [vmem:[%s1 + $0xa8] sm:$0xff]
  %v59 = vld [vmem:[%s1 + $0xb0] sm:$0xff]
  %v60 = vld [vmem:[%s1 + $0xb8] sm:$0xff]
  %v61 = vld [vmem:[%s1 + $0xc0] sm:$0xff]
  %v62 = vld [vmem:[%s1 + $0xc8] sm:$0xff]
  %v63 = vld [vmem:[%s1 + $0xd0] sm:$0xff]
  %v64 = vld [vmem:[%s1 + $0xd8] sm:$0xff]
  %v65 = vld [vmem:[%s1 + $0xe0] sm:$0xff]
  %v66 = vld [vmem:[%s1 + $0xe8] sm:$0xff]
  %v67 = vld [vmem:[%s1 + $0xf0] sm:$0xff]
  %v68 = vld [vmem:[%s1 + $0xf8] sm:$0xff]
  %v69 = vld [vmem:[%s1 + $0x100] sm:$0xff]
  %v70 = vld [vmem:[%s1 + $0x108] sm:$0xff]
  %v71 = vld [vmem:[%s1 + $0x110] sm:$0xff]
  %v72 = vld [vmem:[%s1 + $0x118] sm:$0xff]
  %v73 = vld [vmem:[%s1 + $0x120] sm:$0xff]
  %v74 = vld [vmem:[%s1 + $0x128] sm:$0xff]
  %v75 = vld [vmem:[%s1 + $0x130] sm:$0xff]
  %v76 = vld [vmem:[%s1 + $0x138] sm:$0xff]
  %v77 = vld [vmem:[%s1 + $0x140] sm:$0xff]
  %v78 = vld [vmem:[%s1 + $0x148] sm:$0xff]
  %v79 = vld [vmem:[%s1 + $0x150] sm:$0xff]
  %v80 = vld [vmem:[%s1 + $0x158] sm:$0xff]
  %v81 = vld [vmem:[%s1 + $0x160] sm:$0xff]
  %v82 = vld [vmem:[%s1 + $0x168] sm:$0xff]
  %v83 = vld [vmem:[%s1 + $0x170] sm:$0xff]
  %v84 = vld [vmem:[%s1 + $0x178] sm:$0xff]
  %v85 = vld [vmem:[%s1 + $0x180] sm:$0xff]
  %v86 = vld [vmem:[%s1 + $0x188] sm:$0xff]
  %v87 = vld [vmem:[%s1 + $0x190] sm:$0xff]
  %v88 = vld [vmem:[%s1 + $0x198] sm:$0xff]
  %v89 = vld [vmem:[%s1 + $0x1a0] sm:$0xff]
  %v90 = vld [vmem:[%s1 + $0x1a8] sm:$0xff]
  %v91 = vld [vmem:[%s1 + $0x1b0] sm:$0xff]
  %v92 = vld [vmem:[%s1 + $0x1b8] sm:$0xff]
  %v93 = vld [vmem:[%s1 + $0x1c0] sm:$0xff]
  %v94 = vld [vmem:[%s1 + $0x1c8] sm:$0xff]
  %v95 = vld [vmem:[%s1 + $0x1d0] sm:$0xff]
  %v96 = vld [vmem:[%s1 + $0x1d8] sm:$0xff]
  %v97 = vld [vmem:[%s1 + $0x1e0] sm:$0xff]
  %v98 = vld [vmem:[%s1 + $0x1e8] sm:$0xff]
  %v99 = vld [vmem:[%s1 + $0x1f0] sm:$0xff]
  %v100 = vld [vmem:[%s1 + $0x1f8] sm:$0xff]
  %v101 = vld [vmem:[%s1 + $0x200] sm:$0xff]
  %v102 = vld [vmem:[%s1 + $0x208] sm:$0xff]
  %v103 = vld [vmem:[%s1 + $0x210] sm:$0xff]
  %v104 = vld [vmem:[%s1 + $0x218] sm:$0xff]
  %v105 = vld [vmem:[%s1 + $0x220] sm:$0xff]
  %v106 = vld [vmem:[%s1 + $0x228] sm:$0xff]
  %v107 = vld [vmem:[%s1 + $0x230] sm:$0xff]
  %v108 = vld [vmem:[%s1 + $0x238] sm:$0xff]
  %v109 = vld [vmem:[%s1 + $0x240] sm:$0xff]
  %v110 = vld [vmem:[%s1 + $0x248] sm:$0xff]
  %v111 = vld [vmem:[%s1 + $0x250] sm:$0xff]
  %v112 = vld [vmem:[%s1 + $0x258] sm:$0xff]
  %v113 = vld [vmem:[%s1 + $0x260] sm:$0xff]
  %v114 = vld [vmem:[%s1 + $0x268] sm:$0xff]
  %v115 = vld [vmem:[%s1 + $0x270] sm:$0xff]
  %v116 = vld [vmem:[%s1 + $0x278] sm:$0xff]
  %v117 = vld [vmem:[%s1 + $0x280] sm:$0xff]
  %v118 = vld [vmem:[%s1 + $0x288] sm:$0xff]
  %v119 = vld [vmem:[%s1 + $0x290] sm:$0xff]
  %v120 = vld [vmem:[%s1 + $0x298] sm:$0xff]
  %v121 = vld [vmem:[%s1 + $0x2a0] sm:$0xff]
  %v122 = vld [vmem:[%s1 + $0x2a8] sm:$0xff]
  %v123 = vld [vmem:[%s1 + $0x2b0] sm:$0xff]
  %v124 = vld [vmem:[%s1 + $0x2b8] sm:$0xff]
  %v125 = vld [vmem:[%s1 + $0x2c0] sm:$0xff]
  %v126 = vld [vmem:[%s1 + $0x2c8] sm:$0xff]
  %v127 = vld [vmem:[%s1 + $0x2d0] sm:$0xff]
  %v128 = vld [vmem:[%s1 + $0x2d8] sm:$0xff]
  %v129 = vld [vmem:[%s1 + $0x2e0] sm:$0xff]
  %v130 = vld [vmem:[%s1 + $0x2e8] sm:$0xff]
  %v131 = vld [vmem:[%s1 + $0x2f0] sm:$0xff]
  %v132 = vld [vmem:[%s1 + $0x2f8] sm:$0xff]
  %v133 = vld [vmem:[%s1 + $0x300] sm:$0xff]
  %v134 = vld [vmem:[%s1 + $0x308] sm:$0xff]
  %v135 = vld [vmem:[%s1 + $0x310] sm:$0xff]
  %v136 = vld [vmem:[%s1 + $0x318] sm:$0xff]
  %v137 = vld [vmem:[%s1 + $0x320] sm:$0xff]
  %v138 = vld [vmem:[%s1 + $0x328] sm:$0xff]
  %v139 = vld [vmem:[%s1 + $0x330] sm:$0xff]
  %v140 = vld [vmem:[%s1 + $0x338] sm:$0xff]
  %v141 = vld [vmem:[%s1 + $0x340] sm:$0xff]
  %v142 = vld [vmem:[%s1 + $0x348] sm:$0xff]
  %v143 = vld [vmem:[%s1 + $0x350] sm:$0xff]
  %v144 = vld [vmem:[%s1 + $0x358] sm:$0xff]
  %v145 = vld [vmem:[%s1 + $0x360] sm:$0xff]
  %v146 = vld [vmem:[%s1 + $0x368] sm:$0xff]
  %v147 = vld [vmem:[%s1 + $0x370] sm:$0xff]
  %v148 = vld [vmem:[%s1 + $0x378] sm:$0xff]
  %v149 = vld [vmem:[%s1 + $0x380] sm:$0xff]
  %v150 = vld [vmem:[%s1 + $0x388] sm:$0xff]
  %v151 = vld [vmem:[%s1 + $0x390] sm:$0xff]
  %v152 = vld [vmem:[%s1 + $0x398] sm:$0xff]
  %v153 = vld [vmem:[%s1 + $0x3a0] sm:$0xff]
  %v154 = vld [vmem:[%s1 + $0x3a8] sm:$0xff]
  %v155 = vld [vmem:[%s1 + $0x3b0] sm:$0xff]
  %v156 = vld [vmem:[%s1 + $0x3b8] sm:$0xff]
  %v157 = vld [vmem:[%s1 + $0x3c0] sm:$0xff]
  %v158 = vld [vmem:[%s1 + $0x3c8] sm:$0xff]
  %v159 = vld [vmem:[%s1 + $0x3d0] sm:$0xff]
  %v160 = vld [vmem:[%s1 + $0x3d8] sm:$0xff]
  %v161 = vld [vmem:[%s1 + $0x3e0] sm:$0xff]
  %v162 = vld [vmem:[%s1 + $0x3e8] sm:$0xff]
  %v163 = vld [vmem:[%s1 + $0x3f0] sm:$0xff]
  %v164 = vld [vmem:[%s1 + $0x3f8] sm:$0xff]
  %v165 = vld [vmem:[%s1 + $0x400] sm:$0xff]
  %v166 = vld [vmem:[%s1 + $0x408] sm:$0xff]
  %v167 = vld [vmem:[%s1 + $0x410] sm:$0xff]
  %v168 = vld [vmem:[%s1 + $0x418] sm:$0xff]
  %v169 = vld [vmem:[%s1 + $0x420] sm:$0xff]
  %v170 = vld [vmem:[%s1 + $0x428] sm:$0xff]
  %v171 = vld [vmem:[%s1 + $0x430] sm:$0xff]
  %v172 = vld [vmem:[%s1 + $0x438] sm:$0xff]
  %v173 = vld [vmem:[%s1 + $0x440] sm:$0xff]
  %v174 = vld [vmem:[%s1 + $0x448] sm:$0xff]
  %v175 = vld [vmem:[%s1 + $0x450] sm:$0xff]
  %v176 = vld [vmem:[%s1 + $0x458] sm:$0xff]
  %v177 = vld [vmem:[%s1 + $0x460] sm:$0xff]
  %v178 = vld [vmem:[%s1 + $0x468] sm:$0xff]
  %v179 = vld [vmem:[%s1 + $0x470] sm:$0xff]
  %v180 = vld [vmem:[%s1 + $0x478] sm:$0xff]
  %v181 = vld [vmem:[%s1 + $0x480] sm:$0xff]
  %v182 = vld [vmem:[%s1 + $0x488] sm:$0xff]
  %v183 = vld [vmem:[%s1 + $0x490] sm:$0xff]
  %v184 = vld [vmem:[%s1 + $0x498] sm:$0xff]
  %v185 = vld [vmem:[%s1 + $0x4a0] sm:$0xff]
  %v186 = vld [vmem:[%s1 + $0x4a8] sm:$0xff]
  %v187 = vld [vmem:[%s1 + $0x4b0] sm:$0xff]
  %v188 = vld [vmem:[%s1 + $0x4b8] sm:$0xff]
  %v189 = vld [vmem:[%s1 + $0x4c0] sm:$0xff]
  %v190 = vld [vmem:[%s1 + $0x4c8] sm:$0xff]
  %v191 = vld [vmem:[%s1 + $0x4d0] sm:$0xff]
  %v192 = vld [vmem:[%s1 + $0x4d8] sm:$0xff]
  %v193 = vld [vmem:[%s1 + $0x4e0] sm:$0xff]
  %v194 = vld [vmem:[%s1 + $0x4e8] sm:$0xff]
  %v195 = vld [vmem:[%s1 + $0x4f0] sm:$0xff]
  %v196 = vld [vmem:[%s1 + $0x4f8] sm:$0xff]
  %v197 = vld [vmem:[%s1 + $0x500] sm:$0xff]
  %v198 = vld [vmem:[%s1 + $0x508] sm:$0xff]
  %v199 = vld [vmem:[%s1 + $0x510] sm:$0xff]
  %v200 = vld [vmem:[%s1 + $0x518] sm:$0xff]
  %v201 = vld [vmem:[%s1 + $0x520] sm:$0xff]
  %v202 = vld [vmem:[%s1 + $0x528] sm:$0xff]
  %v203 = vld [vmem:[%s1 + $0x530] sm:$0xff]
  %v204 = vld [vmem:[%s1 + $0x538] sm:$0xff]
  %v205 = vld [vmem:[%s1 + $0x540] sm:$0xff]
  %v206 = vld [vmem:[%s1 + $0x548] sm:$0xff]
  %v207 = vld [vmem:[%s1 + $0x550] sm:$0xff]
  %v208 = vld [vmem:[%s1 + $0x558] sm:$0xff]
  %v209 = vld [vmem:[%s1 + $0x560] sm:$0xff]
  %v210 = vld [vmem:[%s1 + $0x568] sm:$0xff]
  %v211 = vld [vmem:[%s1 + $0x570] sm:$0xff]
  %v212 = vld [vmem:[%s1 + $0x578] sm:$0xff]
  %v213 = vld [vmem:[%s1 + $0x580] sm:$0xff]
  %v214 = vld [vmem:[%s1 + $0x588] sm:$0xff]
  %v215 = vld [vmem:[%s1 + $0x590] sm:$0xff]
  %v216 = vld [vmem:[%s1 + $0x598] sm:$0xff]
  %v217 = vld [vmem:[%s1 + $0x5a0] sm:$0xff]
  %v218 = vld [vmem:[%s1 + $0x5a8] sm:$0xff]
  %v219 = vld [vmem:[%s1 + $0x5b0] sm:$0xff]
  %v220 = vld [vmem:[%s1 + $0x5b8] sm:$0xff]
  %v221 = vld [vmem:[%s1 + $0x5c0] sm:$0xff]
  %v222 = vld [vmem:[%s1 + $0x5c8] sm:$0xff]
  %v223 = vld [vmem:[%s1 + $0x5d0] sm:$0xff]
  %v224 = vld [vmem:[%s1 + $0x5d8] sm:$0xff]
  %v225 = vld [vmem:[%s1 + $0x5e0] sm:$0xff]
  %v226 = vld [vmem:[%s1 + $0x5e8] sm:$0xff]
  %v227 = vld [vmem:[%s1 + $0x5f0] sm:$0xff]
  %v228 = vld [vmem:[%s1 + $0x5f8] sm:$0xff]
  %v229 = vld [vmem:[%s1 + $0x600] sm:$0xff]
  %v230 = vld [vmem:[%s1 + $0x608] sm:$0xff]
  %v231 = vld [vmem:[%s1 + $0x610] sm:$0xff]
  %v232 = vld [vmem:[%s1 + $0x618] sm:$0xff]
  %v233 = vld [vmem:[%s1 + $0x620] sm:$0xff]
  %v234 = vld [vmem:[%s1 + $0x628] sm:$0xff]
  %v235 = vld [vmem:[%s1 + $0x630] sm:$0xff]
  %v236 = vld [vmem:[%s1 + $0x638] sm:$0xff]
  %v237 = vld [vmem:[%s1 + $0x640] sm:$0xff]
  %v238 = vld [vmem:[%s1 + $0x648] sm:$0xff]
  %v239 = vld [vmem:[%s1 + $0x650] sm:$0xff]
  %v240 = vld [vmem:[%s1 + $0x658] sm:$0xff]
  %v241 = vld [vmem:[%s1 + $0x660] sm:$0xff]
  %v242 = vld [vmem:[%s1 + $0x668] sm:$0xff]
  %v243 = vld [vmem:[%s1 + $0x670] sm:$0xff]
  %v244 = vld [vmem:[%s1 + $0x678] sm:$0xff]
  %v245 = vld [vmem:[%s1 + $0x680] sm:$0xff]
  %v246 = vld [vmem:[%s1 + $0x688] sm:$0xff]
  %v247 = vld [vmem:[%s1 + $0x690] sm:$0xff]
  %v248 = vld [vmem:[%s1 + $0x698] sm:$0xff]
  %v249 = vld [vmem:[%s1 + $0x6a0] sm:$0xff]
  %v250 = vld [vmem:[%s1 + $0x6a8] sm:$0xff]
  %v251 = vld [vmem:[%s1 + $0x6b0] sm:$0xff]
  %v252 = vld [vmem:[%s1 + $0x6b8] sm:$0xff]
  %v253 = vld [vmem:[%s1 + $0x6c0] sm:$0xff]
  %v254 = vld [vmem:[%s1 + $0x6c8] sm:$0xff]
  %v255 = vld [vmem:[%s1 + $0x6d0] sm:$0xff]
  %v256 = vld [vmem:[%s1 + $0x6d8] sm:$0xff]
  %v257 = vld [vmem:[%s1 + $0x6e0] sm:$0xff]
  %v258 = vld [vmem:[%s1 + $0x6e8] sm:$0xff]
  %v259 = vld [vmem:[%s1 + $0x6f0] sm:$0xff]
  %v260 = vld [vmem:[%s1 + $0x6f8] sm:$0xff]
  %v261 = vld [vmem:[%s1 + $0x700] sm:$0xff]
  %v262 = vld [vmem:[%s1 + $0x708] sm:$0xff]
  %v263 = vld [vmem:[%s1 + $0x710] sm:$0xff]
  %v264 = vld [vmem:[%s1 + $0x718] sm:$0xff]
  %v265 = vld [vmem:[%s1 + $0x720] sm:$0xff]
  %v266 = vld [vmem:[%s1 + $0x728] sm:$0xff]
  %v267 = vld [vmem:[%s1 + $0x730] sm:$0xff]
  %v268 = vld [vmem:[%s1 + $0x738] sm:$0xff]
  %v269 = vld [vmem:[%s1 + $0x740] sm:$0xff]
  %v270 = vld [vmem:[%s1 + $0x748] sm:$0xff]
  %v271 = vld [vmem:[%s1 + $0x750] sm:$0xff]
  %v272 = vld [vmem:[%s1 + $0x758] sm:$0xff]
  %v273 = vld [vmem:[%s1 + $0x760] sm:$0xff]
  %v274 = vld [vmem:[%s1 + $0x768] sm:$0xff]
  %v275 = vld [vmem:[%s1 + $0x770] sm:$0xff]
  %v276 = vld [vmem:[%s1 + $0x778] sm:$0xff]
  %v277 = vld [vmem:[%s1 + $0x780] sm:$0xff]
  %v278 = vld [vmem:[%s1 + $0x788] sm:$0xff]
  %v279 = vld [vmem:[%s1 + $0x790] sm:$0xff]
  %v280 = vld [vmem:[%s1 + $0x798] sm:$0xff]
  %v281 = vld [vmem:[%s1 + $0x7a0] sm:$0xff]
  %v282 = vld [vmem:[%s1 + $0x7a8] sm:$0xff]
  %v283 = vld [vmem:[%s1 + $0x7b0] sm:$0xff]
  %v284 = vld [vmem:[%s1 + $0x7b8] sm:$0xff]
  %v285 = vld [vmem:[%s1 + $0x7c0] sm:$0xff]
  %v286 = vld [vmem:[%s1 + $0x7c8] sm:$0xff]
  %v287 = vld [vmem:[%s1 + $0x7d0] sm:$0xff]
  %v288 = vld [vmem:[%s1 + $0x7d8] sm:$0xff]
  %v289 = vld [vmem:[%s1 + $0x7e0] sm:$0xff]
  %v290 = vld [vmem:[%s1 + $0x7e8] sm:$0xff]
  %v291 = vld [vmem:[%s1 + $0x7f0] sm:$0xff]
  %v292 = vld [vmem:[%s1 + $0x7f8] sm:$0xff]
  %v293 = vld [vmem:[%s2] sm:$0xf]
  %v295 = vlaneseq
  %v296 = vshrl.u32 %v295, 7
  %v297 = vsub.s32 0, %v296
  %v298 = vrot.slane %v293, %v297
  %v299 = vlaneseq
  %v300 = vshrl.u32 %v299, 7
  %v301 = vsub.s32 1, %v300
  %v302 = vrot.slane %v293, %v301
  %v303 = vlaneseq
  %v304 = vshrl.u32 %v303, 7
  %v305 = vsub.s32 2, %v304
  %v306 = vrot.slane %v293, %v305
  %v307 = vlaneseq
  %v308 = vshrl.u32 %v307, 7
  %v309 = vsub.s32 3, %v308
  %v310 = vrot.slane %v293, %v309
  %315 = vmatprep.subr.mxu0 %v38
  %316 = vmatpush1.msra.mxu0 %v37
  %317 = vmatprep.subr.mxu0 %v42
  %318 = vmatpush1.msra.mxu0 %v41
  %319 = vmatprep.subr.mxu0 %v46
  %320 = vmatpush1.msra.mxu0 %v45
  %321 = vmatprep.subr.mxu0 %v50
  %322 = vmatpush1.msra.mxu0 %v49
  %323 = vmatprep.subr.mxu0 %v54
  %324 = vmatpush1.msra.mxu0 %v53
  %325 = vmatprep.subr.mxu0 %v58
  %326 = vmatpush1.msra.mxu0 %v57
  %327 = vmatprep.subr.mxu0 %v62
  %328 = vmatpush1.msra.mxu0 %v61
  %329 = vmatprep.subr.mxu0 %v66
  %330 = vmatpush1.msra.mxu0 %v65
  %331 = vmatprep.subr.mxu0 %v70
  %332 = vmatpush1.msra.mxu0 %v69
  %333 = vmatprep.subr.mxu0 %v74
  %334 = vmatpush1.msra.mxu0 %v73
  %335 = vmatprep.subr.mxu0 %v78
  %336 = vmatpush1.msra.mxu0 %v77
  %337 = vmatprep.subr.mxu0 %v82
  %338 = vmatpush1.msra.mxu0 %v81
  %339 = vmatprep.subr.mxu0 %v86
  %340 = vmatpush1.msra.mxu0 %v85
  %341 = vmatprep.subr.mxu0 %v90
  %342 = vmatpush1.msra.mxu0 %v89
  %343 = vmatprep.subr.mxu0 %v94
  %344 = vmatpush1.msra.mxu0 %v93
  %345 = vmatprep.subr.mxu0 %v98
  %346 = vmatpush1.msra.mxu0 %v97
  %347 = vmatprep.subr.mxu0 %v102
  %348 = vmatpush1.msra.mxu0 %v101
  %349 = vmatprep.subr.mxu0 %v106
  %350 = vmatpush1.msra.mxu0 %v105
  %351 = vmatprep.subr.mxu0 %v110
  %352 = vmatpush1.msra.mxu0 %v109
  %353 = vmatprep.subr.mxu0 %v114
  %354 = vmatpush1.msra.mxu0 %v113
  %355 = vmatprep.subr.mxu0 %v118
  %356 = vmatpush1.msra.mxu0 %v117
  %357 = vmatprep.subr.mxu0 %v122
  %358 = vmatpush1.msra.mxu0 %v121
  %359 = vmatprep.subr.mxu0 %v126
  %360 = vmatpush1.msra.mxu0 %v125
  %361 = vmatprep.subr.mxu0 %v130
  %362 = vmatpush1.msra.mxu0 %v129
  %363 = vmatprep.subr.mxu0 %v134
  %364 = vmatpush1.msra.mxu0 %v133
  %365 = vmatprep.subr.mxu0 %v138
  %366 = vmatpush1.msra.mxu0 %v137
  %367 = vmatprep.subr.mxu0 %v142
  %368 = vmatpush1.msra.mxu0 %v141
  %369 = vmatprep.subr.mxu0 %v146
  %370 = vmatpush1.msra.mxu0 %v145
  %371 = vmatprep.subr.mxu0 %v150
  %372 = vmatpush1.msra.mxu0 %v149
  %373 = vmatprep.subr.mxu0 %v154
  %374 = vmatpush1.msra.mxu0 %v153
  %375 = vmatprep.subr.mxu0 %v158
  %376 = vmatpush1.msra.mxu0 %v157
  %377 = vmatprep.subr.mxu0 %v162
  %378 = vmatpush1.msra.mxu0 %v161
  %379 = vmatprep.mubr.f32.mxu0 %v30
  %380 = vmatmul.mubr.f32.gmra.mrb[0].mxu0 %v29
  %v381 = vpop.f32.mrb[0].mxu0
  %v382 = vadd.f32 %v298, %v381
  %v383 = vpop.f32.mrb[0].mxu0
  %v384 = vadd.f32 %v302, %v383
  %385 = vmatprep.mubr.f32.mxu0 %v34
  %386 = vmatmul.mubr.f32.gmra.mrb[0].mxu0 %v33
  %v387 = vpop.f32.mrb[0].mxu0
  %v388 = vadd.f32 %v298, %v387
  %v389 = vpop.f32.mrb[0].mxu0
  %v390 = vadd.f32 %v302, %v389
  %391 = vdwg.mxu0
  %392 = vmatprep.subr.mxu0 %v166
  %393 = vmatpush1.msra.mxu0 %v165
  %394 = vmatprep.subr.mxu0 %v170
  %395 = vmatpush1.msra.mxu0 %v169
  %396 = vmatprep.subr.mxu0 %v174
  %397 = vmatpush1.msra.mxu0 %v173
  %398 = vmatprep.subr.mxu0 %v178
  %399 = vmatpush1.msra.mxu0 %v177
  %400 = vmatprep.subr.mxu0 %v182
  %401 = vmatpush1.msra.mxu0 %v181
  %402 = vmatprep.subr.mxu0 %v186
  %403 = vmatpush1.msra.mxu0 %v185
  %404 = vmatprep.subr.mxu0 %v190
  %405 = vmatpush1.msra.mxu0 %v189
  %406 = vmatprep.subr.mxu0 %v194
  %407 = vmatpush1.msra.mxu0 %v193
  %408 = vmatprep.subr.mxu0 %v198
  %409 = vmatpush1.msra.mxu0 %v197
  %410 = vmatprep.subr.mxu0 %v202
  %411 = vmatpush1.msra.mxu0 %v201
  %412 = vmatprep.subr.mxu0 %v206
  %413 = vmatpush1.msra.mxu0 %v205
  %414 = vmatprep.subr.mxu0 %v210
  %415 = vmatpush1.msra.mxu0 %v209
  %416 = vmatprep.subr.mxu0 %v214
  %417 = vmatpush1.msra.mxu0 %v213
  %418 = vmatprep.subr.mxu0 %v218
  %419 = vmatpush1.msra.mxu0 %v217
  %420 = vmatprep.subr.mxu0 %v222
  %421 = vmatpush1.msra.mxu0 %v221
  %422 = vmatprep.subr.mxu0 %v226
  %423 = vmatpush1.msra.mxu0 %v225
  %424 = vmatprep.subr.mxu0 %v230
  %425 = vmatpush1.msra.mxu0 %v229
  %426 = vmatprep.subr.mxu0 %v234
  %427 = vmatpush1.msra.mxu0 %v233
  %428 = vmatprep.subr.mxu0 %v238
  %429 = vmatpush1.msra.mxu0 %v237
  %430 = vmatprep.subr.mxu0 %v242
  %431 = vmatpush1.msra.mxu0 %v241
  %432 = vmatprep.subr.mxu0 %v246
  %433 = vmatpush1.msra.mxu0 %v245
  %434 = vmatprep.subr.mxu0 %v250
  %435 = vmatpush1.msra.mxu0 %v249
  %436 = vmatprep.subr.mxu0 %v254
  %437 = vmatpush1.msra.mxu0 %v253
  %438 = vmatprep.subr.mxu0 %v258
  %439 = vmatpush1.msra.mxu0 %v257
  %440 = vmatprep.subr.mxu0 %v262
  %441 = vmatpush1.msra.mxu0 %v261
  %442 = vmatprep.subr.mxu0 %v266
  %443 = vmatpush1.msra.mxu0 %v265
  %444 = vmatprep.subr.mxu0 %v270
  %445 = vmatpush1.msra.mxu0 %v269
  %446 = vmatprep.subr.mxu0 %v274
  %447 = vmatpush1.msra.mxu0 %v273
  %448 = vmatprep.subr.mxu0 %v278
  %449 = vmatpush1.msra.mxu0 %v277
  %450 = vmatprep.subr.mxu0 %v282
  %451 = vmatpush1.msra.mxu0 %v281
  %452 = vmatprep.subr.mxu0 %v286
  %453 = vmatpush1.msra.mxu0 %v285
  %454 = vmatprep.subr.mxu0 %v290
  %455 = vmatpush1.msra.mxu0 %v289
  %456 = vmatprep.mubr.f32.mxu0 %v32
  %457 = vmatmul.mubr.f32.gmra.mrb[0].mxu0 %v31
  %v458 = vpop.f32.mrb[0].mxu0
  %v459 = vadd.f32 %v382, %v458
  %v460 = vpop.f32.mrb[0].mxu0
  %v461 = vadd.f32 %v384, %v460
  %462 = vmatprep.mubr.f32.mxu0 %v36
  %463 = vmatmul.mubr.f32.gmra.mrb[0].mxu0 %v35
  %v464 = vpop.f32.mrb[0].mxu0
  %v465 = vadd.f32 %v388, %v464
  %v466 = vpop.f32.mrb[0].mxu0
  %v467 = vadd.f32 %v390, %v466
  %468 = vdwg.mxu0
  %469 = vmatprep.subr.mxu0 %v40
  %470 = vmatpush1.msra.mxu0 %v39
  %471 = vmatprep.subr.mxu0 %v44
  %472 = vmatpush1.msra.mxu0 %v43
  %473 = vmatprep.subr.mxu0 %v48
  %474 = vmatpush1.msra.mxu0 %v47
  %475 = vmatprep.subr.mxu0 %v52
  %476 = vmatpush1.msra.mxu0 %v51
  %477 = vmatprep.subr.mxu0 %v56
  %478 = vmatpush1.msra.mxu0 %v55
  %479 = vmatprep.subr.mxu0 %v60
  %480 = vmatpush1.msra.mxu0 %v59
  %481 = vmatprep.subr.mxu0 %v64
  %482 = vmatpush1.msra.mxu0 %v63
  %483 = vmatprep.subr.mxu0 %v68
  %484 = vmatpush1.msra.mxu0 %v67
  %485 = vmatprep.subr.mxu0 %v72
  %486 = vmatpush1.msra.mxu0 %v71
  %487 = vmatprep.subr.mxu0 %v76
  %488 = vmatpush1.msra.mxu0 %v75
  %489 = vmatprep.subr.mxu0 %v80
  %490 = vmatpush1.msra.mxu0 %v79
  %491 = vmatprep.subr.mxu0 %v84
  %492 = vmatpush1.msra.mxu0 %v83
  %493 = vmatprep.subr.mxu0 %v88
  %494 = vmatpush1.msra.mxu0 %v87
  %495 = vmatprep.subr.mxu0 %v92
  %496 = vmatpush1.msra.mxu0 %v91
  %497 = vmatprep.subr.mxu0 %v96
  %498 = vmatpush1.msra.mxu0 %v95
  %499 = vmatprep.subr.mxu0 %v100
  %500 = vmatpush1.msra.mxu0 %v99
  %501 = vmatprep.subr.mxu0 %v104
  %502 = vmatpush1.msra.mxu0 %v103
  %503 = vmatprep.subr.mxu0 %v108
  %504 = vmatpush1.msra.mxu0 %v107
  %505 = vmatprep.subr.mxu0 %v112
  %506 = vmatpush1.msra.mxu0 %v111
  %507 = vmatprep.subr.mxu0 %v116
  %508 = vmatpush1.msra.mxu0 %v115
  %509 = vmatprep.subr.mxu0 %v120
  %510 = vmatpush1.msra.mxu0 %v119
  %511 = vmatprep.subr.mxu0 %v124
  %512 = vmatpush1.msra.mxu0 %v123
  %513 = vmatprep.subr.mxu0 %v128
  %514 = vmatpush1.msra.mxu0 %v127
  %515 = vmatprep.subr.mxu0 %v132
  %516 = vmatpush1.msra.mxu0 %v131
  %517 = vmatprep.subr.mxu0 %v136
  %518 = vmatpush1.msra.mxu0 %v135
  %519 = vmatprep.subr.mxu0 %v140
  %520 = vmatpush1.msra.mxu0 %v139
  %521 = vmatprep.subr.mxu0 %v144
  %522 = vmatpush1.msra.mxu0 %v143
  %523 = vmatprep.subr.mxu0 %v148
  %524 = vmatpush1.msra.mxu0 %v147
  %525 = vmatprep.subr.mxu0 %v152
  %526 = vmatpush1.msra.mxu0 %v151
  %527 = vmatprep.subr.mxu0 %v156
  %528 = vmatpush1.msra.mxu0 %v155
  %529 = vmatprep.subr.mxu0 %v160
  %530 = vmatpush1.msra.mxu0 %v159
  %531 = vmatprep.subr.mxu0 %v164
  %532 = vmatpush1.msra.mxu0 %v163
  %533 = vmatprep.mubr.f32.mxu0 %v30
  %534 = vmatmul.mubr.f32.gmra.mrb[0].mxu0 %v29
  %v535 = vpop.f32.mrb[0].mxu0
  %v536 = vadd.f32 %v306, %v535
  %v537 = vpop.f32.mrb[0].mxu0
  %v538 = vadd.f32 %v310, %v537
  %539 = vmatprep.mubr.f32.mxu0 %v34
  %540 = vmatmul.mubr.f32.gmra.mrb[0].mxu0 %v33
  %v541 = vpop.f32.mrb[0].mxu0
  %v542 = vadd.f32 %v306, %v541
  %v543 = vpop.f32.mrb[0].mxu0
  %v544 = vadd.f32 %v310, %v543
  %545 = vdwg.mxu0
  %546 = vmatprep.subr.mxu0 %v168
  %547 = vmatpush1.msra.mxu0 %v167
  %548 = vmatprep.subr.mxu0 %v172
  %549 = vmatpush1.msra.mxu0 %v171
  %550 = vmatprep.subr.mxu0 %v176
  %551 = vmatpush1.msra.mxu0 %v175
  %552 = vmatprep.subr.mxu0 %v180
  %553 = vmatpush1.msra.mxu0 %v179
  %554 = vmatprep.subr.mxu0 %v184
  %555 = vmatpush1.msra.mxu0 %v183
  %556 = vmatprep.subr.mxu0 %v188
  %557 = vmatpush1.msra.mxu0 %v187
  %558 = vmatprep.subr.mxu0 %v192
  %559 = vmatpush1.msra.mxu0 %v191
  %560 = vmatprep.subr.mxu0 %v196
  %561 = vmatpush1.msra.mxu0 %v195
  %562 = vmatprep.subr.mxu0 %v200
  %563 = vmatpush1.msra.mxu0 %v199
  %564 = vmatprep.subr.mxu0 %v204
  %565 = vmatpush1.msra.mxu0 %v203
  %566 = vmatprep.subr.mxu0 %v208
  %567 = vmatpush1.msra.mxu0 %v207
  %568 = vmatprep.subr.mxu0 %v212
  %569 = vmatpush1.msra.mxu0 %v211
  %570 = vmatprep.subr.mxu0 %v216
  %571 = vmatpush1.msra.mxu0 %v215
  %572 = vmatprep.subr.mxu0 %v220
  %573 = vmatpush1.msra.mxu0 %v219
  %574 = vmatprep.subr.mxu0 %v224
  %575 = vmatpush1.msra.mxu0 %v223
  %576 = vmatprep.subr.mxu0 %v228
  %577 = vmatpush1.msra.mxu0 %v227
  %578 = vmatprep.subr.mxu0 %v232
  %579 = vmatpush1.msra.mxu0 %v231
  %580 = vmatprep.subr.mxu0 %v236
  %581 = vmatpush1.msra.mxu0 %v235
  %582 = vmatprep.subr.mxu0 %v240
  %583 = vmatpush1.msra.mxu0 %v239
  %584 = vmatprep.subr.mxu0 %v244
  %585 = vmatpush1.msra.mxu0 %v243
  %586 = vmatprep.subr.mxu0 %v248
  %587 = vmatpush1.msra.mxu0 %v247
  %588 = vmatprep.subr.mxu0 %v252
  %589 = vmatpush1.msra.mxu0 %v251
  %590 = vmatprep.subr.mxu0 %v256
  %591 = vmatpush1.msra.mxu0 %v255
  %592 = vmatprep.subr.mxu0 %v260
  %593 = vmatpush1.msra.mxu0 %v259
  %594 = vmatprep.subr.mxu0 %v264
  %595 = vmatpush1.msra.mxu0 %v263
  %596 = vmatprep.subr.mxu0 %v268
  %597 = vmatpush1.msra.mxu0 %v267
  %598 = vmatprep.subr.mxu0 %v272
  %599 = vmatpush1.msra.mxu0 %v271
  %600 = vmatprep.subr.mxu0 %v276
  %601 = vmatpush1.msra.mxu0 %v275
  %602 = vmatprep.subr.mxu0 %v280
  %603 = vmatpush1.msra.mxu0 %v279
  %604 = vmatprep.subr.mxu0 %v284
  %605 = vmatpush1.msra.mxu0 %v283
  %606 = vmatprep.subr.mxu0 %v288
  %607 = vmatpush1.msra.mxu0 %v287
  %608 = vmatprep.subr.mxu0 %v292
  %609 = vmatpush1.msra.mxu0 %v291
  %610 = vmatprep.mubr.f32.mxu0 %v32
  %611 = vmatmul.mubr.f32.gmra.mrb[0].mxu0 %v31
  %v612 = vpop.f32.mrb[0].mxu0
  %v613 = vadd.f32 %v536, %v612
  %v614 = vpop.f32.mrb[0].mxu0
  %v615 = vadd.f32 %v538, %v614
  %616 = vmatprep.mubr.f32.mxu0 %v36
  %617 = vmatmul.mubr.f32.gmra.mrb[0].mxu0 %v35
  %v618 = vpop.f32.mrb[0].mxu0
  %v619 = vadd.f32 %v542, %v618
  %v620 = vpop.f32.mrb[0].mxu0
  %v621 = vadd.f32 %v544, %v620
  %622 = vdwg.mxu0
  %v623 = vld [vmem:[%s3] sm:$0xff]
  %v624 = vld [vmem:[%s3 + $0x8] sm:$0xff]
  %v625 = vld [vmem:[%s3 + $0x10] sm:$0xff]
  %v626 = vld [vmem:[%s3 + $0x18] sm:$0xff]
  %v627 = vld [vmem:[%s3 + $0x20] sm:$0xff]
  %v628 = vld [vmem:[%s3 + $0x28] sm:$0xff]
  %v629 = vld [vmem:[%s3 + $0x30] sm:$0xff]
  %v630 = vld [vmem:[%s3 + $0x38] sm:$0xff]
  %v631 = vadd.f32 %v459, %v623
  %v632 = vadd.f32 %v461, %v624
  %v633 = vadd.f32 %v613, %v625
  %v634 = vadd.f32 %v615, %v626
  %v635 = vadd.f32 %v465, %v627
  %v636 = vadd.f32 %v467, %v628
  %v637 = vadd.f32 %v619, %v629
  %v638 = vadd.f32 %v621, %v630
  %v639 = vld [vmem:[%s4] sm:$0xf]
  %v640 = vld [vmem:[%s5] sm:$0xf]
  %v641 = vadd.f32 %v631, %v632
  %v642 = vadd.f32 %v641, %v633
  %v643 = vadd.f32 %v642, %v634
  %644 = vadd.xlane.f32.xlu0 %v643
  %v645 = vpop.xlane.xlu0 %644
  %v646 = vadd.f32 %v635, %v636
  %v647 = vadd.f32 %v646, %v637
  %v648 = vadd.f32 %v647, %v638
  %649 = vadd.xlane.f32.xlu0 %v648
  %v650 = vpop.xlane.xlu0 %649
  %v651 = vrcp.pop 512.0
  %v652 = vmul.f32 %v645, %v651
  %v653 = vmul.f32 %v650, %v651
  %v654 = vsub.f32 %v631, %v652
  %v655 = vsub.f32 %v632, %v652
  %v656 = vsub.f32 %v633, %v652
  %v657 = vsub.f32 %v634, %v652
  %v658 = vsub.f32 %v635, %v653
  %v659 = vsub.f32 %v636, %v653
  %v660 = vsub.f32 %v637, %v653
  %v661 = vsub.f32 %v638, %v653
  %v662 = vmul.f32 %v654, %v654
  %v663 = vmul.f32 %v655, %v655
  %v664 = vmul.f32 %v656, %v656
  %v665 = vmul.f32 %v657, %v657
  %v666 = vmul.f32 %v658, %v658
  %v667 = vmul.f32 %v659, %v659
  %v668 = vmul.f32 %v660, %v660
  %v669 = vmul.f32 %v661, %v661
  %v670 = vadd.f32 %v662, %v663
  %v671 = vadd.f32 %v670, %v664
  %v672 = vadd.f32 %v671, %v665
  %673 = vadd.xlane.f32.xlu0 %v672
  %v674 = vpop.xlane.xlu0 %673
  %v675 = vadd.f32 %v666, %v667
  %v676 = vadd.f32 %v675, %v668
  %v677 = vadd.f32 %v676, %v669
  %678 = vadd.xlane.f32.xlu0 %v677
  %v679 = vpop.xlane.xlu0 %678
  %v680 = vmul.f32 %v674, %v651
  %v681 = vmul.f32 %v679, %v651
  %v682 = vadd.f32 %v680, 1e-05
  %v683 = vadd.f32 %v681, 1e-05
  %v684 = vrsqrt.pop %v682
  %v685 = vrsqrt.pop %v683
  %v686 = vmul.f32 %v654, %v684
  %v687 = vmul.f32 %v655, %v684
  %v688 = vmul.f32 %v656, %v684
  %v689 = vmul.f32 %v657, %v684
  %v690 = vmul.f32 %v658, %v685
  %v691 = vmul.f32 %v659, %v685
  %v692 = vmul.f32 %v660, %v685
  %v693 = vmul.f32 %v661, %v685
  %v695 = vlaneseq
  %v696 = vshrl.u32 %v695, 7
  %v697 = vsub.s32 0, %v696
  %v698 = vrot.slane %v639, %v697
  %v699 = vlaneseq
  %v700 = vshrl.u32 %v699, 7
  %v701 = vsub.s32 1, %v700
  %v702 = vrot.slane %v639, %v701
  %v703 = vlaneseq
  %v704 = vshrl.u32 %v703, 7
  %v705 = vsub.s32 2, %v704
  %v706 = vrot.slane %v639, %v705
  %v707 = vlaneseq
  %v708 = vshrl.u32 %v707, 7
  %v709 = vsub.s32 3, %v708
  %v710 = vrot.slane %v639, %v709
  %v715 = vmul.f32 %v686, %v698
  %v716 = vmul.f32 %v687, %v702
  %v717 = vmul.f32 %v688, %v706
  %v718 = vmul.f32 %v689, %v710
  %v719 = vmul.f32 %v690, %v698
  %v720 = vmul.f32 %v691, %v702
  %v721 = vmul.f32 %v692, %v706
  %v722 = vmul.f32 %v693, %v710
  %v724 = vlaneseq
  %v725 = vshrl.u32 %v724, 7
  %v726 = vsub.s32 0, %v725
  %v727 = vrot.slane %v640, %v726
  %v728 = vlaneseq
  %v729 = vshrl.u32 %v728, 7
  %v730 = vsub.s32 1, %v729
  %v731 = vrot.slane %v640, %v730
  %v732 = vlaneseq
  %v733 = vshrl.u32 %v732, 7
  %v734 = vsub.s32 2, %v733
  %v735 = vrot.slane %v640, %v734
  %v736 = vlaneseq
  %v737 = vshrl.u32 %v736, 7
  %v738 = vsub.s32 3, %v737
  %v739 = vrot.slane %v640, %v738
  %v744 = vadd.f32 %v715, %v727
  %v745 = vadd.f32 %v716, %v731
  %v746 = vadd.f32 %v717, %v735
  %v747 = vadd.f32 %v718, %v739
  %v748 = vadd.f32 %v719, %v727
  %v749 = vadd.f32 %v720, %v731
  %v750 = vadd.f32 %v721, %v735
  %v751 = vadd.f32 %v722, %v739
  %v752 = vadd.f32 %v623, %v744
  %v753 = vadd.f32 %v624, %v745
  %v754 = vadd.f32 %v625, %v746
  %v755 = vadd.f32 %v626, %v747
  %v756 = vadd.f32 %v627, %v748
  %v757 = vadd.f32 %v628, %v749
  %v758 = vadd.f32 %v629, %v750
  %v759 = vadd.f32 %v630, %v751
  %v760 = vld [vmem:[%s6] sm:$0xf]
  %v761 = vld [vmem:[%s7] sm:$0xf]
  %v762 = vadd.f32 %v752, %v753
  %v763 = vadd.f32 %v762, %v754
  %v764 = vadd.f32 %v763, %v755
  %765 = vadd.xlane.f32.xlu0 %v764
  %v766 = vpop.xlane.xlu0 %765
  %v767 = vadd.f32 %v756, %v757
  %v768 = vadd.f32 %v767, %v758
  %v769 = vadd.f32 %v768, %v759
  %770 = vadd.xlane.f32.xlu0 %v769
  %v771 = vpop.xlane.xlu0 %770
  %v772 = vmul.f32 %v766, %v651
  %v773 = vmul.f32 %v771, %v651
  %v774 = vsub.f32 %v752, %v772
  %v775 = vsub.f32 %v753, %v772
  %v776 = vsub.f32 %v754, %v772
  %v777 = vsub.f32 %v755, %v772
  %v778 = vsub.f32 %v756, %v773
  %v779 = vsub.f32 %v757, %v773
  %v780 = vsub.f32 %v758, %v773
  %v781 = vsub.f32 %v759, %v773
  %v782 = vmul.f32 %v774, %v774
  %v783 = vmul.f32 %v775, %v775
  %v784 = vmul.f32 %v776, %v776
  %v785 = vmul.f32 %v777, %v777
  %v786 = vmul.f32 %v778, %v778
  %v787 = vmul.f32 %v779, %v779
  %v788 = vmul.f32 %v780, %v780
  %v789 = vmul.f32 %v781, %v781
  %v790 = vadd.f32 %v782, %v783
  %v791 = vadd.f32 %v790, %v784
  %v792 = vadd.f32 %v791, %v785
  %793 = vadd.xlane.f32.xlu0 %v792
  %v794 = vpop.xlane.xlu0 %793
  %v795 = vadd.f32 %v786, %v787
  %v796 = vadd.f32 %v795, %v788
  %v797 = vadd.f32 %v796, %v789
  %798 = vadd.xlane.f32.xlu0 %v797
  %v799 = vpop.xlane.xlu0 %798
  %v800 = vmul.f32 %v794, %v651
  %v801 = vmul.f32 %v799, %v651
  %v802 = vadd.f32 %v800, 1e-05
  %v803 = vadd.f32 %v801, 1e-05
  %v804 = vrsqrt.pop %v802
  %v805 = vrsqrt.pop %v803
  %v806 = vmul.f32 %v774, %v804
  %v807 = vmul.f32 %v775, %v804
  %v808 = vmul.f32 %v776, %v804
  %v809 = vmul.f32 %v777, %v804
  %v810 = vmul.f32 %v778, %v805
  %v811 = vmul.f32 %v779, %v805
  %v812 = vmul.f32 %v780, %v805
  %v813 = vmul.f32 %v781, %v805
  %v815 = vlaneseq
  %v816 = vshrl.u32 %v815, 7
  %v817 = vsub.s32 0, %v816
  %v818 = vrot.slane %v760, %v817
  %v819 = vlaneseq
  %v820 = vshrl.u32 %v819, 7
  %v821 = vsub.s32 1, %v820
  %v822 = vrot.slane %v760, %v821
  %v823 = vlaneseq
  %v824 = vshrl.u32 %v823, 7
  %v825 = vsub.s32 2, %v824
  %v826 = vrot.slane %v760, %v825
  %v827 = vlaneseq
  %v828 = vshrl.u32 %v827, 7
  %v829 = vsub.s32 3, %v828
  %v830 = vrot.slane %v760, %v829
  %v835 = vmul.f32 %v806, %v818
  %v836 = vmul.f32 %v807, %v822
  %v837 = vmul.f32 %v808, %v826
  %v838 = vmul.f32 %v809, %v830
  %v839 = vmul.f32 %v810, %v818
  %v840 = vmul.f32 %v811, %v822
  %v841 = vmul.f32 %v812, %v826
  %v842 = vmul.f32 %v813, %v830
  %v844 = vlaneseq
  %v845 = vshrl.u32 %v844, 7
  %v846 = vsub.s32 0, %v845
  %v847 = vrot.slane %v761, %v846
  %v848 = vlaneseq
  %v849 = vshrl.u32 %v848, 7
  %v850 = vsub.s32 1, %v849
  %v851 = vrot.slane %v761, %v850
  %v852 = vlaneseq
  %v853 = vshrl.u32 %v852, 7
  %v854 = vsub.s32 2, %v853
  %v855 = vrot.slane %v761, %v854
  %v856 = vlaneseq
  %v857 = vshrl.u32 %v856, 7
  %v858 = vsub.s32 3, %v857
  %v859 = vrot.slane %v761, %v858
  %v864 = vadd.f32 %v835, %v847
  %v865 = vadd.f32 %v836, %v851
  %v866 = vadd.f32 %v837, %v855
  %v867 = vadd.f32 %v838, %v859
  %v868 = vadd.f32 %v839, %v847
  %v869 = vadd.f32 %v840, %v851
  %v870 = vadd.f32 %v841, %v855
  %v871 = vadd.f32 %v842, %v859
  %872 = vst [vmem:[%s8] sm:$0xff] %v864
  %873 = vst [vmem:[%s8 + $0x8] sm:$0xff] %v865
  %874 = vst [vmem:[%s8 + $0x10] sm:$0xff] %v866
  %875 = vst [vmem:[%s8 + $0x18] sm:$0xff] %v867
  %876 = vst [vmem:[%s8 + $0x20] sm:$0xff] %v868
  %877 = vst [vmem:[%s8 + $0x28] sm:$0xff] %v869
  %878 = vst [vmem:[%s8 + $0x30] sm:$0xff] %v870
  %879 = vst [vmem:[%s8 + $0x38] sm:$0xff] %v871
  // Predicated region
  $region34: #{decoder_layer_forward.7} parent=0 // pred_check
    _
  $region35: #{decoder_layer_forward.7} parent=0 // pred_check_branch
    %881 = sbr.rel (0) target = $region37
  $region36: #{decoder_layer_forward.7} parent=0 // pred_region
    _
  $region37: #{decoder_layer_forward.7} parent=0 // pred_fallthru
    _
  // Predicated region
  $region38: #{decoder_layer_forward.7} parent=0 // pred_check
    _
  $region39: #{decoder_layer_forward.7} parent=0 // pred_check_branch
    %883 = sbr.rel (0) target = $region41
  $region40: #{decoder_layer_forward.7} parent=0 // pred_region
    _
  $region41: #{decoder_layer_forward.7} parent=0 // pred_fallthru
    _

// kernel: decoder_layer_forward.5
$region0: #{decoder_layer_forward.5}
  #allocation0 [shape = 'u32[]', space=smem, size = 0x4, offset = 0x4, fixed_abs, tag = 'smem constant byte address 0x4 - core index']
  #allocation1 [shape = 'u32[144,128]{1,0:T(1,128)}', space=vmem, size = 0x12000, scoped, tag = 'internal scratch']
  %s0 = inlined_call_operand.vmem [shape: f32[16,512], index: 0, kind: input, shape index: {}]
  %s1 = inlined_call_operand.vmem [shape: f32[512,1536], index: 1, kind: input, shape index: {}]
  %s2 = inlined_call_operand.vmem [shape: f32[1,1536], index: 2, kind: input, shape index: {}]
  %s3 = inlined_call_operand.vmem [shape: f32[16,1536], index: 3, kind: output, shape index: {}]
  %s4 = sld [smem:[#allocation0]]
  $region22: #{decoder_layer_forward.5} parent=0
    _
  %s6 = ssub.s32 1, %s4
  %s7 = scalar_select 0, %s6, %s4
  // Predicated region
  $region2: #{decoder_layer_forward.5} parent=0 // pred_check
    _
  $region3: #{decoder_layer_forward.5} parent=0 // pred_check_branch
    %9 = sbr.rel (0) target = $region5
  $region4: #{decoder_layer_forward.5} parent=0 // pred_region
    _
  $region5: #{decoder_layer_forward.5} parent=0 // pred_fallthru
    _
  // Predicated region
  $region6: #{decoder_layer_forward.5} parent=0 // pred_check
    _
  $region7: #{decoder_layer_forward.5} parent=0 // pred_check_branch
    %11 = sbr.rel (0) target = $region9
  $region8: #{decoder_layer_forward.5} parent=0 // pred_region
    _
  $region9: #{decoder_layer_forward.5} parent=0 // pred_fallthru
    _
  // Predicated region
  $region10: #{decoder_layer_forward.5} parent=0 // pred_check
    _
  $region11: #{decoder_layer_forward.5} parent=0 // pred_check_branch
    %13 = sbr.rel (0) target = $region13
  $region12: #{decoder_layer_forward.5} parent=0 // pred_region
    _
  $region13: #{decoder_layer_forward.5} parent=0 // pred_fallthru
    _
  %v14 = vld [vmem:[%s0] sm:$0xff]
  %v15 = vld [vmem:[%s0 + $0x8] sm:$0xff]
  %v16 = vld [vmem:[%s0 + $0x10] sm:$0xff]
  %v17 = vld [vmem:[%s0 + $0x18] sm:$0xff]
  %v18 = vld [vmem:[%s0 + $0x20] sm:$0xff]
  %v19 = vld [vmem:[%s0 + $0x28] sm:$0xff]
  %v20 = vld [vmem:[%s0 + $0x30] sm:$0xff]
  %v21 = vld [vmem:[%s0 + $0x38] sm:$0xff]
  %v22 = vld [vmem:[%s1] sm:$0xff]
  %v23 = vld [vmem:[%s1 + $0x8] sm:$0xff]
  %v24 = vld [vmem:[%s1 + $0x10] sm:$0xff]
  %v25 = vld [vmem:[%s1 + $0x18] sm:$0xff]
  %v26 = vld [vmem:[%s1 + $0x20] sm:$0xff]
  %v27 = vld [vmem:[%s1 + $0x28] sm:$0xff]
  %v28 = vld [vmem:[%s1 + $0x30] sm:$0xff]
  %v29 = vld [vmem:[%s1 + $0x38] sm:$0xff]
  %v30 = vld [vmem:[%s1 + $0x40] sm:$0xff]
  %v31 = vld [vmem:[%s1 + $0x48] sm:$0xff]
  %v32 = vld [vmem:[%s1 + $0x50] sm:$0xff]
  %v33 = vld [vmem:[%s1 + $0x58] sm:$0xff]
  %v34 = vld [vmem:[%s1 + $0x60] sm:$0xff]
  %v35 = vld [vmem:[%s1 + $0x68] sm:$0xff]
  %v36 = vld [vmem:[%s1 + $0x70] sm:$0xff]
  %v37 = vld [vmem:[%s1 + $0x78] sm:$0xff]
  %v38 = vld [vmem:[%s1 + $0x80] sm:$0xff]
  %v39 = vld [vmem:[%s1 + $0x88] sm:$0xff]
  %v40 = vld [vmem:[%s1 + $0x90] sm:$0xff]
  %v41 = vld [vmem:[%s1 + $0x98] sm:$0xff]
  %v42 = vld [vmem:[%s1 + $0xa0] sm:$0xff]
  %v43 = vld [vmem:[%s1 + $0xa8] sm:$0xff]
  %v44 = vld [vmem:[%s1 + $0xb0] sm:$0xff]
  %v45 = vld [vmem:[%s1 + $0xb8] sm:$0xff]
  %v46 = vld [vmem:[%s1 + $0xc0] sm:$0xff]
  %v47 = vld [vmem:[%s1 + $0xc8] sm:$0xff]
  %v48 = vld [vmem:[%s1 + $0xd0] sm:$0xff]
  %v49 = vld [vmem:[%s1 + $0xd8] sm:$0xff]
  %v50 = vld [vmem:[%s1 + $0xe0] sm:$0xff]
  %v51 = vld [vmem:[%s1 + $0xe8] sm:$0xff]
  %v52 = vld [vmem:[%s1 + $0xf0] sm:$0xff]
  %v53 = vld [vmem:[%s1 + $0xf8] sm:$0xff]
  %v54 = vld [vmem:[%s1 + $0x100] sm:$0xff]
  %v55 = vld [vmem:[%s1 + $0x108] sm:$0xff]
  %v56 = vld [vmem:[%s1 + $0x110] sm:$0xff]
  %v57 = vld [vmem:[%s1 + $0x118] sm:$0xff]
  %v58 = vld [vmem:[%s1 + $0x120] sm:$0xff]
  %v59 = vld [vmem:[%s1 + $0x128] sm:$0xff]
  %v60 = vld [vmem:[%s1 + $0x130] sm:$0xff]
  %v61 = vld [vmem:[%s1 + $0x138] sm:$0xff]
  %v62 = vld [vmem:[%s1 + $0x140] sm:$0xff]
  %v63 = vld [vmem:[%s1 + $0x148] sm:$0xff]
  %v64 = vld [vmem:[%s1 + $0x150] sm:$0xff]
  %v65 = vld [vmem:[%s1 + $0x158] sm:$0xff]
  %v66 = vld [vmem:[%s1 + $0x160] sm:$0xff]
  %v67 = vld [vmem:[%s1 + $0x168] sm:$0xff]
  %v68 = vld [vmem:[%s1 + $0x170] sm:$0xff]
  %v69 = vld [vmem:[%s1 + $0x178] sm:$0xff]
  %v70 = vld [vmem:[%s1 + $0x180] sm:$0xff]
  %v71 = vld [vmem:[%s1 + $0x188] sm:$0xff]
  %v72 = vld [vmem:[%s1 + $0x190] sm:$0xff]
  %v73 = vld [vmem:[%s1 + $0x198] sm:$0xff]
  %v74 = vld [vmem:[%s1 + $0x1a0] sm:$0xff]
  %v75 = vld [vmem:[%s1 + $0x1a8] sm:$0xff]
  %v76 = vld [vmem:[%s1 + $0x1b0] sm:$0xff]
  %v77 = vld [vmem:[%s1 + $0x1b8] sm:$0xff]
  %v78 = vld [vmem:[%s1 + $0x1c0] sm:$0xff]
  %v79 = vld [vmem:[%s1 + $0x1c8] sm:$0xff]
  %v80 = vld [vmem:[%s1 + $0x1d0] sm:$0xff]
  %v81 = vld [vmem:[%s1 + $0x1d8] sm:$0xff]
  %v82 = vld [vmem:[%s1 + $0x1e0] sm:$0xff]
  %v83 = vld [vmem:[%s1 + $0x1e8] sm:$0xff]
  %v84 = vld [vmem:[%s1 + $0x1f0] sm:$0xff]
  %v85 = vld [vmem:[%s1 + $0x1f8] sm:$0xff]
  %v86 = vld [vmem:[%s1 + $0x200] sm:$0xff]
  %v87 = vld [vmem:[%s1 + $0x208] sm:$0xff]
  %v88 = vld [vmem:[%s1 + $0x210] sm:$0xff]
  %v89 = vld [vmem:[%s1 + $0x218] sm:$0xff]
  %v90 = vld [vmem:[%s1 + $0x220] sm:$0xff]
  %v91 = vld [vmem:[%s1 + $0x228] sm:$0xff]
  %v92 = vld [vmem:[%s1 + $0x230] sm:$0xff]
  %v93 = vld [vmem:[%s1 + $0x238] sm:$0xff]
  %v94 = vld [vmem:[%s1 + $0x240] sm:$0xff]
  %v95 = vld [vmem:[%s1 + $0x248] sm:$0xff]
  %v96 = vld [vmem:[%s1 + $0x250] sm:$0xff]
  %v97 = vld [vmem:[%s1 + $0x258] sm:$0xff]
  %v98 = vld [vmem:[%s1 + $0x260] sm:$0xff]
  %v99 = vld [vmem:[%s1 + $0x268] sm:$0xff]
  %v100 = vld [vmem:[%s1 + $0x270] sm:$0xff]
  %v101 = vld [vmem:[%s1 + $0x278] sm:$0xff]
  %v102 = vld [vmem:[%s1 + $0x280] sm:$0xff]
  %v103 = vld [vmem:[%s1 + $0x288] sm:$0xff]
  %v104 = vld [vmem:[%s1 + $0x290] sm:$0xff]
  %v105 = vld [vmem:[%s1 + $0x298] sm:$0xff]
  %v106 = vld [vmem:[%s1 + $0x2a0] sm:$0xff]
  %v107 = vld [vmem:[%s1 + $0x2a8] sm:$0xff]
  %v108 = vld [vmem:[%s1 + $0x2b0] sm:$0xff]
  %v109 = vld [vmem:[%s1 + $0x2b8] sm:$0xff]
  %v110 = vld [vmem:[%s1 + $0x2c0] sm:$0xff]
  %v111 = vld [vmem:[%s1 + $0x2c8] sm:$0xff]
  %v112 = vld [vmem:[%s1 + $0x2d0] sm:$0xff]
  %v113 = vld [vmem:[%s1 + $0x2d8] sm:$0xff]
  %v114 = vld [vmem:[%s1 + $0x2e0] sm:$0xff]
  %v115 = vld [vmem:[%s1 + $0x2e8] sm:$0xff]
  %v116 = vld [vmem:[%s1 + $0x2f0] sm:$0xff]
  %v117 = vld [vmem:[%s1 + $0x2f8] sm:$0xff]
  %v118 = vld [vmem:[%s1 + $0x300] sm:$0xff]
  %v119 = vld [vmem:[%s1 + $0x308] sm:$0xff]
  %v120 = vld [vmem:[%s1 + $0x310] sm:$0xff]
  %v121 = vld [vmem:[%s1 + $0x318] sm:$0xff]
  %v122 = vld [vmem:[%s1 + $0x320] sm:$0xff]
  %v123 = vld [vmem:[%s1 + $0x328] sm:$0xff]
  %v124 = vld [vmem:[%s1 + $0x330] sm:$0xff]
  %v125 = vld [vmem:[%s1 + $0x338] sm:$0xff]
  %v126 = vld [vmem:[%s1 + $0x340] sm:$0xff]
  %v127 = vld [vmem:[%s1 + $0x348] sm:$0xff]
  %v128 = vld [vmem:[%s1 + $0x350] sm:$0xff]
  %v129 = vld [vmem:[%s1 + $0x358] sm:$0xff]
  %v130 = vld [vmem:[%s1 + $0x360] sm:$0xff]
  %v131 = vld [vmem:[%s1 + $0x368] sm:$0xff]
  %v132 = vld [vmem:[%s1 + $0x370] sm:$0xff]
  %v133 = vld [vmem:[%s1 + $0x378] sm:$0xff]
  %v134 = vld [vmem:[%s1 + $0x380] sm:$0xff]
  %v135 = vld [vmem:[%s1 + $0x388] sm:$0xff]
  %v136 = vld [vmem:[%s1 + $0x390] sm:$0xff]
  %v137 = vld [vmem:[%s1 + $0x398] sm:$0xff]
  %v138 = vld [vmem:[%s1 + $0x3a0] sm:$0xff]
  %v139 = vld [vmem:[%s1 + $0x3a8] sm:$0xff]
  %v140 = vld [vmem:[%s1 + $0x3b0] sm:$0xff]
  %v141 = vld [vmem:[%s1 + $0x3b8] sm:$0xff]
  %v142 = vld [vmem:[%s1 + $0x3c0] sm:$0xff]
  %v143 = vld [vmem:[%s1 + $0x3c8] sm:$0xff]
  %v144 = vld [vmem:[%s1 + $0x3d0] sm:$0xff]
  %v145 = vld [vmem:[%s1 + $0x3d8] sm:$0xff]
  %v146 = vld [vmem:[%s1 + $0x3e0] sm:$0xff]
  %v147 = vld [vmem:[%s1 + $0x3e8] sm:$0xff]
  %v148 = vld [vmem:[%s1 + $0x3f0] sm:$0xff]
  %v149 = vld [vmem:[%s1 + $0x3f8] sm:$0xff]
  %v150 = vld [vmem:[%s1 + $0x400] sm:$0xff]
  %v151 = vld [vmem:[%s1 + $0x408] sm:$0xff]
  %v152 = vld [vmem:[%s1 + $0x410] sm:$0xff]
  %v153 = vld [vmem:[%s1 + $0x418] sm:$0xff]
  %v154 = vld [vmem:[%s1 + $0x420] sm:$0xff]
  %v155 = vld [vmem:[%s1 + $0x428] sm:$0xff]
  %v156 = vld [vmem:[%s1 + $0x430] sm:$0xff]
  %v157 = vld [vmem:[%s1 + $0x438] sm:$0xff]
  %v158 = vld [vmem:[%s1 + $0x440] sm:$0xff]
  %v159 = vld [vmem:[%s1 + $0x448] sm:$0xff]
  %v160 = vld [vmem:[%s1 + $0x450] sm:$0xff]
  %v161 = vld [vmem:[%s1 + $0x458] sm:$0xff]
  %v162 = vld [vmem:[%s1 + $0x460] sm:$0xff]
  %v163 = vld [vmem:[%s1 + $0x468] sm:$0xff]
  %v164 = vld [vmem:[%s1 + $0x470] sm:$0xff]
  %v165 = vld [vmem:[%s1 + $0x478] sm:$0xff]
  %v166 = vld [vmem:[%s1 + $0x480] sm:$0xff]
  %v167 = vld [vmem:[%s1 + $0x488] sm:$0xff]
  %v168 = vld [vmem:[%s1 + $0x490] sm:$0xff]
  %v169 = vld [vmem:[%s1 + $0x498] sm:$0xff]
  %v170 = vld [vmem:[%s1 + $0x4a0] sm:$0xff]
  %v171 = vld [vmem:[%s1 + $0x4a8] sm:$0xff]
  %v172 = vld [vmem:[%s1 + $0x4b0] sm:$0xff]
  %v173 = vld [vmem:[%s1 + $0x4b8] sm:$0xff]
  %v174 = vld [vmem:[%s1 + $0x4c0] sm:$0xff]
  %v175 = vld [vmem:[%s1 + $0x4c8] sm:$0xff]
  %v176 = vld [vmem:[%s1 + $0x4d0] sm:$0xff]
  %v177 = vld [vmem:[%s1 + $0x4d8] sm:$0xff]
  %v178 = vld [vmem:[%s1 + $0x4e0] sm:$0xff]
  %v179 = vld [vmem:[%s1 + $0x4e8] sm:$0xff]
  %v180 = vld [vmem:[%s1 + $0x4f0] sm:$0xff]
  %v181 = vld [vmem:[%s1 + $0x4f8] sm:$0xff]
  %v182 = vld [vmem:[%s1 + $0x500] sm:$0xff]
  %v183 = vld [vmem:[%s1 + $0x508] sm:$0xff]
  %v184 = vld [vmem:[%s1 + $0x510] sm:$0xff]
  %v185 = vld [vmem:[%s1 + $0x518] sm:$0xff]
  %v186 = vld [vmem:[%s1 + $0x520] sm:$0xff]
  %v187 = vld [vmem:[%s1 + $0x528] sm:$0xff]
  %v188 = vld [vmem:[%s1 + $0x530] sm:$0xff]
  %v189 = vld [vmem:[%s1 + $0x538] sm:$0xff]
  %v190 = vld [vmem:[%s1 + $0x540] sm:$0xff]
  %v191 = vld [vmem:[%s1 + $0x548] sm:$0xff]
  %v192 = vld [vmem:[%s1 + $0x550] sm:$0xff]
  %v193 = vld [vmem:[%s1 + $0x558] sm:$0xff]
  %v194 = vld [vmem:[%s1 + $0x560] sm:$0xff]
  %v195 = vld [vmem:[%s1 + $0x568] sm:$0xff]
  %v196 = vld [vmem:[%s1 + $0x570] sm:$0xff]
  %v197 = vld [vmem:[%s1 + $0x578] sm:$0xff]
  %v198 = vld [vmem:[%s1 + $0x580] sm:$0xff]
  %v199 = vld [vmem:[%s1 + $0x588] sm:$0xff]
  %v200 = vld [vmem:[%s1 + $0x590] sm:$0xff]
  %v201 = vld [vmem:[%s1 + $0x598] sm:$0xff]
  %v202 = vld [vmem:[%s1 + $0x5a0] sm:$0xff]
  %v203 = vld [vmem:[%s1 + $0x5a8] sm:$0xff]
  %v204 = vld [vmem:[%s1 + $0x5b0] sm:$0xff]
  %v205 = vld [vmem:[%s1 + $0x5b8] sm:$0xff]
  %v206 = vld [vmem:[%s1 + $0x5c0] sm:$0xff]
  %v207 = vld [vmem:[%s1 + $0x5c8] sm:$0xff]
  %v208 = vld [vmem:[%s1 + $0x5d0] sm:$0xff]
  %v209 = vld [vmem:[%s1 + $0x5d8] sm:$0xff]
  %v210 = vld [vmem:[%s1 + $0x5e0] sm:$0xff]
  %v211 = vld [vmem:[%s1 + $0x5e8] sm:$0xff]
  %v212 = vld [vmem:[%s1 + $0x5f0] sm:$0xff]
  %v213 = vld [vmem:[%s1 + $0x5f8] sm:$0xff]
  %v214 = vld [vmem:[%s1 + $0x600] sm:$0xff]
  %v215 = vld [vmem:[%s1 + $0x608] sm:$0xff]
  %v216 = vld [vmem:[%s1 + $0x610] sm:$0xff]
  %v217 = vld [vmem:[%s1 + $0x618] sm:$0xff]
  %v218 = vld [vmem:[%s1 + $0x620] sm:$0xff]
  %v219 = vld [vmem:[%s1 + $0x628] sm:$0xff]
  %v220 = vld [vmem:[%s1 + $0x630] sm:$0xff]
  %v221 = vld [vmem:[%s1 + $0x638] sm:$0xff]
  %v222 = vld [vmem:[%s1 + $0x640] sm:$0xff]
  %v223 = vld [vmem:[%s1 + $0x648] sm:$0xff]
  %v224 = vld [vmem:[%s1 + $0x650] sm:$0xff]
  %v225 = vld [vmem:[%s1 + $0x658] sm:$0xff]
  %v226 = vld [vmem:[%s1 + $0x660] sm:$0xff]
  %v227 = vld [vmem:[%s1 + $0x668] sm:$0xff]
  %v228 = vld [vmem:[%s1 + $0x670] sm:$0xff]
  %v229 = vld [vmem:[%s1 + $0x678] sm:$0xff]
  %v230 = vld [vmem:[%s1 + $0x680] sm:$0xff]
  %v231 = vld [vmem:[%s1 + $0x688] sm:$0xff]
  %v232 = vld [vmem:[%s1 + $0x690] sm:$0xff]
  %v233 = vld [vmem:[%s1 + $0x698] sm:$0xff]
  %v234 = vld [vmem:[%s1 + $0x6a0] sm:$0xff]
  %v235 = vld [vmem:[%s1 + $0x6a8] sm:$0xff]
  %v236 = vld [vmem:[%s1 + $0x6b0] sm:$0xff]
  %v237 = vld [vmem:[%s1 + $0x6b8] sm:$0xff]
  %v238 = vld [vmem:[%s1 + $0x6c0] sm:$0xff]
  %v239 = vld [vmem:[%s1 + $0x6c8] sm:$0xff]
  %v240 = vld [vmem:[%s1 + $0x6d0] sm:$0xff]
  %v241 = vld [vmem:[%s1 + $0x6d8] sm:$0xff]
  %v242 = vld [vmem:[%s1 + $0x6e0] sm:$0xff]
  %v243 = vld [vmem:[%s1 + $0x6e8] sm:$0xff]
  %v244 = vld [vmem:[%s1 + $0x6f0] sm:$0xff]
  %v245 = vld [vmem:[%s1 + $0x6f8] sm:$0xff]
  %v246 = vld [vmem:[%s1 + $0x700] sm:$0xff]
  %v247 = vld [vmem:[%s1 + $0x708] sm:$0xff]
  %v248 = vld [vmem:[%s1 + $0x710] sm:$0xff]
  %v249 = vld [vmem:[%s1 + $0x718] sm:$0xff]
  %v250 = vld [vmem:[%s1 + $0x720] sm:$0xff]
  %v251 = vld [vmem:[%s1 + $0x728] sm:$0xff]
  %v252 = vld [vmem:[%s1 + $0x730] sm:$0xff]
  %v253 = vld [vmem:[%s1 + $0x738] sm:$0xff]
  %v254 = vld [vmem:[%s1 + $0x740] sm:$0xff]
  %v255 = vld [vmem:[%s1 + $0x748] sm:$0xff]
  %v256 = vld [vmem:[%s1 + $0x750] sm:$0xff]
  %v257 = vld [vmem:[%s1 + $0x758] sm:$0xff]
  %v258 = vld [vmem:[%s1 + $0x760] sm:$0xff]
  %v259 = vld [vmem:[%s1 + $0x768] sm:$0xff]
  %v260 = vld [vmem:[%s1 + $0x770] sm:$0xff]
  %v261 = vld [vmem:[%s1 + $0x778] sm:$0xff]
  %v262 = vld [vmem:[%s1 + $0x780] sm:$0xff]
  %v263 = vld [vmem:[%s1 + $0x788] sm:$0xff]
  %v264 = vld [vmem:[%s1 + $0x790] sm:$0xff]
  %v265 = vld [vmem:[%s1 + $0x798] sm:$0xff]
  %v266 = vld [vmem:[%s1 + $0x7a0] sm:$0xff]
  %v267 = vld [vmem:[%s1 + $0x7a8] sm:$0xff]
  %v268 = vld [vmem:[%s1 + $0x7b0] sm:$0xff]
  %v269 = vld [vmem:[%s1 + $0x7b8] sm:$0xff]
  %v270 = vld [vmem:[%s1 + $0x7c0] sm:$0xff]
  %v271 = vld [vmem:[%s1 + $0x7c8] sm:$0xff]
  %v272 = vld [vmem:[%s1 + $0x7d0] sm:$0xff]
  %v273 = vld [vmem:[%s1 + $0x7d8] sm:$0xff]
  %v274 = vld [vmem:[%s1 + $0x7e0] sm:$0xff]
  %v275 = vld [vmem:[%s1 + $0x7e8] sm:$0xff]
  %v276 = vld [vmem:[%s1 + $0x7f0] sm:$0xff]
  %v277 = vld [vmem:[%s1 + $0x7f8] sm:$0xff]
  %v278 = vld [vmem:[%s1 + $0x800] sm:$0xff]
  %v279 = vld [vmem:[%s1 + $0x808] sm:$0xff]
  %v280 = vld [vmem:[%s1 + $0x810] sm:$0xff]
  %v281 = vld [vmem:[%s1 + $0x818] sm:$0xff]
  %v282 = vld [vmem:[%s1 + $0x820] sm:$0xff]
  %v283 = vld [vmem:[%s1 + $0x828] sm:$0xff]
  %v284 = vld [vmem:[%s1 + $0x830] sm:$0xff]
  %v285 = vld [vmem:[%s1 + $0x838] sm:$0xff]
  %v286 = vld [vmem:[%s1 + $0x840] sm:$0xff]
  %v287 = vld [vmem:[%s1 + $0x848] sm:$0xff]
  %v288 = vld [vmem:[%s1 + $0x850] sm:$0xff]
  %v289 = vld [vmem:[%s1 + $0x858] sm:$0xff]
  %v290 = vld [vmem:[%s1 + $0x860] sm:$0xff]
  %v291 = vld [vmem:[%s1 + $0x868] sm:$0xff]
  %v292 = vld [vmem:[%s1 + $0x870] sm:$0xff]
  %v293 = vld [vmem:[%s1 + $0x878] sm:$0xff]
  %v294 = vld [vmem:[%s1 + $0x880] sm:$0xff]
  %v295 = vld [vmem:[%s1 + $0x888] sm:$0xff]
  %v296 = vld [vmem:[%s1 + $0x890] sm:$0xff]
  %v297 = vld [vmem:[%s1 + $0x898] sm:$0xff]
  %v298 = vld [vmem:[%s1 + $0x8a0] sm:$0xff]
  %v299 = vld [vmem:[%s1 + $0x8a8] sm:$0xff]
  %v300 = vld [vmem:[%s1 + $0x8b0] sm:$0xff]
  %v301 = vld [vmem:[%s1 + $0x8b8] sm:$0xff]
  %v302 = vld [vmem:[%s1 + $0x8c0] sm:$0xff]
  %v303 = vld [vmem:[%s1 + $0x8c8] sm:$0xff]
  %v304 = vld [vmem:[%s1 + $0x8d0] sm:$0xff]
  %v305 = vld [vmem:[%s1 + $0x8d8] sm:$0xff]
  %v306 = vld [vmem:[%s1 + $0x8e0] sm:$0xff]
  %v307 = vld [vmem:[%s1 + $0x8e8] sm:$0xff]
  %v308 = vld [vmem:[%s1 + $0x8f0] sm:$0xff]
  %v309 = vld [vmem:[%s1 + $0x8f8] sm:$0xff]
  %v310 = vld [vmem:[%s1 + $0x900] sm:$0xff]
  %v311 = vld [vmem:[%s1 + $0x908] sm:$0xff]
  %v312 = vld [vmem:[%s1 + $0x910] sm:$0xff]
  %v313 = vld [vmem:[%s1 + $0x918] sm:$0xff]
  %v314 = vld [vmem:[%s1 + $0x920] sm:$0xff]
  %v315 = vld [vmem:[%s1 + $0x928] sm:$0xff]
  %v316 = vld [vmem:[%s1 + $0x930] sm:$0xff]
  %v317 = vld [vmem:[%s1 + $0x938] sm:$0xff]
  %v318 = vld [vmem:[%s1 + $0x940] sm:$0xff]
  %v319 = vld [vmem:[%s1 + $0x948] sm:$0xff]
  %v320 = vld [vmem:[%s1 + $0x950] sm:$0xff]
  %v321 = vld [vmem:[%s1 + $0x958] sm:$0xff]
  %v322 = vld [vmem:[%s1 + $0x960] sm:$0xff]
  %v323 = vld [vmem:[%s1 + $0x968] sm:$0xff]
  %v324 = vld [vmem:[%s1 + $0x970] sm:$0xff]
  %v325 = vld [vmem:[%s1 + $0x978] sm:$0xff]
  %v326 = vld [vmem:[%s1 + $0x980] sm:$0xff]
  %v327 = vld [vmem:[%s1 + $0x988] sm:$0xff]
  %v328 = vld [vmem:[%s1 + $0x990] sm:$0xff]
  %v329 = vld [vmem:[%s1 + $0x998] sm:$0xff]
  %v330 = vld [vmem:[%s1 + $0x9a0] sm:$0xff]
  %v331 = vld [vmem:[%s1 + $0x9a8] sm:$0xff]
  %v332 = vld [vmem:[%s1 + $0x9b0] sm:$0xff]
  %v333 = vld [vmem:[%s1 + $0x9b8] sm:$0xff]
  %v334 = vld [vmem:[%s1 + $0x9c0] sm:$0xff]
  %v335 = vld [vmem:[%s1 + $0x9c8] sm:$0xff]
  %v336 = vld [vmem:[%s1 + $0x9d0] sm:$0xff]
  %v337 = vld [vmem:[%s1 + $0x9d8] sm:$0xff]
  %v338 = vld [vmem:[%s1 + $0x9e0] sm:$0xff]
  %v339 = vld [vmem:[%s1 + $0x9e8] sm:$0xff]
  %v340 = vld [vmem:[%s1 + $0x9f0] sm:$0xff]
  %v341 = vld [vmem:[%s1 + $0x9f8] sm:$0xff]
  %v342 = vld [vmem:[%s1 + $0xa00] sm:$0xff]
  %v343 = vld [vmem:[%s1 + $0xa08] sm:$0xff]
  %v344 = vld [vmem:[%s1 + $0xa10] sm:$0xff]
  %v345 = vld [vmem:[%s1 + $0xa18] sm:$0xff]
  %v346 = vld [vmem:[%s1 + $0xa20] sm:$0xff]
  %v347 = vld [vmem:[%s1 + $0xa28] sm:$0xff]
  %v348 = vld [vmem:[%s1 + $0xa30] sm:$0xff]
  %v349 = vld [vmem:[%s1 + $0xa38] sm:$0xff]
  %v350 = vld [vmem:[%s1 + $0xa40] sm:$0xff]
  %v351 = vld [vmem:[%s1 + $0xa48] sm:$0xff]
  %v352 = vld [vmem:[%s1 + $0xa50] sm:$0xff]
  %v353 = vld [vmem:[%s1 + $0xa58] sm:$0xff]
  %v354 = vld [vmem:[%s1 + $0xa60] sm:$0xff]
  %v355 = vld [vmem:[%s1 + $0xa68] sm:$0xff]
  %v356 = vld [vmem:[%s1 + $0xa70] sm:$0xff]
  %v357 = vld [vmem:[%s1 + $0xa78] sm:$0xff]
  %v358 = vld [vmem:[%s1 + $0xa80] sm:$0xff]
  %v359 = vld [vmem:[%s1 + $0xa88] sm:$0xff]
  %v360 = vld [vmem:[%s1 + $0xa90] sm:$0xff]
  %v361 = vld [vmem:[%s1 + $0xa98] sm:$0xff]
  %v362 = vld [vmem:[%s1 + $0xaa0] sm:$0xff]
  %v363 = vld [vmem:[%s1 + $0xaa8] sm:$0xff]
  %v364 = vld [vmem:[%s1 + $0xab0] sm:$0xff]
  %v365 = vld [vmem:[%s1 + $0xab8] sm:$0xff]
  %v366 = vld [vmem:[%s1 + $0xac0] sm:$0xff]
  %v367 = vld [vmem:[%s1 + $0xac8] sm:$0xff]
  %v368 = vld [vmem:[%s1 + $0xad0] sm:$0xff]
  %v369 = vld [vmem:[%s1 + $0xad8] sm:$0xff]
  %v370 = vld [vmem:[%s1 + $0xae0] sm:$0xff]
  %v371 = vld [vmem:[%s1 + $0xae8] sm:$0xff]
  %v372 = vld [vmem:[%s1 + $0xaf0] sm:$0xff]
  %v373 = vld [vmem:[%s1 + $0xaf8] sm:$0xff]
  %v374 = vld [vmem:[%s1 + $0xb00] sm:$0xff]
  %v375 = vld [vmem:[%s1 + $0xb08] sm:$0xff]
  %v376 = vld [vmem:[%s1 + $0xb10] sm:$0xff]
  %v377 = vld [vmem:[%s1 + $0xb18] sm:$0xff]
  %v378 = vld [vmem:[%s1 + $0xb20] sm:$0xff]
  %v379 = vld [vmem:[%s1 + $0xb28] sm:$0xff]
  %v380 = vld [vmem:[%s1 + $0xb30] sm:$0xff]
  %v381 = vld [vmem:[%s1 + $0xb38] sm:$0xff]
  %v382 = vld [vmem:[%s1 + $0xb40] sm:$0xff]
  %v383 = vld [vmem:[%s1 + $0xb48] sm:$0xff]
  %v384 = vld [vmem:[%s1 + $0xb50] sm:$0xff]
  %v385 = vld [vmem:[%s1 + $0xb58] sm:$0xff]
  %v386 = vld [vmem:[%s1 + $0xb60] sm:$0xff]
  %v387 = vld [vmem:[%s1 + $0xb68] sm:$0xff]
  %v388 = vld [vmem:[%s1 + $0xb70] sm:$0xff]
  %v389 = vld [vmem:[%s1 + $0xb78] sm:$0xff]
  %v390 = vld [vmem:[%s1 + $0xb80] sm:$0xff]
  %v391 = vld [vmem:[%s1 + $0xb88] sm:$0xff]
  %v392 = vld [vmem:[%s1 + $0xb90] sm:$0xff]
  %v393 = vld [vmem:[%s1 + $0xb98] sm:$0xff]
  %v394 = vld [vmem:[%s1 + $0xba0] sm:$0xff]
  %v395 = vld [vmem:[%s1 + $0xba8] sm:$0xff]
  %v396 = vld [vmem:[%s1 + $0xbb0] sm:$0xff]
  %v397 = vld [vmem:[%s1 + $0xbb8] sm:$0xff]
  %v398 = vld [vmem:[%s1 + $0xbc0] sm:$0xff]
  %v399 = vld [vmem:[%s1 + $0xbc8] sm:$0xff]
  %v400 = vld [vmem:[%s1 + $0xbd0] sm:$0xff]
  %v401 = vld [vmem:[%s1 + $0xbd8] sm:$0xff]
  %v402 = vld [vmem:[%s1 + $0xbe0] sm:$0xff]
  %v403 = vld [vmem:[%s1 + $0xbe8] sm:$0xff]
  %v404 = vld [vmem:[%s1 + $0xbf0] sm:$0xff]
  %v405 = vld [vmem:[%s1 + $0xbf8] sm:$0xff]
  %v406 = vld [vmem:[%s1 + $0xc00] sm:$0xff]
  %v407 = vld [vmem:[%s1 + $0xc08] sm:$0xff]
  %v408 = vld [vmem:[%s1 + $0xc10] sm:$0xff]
  %v409 = vld [vmem:[%s1 + $0xc18] sm:$0xff]
  %v410 = vld [vmem:[%s1 + $0xc20] sm:$0xff]
  %v411 = vld [vmem:[%s1 + $0xc28] sm:$0xff]
  %v412 = vld [vmem:[%s1 + $0xc30] sm:$0xff]
  %v413 = vld [vmem:[%s1 + $0xc38] sm:$0xff]
  %v414 = vld [vmem:[%s1 + $0xc40] sm:$0xff]
  %v415 = vld [vmem:[%s1 + $0xc48] sm:$0xff]
  %v416 = vld [vmem:[%s1 + $0xc50] sm:$0xff]
  %v417 = vld [vmem:[%s1 + $0xc58] sm:$0xff]
  %v418 = vld [vmem:[%s1 + $0xc60] sm:$0xff]
  %v419 = vld [vmem:[%s1 + $0xc68] sm:$0xff]
  %v420 = vld [vmem:[%s1 + $0xc70] sm:$0xff]
  %v421 = vld [vmem:[%s1 + $0xc78] sm:$0xff]
  %v422 = vld [vmem:[%s1 + $0xc80] sm:$0xff]
  %v423 = vld [vmem:[%s1 + $0xc88] sm:$0xff]
  %v424 = vld [vmem:[%s1 + $0xc90] sm:$0xff]
  %v425 = vld [vmem:[%s1 + $0xc98] sm:$0xff]
  %v426 = vld [vmem:[%s1 + $0xca0] sm:$0xff]
  %v427 = vld [vmem:[%s1 + $0xca8] sm:$0xff]
  %v428 = vld [vmem:[%s1 + $0xcb0] sm:$0xff]
  %v429 = vld [vmem:[%s1 + $0xcb8] sm:$0xff]
  %v430 = vld [vmem:[%s1 + $0xcc0] sm:$0xff]
  %v431 = vld [vmem:[%s1 + $0xcc8] sm:$0xff]
  %v432 = vld [vmem:[%s1 + $0xcd0] sm:$0xff]
  %v433 = vld [vmem:[%s1 + $0xcd8] sm:$0xff]
  %v434 = vld [vmem:[%s1 + $0xce0] sm:$0xff]
  %v435 = vld [vmem:[%s1 + $0xce8] sm:$0xff]
  %v436 = vld [vmem:[%s1 + $0xcf0] sm:$0xff]
  %v437 = vld [vmem:[%s1 + $0xcf8] sm:$0xff]
  %v438 = vld [vmem:[%s1 + $0xd00] sm:$0xff]
  %v439 = vld [vmem:[%s1 + $0xd08] sm:$0xff]
  %v440 = vld [vmem:[%s1 + $0xd10] sm:$0xff]
  %v441 = vld [vmem:[%s1 + $0xd18] sm:$0xff]
  %v442 = vld [vmem:[%s1 + $0xd20] sm:$0xff]
  %v443 = vld [vmem:[%s1 + $0xd28] sm:$0xff]
  %v444 = vld [vmem:[%s1 + $0xd30] sm:$0xff]
  %v445 = vld [vmem:[%s1 + $0xd38] sm:$0xff]
  %v446 = vld [vmem:[%s1 + $0xd40] sm:$0xff]
  %v447 = vld [vmem:[%s1 + $0xd48] sm:$0xff]
  %v448 = vld [vmem:[%s1 + $0xd50] sm:$0xff]
  %v449 = vld [vmem:[%s1 + $0xd58] sm:$0xff]
  %v450 = vld [vmem:[%s1 + $0xd60] sm:$0xff]
  %v451 = vld [vmem:[%s1 + $0xd68] sm:$0xff]
  %v452 = vld [vmem:[%s1 + $0xd70] sm:$0xff]
  %v453 = vld [vmem:[%s1 + $0xd78] sm:$0xff]
  %v454 = vld [vmem:[%s1 + $0xd80] sm:$0xff]
  %v455 = vld [vmem:[%s1 + $0xd88] sm:$0xff]
  %v456 = vld [vmem:[%s1 + $0xd90] sm:$0xff]
  %v457 = vld [vmem:[%s1 + $0xd98] sm:$0xff]
  %v458 = vld [vmem:[%s1 + $0xda0] sm:$0xff]
  %v459 = vld [vmem:[%s1 + $0xda8] sm:$0xff]
  %v460 = vld [vmem:[%s1 + $0xdb0] sm:$0xff]
  %v461 = vld [vmem:[%s1 + $0xdb8] sm:$0xff]
  %v462 = vld [vmem:[%s1 + $0xdc0] sm:$0xff]
  %v463 = vld [vmem:[%s1 + $0xdc8] sm:$0xff]
  %v464 = vld [vmem:[%s1 + $0xdd0] sm:$0xff]
  %v465 = vld [vmem:[%s1 + $0xdd8] sm:$0xff]
  %v466 = vld [vmem:[%s1 + $0xde0] sm:$0xff]
  %v467 = vld [vmem:[%s1 + $0xde8] sm:$0xff]
  %v468 = vld [vmem:[%s1 + $0xdf0] sm:$0xff]
  %v469 = vld [vmem:[%s1 + $0xdf8] sm:$0xff]
  %v470 = vld [vmem:[%s1 + $0xe00] sm:$0xff]
  %v471 = vld [vmem:[%s1 + $0xe08] sm:$0xff]
  %v472 = vld [vmem:[%s1 + $0xe10] sm:$0xff]
  %v473 = vld [vmem:[%s1 + $0xe18] sm:$0xff]
  %v474 = vld [vmem:[%s1 + $0xe20] sm:$0xff]
  %v475 = vld [vmem:[%s1 + $0xe28] sm:$0xff]
  %v476 = vld [vmem:[%s1 + $0xe30] sm:$0xff]
  %v477 = vld [vmem:[%s1 + $0xe38] sm:$0xff]
  %v478 = vld [vmem:[%s1 + $0xe40] sm:$0xff]
  %v479 = vld [vmem:[%s1 + $0xe48] sm:$0xff]
  %v480 = vld [vmem:[%s1 + $0xe50] sm:$0xff]
  %v481 = vld [vmem:[%s1 + $0xe58] sm:$0xff]
  %v482 = vld [vmem:[%s1 + $0xe60] sm:$0xff]
  %v483 = vld [vmem:[%s1 + $0xe68] sm:$0xff]
  %v484 = vld [vmem:[%s1 + $0xe70] sm:$0xff]
  %v485 = vld [vmem:[%s1 + $0xe78] sm:$0xff]
  %v486 = vld [vmem:[%s1 + $0xe80] sm:$0xff]
  %v487 = vld [vmem:[%s1 + $0xe88] sm:$0xff]
  %v488 = vld [vmem:[%s1 + $0xe90] sm:$0xff]
  %v489 = vld [vmem:[%s1 + $0xe98] sm:$0xff]
  %v490 = vld [vmem:[%s1 + $0xea0] sm:$0xff]
  %v491 = vld [vmem:[%s1 + $0xea8] sm:$0xff]
  %v492 = vld [vmem:[%s1 + $0xeb0] sm:$0xff]
  %v493 = vld [vmem:[%s1 + $0xeb8] sm:$0xff]
  %v494 = vld [vmem:[%s1 + $0xec0] sm:$0xff]
  %v495 = vld [vmem:[%s1 + $0xec8] sm:$0xff]
  %v496 = vld [vmem:[%s1 + $0xed0] sm:$0xff]
  %v497 = vld [vmem:[%s1 + $0xed8] sm:$0xff]
  %v498 = vld [vmem:[%s1 + $0xee0] sm:$0xff]
  %v499 = vld [vmem:[%s1 + $0xee8] sm:$0xff]
  %v500 = vld [vmem:[%s1 + $0xef0] sm:$0xff]
  %v501 = vld [vmem:[%s1 + $0xef8] sm:$0xff]
  %v502 = vld [vmem:[%s1 + $0xf00] sm:$0xff]
  %v503 = vld [vmem:[%s1 + $0xf08] sm:$0xff]
  %v504 = vld [vmem:[%s1 + $0xf10] sm:$0xff]
  %v505 = vld [vmem:[%s1 + $0xf18] sm:$0xff]
  %v506 = vld [vmem:[%s1 + $0xf20] sm:$0xff]
  %v507 = vld [vmem:[%s1 + $0xf28] sm:$0xff]
  %v508 = vld [vmem:[%s1 + $0xf30] sm:$0xff]
  %v509 = vld [vmem:[%s1 + $0xf38] sm:$0xff]
  %v510 = vld [vmem:[%s1 + $0xf40] sm:$0xff]
  %v511 = vld [vmem:[%s1 + $0xf48] sm:$0xff]
  %v512 = vld [vmem:[%s1 + $0xf50] sm:$0xff]
  %v513 = vld [vmem:[%s1 + $0xf58] sm:$0xff]
  %v514 = vld [vmem:[%s1 + $0xf60] sm:$0xff]
  %v515 = vld [vmem:[%s1 + $0xf68] sm:$0xff]
  %v516 = vld [vmem:[%s1 + $0xf70] sm:$0xff]
  %v517 = vld [vmem:[%s1 + $0xf78] sm:$0xff]
  %v518 = vld [vmem:[%s1 + $0xf80] sm:$0xff]
  %v519 = vld [vmem:[%s1 + $0xf88] sm:$0xff]
  %v520 = vld [vmem:[%s1 + $0xf90] sm:$0xff]
  %v521 = vld [vmem:[%s1 + $0xf98] sm:$0xff]
  %v522 = vld [vmem:[%s1 + $0xfa0] sm:$0xff]
  %v523 = vld [vmem:[%s1 + $0xfa8] sm:$0xff]
  %v524 = vld [vmem:[%s1 + $0xfb0] sm:$0xff]
  %v525 = vld [vmem:[%s1 + $0xfb8] sm:$0xff]
  %v526 = vld [vmem:[%s1 + $0xfc0] sm:$0xff]
  %v527 = vld [vmem:[%s1 + $0xfc8] sm:$0xff]
  %v528 = vld [vmem:[%s1 + $0xfd0] sm:$0xff]
  %v529 = vld [vmem:[%s1 + $0xfd8] sm:$0xff]
  %v530 = vld [vmem:[%s1 + $0xfe0] sm:$0xff]
  %v531 = vld [vmem:[%s1 + $0xfe8] sm:$0xff]
  %v532 = vld [vmem:[%s1 + $0xff0] sm:$0xff]
  %v533 = vld [vmem:[%s1 + $0xff8] sm:$0xff]
  %v534 = vld [vmem:[%s1 + $0x1000] sm:$0xff]
  %v535 = vld [vmem:[%s1 + $0x1008] sm:$0xff]
  %v536 = vld [vmem:[%s1 + $0x1010] sm:$0xff]
  %v537 = vld [vmem:[%s1 + $0x1018] sm:$0xff]
  %v538 = vld [vmem:[%s1 + $0x1020] sm:$0xff]
  %v539 = vld [vmem:[%s1 + $0x1028] sm:$0xff]
  %v540 = vld [vmem:[%s1 + $0x1030] sm:$0xff]
  %v541 = vld [vmem:[%s1 + $0x1038] sm:$0xff]
  %v542 = vld [vmem:[%s1 + $0x1040] sm:$0xff]
  %v543 = vld [vmem:[%s1 + $0x1048] sm:$0xff]
  %v544 = vld [vmem:[%s1 + $0x1050] sm:$0xff]
  %v545 = vld [vmem:[%s1 + $0x1058] sm:$0xff]
  %v546 = vld [vmem:[%s1 + $0x1060] sm:$0xff]
  %v547 = vld [vmem:[%s1 + $0x1068] sm:$0xff]
  %v548 = vld [vmem:[%s1 + $0x1070] sm:$0xff]
  %v549 = vld [vmem:[%s1 + $0x1078] sm:$0xff]
  %v550 = vld [vmem:[%s1 + $0x1080] sm:$0xff]
  %v551 = vld [vmem:[%s1 + $0x1088] sm:$0xff]
  %v552 = vld [vmem:[%s1 + $0x1090] sm:$0xff]
  %v553 = vld [vmem:[%s1 + $0x1098] sm:$0xff]
  %v554 = vld [vmem:[%s1 + $0x10a0] sm:$0xff]
  %v555 = vld [vmem:[%s1 + $0x10a8] sm:$0xff]
  %v556 = vld [vmem:[%s1 + $0x10b0] sm:$0xff]
  %v557 = vld [vmem:[%s1 + $0x10b8] sm:$0xff]
  %v558 = vld [vmem:[%s1 + $0x10c0] sm:$0xff]
  %v559 = vld [vmem:[%s1 + $0x10c8] sm:$0xff]
  %v560 = vld [vmem:[%s1 + $0x10d0] sm:$0xff]
  %v561 = vld [vmem:[%s1 + $0x10d8] sm:$0xff]
  %v562 = vld [vmem:[%s1 + $0x10e0] sm:$0xff]
  %v563 = vld [vmem:[%s1 + $0x10e8] sm:$0xff]
  %v564 = vld [vmem:[%s1 + $0x10f0] sm:$0xff]
  %v565 = vld [vmem:[%s1 + $0x10f8] sm:$0xff]
  %v566 = vld [vmem:[%s1 + $0x1100] sm:$0xff]
  %v567 = vld [vmem:[%s1 + $0x1108] sm:$0xff]
  %v568 = vld [vmem:[%s1 + $0x1110] sm:$0xff]
  %v569 = vld [vmem:[%s1 + $0x1118] sm:$0xff]
  %v570 = vld [vmem:[%s1 + $0x1120] sm:$0xff]
  %v571 = vld [vmem:[%s1 + $0x1128] sm:$0xff]
  %v572 = vld [vmem:[%s1 + $0x1130] sm:$0xff]
  %v573 = vld [vmem:[%s1 + $0x1138] sm:$0xff]
  %v574 = vld [vmem:[%s1 + $0x1140] sm:$0xff]
  %v575 = vld [vmem:[%s1 + $0x1148] sm:$0xff]
  %v576 = vld [vmem:[%s1 + $0x1150] sm:$0xff]
  %v577 = vld [vmem:[%s1 + $0x1158] sm:$0xff]
  %v578 = vld [vmem:[%s1 + $0x1160] sm:$0xff]
  %v579 = vld [vmem:[%s1 + $0x1168] sm:$0xff]
  %v580 = vld [vmem:[%s1 + $0x1170] sm:$0xff]
  %v581 = vld [vmem:[%s1 + $0x1178] sm:$0xff]
  %v582 = vld [vmem:[%s1 + $0x1180] sm:$0xff]
  %v583 = vld [vmem:[%s1 + $0x1188] sm:$0xff]
  %v584 = vld [vmem:[%s1 + $0x1190] sm:$0xff]
  %v585 = vld [vmem:[%s1 + $0x1198] sm:$0xff]
  %v586 = vld [vmem:[%s1 + $0x11a0] sm:$0xff]
  %v587 = vld [vmem:[%s1 + $0x11a8] sm:$0xff]
  %v588 = vld [vmem:[%s1 + $0x11b0] sm:$0xff]
  %v589 = vld [vmem:[%s1 + $0x11b8] sm:$0xff]
  %v590 = vld [vmem:[%s1 + $0x11c0] sm:$0xff]
  %v591 = vld [vmem:[%s1 + $0x11c8] sm:$0xff]
  %v592 = vld [vmem:[%s1 + $0x11d0] sm:$0xff]
  %v593 = vld [vmem:[%s1 + $0x11d8] sm:$0xff]
  %v594 = vld [vmem:[%s1 + $0x11e0] sm:$0xff]
  %v595 = vld [vmem:[%s1 + $0x11e8] sm:$0xff]
  %v596 = vld [vmem:[%s1 + $0x11f0] sm:$0xff]
  %v597 = vld [vmem:[%s1 + $0x11f8] sm:$0xff]
  %v598 = vld [vmem:[%s1 + $0x1200] sm:$0xff]
  %v599 = vld [vmem:[%s1 + $0x1208] sm:$0xff]
  %v600 = vld [vmem:[%s1 + $0x1210] sm:$0xff]
  %v601 = vld [vmem:[%s1 + $0x1218] sm:$0xff]
  %v602 = vld [vmem:[%s1 + $0x1220] sm:$0xff]
  %v603 = vld [vmem:[%s1 + $0x1228] sm:$0xff]
  %v604 = vld [vmem:[%s1 + $0x1230] sm:$0xff]
  %v605 = vld [vmem:[%s1 + $0x1238] sm:$0xff]
  %v606 = vld [vmem:[%s1 + $0x1240] sm:$0xff]
  %v607 = vld [vmem:[%s1 + $0x1248] sm:$0xff]
  %v608 = vld [vmem:[%s1 + $0x1250] sm:$0xff]
  %v609 = vld [vmem:[%s1 + $0x1258] sm:$0xff]
  %v610 = vld [vmem:[%s1 + $0x1260] sm:$0xff]
  %v611 = vld [vmem:[%s1 + $0x1268] sm:$0xff]
  %v612 = vld [vmem:[%s1 + $0x1270] sm:$0xff]
  %v613 = vld [vmem:[%s1 + $0x1278] sm:$0xff]
  %v614 = vld [vmem:[%s1 + $0x1280] sm:$0xff]
  %v615 = vld [vmem:[%s1 + $0x1288] sm:$0xff]
  %v616 = vld [vmem:[%s1 + $0x1290] sm:$0xff]
  %v617 = vld [vmem:[%s1 + $0x1298] sm:$0xff]
  %v618 = vld [vmem:[%s1 + $0x12a0] sm:$0xff]
  %v619 = vld [vmem:[%s1 + $0x12a8] sm:$0xff]
  %v620 = vld [vmem:[%s1 + $0x12b0] sm:$0xff]
  %v621 = vld [vmem:[%s1 + $0x12b8] sm:$0xff]
  %v622 = vld [vmem:[%s1 + $0x12c0] sm:$0xff]
  %v623 = vld [vmem:[%s1 + $0x12c8] sm:$0xff]
  %v624 = vld [vmem:[%s1 + $0x12d0] sm:$0xff]
  %v625 = vld [vmem:[%s1 + $0x12d8] sm:$0xff]
  %v626 = vld [vmem:[%s1 + $0x12e0] sm:$0xff]
  %v627 = vld [vmem:[%s1 + $0x12e8] sm:$0xff]
  %v628 = vld [vmem:[%s1 + $0x12f0] sm:$0xff]
  %v629 = vld [vmem:[%s1 + $0x12f8] sm:$0xff]
  %v630 = vld [vmem:[%s1 + $0x1300] sm:$0xff]
  %v631 = vld [vmem:[%s1 + $0x1308] sm:$0xff]
  %v632 = vld [vmem:[%s1 + $0x1310] sm:$0xff]
  %v633 = vld [vmem:[%s1 + $0x1318] sm:$0xff]
  %v634 = vld [vmem:[%s1 + $0x1320] sm:$0xff]
  %v635 = vld [vmem:[%s1 + $0x1328] sm:$0xff]
  %v636 = vld [vmem:[%s1 + $0x1330] sm:$0xff]
  %v637 = vld [vmem:[%s1 + $0x1338] sm:$0xff]
  %v638 = vld [vmem:[%s1 + $0x1340] sm:$0xff]
  %v639 = vld [vmem:[%s1 + $0x1348] sm:$0xff]
  %v640 = vld [vmem:[%s1 + $0x1350] sm:$0xff]
  %v641 = vld [vmem:[%s1 + $0x1358] sm:$0xff]
  %v642 = vld [vmem:[%s1 + $0x1360] sm:$0xff]
  %v643 = vld [vmem:[%s1 + $0x1368] sm:$0xff]
  %v644 = vld [vmem:[%s1 + $0x1370] sm:$0xff]
  %v645 = vld [vmem:[%s1 + $0x1378] sm:$0xff]
  %v646 = vld [vmem:[%s1 + $0x1380] sm:$0xff]
  %v647 = vld [vmem:[%s1 + $0x1388] sm:$0xff]
  %v648 = vld [vmem:[%s1 + $0x1390] sm:$0xff]
  %v649 = vld [vmem:[%s1 + $0x1398] sm:$0xff]
  %v650 = vld [vmem:[%s1 + $0x13a0] sm:$0xff]
  %v651 = vld [vmem:[%s1 + $0x13a8] sm:$0xff]
  %v652 = vld [vmem:[%s1 + $0x13b0] sm:$0xff]
  %v653 = vld [vmem:[%s1 + $0x13b8] sm:$0xff]
  %v654 = vld [vmem:[%s1 + $0x13c0] sm:$0xff]
  %v655 = vld [vmem:[%s1 + $0x13c8] sm:$0xff]
  %v656 = vld [vmem:[%s1 + $0x13d0] sm:$0xff]
  %v657 = vld [vmem:[%s1 + $0x13d8] sm:$0xff]
  %v658 = vld [vmem:[%s1 + $0x13e0] sm:$0xff]
  %v659 = vld [vmem:[%s1 + $0x13e8] sm:$0xff]
  %v660 = vld [vmem:[%s1 + $0x13f0] sm:$0xff]
  %v661 = vld [vmem:[%s1 + $0x13f8] sm:$0xff]
  %v662 = vld [vmem:[%s1 + $0x1400] sm:$0xff]
  %v663 = vld [vmem:[%s1 + $0x1408] sm:$0xff]
  %v664 = vld [vmem:[%s1 + $0x1410] sm:$0xff]
  %v665 = vld [vmem:[%s1 + $0x1418] sm:$0xff]
  %v666 = vld [vmem:[%s1 + $0x1420] sm:$0xff]
  %v667 = vld [vmem:[%s1 + $0x1428] sm:$0xff]
  %v668 = vld [vmem:[%s1 + $0x1430] sm:$0xff]
  %v669 = vld [vmem:[%s1 + $0x1438] sm:$0xff]
  %v670 = vld [vmem:[%s1 + $0x1440] sm:$0xff]
  %v671 = vld [vmem:[%s1 + $0x1448] sm:$0xff]
  %v672 = vld [vmem:[%s1 + $0x1450] sm:$0xff]
  %v673 = vld [vmem:[%s1 + $0x1458] sm:$0xff]
  %v674 = vld [vmem:[%s1 + $0x1460] sm:$0xff]
  %v675 = vld [vmem:[%s1 + $0x1468] sm:$0xff]
  %v676 = vld [vmem:[%s1 + $0x1470] sm:$0xff]
  %v677 = vld [vmem:[%s1 + $0x1478] sm:$0xff]
  %v678 = vld [vmem:[%s1 + $0x1480] sm:$0xff]
  %v679 = vld [vmem:[%s1 + $0x1488] sm:$0xff]
  %v680 = vld [vmem:[%s1 + $0x1490] sm:$0xff]
  %v681 = vld [vmem:[%s1 + $0x1498] sm:$0xff]
  %v682 = vld [vmem:[%s1 + $0x14a0] sm:$0xff]
  %v683 = vld [vmem:[%s1 + $0x14a8] sm:$0xff]
  %v684 = vld [vmem:[%s1 + $0x14b0] sm:$0xff]
  %v685 = vld [vmem:[%s1 + $0x14b8] sm:$0xff]
  %v686 = vld [vmem:[%s1 + $0x14c0] sm:$0xff]
  %v687 = vld [vmem:[%s1 + $0x14c8] sm:$0xff]
  %v688 = vld [vmem:[%s1 + $0x14d0] sm:$0xff]
  %v689 = vld [vmem:[%s1 + $0x14d8] sm:$0xff]
  %v690 = vld [vmem:[%s1 + $0x14e0] sm:$0xff]
  %v691 = vld [vmem:[%s1 + $0x14e8] sm:$0xff]
  %v692 = vld [vmem:[%s1 + $0x14f0] sm:$0xff]
  %v693 = vld [vmem:[%s1 + $0x14f8] sm:$0xff]
  %v694 = vld [vmem:[%s1 + $0x1500] sm:$0xff]
  %v695 = vld [vmem:[%s1 + $0x1508] sm:$0xff]
  %v696 = vld [vmem:[%s1 + $0x1510] sm:$0xff]
  %v697 = vld [vmem:[%s1 + $0x1518] sm:$0xff]
  %v698 = vld [vmem:[%s1 + $0x1520] sm:$0xff]
  %v699 = vld [vmem:[%s1 + $0x1528] sm:$0xff]
  %v700 = vld [vmem:[%s1 + $0x1530] sm:$0xff]
  %v701 = vld [vmem:[%s1 + $0x1538] sm:$0xff]
  %v702 = vld [vmem:[%s1 + $0x1540] sm:$0xff]
  %v703 = vld [vmem:[%s1 + $0x1548] sm:$0xff]
  %v704 = vld [vmem:[%s1 + $0x1550] sm:$0xff]
  %v705 = vld [vmem:[%s1 + $0x1558] sm:$0xff]
  %v706 = vld [vmem:[%s1 + $0x1560] sm:$0xff]
  %v707 = vld [vmem:[%s1 + $0x1568] sm:$0xff]
  %v708 = vld [vmem:[%s1 + $0x1570] sm:$0xff]
  %v709 = vld [vmem:[%s1 + $0x1578] sm:$0xff]
  %v710 = vld [vmem:[%s1 + $0x1580] sm:$0xff]
  %v711 = vld [vmem:[%s1 + $0x1588] sm:$0xff]
  %v712 = vld [vmem:[%s1 + $0x1590] sm:$0xff]
  %v713 = vld [vmem:[%s1 + $0x1598] sm:$0xff]
  %v714 = vld [vmem:[%s1 + $0x15a0] sm:$0xff]
  %v715 = vld [vmem:[%s1 + $0x15a8] sm:$0xff]
  %v716 = vld [vmem:[%s1 + $0x15b0] sm:$0xff]
  %v717 = vld [vmem:[%s1 + $0x15b8] sm:$0xff]
  %v718 = vld [vmem:[%s1 + $0x15c0] sm:$0xff]
  %v719 = vld [vmem:[%s1 + $0x15c8] sm:$0xff]
  %v720 = vld [vmem:[%s1 + $0x15d0] sm:$0xff]
  %v721 = vld [vmem:[%s1 + $0x15d8] sm:$0xff]
  %v722 = vld [vmem:[%s1 + $0x15e0] sm:$0xff]
  %v723 = vld [vmem:[%s1 + $0x15e8] sm:$0xff]
  %v724 = vld [vmem:[%s1 + $0x15f0] sm:$0xff]
  %v725 = vld [vmem:[%s1 + $0x15f8] sm:$0xff]
  %v726 = vld [vmem:[%s1 + $0x1600] sm:$0xff]
  %v727 = vld [vmem:[%s1 + $0x1608] sm:$0xff]
  %v728 = vld [vmem:[%s1 + $0x1610] sm:$0xff]
  %v729 = vld [vmem:[%s1 + $0x1618] sm:$0xff]
  %v730 = vld [vmem:[%s1 + $0x1620] sm:$0xff]
  %v731 = vld [vmem:[%s1 + $0x1628] sm:$0xff]
  %v732 = vld [vmem:[%s1 + $0x1630] sm:$0xff]
  %v733 = vld [vmem:[%s1 + $0x1638] sm:$0xff]
  %v734 = vld [vmem:[%s1 + $0x1640] sm:$0xff]
  %v735 = vld [vmem:[%s1 + $0x1648] sm:$0xff]
  %v736 = vld [vmem:[%s1 + $0x1650] sm:$0xff]
  %v737 = vld [vmem:[%s1 + $0x1658] sm:$0xff]
  %v738 = vld [vmem:[%s1 + $0x1660] sm:$0xff]
  %v739 = vld [vmem:[%s1 + $0x1668] sm:$0xff]
  %v740 = vld [vmem:[%s1 + $0x1670] sm:$0xff]
  %v741 = vld [vmem:[%s1 + $0x1678] sm:$0xff]
  %v742 = vld [vmem:[%s1 + $0x1680] sm:$0xff]
  %v743 = vld [vmem:[%s1 + $0x1688] sm:$0xff]
  %v744 = vld [vmem:[%s1 + $0x1690] sm:$0xff]
  %v745 = vld [vmem:[%s1 + $0x1698] sm:$0xff]
  %v746 = vld [vmem:[%s1 + $0x16a0] sm:$0xff]
  %v747 = vld [vmem:[%s1 + $0x16a8] sm:$0xff]
  %v748 = vld [vmem:[%s1 + $0x16b0] sm:$0xff]
  %v749 = vld [vmem:[%s1 + $0x16b8] sm:$0xff]
  %v750 = vld [vmem:[%s1 + $0x16c0] sm:$0xff]
  %v751 = vld [vmem:[%s1 + $0x16c8] sm:$0xff]
  %v752 = vld [vmem:[%s1 + $0x16d0] sm:$0xff]
  %v753 = vld [vmem:[%s1 + $0x16d8] sm:$0xff]
  %v754 = vld [vmem:[%s1 + $0x16e0] sm:$0xff]
  %v755 = vld [vmem:[%s1 + $0x16e8] sm:$0xff]
  %v756 = vld [vmem:[%s1 + $0x16f0] sm:$0xff]
  %v757 = vld [vmem:[%s1 + $0x16f8] sm:$0xff]
  %v758 = vld [vmem:[%s1 + $0x1700] sm:$0xff]
  %v759 = vld [vmem:[%s1 + $0x1708] sm:$0xff]
  %v760 = vld [vmem:[%s1 + $0x1710] sm:$0xff]
  %v761 = vld [vmem:[%s1 + $0x1718] sm:$0xff]
  %v762 = vld [vmem:[%s1 + $0x1720] sm:$0xff]
  %v763 = vld [vmem:[%s1 + $0x1728] sm:$0xff]
  %v764 = vld [vmem:[%s1 + $0x1730] sm:$0xff]
  %v765 = vld [vmem:[%s1 + $0x1738] sm:$0xff]
  %v766 = vld [vmem:[%s1 + $0x1740] sm:$0xff]
  %v767 = vld [vmem:[%s1 + $0x1748] sm:$0xff]
  %v768 = vld [vmem:[%s1 + $0x1750] sm:$0xff]
  %v769 = vld [vmem:[%s1 + $0x1758] sm:$0xff]
  %v770 = vld [vmem:[%s1 + $0x1760] sm:$0xff]
  %v771 = vld [vmem:[%s1 + $0x1768] sm:$0xff]
  %v772 = vld [vmem:[%s1 + $0x1770] sm:$0xff]
  %v773 = vld [vmem:[%s1 + $0x1778] sm:$0xff]
  %v774 = vld [vmem:[%s1 + $0x1780] sm:$0xff]
  %v775 = vld [vmem:[%s1 + $0x1788] sm:$0xff]
  %v776 = vld [vmem:[%s1 + $0x1790] sm:$0xff]
  %v777 = vld [vmem:[%s1 + $0x1798] sm:$0xff]
  %v778 = vld [vmem:[%s1 + $0x17a0] sm:$0xff]
  %v779 = vld [vmem:[%s1 + $0x17a8] sm:$0xff]
  %v780 = vld [vmem:[%s1 + $0x17b0] sm:$0xff]
  %v781 = vld [vmem:[%s1 + $0x17b8] sm:$0xff]
  %v782 = vld [vmem:[%s1 + $0x17c0] sm:$0xff]
  %v783 = vld [vmem:[%s1 + $0x17c8] sm:$0xff]
  %v784 = vld [vmem:[%s1 + $0x17d0] sm:$0xff]
  %v785 = vld [vmem:[%s1 + $0x17d8] sm:$0xff]
  %v786 = vld [vmem:[%s1 + $0x17e0] sm:$0xff]
  %v787 = vld [vmem:[%s1 + $0x17e8] sm:$0xff]
  %v788 = vld [vmem:[%s1 + $0x17f0] sm:$0xff]
  %v789 = vld [vmem:[%s1 + $0x17f8] sm:$0xff]
  %v790 = vld [vmem:[%s2] sm:$0xff]
  %v791 = vld [vmem:[%s2 + $0x8] sm:$0xf]
  %v794 = vlaneseq
  %v795 = vshrl.u32 %v794, 7
  %v796 = vsub.s32 0, %v795
  %v797 = vrot.slane %v790, %v796
  %v798 = vlaneseq
  %v799 = vshrl.u32 %v798, 7
  %v800 = vsub.s32 1, %v799
  %v801 = vrot.slane %v790, %v800
  %v802 = vlaneseq
  %v803 = vshrl.u32 %v802, 7
  %v804 = vsub.s32 2, %v803
  %v805 = vrot.slane %v790, %v804
  %v806 = vlaneseq
  %v807 = vshrl.u32 %v806, 7
  %v808 = vsub.s32 3, %v807
  %v809 = vrot.slane %v790, %v808
  %v810 = vlaneseq
  %v811 = vshrl.u32 %v810, 7
  %v812 = vsub.s32 4, %v811
  %v813 = vrot.slane %v790, %v812
  %v814 = vlaneseq
  %v815 = vshrl.u32 %v814, 7
  %v816 = vsub.s32 5, %v815
  %v817 = vrot.slane %v790, %v816
  %v818 = vlaneseq
  %v819 = vshrl.u32 %v818, 7
  %v820 = vsub.s32 6, %v819
  %v821 = vrot.slane %v790, %v820
  %v822 = vlaneseq
  %v823 = vshrl.u32 %v822, 7
  %v824 = vsub.s32 7, %v823
  %v825 = vrot.slane %v790, %v824
  %v826 = vlaneseq
  %v827 = vshrl.u32 %v826, 7
  %v828 = vsub.s32 0, %v827
  %v829 = vrot.slane %v791, %v828
  %v830 = vlaneseq
  %v831 = vshrl.u32 %v830, 7
  %v832 = vsub.s32 1, %v831
  %v833 = vrot.slane %v791, %v832
  %v834 = vlaneseq
  %v835 = vshrl.u32 %v834, 7
  %v836 = vsub.s32 2, %v835
  %v837 = vrot.slane %v791, %v836
  %v838 = vlaneseq
  %v839 = vshrl.u32 %v838, 7
  %v840 = vsub.s32 3, %v839
  %v841 = vrot.slane %v791, %v840
  %854 = vmatprep.subr.mxu0 %v23
  %855 = vmatpush1.msra.mxu0 %v22
  %856 = vmatprep.subr.mxu0 %v35
  %857 = vmatpush1.msra.mxu0 %v34
  %858 = vmatprep.subr.mxu0 %v47
  %859 = vmatpush1.msra.mxu0 %v46
  %860 = vmatprep.subr.mxu0 %v59
  %861 = vmatpush1.msra.mxu0 %v58
  %862 = vmatprep.subr.mxu0 %v71
  %863 = vmatpush1.msra.mxu0 %v70
  %864 = vmatprep.subr.mxu0 %v83
  %865 = vmatpush1.msra.mxu0 %v82
  %866 = vmatprep.subr.mxu0 %v95
  %867 = vmatpush1.msra.mxu0 %v94
  %868 = vmatprep.subr.mxu0 %v107
  %869 = vmatpush1.msra.mxu0 %v106
  %870 = vmatprep.subr.mxu0 %v119
  %871 = vmatpush1.msra.mxu0 %v118
  %872 = vmatprep.subr.mxu0 %v131
  %873 = vmatpush1.msra.mxu0 %v130
  %874 = vmatprep.subr.mxu0 %v143
  %875 = vmatpush1.msra.mxu0 %v142
  %876 = vmatprep.subr.mxu0 %v155
  %877 = vmatpush1.msra.mxu0 %v154
  %878 = vmatprep.subr.mxu0 %v167
  %879 = vmatpush1.msra.mxu0 %v166
  %880 = vmatprep.subr.mxu0 %v179
  %881 = vmatpush1.msra.mxu0 %v178
  %882 = vmatprep.subr.mxu0 %v191
  %883 = vmatpush1.msra.mxu0 %v190
  %884 = vmatprep.subr.mxu0 %v203
  %885 = vmatpush1.msra.mxu0 %v202
  %886 = vmatprep.subr.mxu0 %v215
  %887 = vmatpush1.msra.mxu0 %v214
  %888 = vmatprep.subr.mxu0 %v227
  %889 = vmatpush1.msra.mxu0 %v226
  %890 = vmatprep.subr.mxu0 %v239
  %891 = vmatpush1.msra.mxu0 %v238
  %892 = vmatprep.subr.mxu0 %v251
  %893 = vmatpush1.msra.mxu0 %v250
  %894 = vmatprep.subr.mxu0 %v263
  %895 = vmatpush1.msra.mxu0 %v262
  %896 = vmatprep.subr.mxu0 %v275
  %897 = vmatpush1.msra.mxu0 %v274
  %898 = vmatprep.subr.mxu0 %v287
  %899 = vmatpush1.msra.mxu0 %v286
  %900 = vmatprep.subr.mxu0 %v299
  %901 = vmatpush1.msra.mxu0 %v298
  %902 = vmatprep.subr.mxu0 %v311
  %903 = vmatpush1.msra.mxu0 %v310
  %904 = vmatprep.subr.mxu0 %v323
  %905 = vmatpush1.msra.mxu0 %v322
  %906 = vmatprep.subr.mxu0 %v335
  %907 = vmatpush1.msra.mxu0 %v334
  %908 = vmatprep.subr.mxu0 %v347
  %909 = vmatpush1.msra.mxu0 %v346
  %910 = vmatprep.subr.mxu0 %v359
  %911 = vmatpush1.msra.mxu0 %v358
  %912 = vmatprep.subr.mxu0 %v371
  %913 = vmatpush1.msra.mxu0 %v370
  %914 = vmatprep.subr.mxu0 %v383
  %915 = vmatpush1.msra.mxu0 %v382
  %916 = vmatprep.subr.mxu0 %v395
  %917 = vmatpush1.msra.mxu0 %v394
  %918 = vmatprep.mubr.f32.mxu0 %v15
  %919 = vmatmul.mubr.f32.gmra.mrb[0].mxu0 %v14
  %v920 = vpop.f32.mrb[0].mxu0
  %v921 = vadd.f32 %v797, %v920
  %v922 = vpop.f32.mrb[0].mxu0
  %v923 = vadd.f32 %v801, %v922
  %924 = vmatprep.mubr.f32.mxu0 %v19
  %925 = vmatmul.mubr.f32.gmra.mrb[0].mxu0 %v18
  %v926 = vpop.f32.mrb[0].mxu0
  %v927 = vadd.f32 %v797, %v926
  %v928 = vpop.f32.mrb[0].mxu0
  %v929 = vadd.f32 %v801, %v928
  %930 = vdwg.mxu0
  %931 = vmatprep.subr.mxu0 %v407
  %932 = vmatpush1.msra.mxu0 %v406
  %933 = vmatprep.subr.mxu0 %v419
  %934 = vmatpush1.msra.mxu0 %v418
  %935 = vmatprep.subr.mxu0 %v431
  %936 = vmatpush1.msra.mxu0 %v430
  %937 = vmatprep.subr.mxu0 %v443
  %938 = vmatpush1.msra.mxu0 %v442
  %939 = vmatprep.subr.mxu0 %v455
  %940 = vmatpush1.msra.mxu0 %v454
  %941 = vmatprep.subr.mxu0 %v467
  %942 = vmatpush1.msra.mxu0 %v466
  %943 = vmatprep.subr.mxu0 %v479
  %944 = vmatpush1.msra.mxu0 %v478
  %945 = vmatprep.subr.mxu0 %v491
  %946 = vmatpush1.msra.mxu0 %v490
  %947 = vmatprep.subr.mxu0 %v503
  %948 = vmatpush1.msra.mxu0 %v502
  %949 = vmatprep.subr.mxu0 %v515
  %950 = vmatpush1.msra.mxu0 %v514
  %951 = vmatprep.subr.mxu0 %v527
  %952 = vmatpush1.msra.mxu0 %v526
  %953 = vmatprep.subr.mxu0 %v539
  %954 = vmatpush1.msra.mxu0 %v538
  %955 = vmatprep.subr.mxu0 %v551
  %956 = vmatpush1.msra.mxu0 %v550
  %957 = vmatprep.subr.mxu0 %v563
  %958 = vmatpush1.msra.mxu0 %v562
  %959 = vmatprep.subr.mxu0 %v575
  %960 = vmatpush1.msra.mxu0 %v574
  %961 = vmatprep.subr.mxu0 %v587
  %962 = vmatpush1.msra.mxu0 %v586
  %963 = vmatprep.subr.mxu0 %v599
  %964 = vmatpush1.msra.mxu0 %v598
  %965 = vmatprep.subr.mxu0 %v611
  %966 = vmatpush1.msra.mxu0 %v610
  %967 = vmatprep.subr.mxu0 %v623
  %968 = vmatpush1.msra.mxu0 %v622
  %969 = vmatprep.subr.mxu0 %v635
  %970 = vmatpush1.msra.mxu0 %v634
  %971 = vmatprep.subr.mxu0 %v647
  %972 = vmatpush1.msra.mxu0 %v646
  %973 = vmatprep.subr.mxu0 %v659
  %974 = vmatpush1.msra.mxu0 %v658
  %975 = vmatprep.subr.mxu0 %v671
  %976 = vmatpush1.msra.mxu0 %v670
  %977 = vmatprep.subr.mxu0 %v683
  %978 = vmatpush1.msra.mxu0 %v682
  %979 = vmatprep.subr.mxu0 %v695
  %980 = vmatpush1.msra.mxu0 %v694
  %981 = vmatprep.subr.mxu0 %v707
  %982 = vmatpush1.msra.mxu0 %v706
  %983 = vmatprep.subr.mxu0 %v719
  %984 = vmatpush1.msra.mxu0 %v718
  %985 = vmatprep.subr.mxu0 %v731
  %986 = vmatpush1.msra.mxu0 %v730
  %987 = vmatprep.subr.mxu0 %v743
  %988 = vmatpush1.msra.mxu0 %v742
  %989 = vmatprep.subr.mxu0 %v755
  %990 = vmatpush1.msra.mxu0 %v754
  %991 = vmatprep.subr.mxu0 %v767
  %992 = vmatpush1.msra.mxu0 %v766
  %993 = vmatprep.subr.mxu0 %v779
  %994 = vmatpush1.msra.mxu0 %v778
  %995 = vmatprep.mubr.f32.mxu0 %v17
  %996 = vmatmul.mubr.f32.gmra.mrb[0].mxu0 %v16
  %v997 = vpop.f32.mrb[0].mxu0
  %v998 = vadd.f32 %v921, %v997
  %v999 = vpop.f32.mrb[0].mxu0
  %v1000 = vadd.f32 %v923, %v999
  %1001 = vmatprep.mubr.f32.mxu0 %v21
  %1002 = vmatmul.mubr.f32.gmra.mrb[0].mxu0 %v20
  %v1003 = vpop.f32.mrb[0].mxu0
  %v1004 = vadd.f32 %v927, %v1003
  %v1005 = vpop.f32.mrb[0].mxu0
  %v1006 = vadd.f32 %v929, %v1005
  %1007 = vdwg.mxu0
  %1008 = vmatprep.subr.mxu0 %v25
  %1009 = vmatpush1.msra.mxu0 %v24
  %1010 = vmatprep.subr.mxu0 %v37
  %1011 = vmatpush1.msra.mxu0 %v36
  %1012 = vmatprep.subr.mxu0 %v49
  %1013 = vmatpush1.msra.mxu0 %v48
  %1014 = vmatprep.subr.mxu0 %v61
  %1015 = vmatpush1.msra.mxu0 %v60
  %1016 = vmatprep.subr.mxu0 %v73
  %1017 = vmatpush1.msra.mxu0 %v72
  %1018 = vmatprep.subr.mxu0 %v85
  %1019 = vmatpush1.msra.mxu0 %v84
  %1020 = vmatprep.subr.mxu0 %v97
  %1021 = vmatpush1.msra.mxu0 %v96
  %1022 = vmatprep.subr.mxu0 %v109
  %1023 = vmatpush1.msra.mxu0 %v108
  %1024 = vmatprep.subr.mxu0 %v121
  %1025 = vmatpush1.msra.mxu0 %v120
  %1026 = vmatprep.subr.mxu0 %v133
  %1027 = vmatpush1.msra.mxu0 %v132
  %1028 = vmatprep.subr.mxu0 %v145
  %1029 = vmatpush1.msra.mxu0 %v144
  %1030 = vmatprep.subr.mxu0 %v157
  %1031 = vmatpush1.msra.mxu0 %v156
  %1032 = vmatprep.subr.mxu0 %v169
  %1033 = vmatpush1.msra.mxu0 %v168
  %1034 = vmatprep.subr.mxu0 %v181
  %1035 = vmatpush1.msra.mxu0 %v180
  %1036 = vmatprep.subr.mxu0 %v193
  %1037 = vmatpush1.msra.mxu0 %v192
  %1038 = vmatprep.subr.mxu0 %v205
  %1039 = vmatpush1.msra.mxu0 %v204
  %1040 = vmatprep.subr.mxu0 %v217
  %1041 = vmatpush1.msra.mxu0 %v216
  %1042 = vmatprep.subr.mxu0 %v229
  %1043 = vmatpush1.msra.mxu0 %v228
  %1044 = vmatprep.subr.mxu0 %v241
  %1045 = vmatpush1.msra.mxu0 %v240
  %1046 = vmatprep.subr.mxu0 %v253
  %1047 = vmatpush1.msra.mxu0 %v252
  %1048 = vmatprep.subr.mxu0 %v265
  %1049 = vmatpush1.msra.mxu0 %v264
  %1050 = vmatprep.subr.mxu0 %v277
  %1051 = vmatpush1.msra.mxu0 %v276
  %1052 = vmatprep.subr.mxu0 %v289
  %1053 = vmatpush1.msra.mxu0 %v288
  %1054 = vmatprep.subr.mxu0 %v301
  %1055 = vmatpush1.msra.mxu0 %v300
  %1056 = vmatprep.subr.mxu0 %v313
  %1057 = vmatpush1.msra.mxu0 %v312
  %1058 = vmatprep.subr.mxu0 %v325
  %1059 = vmatpush1.msra.mxu0 %v324
  %1060 = vmatprep.subr.mxu0 %v337
  %1061 = vmatpush1.msra.mxu0 %v336
  %1062 = vmatprep.subr.mxu0 %v349
  %1063 = vmatpush1.msra.mxu0 %v348
  %1064 = vmatprep.subr.mxu0 %v361
  %1065 = vmatpush1.msra.mxu0 %v360
  %1066 = vmatprep.subr.mxu0 %v373
  %1067 = vmatpush1.msra.mxu0 %v372
  %1068 = vmatprep.subr.mxu0 %v385
  %1069 = vmatpush1.msra.mxu0 %v384
  %1070 = vmatprep.subr.mxu0 %v397
  %1071 = vmatpush1.msra.mxu0 %v396
  %1072 = vmatprep.mubr.f32.mxu0 %v15
  %1073 = vmatmul.mubr.f32.gmra.mrb[0].mxu0 %v14
  %v1074 = vpop.f32.mrb[0].mxu0
  %v1075 = vadd.f32 %v805, %v1074
  %v1076 = vpop.f32.mrb[0].mxu0
  %v1077 = vadd.f32 %v809, %v1076
  %1078 = vmatprep.mubr.f32.mxu0 %v19
  %1079 = vmatmul.mubr.f32.gmra.mrb[0].mxu0 %v18
  %v1080 = vpop.f32.mrb[0].mxu0
  %v1081 = vadd.f32 %v805, %v1080
  %v1082 = vpop.f32.mrb[0].mxu0
  %v1083 = vadd.f32 %v809, %v1082
  %1084 = vdwg.mxu0
  %1085 = vmatprep.subr.mxu0 %v409
  %1086 = vmatpush1.msra.mxu0 %v408
  %1087 = vmatprep.subr.mxu0 %v421
  %1088 = vmatpush1.msra.mxu0 %v420
  %1089 = vmatprep.subr.mxu0 %v433
  %1090 = vmatpush1.msra.mxu0 %v432
  %1091 = vmatprep.subr.mxu0 %v445
  %1092 = vmatpush1.msra.mxu0 %v444
  %1093 = vmatprep.subr.mxu0 %v457
  %1094 = vmatpush1.msra.mxu0 %v456
  %1095 = vmatprep.subr.mxu0 %v469
  %1096 = vmatpush1.msra.mxu0 %v468
  %1097 = vmatprep.subr.mxu0 %v481
  %1098 = vmatpush1.msra.mxu0 %v480
  %1099 = vmatprep.subr.mxu0 %v493
  %1100 = vmatpush1.msra.mxu0 %v492
  %1101 = vmatprep.subr.mxu0 %v505
  %1102 = vmatpush1.msra.mxu0 %v504
  %1103 = vmatprep.subr.mxu0 %v517
  %1104 = vmatpush1.msra.mxu0 %v516
  %1105 = vmatprep.subr.mxu0 %v529
  %1106 = vmatpush1.msra.mxu0 %v528
  %1107 = vmatprep.subr.mxu0 %v541
  %1108 = vmatpush1.msra.mxu0 %v540
  %1109 = vmatprep.subr.mxu0 %v553
  %1110 = vmatpush1.msra.mxu0 %v552
  %1111 = vmatprep.subr.mxu0 %v565
  %1112 = vmatpush1.msra.mxu0 %v564
  %1113 = vmatprep.subr.mxu0 %v577
  %1114 = vmatpush1.msra.mxu0 %v576
  %1115 = vmatprep.subr.mxu0 %v589
  %1116 = vmatpush1.msra.mxu0 %v588
  %1117 = vmatprep.subr.mxu0 %v601
  %1118 = vmatpush1.msra.mxu0 %v600
  %1119 = vmatprep.subr.mxu0 %v613
  %1120 = vmatpush1.msra.mxu0 %v612
  %1121 = vmatprep.subr.mxu0 %v625
  %1122 = vmatpush1.msra.mxu0 %v624
  %1123 = vmatprep.subr.mxu0 %v637
  %1124 = vmatpush1.msra.mxu0 %v636
  %1125 = vmatprep.subr.mxu0 %v649
  %1126 = vmatpush1.msra.mxu0 %v648
  %1127 = vmatprep.subr.mxu0 %v661
  %1128 = vmatpush1.msra.mxu0 %v660
  %1129 = vmatprep.subr.mxu0 %v673
  %1130 = vmatpush1.msra.mxu0 %v672
  %1131 = vmatprep.subr.mxu0 %v685
  %1132 = vmatpush1.msra.mxu0 %v684
  %1133 = vmatprep.subr.mxu0 %v697
  %1134 = vmatpush1.msra.mxu0 %v696
  %1135 = vmatprep.subr.mxu0 %v709
  %1136 = vmatpush1.msra.mxu0 %v708
  %1137 = vmatprep.subr.mxu0 %v721
  %1138 = vmatpush1.msra.mxu0 %v720
  %1139 = vmatprep.subr.mxu0 %v733
  %1140 = vmatpush1.msra.mxu0 %v732
  %1141 = vmatprep.subr.mxu0 %v745
  %1142 = vmatpush1.msra.mxu0 %v744
  %1143 = vmatprep.subr.mxu0 %v757
  %1144 = vmatpush1.msra.mxu0 %v756
  %1145 = vmatprep.subr.mxu0 %v769
  %1146 = vmatpush1.msra.mxu0 %v768
  %1147 = vmatprep.subr.mxu0 %v781
  %1148 = vmatpush1.msra.mxu0 %v780
  %1149 = vmatprep.mubr.f32.mxu0 %v17
  %1150 = vmatmul.mubr.f32.gmra.mrb[0].mxu0 %v16
  %v1151 = vpop.f32.mrb[0].mxu0
  %v1152 = vadd.f32 %v1075, %v1151
  %v1153 = vpop.f32.mrb[0].mxu0
  %v1154 = vadd.f32 %v1077, %v1153
  %1155 = vmatprep.mubr.f32.mxu0 %v21
  %1156 = vmatmul.mubr.f32.gmra.mrb[0].mxu0 %v20
  %v1157 = vpop.f32.mrb[0].mxu0
  %v1158 = vadd.f32 %v1081, %v1157
  %v1159 = vpop.f32.mrb[0].mxu0
  %v1160 = vadd.f32 %v1083, %v1159
  %1161 = vdwg.mxu0
  %1162 = vmatprep.subr.mxu0 %v27
  %1163 = vmatpush1.msra.mxu0 %v26
  %1164 = vmatprep.subr.mxu0 %v39
  %1165 = vmatpush1.msra.mxu0 %v38
  %1166 = vmatprep.subr.mxu0 %v51
  %1167 = vmatpush1.msra.mxu0 %v50
  %1168 = vmatprep.subr.mxu0 %v63
  %1169 = vmatpush1.msra.mxu0 %v62
  %1170 = vmatprep.subr.mxu0 %v75
  %1171 = vmatpush1.msra.mxu0 %v74
  %1172 = vmatprep.subr.mxu0 %v87
  %1173 = vmatpush1.msra.mxu0 %v86
  %1174 = vmatprep.subr.mxu0 %v99
  %1175 = vmatpush1.msra.mxu0 %v98
  %1176 = vmatprep.subr.mxu0 %v111
  %1177 = vmatpush1.msra.mxu0 %v110
  %1178 = vmatprep.subr.mxu0 %v123
  %1179 = vmatpush1.msra.mxu0 %v122
  %1180 = vmatprep.subr.mxu0 %v135
  %1181 = vmatpush1.msra.mxu0 %v134
  %1182 = vmatprep.subr.mxu0 %v147
  %1183 = vmatpush1.msra.mxu0 %v146
  %1184 = vmatprep.subr.mxu0 %v159
  %1185 = vmatpush1.msra.mxu0 %v158
  %1186 = vmatprep.subr.mxu0 %v171
  %1187 = vmatpush1.msra.mxu0 %v170
  %1188 = vmatprep.subr.mxu0 %v183
  %1189 = vmatpush1.msra.mxu0 %v182
  %1190 = vmatprep.subr.mxu0 %v195
  %1191 = vmatpush1.msra.mxu0 %v194
  %1192 = vmatprep.subr.mxu0 %v207
  %1193 = vmatpush1.msra.mxu0 %v206
  %1194 = vmatprep.subr.mxu0 %v219
  %1195 = vmatpush1.msra.mxu0 %v218
  %1196 = vmatprep.subr.mxu0 %v231
  %1197 = vmatpush1.msra.mxu0 %v230
  %1198 = vmatprep.subr.mxu0 %v243
  %1199 = vmatpush1.msra.mxu0 %v242
  %1200 = vmatprep.subr.mxu0 %v255
  %1201 = vmatpush1.msra.mxu0 %v254
  %1202 = vmatprep.subr.mxu0 %v267
  %1203 = vmatpush1.msra.mxu0 %v266
  %1204 = vmatprep.subr.mxu0 %v279
  %1205 = vmatpush1.msra.mxu0 %v278
  %1206 = vmatprep.subr.mxu0 %v291
  %1207 = vmatpush1.msra.mxu0 %v290
  %1208 = vmatprep.subr.mxu0 %v303
  %1209 = vmatpush1.msra.mxu0 %v302
  %1210 = vmatprep.subr.mxu0 %v315
  %1211 = vmatpush1.msra.mxu0 %v314
  %1212 = vmatprep.subr.mxu0 %v327
  %1213 = vmatpush1.msra.mxu0 %v326
  %1214 = vmatprep.subr.mxu0 %v339
  %1215 = vmatpush1.msra.mxu0 %v338
  %1216 = vmatprep.subr.mxu0 %v351
  %1217 = vmatpush1.msra.mxu0 %v350
  %1218 = vmatprep.subr.mxu0 %v363
  %1219 = vmatpush1.msra.mxu0 %v362
  %1220 = vmatprep.subr.mxu0 %v375
  %1221 = vmatpush1.msra.mxu0 %v374
  %1222 = vmatprep.subr.mxu0 %v387
  %1223 = vmatpush1.msra.mxu0 %v386
  %1224 = vmatprep.subr.mxu0 %v399
  %1225 = vmatpush1.msra.mxu0 %v398
  %1226 = vmatprep.mubr.f32.mxu0 %v15
  %1227 = vmatmul.mubr.f32.gmra.mrb[0].mxu0 %v14
  %v1228 = vpop.f32.mrb[0].mxu0
  %v1229 = vadd.f32 %v813, %v1228
  %v1230 = vpop.f32.mrb[0].mxu0
  %v1231 = vadd.f32 %v817, %v1230
  %1232 = vmatprep.mubr.f32.mxu0 %v19
  %1233 = vmatmul.mubr.f32.gmra.mrb[0].mxu0 %v18
  %v1234 = vpop.f32.mrb[0].mxu0
  %v1235 = vadd.f32 %v813, %v1234
  %v1236 = vpop.f32.mrb[0].mxu0
  %v1237 = vadd.f32 %v817, %v1236
  %1238 = vdwg.mxu0
  %1239 = vmatprep.subr.mxu0 %v411
  %1240 = vmatpush1.msra.mxu0 %v410
  %1241 = vmatprep.subr.mxu0 %v423
  %1242 = vmatpush1.msra.mxu0 %v422
  %1243 = vmatprep.subr.mxu0 %v435
  %1244 = vmatpush1.msra.mxu0 %v434
  %1245 = vmatprep.subr.mxu0 %v447
  %1246 = vmatpush1.msra.mxu0 %v446
  %1247 = vmatprep.subr.mxu0 %v459
  %1248 = vmatpush1.msra.mxu0 %v458
  %1249 = vmatprep.subr.mxu0 %v471
  %1250 = vmatpush1.msra.mxu0 %v470
  %1251 = vmatprep.subr.mxu0 %v483
  %1252 = vmatpush1.msra.mxu0 %v482
  %1253 = vmatprep.subr.mxu0 %v495
  %1254 = vmatpush1.msra.mxu0 %v494
  %1255 = vmatprep.subr.mxu0 %v507
  %1256 = vmatpush1.msra.mxu0 %v506
  %1257 = vmatprep.subr.mxu0 %v519
  %1258 = vmatpush1.msra.mxu0 %v518
  %1259 = vmatprep.subr.mxu0 %v531
  %1260 = vmatpush1.msra.mxu0 %v530
  %1261 = vmatprep.subr.mxu0 %v543
  %1262 = vmatpush1.msra.mxu0 %v542
  %1263 = vmatprep.subr.mxu0 %v555
  %1264 = vmatpush1.msra.mxu0 %v554
  %1265 = vmatprep.subr.mxu0 %v567
  %1266 = vmatpush1.msra.mxu0 %v566
  %1267 = vmatprep.subr.mxu0 %v579
  %1268 = vmatpush1.msra.mxu0 %v578
  %1269 = vmatprep.subr.mxu0 %v591
  %1270 = vmatpush1.msra.mxu0 %v590
  %1271 = vmatprep.subr.mxu0 %v603
  %1272 = vmatpush1.msra.mxu0 %v602
  %1273 = vmatprep.subr.mxu0 %v615
  %1274 = vmatpush1.msra.mxu0 %v614
  %1275 = vmatprep.subr.mxu0 %v627
  %1276 = vmatpush1.msra.mxu0 %v626
  %1277 = vmatprep.subr.mxu0 %v639
  %1278 = vmatpush1.msra.mxu0 %v638
  %1279 = vmatprep.subr.mxu0 %v651
  %1280 = vmatpush1.msra.mxu0 %v650
  %1281 = vmatprep.subr.mxu0 %v663
  %1282 = vmatpush1.msra.mxu0 %v662
  %1283 = vmatprep.subr.mxu0 %v675
  %1284 = vmatpush1.msra.mxu0 %v674
  %1285 = vmatprep.subr.mxu0 %v687
  %1286 = vmatpush1.msra.mxu0 %v686
  %1287 = vmatprep.subr.mxu0 %v699
  %1288 = vmatpush1.msra.mxu0 %v698
  %1289 = vmatprep.subr.mxu0 %v711
  %1290 = vmatpush1.msra.mxu0 %v710
  %1291 = vmatprep.subr.mxu0 %v723
  %1292 = vmatpush1.msra.mxu0 %v722
  %1293 = vmatprep.subr.mxu0 %v735
  %1294 = vmatpush1.msra.mxu0 %v734
  %1295 = vmatprep.subr.mxu0 %v747
  %1296 = vmatpush1.msra.mxu0 %v746
  %1297 = vmatprep.subr.mxu0 %v759
  %1298 = vmatpush1.msra.mxu0 %v758
  %1299 = vmatprep.subr.mxu0 %v771
  %1300 = vmatpush1.msra.mxu0 %v770
  %1301 = vmatprep.subr.mxu0 %v783
  %1302 = vmatpush1.msra.mxu0 %v782
  %1303 = vmatprep.mubr.f32.mxu0 %v17
  %1304 = vmatmul.mubr.f32.gmra.mrb[0].mxu0 %v16
  %v1305 = vpop.f32.mrb[0].mxu0
  %v1306 = vadd.f32 %v1229, %v1305
  %v1307 = vpop.f32.mrb[0].mxu0
  %v1308 = vadd.f32 %v1231, %v1307
  %1309 = vmatprep.mubr.f32.mxu0 %v21
  %1310 = vmatmul.mubr.f32.gmra.mrb[0].mxu0 %v20
  %v1311 = vpop.f32.mrb[0].mxu0
  %v1312 = vadd.f32 %v1235, %v1311
  %v1313 = vpop.f32.mrb[0].mxu0
  %v1314 = vadd.f32 %v1237, %v1313
  %1315 = vdwg.mxu0
  %1316 = vmatprep.subr.mxu0 %v29
  %1317 = vmatpush1.msra.mxu0 %v28
  %1318 = vmatprep.subr.mxu0 %v41
  %1319 = vmatpush1.msra.mxu0 %v40
  %1320 = vmatprep.subr.mxu0 %v53
  %1321 = vmatpush1.msra.mxu0 %v52
  %1322 = vmatprep.subr.mxu0 %v65
  %1323 = vmatpush1.msra.mxu0 %v64
  %1324 = vmatprep.subr.mxu0 %v77
  %1325 = vmatpush1.msra.mxu0 %v76
  %1326 = vmatprep.subr.mxu0 %v89
  %1327 = vmatpush1.msra.mxu0 %v88
  %1328 = vmatprep.subr.mxu0 %v101
  %1329 = vmatpush1.msra.mxu0 %v100
  %1330 = vmatprep.subr.mxu0 %v113
  %1331 = vmatpush1.msra.mxu0 %v112
  %1332 = vmatprep.subr.mxu0 %v125
  %1333 = vmatpush1.msra.mxu0 %v124
  %1334 = vmatprep.subr.mxu0 %v137
  %1335 = vmatpush1.msra.mxu0 %v136
  %1336 = vmatprep.subr.mxu0 %v149
  %1337 = vmatpush1.msra.mxu0 %v148
  %1338 = vmatprep.subr.mxu0 %v161
  %1339 = vmatpush1.msra.mxu0 %v160
  %1340 = vmatprep.subr.mxu0 %v173
  %1341 = vmatpush1.msra.mxu0 %v172
  %1342 = vmatprep.subr.mxu0 %v185
  %1343 = vmatpush1.msra.mxu0 %v184
  %1344 = vmatprep.subr.mxu0 %v197
  %1345 = vmatpush1.msra.mxu0 %v196
  %1346 = vmatprep.subr.mxu0 %v209
  %1347 = vmatpush1.msra.mxu0 %v208
  %1348 = vmatprep.subr.mxu0 %v221
  %1349 = vmatpush1.msra.mxu0 %v220
  %1350 = vmatprep.subr.mxu0 %v233
  %1351 = vmatpush1.msra.mxu0 %v232
  %1352 = vmatprep.subr.mxu0 %v245
  %1353 = vmatpush1.msra.mxu0 %v244
  %1354 = vmatprep.subr.mxu0 %v257
  %1355 = vmatpush1.msra.mxu0 %v256
  %1356 = vmatprep.subr.mxu0 %v269
  %1357 = vmatpush1.msra.mxu0 %v268
  %1358 = vmatprep.subr.mxu0 %v281
  %1359 = vmatpush1.msra.mxu0 %v280
  %1360 = vmatprep.subr.mxu0 %v293
  %1361 = vmatpush1.msra.mxu0 %v292
  %1362 = vmatprep.subr.mxu0 %v305
  %1363 = vmatpush1.msra.mxu0 %v304
  %1364 = vmatprep.subr.mxu0 %v317
  %1365 = vmatpush1.msra.mxu0 %v316
  %1366 = vmatprep.subr.mxu0 %v329
  %1367 = vmatpush1.msra.mxu0 %v328
  %1368 = vmatprep.subr.mxu0 %v341
  %1369 = vmatpush1.msra.mxu0 %v340
  %1370 = vmatprep.subr.mxu0 %v353
  %1371 = vmatpush1.msra.mxu0 %v352
  %1372 = vmatprep.subr.mxu0 %v365
  %1373 = vmatpush1.msra.mxu0 %v364
  %1374 = vmatprep.subr.mxu0 %v377
  %1375 = vmatpush1.msra.mxu0 %v376
  %1376 = vmatprep.subr.mxu0 %v389
  %1377 = vmatpush1.msra.mxu0 %v388
  %1378 = vmatprep.subr.mxu0 %v401
  %1379 = vmatpush1.msra.mxu0 %v400
  %1380 = vmatprep.mubr.f32.mxu0 %v15
  %1381 = vmatmul.mubr.f32.gmra.mrb[0].mxu0 %v14
  %v1382 = vpop.f32.mrb[0].mxu0
  %v1383 = vadd.f32 %v821, %v1382
  %v1384 = vpop.f32.mrb[0].mxu0
  %v1385 = vadd.f32 %v825, %v1384
  %1386 = vmatprep.mubr.f32.mxu0 %v19
  %1387 = vmatmul.mubr.f32.gmra.mrb[0].mxu0 %v18
  %v1388 = vpop.f32.mrb[0].mxu0
  %v1389 = vadd.f32 %v821, %v1388
  %v1390 = vpop.f32.mrb[0].mxu0
  %v1391 = vadd.f32 %v825, %v1390
  %1392 = vdwg.mxu0
  %1393 = vmatprep.subr.mxu0 %v413
  %1394 = vmatpush1.msra.mxu0 %v412
  %1395 = vmatprep.subr.mxu0 %v425
  %1396 = vmatpush1.msra.mxu0 %v424
  %1397 = vmatprep.subr.mxu0 %v437
  %1398 = vmatpush1.msra.mxu0 %v436
  %1399 = vmatprep.subr.mxu0 %v449
  %1400 = vmatpush1.msra.mxu0 %v448
  %1401 = vmatprep.subr.mxu0 %v461
  %1402 = vmatpush1.msra.mxu0 %v460
  %1403 = vmatprep.subr.mxu0 %v473
  %1404 = vmatpush1.msra.mxu0 %v472
  %1405 = vmatprep.subr.mxu0 %v485
  %1406 = vmatpush1.msra.mxu0 %v484
  %1407 = vmatprep.subr.mxu0 %v497
  %1408 = vmatpush1.msra.mxu0 %v496
  %1409 = vmatprep.subr.mxu0 %v509
  %1410 = vmatpush1.msra.mxu0 %v508
  %1411 = vmatprep.subr.mxu0 %v521
  %1412 = vmatpush1.msra.mxu0 %v520
  %1413 = vmatprep.subr.mxu0 %v533
  %1414 = vmatpush1.msra.mxu0 %v532
  %1415 = vmatprep.subr.mxu0 %v545
  %1416 = vmatpush1.msra.mxu0 %v544
  %1417 = vmatprep.subr.mxu0 %v557
  %1418 = vmatpush1.msra.mxu0 %v556
  %1419 = vmatprep.subr.mxu0 %v569
  %1420 = vmatpush1.msra.mxu0 %v568
  %1421 = vmatprep.subr.mxu0 %v581
  %1422 = vmatpush1.msra.mxu0 %v580
  %1423 = vmatprep.subr.mxu0 %v593
  %1424 = vmatpush1.msra.mxu0 %v592
  %1425 = vmatprep.subr.mxu0 %v605
  %1426 = vmatpush1.msra.mxu0 %v604
  %1427 = vmatprep.subr.mxu0 %v617
  %1428 = vmatpush1.msra.mxu0 %v616
  %1429 = vmatprep.subr.mxu0 %v629
  %1430 = vmatpush1.msra.mxu0 %v628
  %1431 = vmatprep.subr.mxu0 %v641
  %1432 = vmatpush1.msra.mxu0 %v640
  %1433 = vmatprep.subr.mxu0 %v653
  %1434 = vmatpush1.msra.mxu0 %v652
  %1435 = vmatprep.subr.mxu0 %v665
  %1436 = vmatpush1.msra.mxu0 %v664
  %1437 = vmatprep.subr.mxu0 %v677
  %1438 = vmatpush1.msra.mxu0 %v676
  %1439 = vmatprep.subr.mxu0 %v689
  %1440 = vmatpush1.msra.mxu0 %v688
  %1441 = vmatprep.subr.mxu0 %v701
  %1442 = vmatpush1.msra.mxu0 %v700
  %1443 = vmatprep.subr.mxu0 %v713
  %1444 = vmatpush1.msra.mxu0 %v712
  %1445 = vmatprep.subr.mxu0 %v725
  %1446 = vmatpush1.msra.mxu0 %v724
  %1447 = vmatprep.subr.mxu0 %v737
  %1448 = vmatpush1.msra.mxu0 %v736
  %1449 = vmatprep.subr.mxu0 %v749
  %1450 = vmatpush1.msra.mxu0 %v748
  %1451 = vmatprep.subr.mxu0 %v761
  %1452 = vmatpush1.msra.mxu0 %v760
  %1453 = vmatprep.subr.mxu0 %v773
  %1454 = vmatpush1.msra.mxu0 %v772
  %1455 = vmatprep.subr.mxu0 %v785
  %1456 = vmatpush1.msra.mxu0 %v784
  %1457 = vmatprep.mubr.f32.mxu0 %v17
  %1458 = vmatmul.mubr.f32.gmra.mrb[0].mxu0 %v16
  %v1459 = vpop.f32.mrb[0].mxu0
  %v1460 = vadd.f32 %v1383, %v1459
  %v1461 = vpop.f32.mrb[0].mxu0
  %v1462 = vadd.f32 %v1385, %v1461
  %1463 = vmatprep.mubr.f32.mxu0 %v21
  %1464 = vmatmul.mubr.f32.gmra.mrb[0].mxu0 %v20
  %v1465 = vpop.f32.mrb[0].mxu0
  %v1466 = vadd.f32 %v1389, %v1465
  %v1467 = vpop.f32.mrb[0].mxu0
  %v1468 = vadd.f32 %v1391, %v1467
  %1469 = vdwg.mxu0
  %1470 = vmatprep.subr.mxu0 %v31
  %1471 = vmatpush1.msra.mxu0 %v30
  %1472 = vmatprep.subr.mxu0 %v43
  %1473 = vmatpush1.msra.mxu0 %v42
  %1474 = vmatprep.subr.mxu0 %v55
  %1475 = vmatpush1.msra.mxu0 %v54
  %1476 = vmatprep.subr.mxu0 %v67
  %1477 = vmatpush1.msra.mxu0 %v66
  %1478 = vmatprep.subr.mxu0 %v79
  %1479 = vmatpush1.msra.mxu0 %v78
  %1480 = vmatprep.subr.mxu0 %v91
  %1481 = vmatpush1.msra.mxu0 %v90
  %1482 = vmatprep.subr.mxu0 %v103
  %1483 = vmatpush1.msra.mxu0 %v102
  %1484 = vmatprep.subr.mxu0 %v115
  %1485 = vmatpush1.msra.mxu0 %v114
  %1486 = vmatprep.subr.mxu0 %v127
  %1487 = vmatpush1.msra.mxu0 %v126
  %1488 = vmatprep.subr.mxu0 %v139
  %1489 = vmatpush1.msra.mxu0 %v138
  %1490 = vmatprep.subr.mxu0 %v151
  %1491 = vmatpush1.msra.mxu0 %v150
  %1492 = vmatprep.subr.mxu0 %v163
  %1493 = vmatpush1.msra.mxu0 %v162
  %1494 = vmatprep.subr.mxu0 %v175
  %1495 = vmatpush1.msra.mxu0 %v174
  %1496 = vmatprep.subr.mxu0 %v187
  %1497 = vmatpush1.msra.mxu0 %v186
  %1498 = vmatprep.subr.mxu0 %v199
  %1499 = vmatpush1.msra.mxu0 %v198
  %1500 = vmatprep.subr.mxu0 %v211
  %1501 = vmatpush1.msra.mxu0 %v210
  %1502 = vmatprep.subr.mxu0 %v223
  %1503 = vmatpush1.msra.mxu0 %v222
  %1504 = vmatprep.subr.mxu0 %v235
  %1505 = vmatpush1.msra.mxu0 %v234
  %1506 = vmatprep.subr.mxu0 %v247
  %1507 = vmatpush1.msra.mxu0 %v246
  %1508 = vmatprep.subr.mxu0 %v259
  %1509 = vmatpush1.msra.mxu0 %v258
  %1510 = vmatprep.subr.mxu0 %v271
  %1511 = vmatpush1.msra.mxu0 %v270
  %1512 = vmatprep.subr.mxu0 %v283
  %1513 = vmatpush1.msra.mxu0 %v282
  %1514 = vmatprep.subr.mxu0 %v295
  %1515 = vmatpush1.msra.mxu0 %v294
  %1516 = vmatprep.subr.mxu0 %v307
  %1517 = vmatpush1.msra.mxu0 %v306
  %1518 = vmatprep.subr.mxu0 %v319
  %1519 = vmatpush1.msra.mxu0 %v318
  %1520 = vmatprep.subr.mxu0 %v331
  %1521 = vmatpush1.msra.mxu0 %v330
  %1522 = vmatprep.subr.mxu0 %v343
  %1523 = vmatpush1.msra.mxu0 %v342
  %1524 = vmatprep.subr.mxu0 %v355
  %1525 = vmatpush1.msra.mxu0 %v354
  %1526 = vmatprep.subr.mxu0 %v367
  %1527 = vmatpush1.msra.mxu0 %v366
  %1528 = vmatprep.subr.mxu0 %v379
  %1529 = vmatpush1.msra.mxu0 %v378
  %1530 = vmatprep.subr.mxu0 %v391
  %1531 = vmatpush1.msra.mxu0 %v390
  %1532 = vmatprep.subr.mxu0 %v403
  %1533 = vmatpush1.msra.mxu0 %v402
  %1534 = vmatprep.mubr.f32.mxu0 %v15
  %1535 = vmatmul.mubr.f32.gmra.mrb[0].mxu0 %v14
  %v1536 = vpop.f32.mrb[0].mxu0
  %v1537 = vadd.f32 %v829, %v1536
  %v1538 = vpop.f32.mrb[0].mxu0
  %v1539 = vadd.f32 %v833, %v1538
  %1540 = vmatprep.mubr.f32.mxu0 %v19
  %1541 = vmatmul.mubr.f32.gmra.mrb[0].mxu0 %v18
  %v1542 = vpop.f32.mrb[0].mxu0
  %v1543 = vadd.f32 %v829, %v1542
  %v1544 = vpop.f32.mrb[0].mxu0
  %v1545 = vadd.f32 %v833, %v1544
  %1546 = vdwg.mxu0
  %1547 = vmatprep.subr.mxu0 %v415
  %1548 = vmatpush1.msra.mxu0 %v414
  %1549 = vmatprep.subr.mxu0 %v427
  %1550 = vmatpush1.msra.mxu0 %v426
  %1551 = vmatprep.subr.mxu0 %v439
  %1552 = vmatpush1.msra.mxu0 %v438
  %1553 = vmatprep.subr.mxu0 %v451
  %1554 = vmatpush1.msra.mxu0 %v450
  %1555 = vmatprep.subr.mxu0 %v463
  %1556 = vmatpush1.msra.mxu0 %v462
  %1557 = vmatprep.subr.mxu0 %v475
  %1558 = vmatpush1.msra.mxu0 %v474
  %1559 = vmatprep.subr.mxu0 %v487
  %1560 = vmatpush1.msra.mxu0 %v486
  %1561 = vmatprep.subr.mxu0 %v499
  %1562 = vmatpush1.msra.mxu0 %v498
  %1563 = vmatprep.subr.mxu0 %v511
  %1564 = vmatpush1.msra.mxu0 %v510
  %1565 = vmatprep.subr.mxu0 %v523
  %1566 = vmatpush1.msra.mxu0 %v522
  %1567 = vmatprep.subr.mxu0 %v535
  %1568 = vmatpush1.msra.mxu0 %v534
  %1569 = vmatprep.subr.mxu0 %v547
  %1570 = vmatpush1.msra.mxu0 %v546
  %1571 = vmatprep.subr.mxu0 %v559
  %1572 = vmatpush1.msra.mxu0 %v558
  %1573 = vmatprep.subr.mxu0 %v571
  %1574 = vmatpush1.msra.mxu0 %v570
  %1575 = vmatprep.subr.mxu0 %v583
  %1576 = vmatpush1.msra.mxu0 %v582
  %1577 = vmatprep.subr.mxu0 %v595
  %1578 = vmatpush1.msra.mxu0 %v594
  %1579 = vmatprep.subr.mxu0 %v607
  %1580 = vmatpush1.msra.mxu0 %v606
  %1581 = vmatprep.subr.mxu0 %v619
  %1582 = vmatpush1.msra.mxu0 %v618
  %1583 = vmatprep.subr.mxu0 %v631
  %1584 = vmatpush1.msra.mxu0 %v630
  %1585 = vmatprep.subr.mxu0 %v643
  %1586 = vmatpush1.msra.mxu0 %v642
  %1587 = vmatprep.subr.mxu0 %v655
  %1588 = vmatpush1.msra.mxu0 %v654
  %1589 = vmatprep.subr.mxu0 %v667
  %1590 = vmatpush1.msra.mxu0 %v666
  %1591 = vmatprep.subr.mxu0 %v679
  %1592 = vmatpush1.msra.mxu0 %v678
  %1593 = vmatprep.subr.mxu0 %v691
  %1594 = vmatpush1.msra.mxu0 %v690
  %1595 = vmatprep.subr.mxu0 %v703
  %1596 = vmatpush1.msra.mxu0 %v702
  %1597 = vmatprep.subr.mxu0 %v715
  %1598 = vmatpush1.msra.mxu0 %v714
  %1599 = vmatprep.subr.mxu0 %v727
  %1600 = vmatpush1.msra.mxu0 %v726
  %1601 = vmatprep.subr.mxu0 %v739
  %1602 = vmatpush1.msra.mxu0 %v738
  %1603 = vmatprep.subr.mxu0 %v751
  %1604 = vmatpush1.msra.mxu0 %v750
  %1605 = vmatprep.subr.mxu0 %v763
  %1606 = vmatpush1.msra.mxu0 %v762
  %1607 = vmatprep.subr.mxu0 %v775
  %1608 = vmatpush1.msra.mxu0 %v774
  %1609 = vmatprep.subr.mxu0 %v787
  %1610 = vmatpush1.msra.mxu0 %v786
  %1611 = vmatprep.mubr.f32.mxu0 %v17
  %1612 = vmatmul.mubr.f32.gmra.mrb[0].mxu0 %v16
  %v1613 = vpop.f32.mrb[0].mxu0
  %v1614 = vadd.f32 %v1537, %v1613
  %v1615 = vpop.f32.mrb[0].mxu0
  %v1616 = vadd.f32 %v1539, %v1615
  %1617 = vmatprep.mubr.f32.mxu0 %v21
  %1618 = vmatmul.mubr.f32.gmra.mrb[0].mxu0 %v20
  %v1619 = vpop.f32.mrb[0].mxu0
  %v1620 = vadd.f32 %v1543, %v1619
  %v1621 = vpop.f32.mrb[0].mxu0
  %v1622 = vadd.f32 %v1545, %v1621
  %1623 = vdwg.mxu0
  %1624 = vmatprep.subr.mxu0 %v33
  %1625 = vmatpush1.msra.mxu0 %v32
  %1626 = vmatprep.subr.mxu0 %v45
  %1627 = vmatpush1.msra.mxu0 %v44
  %1628 = vmatprep.subr.mxu0 %v57
  %1629 = vmatpush1.msra.mxu0 %v56
  %1630 = vmatprep.subr.mxu0 %v69
  %1631 = vmatpush1.msra.mxu0 %v68
  %1632 = vmatprep.subr.mxu0 %v81
  %1633 = vmatpush1.msra.mxu0 %v80
  %1634 = vmatprep.subr.mxu0 %v93
  %1635 = vmatpush1.msra.mxu0 %v92
  %1636 = vmatprep.subr.mxu0 %v105
  %1637 = vmatpush1.msra.mxu0 %v104
  %1638 = vmatprep.subr.mxu0 %v117
  %1639 = vmatpush1.msra.mxu0 %v116
  %1640 = vmatprep.subr.mxu0 %v129
  %1641 = vmatpush1.msra.mxu0 %v128
  %1642 = vmatprep.subr.mxu0 %v141
  %1643 = vmatpush1.msra.mxu0 %v140
  %1644 = vmatprep.subr.mxu0 %v153
  %1645 = vmatpush1.msra.mxu0 %v152
  %1646 = vmatprep.subr.mxu0 %v165
  %1647 = vmatpush1.msra.mxu0 %v164
  %1648 = vmatprep.subr.mxu0 %v177
  %1649 = vmatpush1.msra.mxu0 %v176
  %1650 = vmatprep.subr.mxu0 %v189
  %1651 = vmatpush1.msra.mxu0 %v188
  %1652 = vmatprep.subr.mxu0 %v201
  %1653 = vmatpush1.msra.mxu0 %v200
  %1654 = vmatprep.subr.mxu0 %v213
  %1655 = vmatpush1.msra.mxu0 %v212
  %1656 = vmatprep.subr.mxu0 %v225
  %1657 = vmatpush1.msra.mxu0 %v224
  %1658 = vmatprep.subr.mxu0 %v237
  %1659 = vmatpush1.msra.mxu0 %v236
  %1660 = vmatprep.subr.mxu0 %v249
  %1661 = vmatpush1.msra.mxu0 %v248
  %1662 = vmatprep.subr.mxu0 %v261
  %1663 = vmatpush1.msra.mxu0 %v260
  %1664 = vmatprep.subr.mxu0 %v273
  %1665 = vmatpush1.msra.mxu0 %v272
  %1666 = vmatprep.subr.mxu0 %v285
  %1667 = vmatpush1.msra.mxu0 %v284
  %1668 = vmatprep.subr.mxu0 %v297
  %1669 = vmatpush1.msra.mxu0 %v296
  %1670 = vmatprep.subr.mxu0 %v309
  %1671 = vmatpush1.msra.mxu0 %v308
  %1672 = vmatprep.subr.mxu0 %v321
  %1673 = vmatpush1.msra.mxu0 %v320
  %1674 = vmatprep.subr.mxu0 %v333
  %1675 = vmatpush1.msra.mxu0 %v332
  %1676 = vmatprep.subr.mxu0 %v345
  %1677 = vmatpush1.msra.mxu0 %v344
  %1678 = vmatprep.subr.mxu0 %v357
  %1679 = vmatpush1.msra.mxu0 %v356
  %1680 = vmatprep.subr.mxu0 %v369
  %1681 = vmatpush1.msra.mxu0 %v368
  %1682 = vmatprep.subr.mxu0 %v381
  %1683 = vmatpush1.msra.mxu0 %v380
  %1684 = vmatprep.subr.mxu0 %v393
  %1685 = vmatpush1.msra.mxu0 %v392
  %1686 = vmatprep.subr.mxu0 %v405
  %1687 = vmatpush1.msra.mxu0 %v404
  %1688 = vmatprep.mubr.f32.mxu0 %v15
  %1689 = vmatmul.mubr.f32.gmra.mrb[0].mxu0 %v14
  %v1690 = vpop.f32.mrb[0].mxu0
  %v1691 = vadd.f32 %v837, %v1690
  %v1692 = vpop.f32.mrb[0].mxu0
  %v1693 = vadd.f32 %v841, %v1692
  %1694 = vmatprep.mubr.f32.mxu0 %v19
  %1695 = vmatmul.mubr.f32.gmra.mrb[0].mxu0 %v18
  %v1696 = vpop.f32.mrb[0].mxu0
  %v1697 = vadd.f32 %v837, %v1696
  %v1698 = vpop.f32.mrb[0].mxu0
  %v1699 = vadd.f32 %v841, %v1698
  %1700 = vdwg.mxu0
  %1701 = vmatprep.subr.mxu0 %v417
  %1702 = vmatpush1.msra.mxu0 %v416
  %1703 = vmatprep.subr.mxu0 %v429
  %1704 = vmatpush1.msra.mxu0 %v428
  %1705 = vmatprep.subr.mxu0 %v441
  %1706 = vmatpush1.msra.mxu0 %v440
  %1707 = vmatprep.subr.mxu0 %v453
  %1708 = vmatpush1.msra.mxu0 %v452
  %1709 = vmatprep.subr.mxu0 %v465
  %1710 = vmatpush1.msra.mxu0 %v464
  %1711 = vmatprep.subr.mxu0 %v477
  %1712 = vmatpush1.msra.mxu0 %v476
  %1713 = vmatprep.subr.mxu0 %v489
  %1714 = vmatpush1.msra.mxu0 %v488
  %1715 = vmatprep.subr.mxu0 %v501
  %1716 = vmatpush1.msra.mxu0 %v500
  %1717 = vmatprep.subr.mxu0 %v513
  %1718 = vmatpush1.msra.mxu0 %v512
  %1719 = vmatprep.subr.mxu0 %v525
  %1720 = vmatpush1.msra.mxu0 %v524
  %1721 = vmatprep.subr.mxu0 %v537
  %1722 = vmatpush1.msra.mxu0 %v536
  %1723 = vmatprep.subr.mxu0 %v549
  %1724 = vmatpush1.msra.mxu0 %v548
  %1725 = vmatprep.subr.mxu0 %v561
  %1726 = vmatpush1.msra.mxu0 %v560
  %1727 = vmatprep.subr.mxu0 %v573
  %1728 = vmatpush1.msra.mxu0 %v572
  %1729 = vmatprep.subr.mxu0 %v585
  %1730 = vmatpush1.msra.mxu0 %v584
  %1731 = vmatprep.subr.mxu0 %v597
  %1732 = vmatpush1.msra.mxu0 %v596
  %1733 = vmatprep.subr.mxu0 %v609
  %1734 = vmatpush1.msra.mxu0 %v608
  %1735 = vmatprep.subr.mxu0 %v621
  %1736 = vmatpush1.msra.mxu0 %v620
  %1737 = vmatprep.subr.mxu0 %v633
  %1738 = vmatpush1.msra.mxu0 %v632
  %1739 = vmatprep.subr.mxu0 %v645
  %1740 = vmatpush1.msra.mxu0 %v644
  %1741 = vmatprep.subr.mxu0 %v657
  %1742 = vmatpush1.msra.mxu0 %v656
  %1743 = vmatprep.subr.mxu0 %v669
  %1744 = vmatpush1.msra.mxu0 %v668
  %1745 = vmatprep.subr.mxu0 %v681
  %1746 = vmatpush1.msra.mxu0 %v680
  %1747 = vmatprep.subr.mxu0 %v693
  %1748 = vmatpush1.msra.mxu0 %v692
  %1749 = vmatprep.subr.mxu0 %v705
  %1750 = vmatpush1.msra.mxu0 %v704
  %1751 = vmatprep.subr.mxu0 %v717
  %1752 = vmatpush1.msra.mxu0 %v716
  %1753 = vmatprep.subr.mxu0 %v729
  %1754 = vmatpush1.msra.mxu0 %v728
  %1755 = vmatprep.subr.mxu0 %v741
  %1756 = vmatpush1.msra.mxu0 %v740
  %1757 = vmatprep.subr.mxu0 %v753
  %1758 = vmatpush1.msra.mxu0 %v752
  %1759 = vmatprep.subr.mxu0 %v765
  %1760 = vmatpush1.msra.mxu0 %v764
  %1761 = vmatprep.subr.mxu0 %v777
  %1762 = vmatpush1.msra.mxu0 %v776
  %1763 = vmatprep.subr.mxu0 %v789
  %1764 = vmatpush1.msra.mxu0 %v788
  %1765 = vmatprep.mubr.f32.mxu0 %v17
  %1766 = vmatmul.mubr.f32.gmra.mrb[0].mxu0 %v16
  %v1767 = vpop.f32.mrb[0].mxu0
  %v1768 = vadd.f32 %v1691, %v1767
  %v1769 = vpop.f32.mrb[0].mxu0
  %v1770 = vadd.f32 %v1693, %v1769
  %1771 = vmatprep.mubr.f32.mxu0 %v21
  %1772 = vmatmul.mubr.f32.gmra.mrb[0].mxu0 %v20
  %v1773 = vpop.f32.mrb[0].mxu0
  %v1774 = vadd.f32 %v1697, %v1773
  %v1775 = vpop.f32.mrb[0].mxu0
  %v1776 = vadd.f32 %v1699, %v1775
  %1777 = vdwg.mxu0
  %1778 = vst [vmem:[%s3] sm:$0xff] %v998
  %1779 = vst [vmem:[%s3 + $0x8] sm:$0xff] %v1000
  %1780 = vst [vmem:[%s3 + $0x10] sm:$0xff] %v1152
  %1781 = vst [vmem:[%s3 + $0x18] sm:$0xff] %v1154
  %1782 = vst [vmem:[%s3 + $0x20] sm:$0xff] %v1306
  %1783 = vst [vmem:[%s3 + $0x28] sm:$0xff] %v1308
  %1784 = vst [vmem:[%s3 + $0x30] sm:$0xff] %v1460
  %1785 = vst [vmem:[%s3 + $0x38] sm:$0xff] %v1462
  %1786 = vst [vmem:[%s3 + $0x40] sm:$0xff] %v1614
  %1787 = vst [vmem:[%s3 + $0x48] sm:$0xff] %v1616
  %1788 = vst [vmem:[%s3 + $0x50] sm:$0xff] %v1768
  %1789 = vst [vmem:[%s3 + $0x58] sm:$0xff] %v1770
  %1790 = vst [vmem:[%s3 + $0x60] sm:$0xff] %v1004
  %1791 = vst [vmem:[%s3 + $0x68] sm:$0xff] %v1006
  %1792 = vst [vmem:[%s3 + $0x70] sm:$0xff] %v1158
  %1793 = vst [vmem:[%s3 + $0x78] sm:$0xff] %v1160
  %1794 = vst [vmem:[%s3 + $0x80] sm:$0xff] %v1312
  %1795 = vst [vmem:[%s3 + $0x88] sm:$0xff] %v1314
  %1796 = vst [vmem:[%s3 + $0x90] sm:$0xff] %v1466
  %1797 = vst [vmem:[%s3 + $0x98] sm:$0xff] %v1468
  %1798 = vst [vmem:[%s3 + $0xa0] sm:$0xff] %v1620
  %1799 = vst [vmem:[%s3 + $0xa8] sm:$0xff] %v1622
  %1800 = vst [vmem:[%s3 + $0xb0] sm:$0xff] %v1774
  %1801 = vst [vmem:[%s3 + $0xb8] sm:$0xff] %v1776
  // Predicated region
  $region14: #{decoder_layer_forward.5} parent=0 // pred_check
    _
  $region15: #{decoder_layer_forward.5} parent=0 // pred_check_branch
    %1803 = sbr.rel (0) target = $region17
  $region16: #{decoder_layer_forward.5} parent=0 // pred_region
    _
  $region17: #{decoder_layer_forward.5} parent=0 // pred_fallthru
    _
  // Predicated region
  $region18: #{decoder_layer_forward.5} parent=0 // pred_check
    _
  $region19: #{decoder_layer_forward.5} parent=0 // pred_check_branch
    %1805 = sbr.rel (0) target = $region21
  $region20: #{decoder_layer_forward.5} parent=0 // pred_region
    _
  $region21: #{decoder_layer_forward.5} parent=0 // pred_fallthru
    _

// kernel: decoder_layer_forward.8
$region0: #{decoder_layer_forward.8}
  #allocation0 [shape = 'u32[]', space=smem, size = 0x4, offset = 0x4, fixed_abs, tag = 'smem constant byte address 0x4 - core index']
  #allocation1 [shape = 'u32[144,128]{1,0:T(1,128)}', space=vmem, size = 0x12000, scoped, tag = 'internal scratch']
  %s0 = inlined_call_operand.vmem [shape: f32[16,512], index: 0, kind: input, shape index: {}]
  %s1 = inlined_call_operand.vmem [shape: f32[512,2048], index: 1, kind: input, shape index: {}]
  %s2 = inlined_call_operand.vmem [shape: f32[1,2048], index: 2, kind: input, shape index: {}]
  %s3 = inlined_call_operand.vmem [shape: f32[16,2048], index: 3, kind: output, shape index: {}]
  %s4 = sld [smem:[#allocation0]]
  $region22: #{decoder_layer_forward.8} parent=0
    _
  %s6 = ssub.s32 1, %s4
  %s7 = scalar_select 0, %s6, %s4
  // Predicated region
  $region2: #{decoder_layer_forward.8} parent=0 // pred_check
    _
  $region3: #{decoder_layer_forward.8} parent=0 // pred_check_branch
    %9 = sbr.rel (0) target = $region5
  $region4: #{decoder_layer_forward.8} parent=0 // pred_region
    _
  $region5: #{decoder_layer_forward.8} parent=0 // pred_fallthru
    _
  // Predicated region
  $region6: #{decoder_layer_forward.8} parent=0 // pred_check
    _
  $region7: #{decoder_layer_forward.8} parent=0 // pred_check_branch
    %11 = sbr.rel (0) target = $region9
  $region8: #{decoder_layer_forward.8} parent=0 // pred_region
    _
  $region9: #{decoder_layer_forward.8} parent=0 // pred_fallthru
    _
  // Predicated region
  $region10: #{decoder_layer_forward.8} parent=0 // pred_check
    _
  $region11: #{decoder_layer_forward.8} parent=0 // pred_check_branch
    %13 = sbr.rel (0) target = $region13
  $region12: #{decoder_layer_forward.8} parent=0 // pred_region
    _
  $region13: #{decoder_layer_forward.8} parent=0 // pred_fallthru
    _
  %v14 = vld [vmem:[%s0] sm:$0xff]
  %v15 = vld [vmem:[%s0 + $0x8] sm:$0xff]
  %v16 = vld [vmem:[%s0 + $0x10] sm:$0xff]
  %v17 = vld [vmem:[%s0 + $0x18] sm:$0xff]
  %v18 = vld [vmem:[%s0 + $0x20] sm:$0xff]
  %v19 = vld [vmem:[%s0 + $0x28] sm:$0xff]
  %v20 = vld [vmem:[%s0 + $0x30] sm:$0xff]
  %v21 = vld [vmem:[%s0 + $0x38] sm:$0xff]
  %v22 = vld [vmem:[%s1] sm:$0xff]
  %v23 = vld [vmem:[%s1 + $0x8] sm:$0xff]
  %v24 = vld [vmem:[%s1 + $0x10] sm:$0xff]
  %v25 = vld [vmem:[%s1 + $0x18] sm:$0xff]
  %v26 = vld [vmem:[%s1 + $0x20] sm:$0xff]
  %v27 = vld [vmem:[%s1 + $0x28] sm:$0xff]
  %v28 = vld [vmem:[%s1 + $0x30] sm:$0xff]
  %v29 = vld [vmem:[%s1 + $0x38] sm:$0xff]
  %v30 = vld [vmem:[%s1 + $0x40] sm:$0xff]
  %v31 = vld [vmem:[%s1 + $0x48] sm:$0xff]
  %v32 = vld [vmem:[%s1 + $0x50] sm:$0xff]
  %v33 = vld [vmem:[%s1 + $0x58] sm:$0xff]
  %v34 = vld [vmem:[%s1 + $0x60] sm:$0xff]
  %v35 = vld [vmem:[%s1 + $0x68] sm:$0xff]
  %v36 = vld [vmem:[%s1 + $0x70] sm:$0xff]
  %v37 = vld [vmem:[%s1 + $0x78] sm:$0xff]
  %v38 = vld [vmem:[%s1 + $0x80] sm:$0xff]
  %v39 = vld [vmem:[%s1 + $0x88] sm:$0xff]
  %v40 = vld [vmem:[%s1 + $0x90] sm:$0xff]
  %v41 = vld [vmem:[%s1 + $0x98] sm:$0xff]
  %v42 = vld [vmem:[%s1 + $0xa0] sm:$0xff]
  %v43 = vld [vmem:[%s1 + $0xa8] sm:$0xff]
  %v44 = vld [vmem:[%s1 + $0xb0] sm:$0xff]
  %v45 = vld [vmem:[%s1 + $0xb8] sm:$0xff]
  %v46 = vld [vmem:[%s1 + $0xc0] sm:$0xff]
  %v47 = vld [vmem:[%s1 + $0xc8] sm:$0xff]
  %v48 = vld [vmem:[%s1 + $0xd0] sm:$0xff]
  %v49 = vld [vmem:[%s1 + $0xd8] sm:$0xff]
  %v50 = vld [vmem:[%s1 + $0xe0] sm:$0xff]
  %v51 = vld [vmem:[%s1 + $0xe8] sm:$0xff]
  %v52 = vld [vmem:[%s1 + $0xf0] sm:$0xff]
  %v53 = vld [vmem:[%s1 + $0xf8] sm:$0xff]
  %v54 = vld [vmem:[%s1 + $0x100] sm:$0xff]
  %v55 = vld [vmem:[%s1 + $0x108] sm:$0xff]
  %v56 = vld [vmem:[%s1 + $0x110] sm:$0xff]
  %v57 = vld [vmem:[%s1 + $0x118] sm:$0xff]
  %v58 = vld [vmem:[%s1 + $0x120] sm:$0xff]
  %v59 = vld [vmem:[%s1 + $0x128] sm:$0xff]
  %v60 = vld [vmem:[%s1 + $0x130] sm:$0xff]
  %v61 = vld [vmem:[%s1 + $0x138] sm:$0xff]
  %v62 = vld [vmem:[%s1 + $0x140] sm:$0xff]
  %v63 = vld [vmem:[%s1 + $0x148] sm:$0xff]
  %v64 = vld [vmem:[%s1 + $0x150] sm:$0xff]
  %v65 = vld [vmem:[%s1 + $0x158] sm:$0xff]
  %v66 = vld [vmem:[%s1 + $0x160] sm:$0xff]
  %v67 = vld [vmem:[%s1 + $0x168] sm:$0xff]
  %v68 = vld [vmem:[%s1 + $0x170] sm:$0xff]
  %v69 = vld [vmem:[%s1 + $0x178] sm:$0xff]
  %v70 = vld [vmem:[%s1 + $0x180] sm:$0xff]
  %v71 = vld [vmem:[%s1 + $0x188] sm:$0xff]
  %v72 = vld [vmem:[%s1 + $0x190] sm:$0xff]
  %v73 = vld [vmem:[%s1 + $0x198] sm:$0xff]
  %v74 = vld [vmem:[%s1 + $0x1a0] sm:$0xff]
  %v75 = vld [vmem:[%s1 + $0x1a8] sm:$0xff]
  %v76 = vld [vmem:[%s1 + $0x1b0] sm:$0xff]
  %v77 = vld [vmem:[%s1 + $0x1b8] sm:$0xff]
  %v78 = vld [vmem:[%s1 + $0x1c0] sm:$0xff]
  %v79 = vld [vmem:[%s1 + $0x1c8] sm:$0xff]
  %v80 = vld [vmem:[%s1 + $0x1d0] sm:$0xff]
  %v81 = vld [vmem:[%s1 + $0x1d8] sm:$0xff]
  %v82 = vld [vmem:[%s1 + $0x1e0] sm:$0xff]
  %v83 = vld [vmem:[%s1 + $0x1e8] sm:$0xff]
  %v84 = vld [vmem:[%s1 + $0x1f0] sm:$0xff]
  %v85 = vld [vmem:[%s1 + $0x1f8] sm:$0xff]
  %v86 = vld [vmem:[%s1 + $0x200] sm:$0xff]
  %v87 = vld [vmem:[%s1 + $0x208] sm:$0xff]
  %v88 = vld [vmem:[%s1 + $0x210] sm:$0xff]
  %v89 = vld [vmem:[%s1 + $0x218] sm:$0xff]
  %v90 = vld [vmem:[%s1 + $0x220] sm:$0xff]
  %v91 = vld [vmem:[%s1 + $0x228] sm:$0xff]
  %v92 = vld [vmem:[%s1 + $0x230] sm:$0xff]
  %v93 = vld [vmem:[%s1 + $0x238] sm:$0xff]
  %v94 = vld [vmem:[%s1 + $0x240] sm:$0xff]
  %v95 = vld [vmem:[%s1 + $0x248] sm:$0xff]
  %v96 = vld [vmem:[%s1 + $0x250] sm:$0xff]
  %v97 = vld [vmem:[%s1 + $0x258] sm:$0xff]
  %v98 = vld [vmem:[%s1 + $0x260] sm:$0xff]
  %v99 = vld [vmem:[%s1 + $0x268] sm:$0xff]
  %v100 = vld [vmem:[%s1 + $0x270] sm:$0xff]
  %v101 = vld [vmem:[%s1 + $0x278] sm:$0xff]
  %v102 = vld [vmem:[%s1 + $0x280] sm:$0xff]
  %v103 = vld [vmem:[%s1 + $0x288] sm:$0xff]
  %v104 = vld [vmem:[%s1 + $0x290] sm:$0xff]
  %v105 = vld [vmem:[%s1 + $0x298] sm:$0xff]
  %v106 = vld [vmem:[%s1 + $0x2a0] sm:$0xff]
  %v107 = vld [vmem:[%s1 + $0x2a8] sm:$0xff]
  %v108 = vld [vmem:[%s1 + $0x2b0] sm:$0xff]
  %v109 = vld [vmem:[%s1 + $0x2b8] sm:$0xff]
  %v110 = vld [vmem:[%s1 + $0x2c0] sm:$0xff]
  %v111 = vld [vmem:[%s1 + $0x2c8] sm:$0xff]
  %v112 = vld [vmem:[%s1 + $0x2d0] sm:$0xff]
  %v113 = vld [vmem:[%s1 + $0x2d8] sm:$0xff]
  %v114 = vld [vmem:[%s1 + $0x2e0] sm:$0xff]
  %v115 = vld [vmem:[%s1 + $0x2e8] sm:$0xff]
  %v116 = vld [vmem:[%s1 + $0x2f0] sm:$0xff]
  %v117 = vld [vmem:[%s1 + $0x2f8] sm:$0xff]
  %v118 = vld [vmem:[%s1 + $0x300] sm:$0xff]
  %v119 = vld [vmem:[%s1 + $0x308] sm:$0xff]
  %v120 = vld [vmem:[%s1 + $0x310] sm:$0xff]
  %v121 = vld [vmem:[%s1 + $0x318] sm:$0xff]
  %v122 = vld [vmem:[%s1 + $0x320] sm:$0xff]
  %v123 = vld [vmem:[%s1 + $0x328] sm:$0xff]
  %v124 = vld [vmem:[%s1 + $0x330] sm:$0xff]
  %v125 = vld [vmem:[%s1 + $0x338] sm:$0xff]
  %v126 = vld [vmem:[%s1 + $0x340] sm:$0xff]
  %v127 = vld [vmem:[%s1 + $0x348] sm:$0xff]
  %v128 = vld [vmem:[%s1 + $0x350] sm:$0xff]
  %v129 = vld [vmem:[%s1 + $0x358] sm:$0xff]
  %v130 = vld [vmem:[%s1 + $0x360] sm:$0xff]
  %v131 = vld [vmem:[%s1 + $0x368] sm:$0xff]
  %v132 = vld [vmem:[%s1 + $0x370] sm:$0xff]
  %v133 = vld [vmem:[%s1 + $0x378] sm:$0xff]
  %v134 = vld [vmem:[%s1 + $0x380] sm:$0xff]
  %v135 = vld [vmem:[%s1 + $0x388] sm:$0xff]
  %v136 = vld [vmem:[%s1 + $0x390] sm:$0xff]
  %v137 = vld [vmem:[%s1 + $0x398] sm:$0xff]
  %v138 = vld [vmem:[%s1 + $0x3a0] sm:$0xff]
  %v139 = vld [vmem:[%s1 + $0x3a8] sm:$0xff]
  %v140 = vld [vmem:[%s1 + $0x3b0] sm:$0xff]
  %v141 = vld [vmem:[%s1 + $0x3b8] sm:$0xff]
  %v142 = vld [vmem:[%s1 + $0x3c0] sm:$0xff]
  %v143 = vld [vmem:[%s1 + $0x3c8] sm:$0xff]
  %v144 = vld [vmem:[%s1 + $0x3d0] sm:$0xff]
  %v145 = vld [vmem:[%s1 + $0x3d8] sm:$0xff]
  %v146 = vld [vmem:[%s1 + $0x3e0] sm:$0xff]
  %v147 = vld [vmem:[%s1 + $0x3e8] sm:$0xff]
  %v148 = vld [vmem:[%s1 + $0x3f0] sm:$0xff]
  %v149 = vld [vmem:[%s1 + $0x3f8] sm:$0xff]
  %v150 = vld [vmem:[%s1 + $0x400] sm:$0xff]
  %v151 = vld [vmem:[%s1 + $0x408] sm:$0xff]
  %v152 = vld [vmem:[%s1 + $0x410] sm:$0xff]
  %v153 = vld [vmem:[%s1 + $0x418] sm:$0xff]
  %v154 = vld [vmem:[%s1 + $0x420] sm:$0xff]
  %v155 = vld [vmem:[%s1 + $0x428] sm:$0xff]
  %v156 = vld [vmem:[%s1 + $0x430] sm:$0xff]
  %v157 = vld [vmem:[%s1 + $0x438] sm:$0xff]
  %v158 = vld [vmem:[%s1 + $0x440] sm:$0xff]
  %v159 = vld [vmem:[%s1 + $0x448] sm:$0xff]
  %v160 = vld [vmem:[%s1 + $0x450] sm:$0xff]
  %v161 = vld [vmem:[%s1 + $0x458] sm:$0xff]
  %v162 = vld [vmem:[%s1 + $0x460] sm:$0xff]
  %v163 = vld [vmem:[%s1 + $0x468] sm:$0xff]
  %v164 = vld [vmem:[%s1 + $0x470] sm:$0xff]
  %v165 = vld [vmem:[%s1 + $0x478] sm:$0xff]
  %v166 = vld [vmem:[%s1 + $0x480] sm:$0xff]
  %v167 = vld [vmem:[%s1 + $0x488] sm:$0xff]
  %v168 = vld [vmem:[%s1 + $0x490] sm:$0xff]
  %v169 = vld [vmem:[%s1 + $0x498] sm:$0xff]
  %v170 = vld [vmem:[%s1 + $0x4a0] sm:$0xff]
  %v171 = vld [vmem:[%s1 + $0x4a8] sm:$0xff]
  %v172 = vld [vmem:[%s1 + $0x4b0] sm:$0xff]
  %v173 = vld [vmem:[%s1 + $0x4b8] sm:$0xff]
  %v174 = vld [vmem:[%s1 + $0x4c0] sm:$0xff]
  %v175 = vld [vmem:[%s1 + $0x4c8] sm:$0xff]
  %v176 = vld [vmem:[%s1 + $0x4d0] sm:$0xff]
  %v177 = vld [vmem:[%s1 + $0x4d8] sm:$0xff]
  %v178 = vld [vmem:[%s1 + $0x4e0] sm:$0xff]
  %v179 = vld [vmem:[%s1 + $0x4e8] sm:$0xff]
  %v180 = vld [vmem:[%s1 + $0x4f0] sm:$0xff]
  %v181 = vld [vmem:[%s1 + $0x4f8] sm:$0xff]
  %v182 = vld [vmem:[%s1 + $0x500] sm:$0xff]
  %v183 = vld [vmem:[%s1 + $0x508] sm:$0xff]
  %v184 = vld [vmem:[%s1 + $0x510] sm:$0xff]
  %v185 = vld [vmem:[%s1 + $0x518] sm:$0xff]
  %v186 = vld [vmem:[%s1 + $0x520] sm:$0xff]
  %v187 = vld [vmem:[%s1 + $0x528] sm:$0xff]
  %v188 = vld [vmem:[%s1 + $0x530] sm:$0xff]
  %v189 = vld [vmem:[%s1 + $0x538] sm:$0xff]
  %v190 = vld [vmem:[%s1 + $0x540] sm:$0xff]
  %v191 = vld [vmem:[%s1 + $0x548] sm:$0xff]
  %v192 = vld [vmem:[%s1 + $0x550] sm:$0xff]
  %v193 = vld [vmem:[%s1 + $0x558] sm:$0xff]
  %v194 = vld [vmem:[%s1 + $0x560] sm:$0xff]
  %v195 = vld [vmem:[%s1 + $0x568] sm:$0xff]
  %v196 = vld [vmem:[%s1 + $0x570] sm:$0xff]
  %v197 = vld [vmem:[%s1 + $0x578] sm:$0xff]
  %v198 = vld [vmem:[%s1 + $0x580] sm:$0xff]
  %v199 = vld [vmem:[%s1 + $0x588] sm:$0xff]
  %v200 = vld [vmem:[%s1 + $0x590] sm:$0xff]
  %v201 = vld [vmem:[%s1 + $0x598] sm:$0xff]
  %v202 = vld [vmem:[%s1 + $0x5a0] sm:$0xff]
  %v203 = vld [vmem:[%s1 + $0x5a8] sm:$0xff]
  %v204 = vld [vmem:[%s1 + $0x5b0] sm:$0xff]
  %v205 = vld [vmem:[%s1 + $0x5b8] sm:$0xff]
  %v206 = vld [vmem:[%s1 + $0x5c0] sm:$0xff]
  %v207 = vld [vmem:[%s1 + $0x5c8] sm:$0xff]
  %v208 = vld [vmem:[%s1 + $0x5d0] sm:$0xff]
  %v209 = vld [vmem:[%s1 + $0x5d8] sm:$0xff]
  %v210 = vld [vmem:[%s1 + $0x5e0] sm:$0xff]
  %v211 = vld [vmem:[%s1 + $0x5e8] sm:$0xff]
  %v212 = vld [vmem:[%s1 + $0x5f0] sm:$0xff]
  %v213 = vld [vmem:[%s1 + $0x5f8] sm:$0xff]
  %v214 = vld [vmem:[%s1 + $0x600] sm:$0xff]
  %v215 = vld [vmem:[%s1 + $0x608] sm:$0xff]
  %v216 = vld [vmem:[%s1 + $0x610] sm:$0xff]
  %v217 = vld [vmem:[%s1 + $0x618] sm:$0xff]
  %v218 = vld [vmem:[%s1 + $0x620] sm:$0xff]
  %v219 = vld [vmem:[%s1 + $0x628] sm:$0xff]
  %v220 = vld [vmem:[%s1 + $0x630] sm:$0xff]
  %v221 = vld [vmem:[%s1 + $0x638] sm:$0xff]
  %v222 = vld [vmem:[%s1 + $0x640] sm:$0xff]
  %v223 = vld [vmem:[%s1 + $0x648] sm:$0xff]
  %v224 = vld [vmem:[%s1 + $0x650] sm:$0xff]
  %v225 = vld [vmem:[%s1 + $0x658] sm:$0xff]
  %v226 = vld [vmem:[%s1 + $0x660] sm:$0xff]
  %v227 = vld [vmem:[%s1 + $0x668] sm:$0xff]
  %v228 = vld [vmem:[%s1 + $0x670] sm:$0xff]
  %v229 = vld [vmem:[%s1 + $0x678] sm:$0xff]
  %v230 = vld [vmem:[%s1 + $0x680] sm:$0xff]
  %v231 = vld [vmem:[%s1 + $0x688] sm:$0xff]
  %v232 = vld [vmem:[%s1 + $0x690] sm:$0xff]
  %v233 = vld [vmem:[%s1 + $0x698] sm:$0xff]
  %v234 = vld [vmem:[%s1 + $0x6a0] sm:$0xff]
  %v235 = vld [vmem:[%s1 + $0x6a8] sm:$0xff]
  %v236 = vld [vmem:[%s1 + $0x6b0] sm:$0xff]
  %v237 = vld [vmem:[%s1 + $0x6b8] sm:$0xff]
  %v238 = vld [vmem:[%s1 + $0x6c0] sm:$0xff]
  %v239 = vld [vmem:[%s1 + $0x6c8] sm:$0xff]
  %v240 = vld [vmem:[%s1 + $0x6d0] sm:$0xff]
  %v241 = vld [vmem:[%s1 + $0x6d8] sm:$0xff]
  %v242 = vld [vmem:[%s1 + $0x6e0] sm:$0xff]
  %v243 = vld [vmem:[%s1 + $0x6e8] sm:$0xff]
  %v244 = vld [vmem:[%s1 + $0x6f0] sm:$0xff]
  %v245 = vld [vmem:[%s1 + $0x6f8] sm:$0xff]
  %v246 = vld [vmem:[%s1 + $0x700] sm:$0xff]
  %v247 = vld [vmem:[%s1 + $0x708] sm:$0xff]
  %v248 = vld [vmem:[%s1 + $0x710] sm:$0xff]
  %v249 = vld [vmem:[%s1 + $0x718] sm:$0xff]
  %v250 = vld [vmem:[%s1 + $0x720] sm:$0xff]
  %v251 = vld [vmem:[%s1 + $0x728] sm:$0xff]
  %v252 = vld [vmem:[%s1 + $0x730] sm:$0xff]
  %v253 = vld [vmem:[%s1 + $0x738] sm:$0xff]
  %v254 = vld [vmem:[%s1 + $0x740] sm:$0xff]
  %v255 = vld [vmem:[%s1 + $0x748] sm:$0xff]
  %v256 = vld [vmem:[%s1 + $0x750] sm:$0xff]
  %v257 = vld [vmem:[%s1 + $0x758] sm:$0xff]
  %v258 = vld [vmem:[%s1 + $0x760] sm:$0xff]
  %v259 = vld [vmem:[%s1 + $0x768] sm:$0xff]
  %v260 = vld [vmem:[%s1 + $0x770] sm:$0xff]
  %v261 = vld [vmem:[%s1 + $0x778] sm:$0xff]
  %v262 = vld [vmem:[%s1 + $0x780] sm:$0xff]
  %v263 = vld [vmem:[%s1 + $0x788] sm:$0xff]
  %v264 = vld [vmem:[%s1 + $0x790] sm:$0xff]
  %v265 = vld [vmem:[%s1 + $0x798] sm:$0xff]
  %v266 = vld [vmem:[%s1 + $0x7a0] sm:$0xff]
  %v267 = vld [vmem:[%s1 + $0x7a8] sm:$0xff]
  %v268 = vld [vmem:[%s1 + $0x7b0] sm:$0xff]
  %v269 = vld [vmem:[%s1 + $0x7b8] sm:$0xff]
  %v270 = vld [vmem:[%s1 + $0x7c0] sm:$0xff]
  %v271 = vld [vmem:[%s1 + $0x7c8] sm:$0xff]
  %v272 = vld [vmem:[%s1 + $0x7d0] sm:$0xff]
  %v273 = vld [vmem:[%s1 + $0x7d8] sm:$0xff]
  %v274 = vld [vmem:[%s1 + $0x7e0] sm:$0xff]
  %v275 = vld [vmem:[%s1 + $0x7e8] sm:$0xff]
  %v276 = vld [vmem:[%s1 + $0x7f0] sm:$0xff]
  %v277 = vld [vmem:[%s1 + $0x7f8] sm:$0xff]
  %v278 = vld [vmem:[%s1 + $0x800] sm:$0xff]
  %v279 = vld [vmem:[%s1 + $0x808] sm:$0xff]
  %v280 = vld [vmem:[%s1 + $0x810] sm:$0xff]
  %v281 = vld [vmem:[%s1 + $0x818] sm:$0xff]
  %v282 = vld [vmem:[%s1 + $0x820] sm:$0xff]
  %v283 = vld [vmem:[%s1 + $0x828] sm:$0xff]
  %v284 = vld [vmem:[%s1 + $0x830] sm:$0xff]
  %v285 = vld [vmem:[%s1 + $0x838] sm:$0xff]
  %v286 = vld [vmem:[%s1 + $0x840] sm:$0xff]
  %v287 = vld [vmem:[%s1 + $0x848] sm:$0xff]
  %v288 = vld [vmem:[%s1 + $0x850] sm:$0xff]
  %v289 = vld [vmem:[%s1 + $0x858] sm:$0xff]
  %v290 = vld [vmem:[%s1 + $0x860] sm:$0xff]
  %v291 = vld [vmem:[%s1 + $0x868] sm:$0xff]
  %v292 = vld [vmem:[%s1 + $0x870] sm:$0xff]
  %v293 = vld [vmem:[%s1 + $0x878] sm:$0xff]
  %v294 = vld [vmem:[%s1 + $0x880] sm:$0xff]
  %v295 = vld [vmem:[%s1 + $0x888] sm:$0xff]
  %v296 = vld [vmem:[%s1 + $0x890] sm:$0xff]
  %v297 = vld [vmem:[%s1 + $0x898] sm:$0xff]
  %v298 = vld [vmem:[%s1 + $0x8a0] sm:$0xff]
  %v299 = vld [vmem:[%s1 + $0x8a8] sm:$0xff]
  %v300 = vld [vmem:[%s1 + $0x8b0] sm:$0xff]
  %v301 = vld [vmem:[%s1 + $0x8b8] sm:$0xff]
  %v302 = vld [vmem:[%s1 + $0x8c0] sm:$0xff]
  %v303 = vld [vmem:[%s1 + $0x8c8] sm:$0xff]
  %v304 = vld [vmem:[%s1 + $0x8d0] sm:$0xff]
  %v305 = vld [vmem:[%s1 + $0x8d8] sm:$0xff]
  %v306 = vld [vmem:[%s1 + $0x8e0] sm:$0xff]
  %v307 = vld [vmem:[%s1 + $0x8e8] sm:$0xff]
  %v308 = vld [vmem:[%s1 + $0x8f0] sm:$0xff]
  %v309 = vld [vmem:[%s1 + $0x8f8] sm:$0xff]
  %v310 = vld [vmem:[%s1 + $0x900] sm:$0xff]
  %v311 = vld [vmem:[%s1 + $0x908] sm:$0xff]
  %v312 = vld [vmem:[%s1 + $0x910] sm:$0xff]
  %v313 = vld [vmem:[%s1 + $0x918] sm:$0xff]
  %v314 = vld [vmem:[%s1 + $0x920] sm:$0xff]
  %v315 = vld [vmem:[%s1 + $0x928] sm:$0xff]
  %v316 = vld [vmem:[%s1 + $0x930] sm:$0xff]
  %v317 = vld [vmem:[%s1 + $0x938] sm:$0xff]
  %v318 = vld [vmem:[%s1 + $0x940] sm:$0xff]
  %v319 = vld [vmem:[%s1 + $0x948] sm:$0xff]
  %v320 = vld [vmem:[%s1 + $0x950] sm:$0xff]
  %v321 = vld [vmem:[%s1 + $0x958] sm:$0xff]
  %v322 = vld [vmem:[%s1 + $0x960] sm:$0xff]
  %v323 = vld [vmem:[%s1 + $0x968] sm:$0xff]
  %v324 = vld [vmem:[%s1 + $0x970] sm:$0xff]
  %v325 = vld [vmem:[%s1 + $0x978] sm:$0xff]
  %v326 = vld [vmem:[%s1 + $0x980] sm:$0xff]
  %v327 = vld [vmem:[%s1 + $0x988] sm:$0xff]
  %v328 = vld [vmem:[%s1 + $0x990] sm:$0xff]
  %v329 = vld [vmem:[%s1 + $0x998] sm:$0xff]
  %v330 = vld [vmem:[%s1 + $0x9a0] sm:$0xff]
  %v331 = vld [vmem:[%s1 + $0x9a8] sm:$0xff]
  %v332 = vld [vmem:[%s1 + $0x9b0] sm:$0xff]
  %v333 = vld [vmem:[%s1 + $0x9b8] sm:$0xff]
  %v334 = vld [vmem:[%s1 + $0x9c0] sm:$0xff]
  %v335 = vld [vmem:[%s1 + $0x9c8] sm:$0xff]
  %v336 = vld [vmem:[%s1 + $0x9d0] sm:$0xff]
  %v337 = vld [vmem:[%s1 + $0x9d8] sm:$0xff]
  %v338 = vld [vmem:[%s1 + $0x9e0] sm:$0xff]
  %v339 = vld [vmem:[%s1 + $0x9e8] sm:$0xff]
  %v340 = vld [vmem:[%s1 + $0x9f0] sm:$0xff]
  %v341 = vld [vmem:[%s1 + $0x9f8] sm:$0xff]
  %v342 = vld [vmem:[%s1 + $0xa00] sm:$0xff]
  %v343 = vld [vmem:[%s1 + $0xa08] sm:$0xff]
  %v344 = vld [vmem:[%s1 + $0xa10] sm:$0xff]
  %v345 = vld [vmem:[%s1 + $0xa18] sm:$0xff]
  %v346 = vld [vmem:[%s1 + $0xa20] sm:$0xff]
  %v347 = vld [vmem:[%s1 + $0xa28] sm:$0xff]
  %v348 = vld [vmem:[%s1 + $0xa30] sm:$0xff]
  %v349 = vld [vmem:[%s1 + $0xa38] sm:$0xff]
  %v350 = vld [vmem:[%s1 + $0xa40] sm:$0xff]
  %v351 = vld [vmem:[%s1 + $0xa48] sm:$0xff]
  %v352 = vld [vmem:[%s1 + $0xa50] sm:$0xff]
  %v353 = vld [vmem:[%s1 + $0xa58] sm:$0xff]
  %v354 = vld [vmem:[%s1 + $0xa60] sm:$0xff]
  %v355 = vld [vmem:[%s1 + $0xa68] sm:$0xff]
  %v356 = vld [vmem:[%s1 + $0xa70] sm:$0xff]
  %v357 = vld [vmem:[%s1 + $0xa78] sm:$0xff]
  %v358 = vld [vmem:[%s1 + $0xa80] sm:$0xff]
  %v359 = vld [vmem:[%s1 + $0xa88] sm:$0xff]
  %v360 = vld [vmem:[%s1 + $0xa90] sm:$0xff]
  %v361 = vld [vmem:[%s1 + $0xa98] sm:$0xff]
  %v362 = vld [vmem:[%s1 + $0xaa0] sm:$0xff]
  %v363 = vld [vmem:[%s1 + $0xaa8] sm:$0xff]
  %v364 = vld [vmem:[%s1 + $0xab0] sm:$0xff]
  %v365 = vld [vmem:[%s1 + $0xab8] sm:$0xff]
  %v366 = vld [vmem:[%s1 + $0xac0] sm:$0xff]
  %v367 = vld [vmem:[%s1 + $0xac8] sm:$0xff]
  %v368 = vld [vmem:[%s1 + $0xad0] sm:$0xff]
  %v369 = vld [vmem:[%s1 + $0xad8] sm:$0xff]
  %v370 = vld [vmem:[%s1 + $0xae0] sm:$0xff]
  %v371 = vld [vmem:[%s1 + $0xae8] sm:$0xff]
  %v372 = vld [vmem:[%s1 + $0xaf0] sm:$0xff]
  %v373 = vld [vmem:[%s1 + $0xaf8] sm:$0xff]
  %v374 = vld [vmem:[%s1 + $0xb00] sm:$0xff]
  %v375 = vld [vmem:[%s1 + $0xb08] sm:$0xff]
  %v376 = vld [vmem:[%s1 + $0xb10] sm:$0xff]
  %v377 = vld [vmem:[%s1 + $0xb18] sm:$0xff]
  %v378 = vld [vmem:[%s1 + $0xb20] sm:$0xff]
  %v379 = vld [vmem:[%s1 + $0xb28] sm:$0xff]
  %v380 = vld [vmem:[%s1 + $0xb30] sm:$0xff]
  %v381 = vld [vmem:[%s1 + $0xb38] sm:$0xff]
  %v382 = vld [vmem:[%s1 + $0xb40] sm:$0xff]
  %v383 = vld [vmem:[%s1 + $0xb48] sm:$0xff]
  %v384 = vld [vmem:[%s1 + $0xb50] sm:$0xff]
  %v385 = vld [vmem:[%s1 + $0xb58] sm:$0xff]
  %v386 = vld [vmem:[%s1 + $0xb60] sm:$0xff]
  %v387 = vld [vmem:[%s1 + $0xb68] sm:$0xff]
  %v388 = vld [vmem:[%s1 + $0xb70] sm:$0xff]
  %v389 = vld [vmem:[%s1 + $0xb78] sm:$0xff]
  %v390 = vld [vmem:[%s1 + $0xb80] sm:$0xff]
  %v391 = vld [vmem:[%s1 + $0xb88] sm:$0xff]
  %v392 = vld [vmem:[%s1 + $0xb90] sm:$0xff]
  %v393 = vld [vmem:[%s1 + $0xb98] sm:$0xff]
  %v394 = vld [vmem:[%s1 + $0xba0] sm:$0xff]
  %v395 = vld [vmem:[%s1 + $0xba8] sm:$0xff]
  %v396 = vld [vmem:[%s1 + $0xbb0] sm:$0xff]
  %v397 = vld [vmem:[%s1 + $0xbb8] sm:$0xff]
  %v398 = vld [vmem:[%s1 + $0xbc0] sm:$0xff]
  %v399 = vld [vmem:[%s1 + $0xbc8] sm:$0xff]
  %v400 = vld [vmem:[%s1 + $0xbd0] sm:$0xff]
  %v401 = vld [vmem:[%s1 + $0xbd8] sm:$0xff]
  %v402 = vld [vmem:[%s1 + $0xbe0] sm:$0xff]
  %v403 = vld [vmem:[%s1 + $0xbe8] sm:$0xff]
  %v404 = vld [vmem:[%s1 + $0xbf0] sm:$0xff]
  %v405 = vld [vmem:[%s1 + $0xbf8] sm:$0xff]
  %v406 = vld [vmem:[%s1 + $0xc00] sm:$0xff]
  %v407 = vld [vmem:[%s1 + $0xc08] sm:$0xff]
  %v408 = vld [vmem:[%s1 + $0xc10] sm:$0xff]
  %v409 = vld [vmem:[%s1 + $0xc18] sm:$0xff]
  %v410 = vld [vmem:[%s1 + $0xc20] sm:$0xff]
  %v411 = vld [vmem:[%s1 + $0xc28] sm:$0xff]
  %v412 = vld [vmem:[%s1 + $0xc30] sm:$0xff]
  %v413 = vld [vmem:[%s1 + $0xc38] sm:$0xff]
  %v414 = vld [vmem:[%s1 + $0xc40] sm:$0xff]
  %v415 = vld [vmem:[%s1 + $0xc48] sm:$0xff]
  %v416 = vld [vmem:[%s1 + $0xc50] sm:$0xff]
  %v417 = vld [vmem:[%s1 + $0xc58] sm:$0xff]
  %v418 = vld [vmem:[%s1 + $0xc60] sm:$0xff]
  %v419 = vld [vmem:[%s1 + $0xc68] sm:$0xff]
  %v420 = vld [vmem:[%s1 + $0xc70] sm:$0xff]
  %v421 = vld [vmem:[%s1 + $0xc78] sm:$0xff]
  %v422 = vld [vmem:[%s1 + $0xc80] sm:$0xff]
  %v423 = vld [vmem:[%s1 + $0xc88] sm:$0xff]
  %v424 = vld [vmem:[%s1 + $0xc90] sm:$0xff]
  %v425 = vld [vmem:[%s1 + $0xc98] sm:$0xff]
  %v426 = vld [vmem:[%s1 + $0xca0] sm:$0xff]
  %v427 = vld [vmem:[%s1 + $0xca8] sm:$0xff]
  %v428 = vld [vmem:[%s1 + $0xcb0] sm:$0xff]
  %v429 = vld [vmem:[%s1 + $0xcb8] sm:$0xff]
  %v430 = vld [vmem:[%s1 + $0xcc0] sm:$0xff]
  %v431 = vld [vmem:[%s1 + $0xcc8] sm:$0xff]
  %v432 = vld [vmem:[%s1 + $0xcd0] sm:$0xff]
  %v433 = vld [vmem:[%s1 + $0xcd8] sm:$0xff]
  %v434 = vld [vmem:[%s1 + $0xce0] sm:$0xff]
  %v435 = vld [vmem:[%s1 + $0xce8] sm:$0xff]
  %v436 = vld [vmem:[%s1 + $0xcf0] sm:$0xff]
  %v437 = vld [vmem:[%s1 + $0xcf8] sm:$0xff]
  %v438 = vld [vmem:[%s1 + $0xd00] sm:$0xff]
  %v439 = vld [vmem:[%s1 + $0xd08] sm:$0xff]
  %v440 = vld [vmem:[%s1 + $0xd10] sm:$0xff]
  %v441 = vld [vmem:[%s1 + $0xd18] sm:$0xff]
  %v442 = vld [vmem:[%s1 + $0xd20] sm:$0xff]
  %v443 = vld [vmem:[%s1 + $0xd28] sm:$0xff]
  %v444 = vld [vmem:[%s1 + $0xd30] sm:$0xff]
  %v445 = vld [vmem:[%s1 + $0xd38] sm:$0xff]
  %v446 = vld [vmem:[%s1 + $0xd40] sm:$0xff]
  %v447 = vld [vmem:[%s1 + $0xd48] sm:$0xff]
  %v448 = vld [vmem:[%s1 + $0xd50] sm:$0xff]
  %v449 = vld [vmem:[%s1 + $0xd58] sm:$0xff]
  %v450 = vld [vmem:[%s1 + $0xd60] sm:$0xff]
  %v451 = vld [vmem:[%s1 + $0xd68] sm:$0xff]
  %v452 = vld [vmem:[%s1 + $0xd70] sm:$0xff]
  %v453 = vld [vmem:[%s1 + $0xd78] sm:$0xff]
  %v454 = vld [vmem:[%s1 + $0xd80] sm:$0xff]
  %v455 = vld [vmem:[%s1 + $0xd88] sm:$0xff]
  %v456 = vld [vmem:[%s1 + $0xd90] sm:$0xff]
  %v457 = vld [vmem:[%s1 + $0xd98] sm:$0xff]
  %v458 = vld [vmem:[%s1 + $0xda0] sm:$0xff]
  %v459 = vld [vmem:[%s1 + $0xda8] sm:$0xff]
  %v460 = vld [vmem:[%s1 + $0xdb0] sm:$0xff]
  %v461 = vld [vmem:[%s1 + $0xdb8] sm:$0xff]
  %v462 = vld [vmem:[%s1 + $0xdc0] sm:$0xff]
  %v463 = vld [vmem:[%s1 + $0xdc8] sm:$0xff]
  %v464 = vld [vmem:[%s1 + $0xdd0] sm:$0xff]
  %v465 = vld [vmem:[%s1 + $0xdd8] sm:$0xff]
  %v466 = vld [vmem:[%s1 + $0xde0] sm:$0xff]
  %v467 = vld [vmem:[%s1 + $0xde8] sm:$0xff]
  %v468 = vld [vmem:[%s1 + $0xdf0] sm:$0xff]
  %v469 = vld [vmem:[%s1 + $0xdf8] sm:$0xff]
  %v470 = vld [vmem:[%s1 + $0xe00] sm:$0xff]
  %v471 = vld [vmem:[%s1 + $0xe08] sm:$0xff]
  %v472 = vld [vmem:[%s1 + $0xe10] sm:$0xff]
  %v473 = vld [vmem:[%s1 + $0xe18] sm:$0xff]
  %v474 = vld [vmem:[%s1 + $0xe20] sm:$0xff]
  %v475 = vld [vmem:[%s1 + $0xe28] sm:$0xff]
  %v476 = vld [vmem:[%s1 + $0xe30] sm:$0xff]
  %v477 = vld [vmem:[%s1 + $0xe38] sm:$0xff]
  %v478 = vld [vmem:[%s1 + $0xe40] sm:$0xff]
  %v479 = vld [vmem:[%s1 + $0xe48] sm:$0xff]
  %v480 = vld [vmem:[%s1 + $0xe50] sm:$0xff]
  %v481 = vld [vmem:[%s1 + $0xe58] sm:$0xff]
  %v482 = vld [vmem:[%s1 + $0xe60] sm:$0xff]
  %v483 = vld [vmem:[%s1 + $0xe68] sm:$0xff]
  %v484 = vld [vmem:[%s1 + $0xe70] sm:$0xff]
  %v485 = vld [vmem:[%s1 + $0xe78] sm:$0xff]
  %v486 = vld [vmem:[%s1 + $0xe80] sm:$0xff]
  %v487 = vld [vmem:[%s1 + $0xe88] sm:$0xff]
  %v488 = vld [vmem:[%s1 + $0xe90] sm:$0xff]
  %v489 = vld [vmem:[%s1 + $0xe98] sm:$0xff]
  %v490 = vld [vmem:[%s1 + $0xea0] sm:$0xff]
  %v491 = vld [vmem:[%s1 + $0xea8] sm:$0xff]
  %v492 = vld [vmem:[%s1 + $0xeb0] sm:$0xff]
  %v493 = vld [vmem:[%s1 + $0xeb8] sm:$0xff]
  %v494 = vld [vmem:[%s1 + $0xec0] sm:$0xff]
  %v495 = vld [vmem:[%s1 + $0xec8] sm:$0xff]
  %v496 = vld [vmem:[%s1 + $0xed0] sm:$0xff]
  %v497 = vld [vmem:[%s1 + $0xed8] sm:$0xff]
  %v498 = vld [vmem:[%s1 + $0xee0] sm:$0xff]
  %v499 = vld [vmem:[%s1 + $0xee8] sm:$0xff]
  %v500 = vld [vmem:[%s1 + $0xef0] sm:$0xff]
  %v501 = vld [vmem:[%s1 + $0xef8] sm:$0xff]
  %v502 = vld [vmem:[%s1 + $0xf00] sm:$0xff]
  %v503 = vld [vmem:[%s1 + $0xf08] sm:$0xff]
  %v504 = vld [vmem:[%s1 + $0xf10] sm:$0xff]
  %v505 = vld [vmem:[%s1 + $0xf18] sm:$0xff]
  %v506 = vld [vmem:[%s1 + $0xf20] sm:$0xff]
  %v507 = vld [vmem:[%s1 + $0xf28] sm:$0xff]
  %v508 = vld [vmem:[%s1 + $0xf30] sm:$0xff]
  %v509 = vld [vmem:[%s1 + $0xf38] sm:$0xff]
  %v510 = vld [vmem:[%s1 + $0xf40] sm:$0xff]
  %v511 = vld [vmem:[%s1 + $0xf48] sm:$0xff]
  %v512 = vld [vmem:[%s1 + $0xf50] sm:$0xff]
  %v513 = vld [vmem:[%s1 + $0xf58] sm:$0xff]
  %v514 = vld [vmem:[%s1 + $0xf60] sm:$0xff]
  %v515 = vld [vmem:[%s1 + $0xf68] sm:$0xff]
  %v516 = vld [vmem:[%s1 + $0xf70] sm:$0xff]
  %v517 = vld [vmem:[%s1 + $0xf78] sm:$0xff]
  %v518 = vld [vmem:[%s1 + $0xf80] sm:$0xff]
  %v519 = vld [vmem:[%s1 + $0xf88] sm:$0xff]
  %v520 = vld [vmem:[%s1 + $0xf90] sm:$0xff]
  %v521 = vld [vmem:[%s1 + $0xf98] sm:$0xff]
  %v522 = vld [vmem:[%s1 + $0xfa0] sm:$0xff]
  %v523 = vld [vmem:[%s1 + $0xfa8] sm:$0xff]
  %v524 = vld [vmem:[%s1 + $0xfb0] sm:$0xff]
  %v525 = vld [vmem:[%s1 + $0xfb8] sm:$0xff]
  %v526 = vld [vmem:[%s1 + $0xfc0] sm:$0xff]
  %v527 = vld [vmem:[%s1 + $0xfc8] sm:$0xff]
  %v528 = vld [vmem:[%s1 + $0xfd0] sm:$0xff]
  %v529 = vld [vmem:[%s1 + $0xfd8] sm:$0xff]
  %v530 = vld [vmem:[%s1 + $0xfe0] sm:$0xff]
  %v531 = vld [vmem:[%s1 + $0xfe8] sm:$0xff]
  %v532 = vld [vmem:[%s1 + $0xff0] sm:$0xff]
  %v533 = vld [vmem:[%s1 + $0xff8] sm:$0xff]
  %v534 = vld [vmem:[%s1 + $0x1000] sm:$0xff]
  %v535 = vld [vmem:[%s1 + $0x1008] sm:$0xff]
  %v536 = vld [vmem:[%s1 + $0x1010] sm:$0xff]
  %v537 = vld [vmem:[%s1 + $0x1018] sm:$0xff]
  %v538 = vld [vmem:[%s1 + $0x1020] sm:$0xff]
  %v539 = vld [vmem:[%s1 + $0x1028] sm:$0xff]
  %v540 = vld [vmem:[%s1 + $0x1030] sm:$0xff]
  %v541 = vld [vmem:[%s1 + $0x1038] sm:$0xff]
  %v542 = vld [vmem:[%s1 + $0x1040] sm:$0xff]
  %v543 = vld [vmem:[%s1 + $0x1048] sm:$0xff]
  %v544 = vld [vmem:[%s1 + $0x1050] sm:$0xff]
  %v545 = vld [vmem:[%s1 + $0x1058] sm:$0xff]
  %v546 = vld [vmem:[%s1 + $0x1060] sm:$0xff]
  %v547 = vld [vmem:[%s1 + $0x1068] sm:$0xff]
  %v548 = vld [vmem:[%s1 + $0x1070] sm:$0xff]
  %v549 = vld [vmem:[%s1 + $0x1078] sm:$0xff]
  %v550 = vld [vmem:[%s1 + $0x1080] sm:$0xff]
  %v551 = vld [vmem:[%s1 + $0x1088] sm:$0xff]
  %v552 = vld [vmem:[%s1 + $0x1090] sm:$0xff]
  %v553 = vld [vmem:[%s1 + $0x1098] sm:$0xff]
  %v554 = vld [vmem:[%s1 + $0x10a0] sm:$0xff]
  %v555 = vld [vmem:[%s1 + $0x10a8] sm:$0xff]
  %v556 = vld [vmem:[%s1 + $0x10b0] sm:$0xff]
  %v557 = vld [vmem:[%s1 + $0x10b8] sm:$0xff]
  %v558 = vld [vmem:[%s1 + $0x10c0] sm:$0xff]
  %v559 = vld [vmem:[%s1 + $0x10c8] sm:$0xff]
  %v560 = vld [vmem:[%s1 + $0x10d0] sm:$0xff]
  %v561 = vld [vmem:[%s1 + $0x10d8] sm:$0xff]
  %v562 = vld [vmem:[%s1 + $0x10e0] sm:$0xff]
  %v563 = vld [vmem:[%s1 + $0x10e8] sm:$0xff]
  %v564 = vld [vmem:[%s1 + $0x10f0] sm:$0xff]
  %v565 = vld [vmem:[%s1 + $0x10f8] sm:$0xff]
  %v566 = vld [vmem:[%s1 + $0x1100] sm:$0xff]
  %v567 = vld [vmem:[%s1 + $0x1108] sm:$0xff]
  %v568 = vld [vmem:[%s1 + $0x1110] sm:$0xff]
  %v569 = vld [vmem:[%s1 + $0x1118] sm:$0xff]
  %v570 = vld [vmem:[%s1 + $0x1120] sm:$0xff]
  %v571 = vld [vmem:[%s1 + $0x1128] sm:$0xff]
  %v572 = vld [vmem:[%s1 + $0x1130] sm:$0xff]
  %v573 = vld [vmem:[%s1 + $0x1138] sm:$0xff]
  %v574 = vld [vmem:[%s1 + $0x1140] sm:$0xff]
  %v575 = vld [vmem:[%s1 + $0x1148] sm:$0xff]
  %v576 = vld [vmem:[%s1 + $0x1150] sm:$0xff]
  %v577 = vld [vmem:[%s1 + $0x1158] sm:$0xff]
  %v578 = vld [vmem:[%s1 + $0x1160] sm:$0xff]
  %v579 = vld [vmem:[%s1 + $0x1168] sm:$0xff]
  %v580 = vld [vmem:[%s1 + $0x1170] sm:$0xff]
  %v581 = vld [vmem:[%s1 + $0x1178] sm:$0xff]
  %v582 = vld [vmem:[%s1 + $0x1180] sm:$0xff]
  %v583 = vld [vmem:[%s1 + $0x1188] sm:$0xff]
  %v584 = vld [vmem:[%s1 + $0x1190] sm:$0xff]
  %v585 = vld [vmem:[%s1 + $0x1198] sm:$0xff]
  %v586 = vld [vmem:[%s1 + $0x11a0] sm:$0xff]
  %v587 = vld [vmem:[%s1 + $0x11a8] sm:$0xff]
  %v588 = vld [vmem:[%s1 + $0x11b0] sm:$0xff]
  %v589 = vld [vmem:[%s1 + $0x11b8] sm:$0xff]
  %v590 = vld [vmem:[%s1 + $0x11c0] sm:$0xff]
  %v591 = vld [vmem:[%s1 + $0x11c8] sm:$0xff]
  %v592 = vld [vmem:[%s1 + $0x11d0] sm:$0xff]
  %v593 = vld [vmem:[%s1 + $0x11d8] sm:$0xff]
  %v594 = vld [vmem:[%s1 + $0x11e0] sm:$0xff]
  %v595 = vld [vmem:[%s1 + $0x11e8] sm:$0xff]
  %v596 = vld [vmem:[%s1 + $0x11f0] sm:$0xff]
  %v597 = vld [vmem:[%s1 + $0x11f8] sm:$0xff]
  %v598 = vld [vmem:[%s1 + $0x1200] sm:$0xff]
  %v599 = vld [vmem:[%s1 + $0x1208] sm:$0xff]
  %v600 = vld [vmem:[%s1 + $0x1210] sm:$0xff]
  %v601 = vld [vmem:[%s1 + $0x1218] sm:$0xff]
  %v602 = vld [vmem:[%s1 + $0x1220] sm:$0xff]
  %v603 = vld [vmem:[%s1 + $0x1228] sm:$0xff]
  %v604 = vld [vmem:[%s1 + $0x1230] sm:$0xff]
  %v605 = vld [vmem:[%s1 + $0x1238] sm:$0xff]
  %v606 = vld [vmem:[%s1 + $0x1240] sm:$0xff]
  %v607 = vld [vmem:[%s1 + $0x1248] sm:$0xff]
  %v608 = vld [vmem:[%s1 + $0x1250] sm:$0xff]
  %v609 = vld [vmem:[%s1 + $0x1258] sm:$0xff]
  %v610 = vld [vmem:[%s1 + $0x1260] sm:$0xff]
  %v611 = vld [vmem:[%s1 + $0x1268] sm:$0xff]
  %v612 = vld [vmem:[%s1 + $0x1270] sm:$0xff]
  %v613 = vld [vmem:[%s1 + $0x1278] sm:$0xff]
  %v614 = vld [vmem:[%s1 + $0x1280] sm:$0xff]
  %v615 = vld [vmem:[%s1 + $0x1288] sm:$0xff]
  %v616 = vld [vmem:[%s1 + $0x1290] sm:$0xff]
  %v617 = vld [vmem:[%s1 + $0x1298] sm:$0xff]
  %v618 = vld [vmem:[%s1 + $0x12a0] sm:$0xff]
  %v619 = vld [vmem:[%s1 + $0x12a8] sm:$0xff]
  %v620 = vld [vmem:[%s1 + $0x12b0] sm:$0xff]
  %v621 = vld [vmem:[%s1 + $0x12b8] sm:$0xff]
  %v622 = vld [vmem:[%s1 + $0x12c0] sm:$0xff]
  %v623 = vld [vmem:[%s1 + $0x12c8] sm:$0xff]
  %v624 = vld [vmem:[%s1 + $0x12d0] sm:$0xff]
  %v625 = vld [vmem:[%s1 + $0x12d8] sm:$0xff]
  %v626 = vld [vmem:[%s1 + $0x12e0] sm:$0xff]
  %v627 = vld [vmem:[%s1 + $0x12e8] sm:$0xff]
  %v628 = vld [vmem:[%s1 + $0x12f0] sm:$0xff]
  %v629 = vld [vmem:[%s1 + $0x12f8] sm:$0xff]
  %v630 = vld [vmem:[%s1 + $0x1300] sm:$0xff]
  %v631 = vld [vmem:[%s1 + $0x1308] sm:$0xff]
  %v632 = vld [vmem:[%s1 + $0x1310] sm:$0xff]
  %v633 = vld [vmem:[%s1 + $0x1318] sm:$0xff]
  %v634 = vld [vmem:[%s1 + $0x1320] sm:$0xff]
  %v635 = vld [vmem:[%s1 + $0x1328] sm:$0xff]
  %v636 = vld [vmem:[%s1 + $0x1330] sm:$0xff]
  %v637 = vld [vmem:[%s1 + $0x1338] sm:$0xff]
  %v638 = vld [vmem:[%s1 + $0x1340] sm:$0xff]
  %v639 = vld [vmem:[%s1 + $0x1348] sm:$0xff]
  %v640 = vld [vmem:[%s1 + $0x1350] sm:$0xff]
  %v641 = vld [vmem:[%s1 + $0x1358] sm:$0xff]
  %v642 = vld [vmem:[%s1 + $0x1360] sm:$0xff]
  %v643 = vld [vmem:[%s1 + $0x1368] sm:$0xff]
  %v644 = vld [vmem:[%s1 + $0x1370] sm:$0xff]
  %v645 = vld [vmem:[%s1 + $0x1378] sm:$0xff]
  %v646 = vld [vmem:[%s1 + $0x1380] sm:$0xff]
  %v647 = vld [vmem:[%s1 + $0x1388] sm:$0xff]
  %v648 = vld [vmem:[%s1 + $0x1390] sm:$0xff]
  %v649 = vld [vmem:[%s1 + $0x1398] sm:$0xff]
  %v650 = vld [vmem:[%s1 + $0x13a0] sm:$0xff]
  %v651 = vld [vmem:[%s1 + $0x13a8] sm:$0xff]
  %v652 = vld [vmem:[%s1 + $0x13b0] sm:$0xff]
  %v653 = vld [vmem:[%s1 + $0x13b8] sm:$0xff]
  %v654 = vld [vmem:[%s1 + $0x13c0] sm:$0xff]
  %v655 = vld [vmem:[%s1 + $0x13c8] sm:$0xff]
  %v656 = vld [vmem:[%s1 + $0x13d0] sm:$0xff]
  %v657 = vld [vmem:[%s1 + $0x13d8] sm:$0xff]
  %v658 = vld [vmem:[%s1 + $0x13e0] sm:$0xff]
  %v659 = vld [vmem:[%s1 + $0x13e8] sm:$0xff]
  %v660 = vld [vmem:[%s1 + $0x13f0] sm:$0xff]
  %v661 = vld [vmem:[%s1 + $0x13f8] sm:$0xff]
  %v662 = vld [vmem:[%s1 + $0x1400] sm:$0xff]
  %v663 = vld [vmem:[%s1 + $0x1408] sm:$0xff]
  %v664 = vld [vmem:[%s1 + $0x1410] sm:$0xff]
  %v665 = vld [vmem:[%s1 + $0x1418] sm:$0xff]
  %v666 = vld [vmem:[%s1 + $0x1420] sm:$0xff]
  %v667 = vld [vmem:[%s1 + $0x1428] sm:$0xff]
  %v668 = vld [vmem:[%s1 + $0x1430] sm:$0xff]
  %v669 = vld [vmem:[%s1 + $0x1438] sm:$0xff]
  %v670 = vld [vmem:[%s1 + $0x1440] sm:$0xff]
  %v671 = vld [vmem:[%s1 + $0x1448] sm:$0xff]
  %v672 = vld [vmem:[%s1 + $0x1450] sm:$0xff]
  %v673 = vld [vmem:[%s1 + $0x1458] sm:$0xff]
  %v674 = vld [vmem:[%s1 + $0x1460] sm:$0xff]
  %v675 = vld [vmem:[%s1 + $0x1468] sm:$0xff]
  %v676 = vld [vmem:[%s1 + $0x1470] sm:$0xff]
  %v677 = vld [vmem:[%s1 + $0x1478] sm:$0xff]
  %v678 = vld [vmem:[%s1 + $0x1480] sm:$0xff]
  %v679 = vld [vmem:[%s1 + $0x1488] sm:$0xff]
  %v680 = vld [vmem:[%s1 + $0x1490] sm:$0xff]
  %v681 = vld [vmem:[%s1 + $0x1498] sm:$0xff]
  %v682 = vld [vmem:[%s1 + $0x14a0] sm:$0xff]
  %v683 = vld [vmem:[%s1 + $0x14a8] sm:$0xff]
  %v684 = vld [vmem:[%s1 + $0x14b0] sm:$0xff]
  %v685 = vld [vmem:[%s1 + $0x14b8] sm:$0xff]
  %v686 = vld [vmem:[%s1 + $0x14c0] sm:$0xff]
  %v687 = vld [vmem:[%s1 + $0x14c8] sm:$0xff]
  %v688 = vld [vmem:[%s1 + $0x14d0] sm:$0xff]
  %v689 = vld [vmem:[%s1 + $0x14d8] sm:$0xff]
  %v690 = vld [vmem:[%s1 + $0x14e0] sm:$0xff]
  %v691 = vld [vmem:[%s1 + $0x14e8] sm:$0xff]
  %v692 = vld [vmem:[%s1 + $0x14f0] sm:$0xff]
  %v693 = vld [vmem:[%s1 + $0x14f8] sm:$0xff]
  %v694 = vld [vmem:[%s1 + $0x1500] sm:$0xff]
  %v695 = vld [vmem:[%s1 + $0x1508] sm:$0xff]
  %v696 = vld [vmem:[%s1 + $0x1510] sm:$0xff]
  %v697 = vld [vmem:[%s1 + $0x1518] sm:$0xff]
  %v698 = vld [vmem:[%s1 + $0x1520] sm:$0xff]
  %v699 = vld [vmem:[%s1 + $0x1528] sm:$0xff]
  %v700 = vld [vmem:[%s1 + $0x1530] sm:$0xff]
  %v701 = vld [vmem:[%s1 + $0x1538] sm:$0xff]
  %v702 = vld [vmem:[%s1 + $0x1540] sm:$0xff]
  %v703 = vld [vmem:[%s1 + $0x1548] sm:$0xff]
  %v704 = vld [vmem:[%s1 + $0x1550] sm:$0xff]
  %v705 = vld [vmem:[%s1 + $0x1558] sm:$0xff]
  %v706 = vld [vmem:[%s1 + $0x1560] sm:$0xff]
  %v707 = vld [vmem:[%s1 + $0x1568] sm:$0xff]
  %v708 = vld [vmem:[%s1 + $0x1570] sm:$0xff]
  %v709 = vld [vmem:[%s1 + $0x1578] sm:$0xff]
  %v710 = vld [vmem:[%s1 + $0x1580] sm:$0xff]
  %v711 = vld [vmem:[%s1 + $0x1588] sm:$0xff]
  %v712 = vld [vmem:[%s1 + $0x1590] sm:$0xff]
  %v713 = vld [vmem:[%s1 + $0x1598] sm:$0xff]
  %v714 = vld [vmem:[%s1 + $0x15a0] sm:$0xff]
  %v715 = vld [vmem:[%s1 + $0x15a8] sm:$0xff]
  %v716 = vld [vmem:[%s1 + $0x15b0] sm:$0xff]
  %v717 = vld [vmem:[%s1 + $0x15b8] sm:$0xff]
  %v718 = vld [vmem:[%s1 + $0x15c0] sm:$0xff]
  %v719 = vld [vmem:[%s1 + $0x15c8] sm:$0xff]
  %v720 = vld [vmem:[%s1 + $0x15d0] sm:$0xff]
  %v721 = vld [vmem:[%s1 + $0x15d8] sm:$0xff]
  %v722 = vld [vmem:[%s1 + $0x15e0] sm:$0xff]
  %v723 = vld [vmem:[%s1 + $0x15e8] sm:$0xff]
  %v724 = vld [vmem:[%s1 + $0x15f0] sm:$0xff]
  %v725 = vld [vmem:[%s1 + $0x15f8] sm:$0xff]
  %v726 = vld [vmem:[%s1 + $0x1600] sm:$0xff]
  %v727 = vld [vmem:[%s1 + $0x1608] sm:$0xff]
  %v728 = vld [vmem:[%s1 + $0x1610] sm:$0xff]
  %v729 = vld [vmem:[%s1 + $0x1618] sm:$0xff]
  %v730 = vld [vmem:[%s1 + $0x1620] sm:$0xff]
  %v731 = vld [vmem:[%s1 + $0x1628] sm:$0xff]
  %v732 = vld [vmem:[%s1 + $0x1630] sm:$0xff]
  %v733 = vld [vmem:[%s1 + $0x1638] sm:$0xff]
  %v734 = vld [vmem:[%s1 + $0x1640] sm:$0xff]
  %v735 = vld [vmem:[%s1 + $0x1648] sm:$0xff]
  %v736 = vld [vmem:[%s1 + $0x1650] sm:$0xff]
  %v737 = vld [vmem:[%s1 + $0x1658] sm:$0xff]
  %v738 = vld [vmem:[%s1 + $0x1660] sm:$0xff]
  %v739 = vld [vmem:[%s1 + $0x1668] sm:$0xff]
  %v740 = vld [vmem:[%s1 + $0x1670] sm:$0xff]
  %v741 = vld [vmem:[%s1 + $0x1678] sm:$0xff]
  %v742 = vld [vmem:[%s1 + $0x1680] sm:$0xff]
  %v743 = vld [vmem:[%s1 + $0x1688] sm:$0xff]
  %v744 = vld [vmem:[%s1 + $0x1690] sm:$0xff]
  %v745 = vld [vmem:[%s1 + $0x1698] sm:$0xff]
  %v746 = vld [vmem:[%s1 + $0x16a0] sm:$0xff]
  %v747 = vld [vmem:[%s1 + $0x16a8] sm:$0xff]
  %v748 = vld [vmem:[%s1 + $0x16b0] sm:$0xff]
  %v749 = vld [vmem:[%s1 + $0x16b8] sm:$0xff]
  %v750 = vld [vmem:[%s1 + $0x16c0] sm:$0xff]
  %v751 = vld [vmem:[%s1 + $0x16c8] sm:$0xff]
  %v752 = vld [vmem:[%s1 + $0x16d0] sm:$0xff]
  %v753 = vld [vmem:[%s1 + $0x16d8] sm:$0xff]
  %v754 = vld [vmem:[%s1 + $0x16e0] sm:$0xff]
  %v755 = vld [vmem:[%s1 + $0x16e8] sm:$0xff]
  %v756 = vld [vmem:[%s1 + $0x16f0] sm:$0xff]
  %v757 = vld [vmem:[%s1 + $0x16f8] sm:$0xff]
  %v758 = vld [vmem:[%s1 + $0x1700] sm:$0xff]
  %v759 = vld [vmem:[%s1 + $0x1708] sm:$0xff]
  %v760 = vld [vmem:[%s1 + $0x1710] sm:$0xff]
  %v761 = vld [vmem:[%s1 + $0x1718] sm:$0xff]
  %v762 = vld [vmem:[%s1 + $0x1720] sm:$0xff]
  %v763 = vld [vmem:[%s1 + $0x1728] sm:$0xff]
  %v764 = vld [vmem:[%s1 + $0x1730] sm:$0xff]
  %v765 = vld [vmem:[%s1 + $0x1738] sm:$0xff]
  %v766 = vld [vmem:[%s1 + $0x1740] sm:$0xff]
  %v767 = vld [vmem:[%s1 + $0x1748] sm:$0xff]
  %v768 = vld [vmem:[%s1 + $0x1750] sm:$0xff]
  %v769 = vld [vmem:[%s1 + $0x1758] sm:$0xff]
  %v770 = vld [vmem:[%s1 + $0x1760] sm:$0xff]
  %v771 = vld [vmem:[%s1 + $0x1768] sm:$0xff]
  %v772 = vld [vmem:[%s1 + $0x1770] sm:$0xff]
  %v773 = vld [vmem:[%s1 + $0x1778] sm:$0xff]
  %v774 = vld [vmem:[%s1 + $0x1780] sm:$0xff]
  %v775 = vld [vmem:[%s1 + $0x1788] sm:$0xff]
  %v776 = vld [vmem:[%s1 + $0x1790] sm:$0xff]
  %v777 = vld [vmem:[%s1 + $0x1798] sm:$0xff]
  %v778 = vld [vmem:[%s1 + $0x17a0] sm:$0xff]
  %v779 = vld [vmem:[%s1 + $0x17a8] sm:$0xff]
  %v780 = vld [vmem:[%s1 + $0x17b0] sm:$0xff]
  %v781 = vld [vmem:[%s1 + $0x17b8] sm:$0xff]
  %v782 = vld [vmem:[%s1 + $0x17c0] sm:$0xff]
  %v783 = vld [vmem:[%s1 + $0x17c8] sm:$0xff]
  %v784 = vld [vmem:[%s1 + $0x17d0] sm:$0xff]
  %v785 = vld [vmem:[%s1 + $0x17d8] sm:$0xff]
  %v786 = vld [vmem:[%s1 + $0x17e0] sm:$0xff]
  %v787 = vld [vmem:[%s1 + $0x17e8] sm:$0xff]
  %v788 = vld [vmem:[%s1 + $0x17f0] sm:$0xff]
  %v789 = vld [vmem:[%s1 + $0x17f8] sm:$0xff]
  %v790 = vld [vmem:[%s1 + $0x1800] sm:$0xff]
  %v791 = vld [vmem:[%s1 + $0x1808] sm:$0xff]
  %v792 = vld [vmem:[%s1 + $0x1810] sm:$0xff]
  %v793 = vld [vmem:[%s1 + $0x1818] sm:$0xff]
  %v794 = vld [vmem:[%s1 + $0x1820] sm:$0xff]
  %v795 = vld [vmem:[%s1 + $0x1828] sm:$0xff]
  %v796 = vld [vmem:[%s1 + $0x1830] sm:$0xff]
  %v797 = vld [vmem:[%s1 + $0x1838] sm:$0xff]
  %v798 = vld [vmem:[%s1 + $0x1840] sm:$0xff]
  %v799 = vld [vmem:[%s1 + $0x1848] sm:$0xff]
  %v800 = vld [vmem:[%s1 + $0x1850] sm:$0xff]
  %v801 = vld [vmem:[%s1 + $0x1858] sm:$0xff]
  %v802 = vld [vmem:[%s1 + $0x1860] sm:$0xff]
  %v803 = vld [vmem:[%s1 + $0x1868] sm:$0xff]
  %v804 = vld [vmem:[%s1 + $0x1870] sm:$0xff]
  %v805 = vld [vmem:[%s1 + $0x1878] sm:$0xff]
  %v806 = vld [vmem:[%s1 + $0x1880] sm:$0xff]
  %v807 = vld [vmem:[%s1 + $0x1888] sm:$0xff]
  %v808 = vld [vmem:[%s1 + $0x1890] sm:$0xff]
  %v809 = vld [vmem:[%s1 + $0x1898] sm:$0xff]
  %v810 = vld [vmem:[%s1 + $0x18a0] sm:$0xff]
  %v811 = vld [vmem:[%s1 + $0x18a8] sm:$0xff]
  %v812 = vld [vmem:[%s1 + $0x18b0] sm:$0xff]
  %v813 = vld [vmem:[%s1 + $0x18b8] sm:$0xff]
  %v814 = vld [vmem:[%s1 + $0x18c0] sm:$0xff]
  %v815 = vld [vmem:[%s1 + $0x18c8] sm:$0xff]
  %v816 = vld [vmem:[%s1 + $0x18d0] sm:$0xff]
  %v817 = vld [vmem:[%s1 + $0x18d8] sm:$0xff]
  %v818 = vld [vmem:[%s1 + $0x18e0] sm:$0xff]
  %v819 = vld [vmem:[%s1 + $0x18e8] sm:$0xff]
  %v820 = vld [vmem:[%s1 + $0x18f0] sm:$0xff]
  %v821 = vld [vmem:[%s1 + $0x18f8] sm:$0xff]
  %v822 = vld [vmem:[%s1 + $0x1900] sm:$0xff]
  %v823 = vld [vmem:[%s1 + $0x1908] sm:$0xff]
  %v824 = vld [vmem:[%s1 + $0x1910] sm:$0xff]
  %v825 = vld [vmem:[%s1 + $0x1918] sm:$0xff]
  %v826 = vld [vmem:[%s1 + $0x1920] sm:$0xff]
  %v827 = vld [vmem:[%s1 + $0x1928] sm:$0xff]
  %v828 = vld [vmem:[%s1 + $0x1930] sm:$0xff]
  %v829 = vld [vmem:[%s1 + $0x1938] sm:$0xff]
  %v830 = vld [vmem:[%s1 + $0x1940] sm:$0xff]
  %v831 = vld [vmem:[%s1 + $0x1948] sm:$0xff]
  %v832 = vld [vmem:[%s1 + $0x1950] sm:$0xff]
  %v833 = vld [vmem:[%s1 + $0x1958] sm:$0xff]
  %v834 = vld [vmem:[%s1 + $0x1960] sm:$0xff]
  %v835 = vld [vmem:[%s1 + $0x1968] sm:$0xff]
  %v836 = vld [vmem:[%s1 + $0x1970] sm:$0xff]
  %v837 = vld [vmem:[%s1 + $0x1978] sm:$0xff]
  %v838 = vld [vmem:[%s1 + $0x1980] sm:$0xff]
  %v839 = vld [vmem:[%s1 + $0x1988] sm:$0xff]
  %v840 = vld [vmem:[%s1 + $0x1990] sm:$0xff]
  %v841 = vld [vmem:[%s1 + $0x1998] sm:$0xff]
  %v842 = vld [vmem:[%s1 + $0x19a0] sm:$0xff]
  %v843 = vld [vmem:[%s1 + $0x19a8] sm:$0xff]
  %v844 = vld [vmem:[%s1 + $0x19b0] sm:$0xff]
  %v845 = vld [vmem:[%s1 + $0x19b8] sm:$0xff]
  %v846 = vld [vmem:[%s1 + $0x19c0] sm:$0xff]
  %v847 = vld [vmem:[%s1 + $0x19c8] sm:$0xff]
  %v848 = vld [vmem:[%s1 + $0x19d0] sm:$0xff]
  %v849 = vld [vmem:[%s1 + $0x19d8] sm:$0xff]
  %v850 = vld [vmem:[%s1 + $0x19e0] sm:$0xff]
  %v851 = vld [vmem:[%s1 + $0x19e8] sm:$0xff]
  %v852 = vld [vmem:[%s1 + $0x19f0] sm:$0xff]
  %v853 = vld [vmem:[%s1 + $0x19f8] sm:$0xff]
  %v854 = vld [vmem:[%s1 + $0x1a00] sm:$0xff]
  %v855 = vld [vmem:[%s1 + $0x1a08] sm:$0xff]
  %v856 = vld [vmem:[%s1 + $0x1a10] sm:$0xff]
  %v857 = vld [vmem:[%s1 + $0x1a18] sm:$0xff]
  %v858 = vld [vmem:[%s1 + $0x1a20] sm:$0xff]
  %v859 = vld [vmem:[%s1 + $0x1a28] sm:$0xff]
  %v860 = vld [vmem:[%s1 + $0x1a30] sm:$0xff]
  %v861 = vld [vmem:[%s1 + $0x1a38] sm:$0xff]
  %v862 = vld [vmem:[%s1 + $0x1a40] sm:$0xff]
  %v863 = vld [vmem:[%s1 + $0x1a48] sm:$0xff]
  %v864 = vld [vmem:[%s1 + $0x1a50] sm:$0xff]
  %v865 = vld [vmem:[%s1 + $0x1a58] sm:$0xff]
  %v866 = vld [vmem:[%s1 + $0x1a60] sm:$0xff]
  %v867 = vld [vmem:[%s1 + $0x1a68] sm:$0xff]
  %v868 = vld [vmem:[%s1 + $0x1a70] sm:$0xff]
  %v869 = vld [vmem:[%s1 + $0x1a78] sm:$0xff]
  %v870 = vld [vmem:[%s1 + $0x1a80] sm:$0xff]
  %v871 = vld [vmem:[%s1 + $0x1a88] sm:$0xff]
  %v872 = vld [vmem:[%s1 + $0x1a90] sm:$0xff]
  %v873 = vld [vmem:[%s1 + $0x1a98] sm:$0xff]
  %v874 = vld [vmem:[%s1 + $0x1aa0] sm:$0xff]
  %v875 = vld [vmem:[%s1 + $0x1aa8] sm:$0xff]
  %v876 = vld [vmem:[%s1 + $0x1ab0] sm:$0xff]
  %v877 = vld [vmem:[%s1 + $0x1ab8] sm:$0xff]
  %v878 = vld [vmem:[%s1 + $0x1ac0] sm:$0xff]
  %v879 = vld [vmem:[%s1 + $0x1ac8] sm:$0xff]
  %v880 = vld [vmem:[%s1 + $0x1ad0] sm:$0xff]
  %v881 = vld [vmem:[%s1 + $0x1ad8] sm:$0xff]
  %v882 = vld [vmem:[%s1 + $0x1ae0] sm:$0xff]
  %v883 = vld [vmem:[%s1 + $0x1ae8] sm:$0xff]
  %v884 = vld [vmem:[%s1 + $0x1af0] sm:$0xff]
  %v885 = vld [vmem:[%s1 + $0x1af8] sm:$0xff]
  %v886 = vld [vmem:[%s1 + $0x1b00] sm:$0xff]
  %v887 = vld [vmem:[%s1 + $0x1b08] sm:$0xff]
  %v888 = vld [vmem:[%s1 + $0x1b10] sm:$0xff]
  %v889 = vld [vmem:[%s1 + $0x1b18] sm:$0xff]
  %v890 = vld [vmem:[%s1 + $0x1b20] sm:$0xff]
  %v891 = vld [vmem:[%s1 + $0x1b28] sm:$0xff]
  %v892 = vld [vmem:[%s1 + $0x1b30] sm:$0xff]
  %v893 = vld [vmem:[%s1 + $0x1b38] sm:$0xff]
  %v894 = vld [vmem:[%s1 + $0x1b40] sm:$0xff]
  %v895 = vld [vmem:[%s1 + $0x1b48] sm:$0xff]
  %v896 = vld [vmem:[%s1 + $0x1b50] sm:$0xff]
  %v897 = vld [vmem:[%s1 + $0x1b58] sm:$0xff]
  %v898 = vld [vmem:[%s1 + $0x1b60] sm:$0xff]
  %v899 = vld [vmem:[%s1 + $0x1b68] sm:$0xff]
  %v900 = vld [vmem:[%s1 + $0x1b70] sm:$0xff]
  %v901 = vld [vmem:[%s1 + $0x1b78] sm:$0xff]
  %v902 = vld [vmem:[%s1 + $0x1b80] sm:$0xff]
  %v903 = vld [vmem:[%s1 + $0x1b88] sm:$0xff]
  %v904 = vld [vmem:[%s1 + $0x1b90] sm:$0xff]
  %v905 = vld [vmem:[%s1 + $0x1b98] sm:$0xff]
  %v906 = vld [vmem:[%s1 + $0x1ba0] sm:$0xff]
  %v907 = vld [vmem:[%s1 + $0x1ba8] sm:$0xff]
  %v908 = vld [vmem:[%s1 + $0x1bb0] sm:$0xff]
  %v909 = vld [vmem:[%s1 + $0x1bb8] sm:$0xff]
  %v910 = vld [vmem:[%s1 + $0x1bc0] sm:$0xff]
  %v911 = vld [vmem:[%s1 + $0x1bc8] sm:$0xff]
  %v912 = vld [vmem:[%s1 + $0x1bd0] sm:$0xff]
  %v913 = vld [vmem:[%s1 + $0x1bd8] sm:$0xff]
  %v914 = vld [vmem:[%s1 + $0x1be0] sm:$0xff]
  %v915 = vld [vmem:[%s1 + $0x1be8] sm:$0xff]
  %v916 = vld [vmem:[%s1 + $0x1bf0] sm:$0xff]
  %v917 = vld [vmem:[%s1 + $0x1bf8] sm:$0xff]
  %v918 = vld [vmem:[%s1 + $0x1c00] sm:$0xff]
  %v919 = vld [vmem:[%s1 + $0x1c08] sm:$0xff]
  %v920 = vld [vmem:[%s1 + $0x1c10] sm:$0xff]
  %v921 = vld [vmem:[%s1 + $0x1c18] sm:$0xff]
  %v922 = vld [vmem:[%s1 + $0x1c20] sm:$0xff]
  %v923 = vld [vmem:[%s1 + $0x1c28] sm:$0xff]
  %v924 = vld [vmem:[%s1 + $0x1c30] sm:$0xff]
  %v925 = vld [vmem:[%s1 + $0x1c38] sm:$0xff]
  %v926 = vld [vmem:[%s1 + $0x1c40] sm:$0xff]
  %v927 = vld [vmem:[%s1 + $0x1c48] sm:$0xff]
  %v928 = vld [vmem:[%s1 + $0x1c50] sm:$0xff]
  %v929 = vld [vmem:[%s1 + $0x1c58] sm:$0xff]
  %v930 = vld [vmem:[%s1 + $0x1c60] sm:$0xff]
  %v931 = vld [vmem:[%s1 + $0x1c68] sm:$0xff]
  %v932 = vld [vmem:[%s1 + $0x1c70] sm:$0xff]
  %v933 = vld [vmem:[%s1 + $0x1c78] sm:$0xff]
  %v934 = vld [vmem:[%s1 + $0x1c80] sm:$0xff]
  %v935 = vld [vmem:[%s1 + $0x1c88] sm:$0xff]
  %v936 = vld [vmem:[%s1 + $0x1c90] sm:$0xff]
  %v937 = vld [vmem:[%s1 + $0x1c98] sm:$0xff]
  %v938 = vld [vmem:[%s1 + $0x1ca0] sm:$0xff]
  %v939 = vld [vmem:[%s1 + $0x1ca8] sm:$0xff]
  %v940 = vld [vmem:[%s1 + $0x1cb0] sm:$0xff]
  %v941 = vld [vmem:[%s1 + $0x1cb8] sm:$0xff]
  %v942 = vld [vmem:[%s1 + $0x1cc0] sm:$0xff]
  %v943 = vld [vmem:[%s1 + $0x1cc8] sm:$0xff]
  %v944 = vld [vmem:[%s1 + $0x1cd0] sm:$0xff]
  %v945 = vld [vmem:[%s1 + $0x1cd8] sm:$0xff]
  %v946 = vld [vmem:[%s1 + $0x1ce0] sm:$0xff]
  %v947 = vld [vmem:[%s1 + $0x1ce8] sm:$0xff]
  %v948 = vld [vmem:[%s1 + $0x1cf0] sm:$0xff]
  %v949 = vld [vmem:[%s1 + $0x1cf8] sm:$0xff]
  %v950 = vld [vmem:[%s1 + $0x1d00] sm:$0xff]
  %v951 = vld [vmem:[%s1 + $0x1d08] sm:$0xff]
  %v952 = vld [vmem:[%s1 + $0x1d10] sm:$0xff]
  %v953 = vld [vmem:[%s1 + $0x1d18] sm:$0xff]
  %v954 = vld [vmem:[%s1 + $0x1d20] sm:$0xff]
  %v955 = vld [vmem:[%s1 + $0x1d28] sm:$0xff]
  %v956 = vld [vmem:[%s1 + $0x1d30] sm:$0xff]
  %v957 = vld [vmem:[%s1 + $0x1d38] sm:$0xff]
  %v958 = vld [vmem:[%s1 + $0x1d40] sm:$0xff]
  %v959 = vld [vmem:[%s1 + $0x1d48] sm:$0xff]
  %v960 = vld [vmem:[%s1 + $0x1d50] sm:$0xff]
  %v961 = vld [vmem:[%s1 + $0x1d58] sm:$0xff]
  %v962 = vld [vmem:[%s1 + $0x1d60] sm:$0xff]
  %v963 = vld [vmem:[%s1 + $0x1d68] sm:$0xff]
  %v964 = vld [vmem:[%s1 + $0x1d70] sm:$0xff]
  %v965 = vld [vmem:[%s1 + $0x1d78] sm:$0xff]
  %v966 = vld [vmem:[%s1 + $0x1d80] sm:$0xff]
  %v967 = vld [vmem:[%s1 + $0x1d88] sm:$0xff]
  %v968 = vld [vmem:[%s1 + $0x1d90] sm:$0xff]
  %v969 = vld [vmem:[%s1 + $0x1d98] sm:$0xff]
  %v970 = vld [vmem:[%s1 + $0x1da0] sm:$0xff]
  %v971 = vld [vmem:[%s1 + $0x1da8] sm:$0xff]
  %v972 = vld [vmem:[%s1 + $0x1db0] sm:$0xff]
  %v973 = vld [vmem:[%s1 + $0x1db8] sm:$0xff]
  %v974 = vld [vmem:[%s1 + $0x1dc0] sm:$0xff]
  %v975 = vld [vmem:[%s1 + $0x1dc8] sm:$0xff]
  %v976 = vld [vmem:[%s1 + $0x1dd0] sm:$0xff]
  %v977 = vld [vmem:[%s1 + $0x1dd8] sm:$0xff]
  %v978 = vld [vmem:[%s1 + $0x1de0] sm:$0xff]
  %v979 = vld [vmem:[%s1 + $0x1de8] sm:$0xff]
  %v980 = vld [vmem:[%s1 + $0x1df0] sm:$0xff]
  %v981 = vld [vmem:[%s1 + $0x1df8] sm:$0xff]
  %v982 = vld [vmem:[%s1 + $0x1e00] sm:$0xff]
  %v983 = vld [vmem:[%s1 + $0x1e08] sm:$0xff]
  %v984 = vld [vmem:[%s1 + $0x1e10] sm:$0xff]
  %v985 = vld [vmem:[%s1 + $0x1e18] sm:$0xff]
  %v986 = vld [vmem:[%s1 + $0x1e20] sm:$0xff]
  %v987 = vld [vmem:[%s1 + $0x1e28] sm:$0xff]
  %v988 = vld [vmem:[%s1 + $0x1e30] sm:$0xff]
  %v989 = vld [vmem:[%s1 + $0x1e38] sm:$0xff]
  %v990 = vld [vmem:[%s1 + $0x1e40] sm:$0xff]
  %v991 = vld [vmem:[%s1 + $0x1e48] sm:$0xff]
  %v992 = vld [vmem:[%s1 + $0x1e50] sm:$0xff]
  %v993 = vld [vmem:[%s1 + $0x1e58] sm:$0xff]
  %v994 = vld [vmem:[%s1 + $0x1e60] sm:$0xff]
  %v995 = vld [vmem:[%s1 + $0x1e68] sm:$0xff]
  %v996 = vld [vmem:[%s1 + $0x1e70] sm:$0xff]
  %v997 = vld [vmem:[%s1 + $0x1e78] sm:$0xff]
  %v998 = vld [vmem:[%s1 + $0x1e80] sm:$0xff]
  %v999 = vld [vmem:[%s1 + $0x1e88] sm:$0xff]
  %v1000 = vld [vmem:[%s1 + $0x1e90] sm:$0xff]
  %v1001 = vld [vmem:[%s1 + $0x1e98] sm:$0xff]
  %v1002 = vld [vmem:[%s1 + $0x1ea0] sm:$0xff]
  %v1003 = vld [vmem:[%s1 + $0x1ea8] sm:$0xff]
  %v1004 = vld [vmem:[%s1 + $0x1eb0] sm:$0xff]
  %v1005 = vld [vmem:[%s1 + $0x1eb8] sm:$0xff]
  %v1006 = vld [vmem:[%s1 + $0x1ec0] sm:$0xff]
  %v1007 = vld [vmem:[%s1 + $0x1ec8] sm:$0xff]
  %v1008 = vld [vmem:[%s1 + $0x1ed0] sm:$0xff]
  %v1009 = vld [vmem:[%s1 + $0x1ed8] sm:$0xff]
  %v1010 = vld [vmem:[%s1 + $0x1ee0] sm:$0xff]
  %v1011 = vld [vmem:[%s1 + $0x1ee8] sm:$0xff]
  %v1012 = vld [vmem:[%s1 + $0x1ef0] sm:$0xff]
  %v1013 = vld [vmem:[%s1 + $0x1ef8] sm:$0xff]
  %v1014 = vld [vmem:[%s1 + $0x1f00] sm:$0xff]
  %v1015 = vld [vmem:[%s1 + $0x1f08] sm:$0xff]
  %v1016 = vld [vmem:[%s1 + $0x1f10] sm:$0xff]
  %v1017 = vld [vmem:[%s1 + $0x1f18] sm:$0xff]
  %v1018 = vld [vmem:[%s1 + $0x1f20] sm:$0xff]
  %v1019 = vld [vmem:[%s1 + $0x1f28] sm:$0xff]
  %v1020 = vld [vmem:[%s1 + $0x1f30] sm:$0xff]
  %v1021 = vld [vmem:[%s1 + $0x1f38] sm:$0xff]
  %v1022 = vld [vmem:[%s1 + $0x1f40] sm:$0xff]
  %v1023 = vld [vmem:[%s1 + $0x1f48] sm:$0xff]
  %v1024 = vld [vmem:[%s1 + $0x1f50] sm:$0xff]
  %v1025 = vld [vmem:[%s1 + $0x1f58] sm:$0xff]
  %v1026 = vld [vmem:[%s1 + $0x1f60] sm:$0xff]
  %v1027 = vld [vmem:[%s1 + $0x1f68] sm:$0xff]
  %v1028 = vld [vmem:[%s1 + $0x1f70] sm:$0xff]
  %v1029 = vld [vmem:[%s1 + $0x1f78] sm:$0xff]
  %v1030 = vld [vmem:[%s1 + $0x1f80] sm:$0xff]
  %v1031 = vld [vmem:[%s1 + $0x1f88] sm:$0xff]
  %v1032 = vld [vmem:[%s1 + $0x1f90] sm:$0xff]
  %v1033 = vld [vmem:[%s1 + $0x1f98] sm:$0xff]
  %v1034 = vld [vmem:[%s1 + $0x1fa0] sm:$0xff]
  %v1035 = vld [vmem:[%s1 + $0x1fa8] sm:$0xff]
  %v1036 = vld [vmem:[%s1 + $0x1fb0] sm:$0xff]
  %v1037 = vld [vmem:[%s1 + $0x1fb8] sm:$0xff]
  %v1038 = vld [vmem:[%s1 + $0x1fc0] sm:$0xff]
  %v1039 = vld [vmem:[%s1 + $0x1fc8] sm:$0xff]
  %v1040 = vld [vmem:[%s1 + $0x1fd0] sm:$0xff]
  %v1041 = vld [vmem:[%s1 + $0x1fd8] sm:$0xff]
  %v1042 = vld [vmem:[%s1 + $0x1fe0] sm:$0xff]
  %v1043 = vld [vmem:[%s1 + $0x1fe8] sm:$0xff]
  %v1044 = vld [vmem:[%s1 + $0x1ff0] sm:$0xff]
  %v1045 = vld [vmem:[%s1 + $0x1ff8] sm:$0xff]
  %v1046 = vld [vmem:[%s2] sm:$0xff]
  %v1047 = vld [vmem:[%s2 + $0x8] sm:$0xff]
  %v1050 = vlaneseq
  %v1051 = vshrl.u32 %v1050, 7
  %v1052 = vsub.s32 0, %v1051
  %v1053 = vrot.slane %v1046, %v1052
  %v1054 = vlaneseq
  %v1055 = vshrl.u32 %v1054, 7
  %v1056 = vsub.s32 1, %v1055
  %v1057 = vrot.slane %v1046, %v1056
  %v1058 = vlaneseq
  %v1059 = vshrl.u32 %v1058, 7
  %v1060 = vsub.s32 2, %v1059
  %v1061 = vrot.slane %v1046, %v1060
  %v1062 = vlaneseq
  %v1063 = vshrl.u32 %v1062, 7
  %v1064 = vsub.s32 3, %v1063
  %v1065 = vrot.slane %v1046, %v1064
  %v1066 = vlaneseq
  %v1067 = vshrl.u32 %v1066, 7
  %v1068 = vsub.s32 4, %v1067
  %v1069 = vrot.slane %v1046, %v1068
  %v1070 = vlaneseq
  %v1071 = vshrl.u32 %v1070, 7
  %v1072 = vsub.s32 5, %v1071
  %v1073 = vrot.slane %v1046, %v1072
  %v1074 = vlaneseq
  %v1075 = vshrl.u32 %v1074, 7
  %v1076 = vsub.s32 6, %v1075
  %v1077 = vrot.slane %v1046, %v1076
  %v1078 = vlaneseq
  %v1079 = vshrl.u32 %v1078, 7
  %v1080 = vsub.s32 7, %v1079
  %v1081 = vrot.slane %v1046, %v1080
  %v1082 = vlaneseq
  %v1083 = vshrl.u32 %v1082, 7
  %v1084 = vsub.s32 0, %v1083
  %v1085 = vrot.slane %v1047, %v1084
  %v1086 = vlaneseq
  %v1087 = vshrl.u32 %v1086, 7
  %v1088 = vsub.s32 1, %v1087
  %v1089 = vrot.slane %v1047, %v1088
  %v1090 = vlaneseq
  %v1091 = vshrl.u32 %v1090, 7
  %v1092 = vsub.s32 2, %v1091
  %v1093 = vrot.slane %v1047, %v1092
  %v1094 = vlaneseq
  %v1095 = vshrl.u32 %v1094, 7
  %v1096 = vsub.s32 3, %v1095
  %v1097 = vrot.slane %v1047, %v1096
  %v1098 = vlaneseq
  %v1099 = vshrl.u32 %v1098, 7
  %v1100 = vsub.s32 4, %v1099
  %v1101 = vrot.slane %v1047, %v1100
  %v1102 = vlaneseq
  %v1103 = vshrl.u32 %v1102, 7
  %v1104 = vsub.s32 5, %v1103
  %v1105 = vrot.slane %v1047, %v1104
  %v1106 = vlaneseq
  %v1107 = vshrl.u32 %v1106, 7
  %v1108 = vsub.s32 6, %v1107
  %v1109 = vrot.slane %v1047, %v1108
  %v1110 = vlaneseq
  %v1111 = vshrl.u32 %v1110, 7
  %v1112 = vsub.s32 7, %v1111
  %v1113 = vrot.slane %v1047, %v1112
  %1130 = vmatprep.subr.mxu0 %v23
  %1131 = vmatpush1.msra.mxu0 %v22
  %1132 = vmatprep.subr.mxu0 %v39
  %1133 = vmatpush1.msra.mxu0 %v38
  %1134 = vmatprep.subr.mxu0 %v55
  %1135 = vmatpush1.msra.mxu0 %v54
  %1136 = vmatprep.subr.mxu0 %v71
  %1137 = vmatpush1.msra.mxu0 %v70
  %1138 = vmatprep.subr.mxu0 %v87
  %1139 = vmatpush1.msra.mxu0 %v86
  %1140 = vmatprep.subr.mxu0 %v103
  %1141 = vmatpush1.msra.mxu0 %v102
  %1142 = vmatprep.subr.mxu0 %v119
  %1143 = vmatpush1.msra.mxu0 %v118
  %1144 = vmatprep.subr.mxu0 %v135
  %1145 = vmatpush1.msra.mxu0 %v134
  %1146 = vmatprep.subr.mxu0 %v151
  %1147 = vmatpush1.msra.mxu0 %v150
  %1148 = vmatprep.subr.mxu0 %v167
  %1149 = vmatpush1.msra.mxu0 %v166
  %1150 = vmatprep.subr.mxu0 %v183
  %1151 = vmatpush1.msra.mxu0 %v182
  %1152 = vmatprep.subr.mxu0 %v199
  %1153 = vmatpush1.msra.mxu0 %v198
  %1154 = vmatprep.subr.mxu0 %v215
  %1155 = vmatpush1.msra.mxu0 %v214
  %1156 = vmatprep.subr.mxu0 %v231
  %1157 = vmatpush1.msra.mxu0 %v230
  %1158 = vmatprep.subr.mxu0 %v247
  %1159 = vmatpush1.msra.mxu0 %v246
  %1160 = vmatprep.subr.mxu0 %v263
  %1161 = vmatpush1.msra.mxu0 %v262
  %1162 = vmatprep.subr.mxu0 %v279
  %1163 = vmatpush1.msra.mxu0 %v278
  %1164 = vmatprep.subr.mxu0 %v295
  %1165 = vmatpush1.msra.mxu0 %v294
  %1166 = vmatprep.subr.mxu0 %v311
  %1167 = vmatpush1.msra.mxu0 %v310
  %1168 = vmatprep.subr.mxu0 %v327
  %1169 = vmatpush1.msra.mxu0 %v326
  %1170 = vmatprep.subr.mxu0 %v343
  %1171 = vmatpush1.msra.mxu0 %v342
  %1172 = vmatprep.subr.mxu0 %v359
  %1173 = vmatpush1.msra.mxu0 %v358
  %1174 = vmatprep.subr.mxu0 %v375
  %1175 = vmatpush1.msra.mxu0 %v374
  %1176 = vmatprep.subr.mxu0 %v391
  %1177 = vmatpush1.msra.mxu0 %v390
  %1178 = vmatprep.subr.mxu0 %v407
  %1179 = vmatpush1.msra.mxu0 %v406
  %1180 = vmatprep.subr.mxu0 %v423
  %1181 = vmatpush1.msra.mxu0 %v422
  %1182 = vmatprep.subr.mxu0 %v439
  %1183 = vmatpush1.msra.mxu0 %v438
  %1184 = vmatprep.subr.mxu0 %v455
  %1185 = vmatpush1.msra.mxu0 %v454
  %1186 = vmatprep.subr.mxu0 %v471
  %1187 = vmatpush1.msra.mxu0 %v470
  %1188 = vmatprep.subr.mxu0 %v487
  %1189 = vmatpush1.msra.mxu0 %v486
  %1190 = vmatprep.subr.mxu0 %v503
  %1191 = vmatpush1.msra.mxu0 %v502
  %1192 = vmatprep.subr.mxu0 %v519
  %1193 = vmatpush1.msra.mxu0 %v518
  %1194 = vmatprep.mubr.f32.mxu0 %v15
  %1195 = vmatmul.mubr.f32.gmra.mrb[0].mxu0 %v14
  %v1196 = vpop.f32.mrb[0].mxu0
  %v1197 = vadd.f32 %v1053, %v1196
  %v1198 = vpop.f32.mrb[0].mxu0
  %v1199 = vadd.f32 %v1057, %v1198
  %1200 = vmatprep.mubr.f32.mxu0 %v19
  %1201 = vmatmul.mubr.f32.gmra.mrb[0].mxu0 %v18
  %v1202 = vpop.f32.mrb[0].mxu0
  %v1203 = vadd.f32 %v1053, %v1202
  %v1204 = vpop.f32.mrb[0].mxu0
  %v1205 = vadd.f32 %v1057, %v1204
  %1206 = vdwg.mxu0
  %1207 = vmatprep.subr.mxu0 %v535
  %1208 = vmatpush1.msra.mxu0 %v534
  %1209 = vmatprep.subr.mxu0 %v551
  %1210 = vmatpush1.msra.mxu0 %v550
  %1211 = vmatprep.subr.mxu0 %v567
  %1212 = vmatpush1.msra.mxu0 %v566
  %1213 = vmatprep.subr.mxu0 %v583
  %1214 = vmatpush1.msra.mxu0 %v582
  %1215 = vmatprep.subr.mxu0 %v599
  %1216 = vmatpush1.msra.mxu0 %v598
  %1217 = vmatprep.subr.mxu0 %v615
  %1218 = vmatpush1.msra.mxu0 %v614
  %1219 = vmatprep.subr.mxu0 %v631
  %1220 = vmatpush1.msra.mxu0 %v630
  %1221 = vmatprep.subr.mxu0 %v647
  %1222 = vmatpush1.msra.mxu0 %v646
  %1223 = vmatprep.subr.mxu0 %v663
  %1224 = vmatpush1.msra.mxu0 %v662
  %1225 = vmatprep.subr.mxu0 %v679
  %1226 = vmatpush1.msra.mxu0 %v678
  %1227 = vmatprep.subr.mxu0 %v695
  %1228 = vmatpush1.msra.mxu0 %v694
  %1229 = vmatprep.subr.mxu0 %v711
  %1230 = vmatpush1.msra.mxu0 %v710
  %1231 = vmatprep.subr.mxu0 %v727
  %1232 = vmatpush1.msra.mxu0 %v726
  %1233 = vmatprep.subr.mxu0 %v743
  %1234 = vmatpush1.msra.mxu0 %v742
  %1235 = vmatprep.subr.mxu0 %v759
  %1236 = vmatpush1.msra.mxu0 %v758
  %1237 = vmatprep.subr.mxu0 %v775
  %1238 = vmatpush1.msra.mxu0 %v774
  %1239 = vmatprep.subr.mxu0 %v791
  %1240 = vmatpush1.msra.mxu0 %v790
  %1241 = vmatprep.subr.mxu0 %v807
  %1242 = vmatpush1.msra.mxu0 %v806
  %1243 = vmatprep.subr.mxu0 %v823
  %1244 = vmatpush1.msra.mxu0 %v822
  %1245 = vmatprep.subr.mxu0 %v839
  %1246 = vmatpush1.msra.mxu0 %v838
  %1247 = vmatprep.subr.mxu0 %v855
  %1248 = vmatpush1.msra.mxu0 %v854
  %1249 = vmatprep.subr.mxu0 %v871
  %1250 = vmatpush1.msra.mxu0 %v870
  %1251 = vmatprep.subr.mxu0 %v887
  %1252 = vmatpush1.msra.mxu0 %v886
  %1253 = vmatprep.subr.mxu0 %v903
  %1254 = vmatpush1.msra.mxu0 %v902
  %1255 = vmatprep.subr.mxu0 %v919
  %1256 = vmatpush1.msra.mxu0 %v918
  %1257 = vmatprep.subr.mxu0 %v935
  %1258 = vmatpush1.msra.mxu0 %v934
  %1259 = vmatprep.subr.mxu0 %v951
  %1260 = vmatpush1.msra.mxu0 %v950
  %1261 = vmatprep.subr.mxu0 %v967
  %1262 = vmatpush1.msra.mxu0 %v966
  %1263 = vmatprep.subr.mxu0 %v983
  %1264 = vmatpush1.msra.mxu0 %v982
  %1265 = vmatprep.subr.mxu0 %v999
  %1266 = vmatpush1.msra.mxu0 %v998
  %1267 = vmatprep.subr.mxu0 %v1015
  %1268 = vmatpush1.msra.mxu0 %v1014
  %1269 = vmatprep.subr.mxu0 %v1031
  %1270 = vmatpush1.msra.mxu0 %v1030
  %1271 = vmatprep.mubr.f32.mxu0 %v17
  %1272 = vmatmul.mubr.f32.gmra.mrb[0].mxu0 %v16
  %v1273 = vpop.f32.mrb[0].mxu0
  %v1274 = vadd.f32 %v1197, %v1273
  %v1275 = vpop.f32.mrb[0].mxu0
  %v1276 = vadd.f32 %v1199, %v1275
  %1277 = vmatprep.mubr.f32.mxu0 %v21
  %1278 = vmatmul.mubr.f32.gmra.mrb[0].mxu0 %v20
  %v1279 = vpop.f32.mrb[0].mxu0
  %v1280 = vadd.f32 %v1203, %v1279
  %v1281 = vpop.f32.mrb[0].mxu0
  %v1282 = vadd.f32 %v1205, %v1281
  %1283 = vdwg.mxu0
  %1284 = vmatprep.subr.mxu0 %v25
  %1285 = vmatpush1.msra.mxu0 %v24
  %1286 = vmatprep.subr.mxu0 %v41
  %1287 = vmatpush1.msra.mxu0 %v40
  %1288 = vmatprep.subr.mxu0 %v57
  %1289 = vmatpush1.msra.mxu0 %v56
  %1290 = vmatprep.subr.mxu0 %v73
  %1291 = vmatpush1.msra.mxu0 %v72
  %1292 = vmatprep.subr.mxu0 %v89
  %1293 = vmatpush1.msra.mxu0 %v88
  %1294 = vmatprep.subr.mxu0 %v105
  %1295 = vmatpush1.msra.mxu0 %v104
  %1296 = vmatprep.subr.mxu0 %v121
  %1297 = vmatpush1.msra.mxu0 %v120
  %1298 = vmatprep.subr.mxu0 %v137
  %1299 = vmatpush1.msra.mxu0 %v136
  %1300 = vmatprep.subr.mxu0 %v153
  %1301 = vmatpush1.msra.mxu0 %v152
  %1302 = vmatprep.subr.mxu0 %v169
  %1303 = vmatpush1.msra.mxu0 %v168
  %1304 = vmatprep.subr.mxu0 %v185
  %1305 = vmatpush1.msra.mxu0 %v184
  %1306 = vmatprep.subr.mxu0 %v201
  %1307 = vmatpush1.msra.mxu0 %v200
  %1308 = vmatprep.subr.mxu0 %v217
  %1309 = vmatpush1.msra.mxu0 %v216
  %1310 = vmatprep.subr.mxu0 %v233
  %1311 = vmatpush1.msra.mxu0 %v232
  %1312 = vmatprep.subr.mxu0 %v249
  %1313 = vmatpush1.msra.mxu0 %v248
  %1314 = vmatprep.subr.mxu0 %v265
  %1315 = vmatpush1.msra.mxu0 %v264
  %1316 = vmatprep.subr.mxu0 %v281
  %1317 = vmatpush1.msra.mxu0 %v280
  %1318 = vmatprep.subr.mxu0 %v297
  %1319 = vmatpush1.msra.mxu0 %v296
  %1320 = vmatprep.subr.mxu0 %v313
  %1321 = vmatpush1.msra.mxu0 %v312
  %1322 = vmatprep.subr.mxu0 %v329
  %1323 = vmatpush1.msra.mxu0 %v328
  %1324 = vmatprep.subr.mxu0 %v345
  %1325 = vmatpush1.msra.mxu0 %v344
  %1326 = vmatprep.subr.mxu0 %v361
  %1327 = vmatpush1.msra.mxu0 %v360
  %1328 = vmatprep.subr.mxu0 %v377
  %1329 = vmatpush1.msra.mxu0 %v376
  %1330 = vmatprep.subr.mxu0 %v393
  %1331 = vmatpush1.msra.mxu0 %v392
  %1332 = vmatprep.subr.mxu0 %v409
  %1333 = vmatpush1.msra.mxu0 %v408
  %1334 = vmatprep.subr.mxu0 %v425
  %1335 = vmatpush1.msra.mxu0 %v424
  %1336 = vmatprep.subr.mxu0 %v441
  %1337 = vmatpush1.msra.mxu0 %v440
  %1338 = vmatprep.subr.mxu0 %v457
  %1339 = vmatpush1.msra.mxu0 %v456
  %1340 = vmatprep.subr.mxu0 %v473
  %1341 = vmatpush1.msra.mxu0 %v472
  %1342 = vmatprep.subr.mxu0 %v489
  %1343 = vmatpush1.msra.mxu0 %v488
  %1344 = vmatprep.subr.mxu0 %v505
  %1345 = vmatpush1.msra.mxu0 %v504
  %1346 = vmatprep.subr.mxu0 %v521
  %1347 = vmatpush1.msra.mxu0 %v520
  %1348 = vmatprep.mubr.f32.mxu0 %v15
  %1349 = vmatmul.mubr.f32.gmra.mrb[0].mxu0 %v14
  %v1350 = vpop.f32.mrb[0].mxu0
  %v1351 = vadd.f32 %v1061, %v1350
  %v1352 = vpop.f32.mrb[0].mxu0
  %v1353 = vadd.f32 %v1065, %v1352
  %1354 = vmatprep.mubr.f32.mxu0 %v19
  %1355 = vmatmul.mubr.f32.gmra.mrb[0].mxu0 %v18
  %v1356 = vpop.f32.mrb[0].mxu0
  %v1357 = vadd.f32 %v1061, %v1356
  %v1358 = vpop.f32.mrb[0].mxu0
  %v1359 = vadd.f32 %v1065, %v1358
  %1360 = vdwg.mxu0
  %1361 = vmatprep.subr.mxu0 %v537
  %1362 = vmatpush1.msra.mxu0 %v536
  %1363 = vmatprep.subr.mxu0 %v553
  %1364 = vmatpush1.msra.mxu0 %v552
  %1365 = vmatprep.subr.mxu0 %v569
  %1366 = vmatpush1.msra.mxu0 %v568
  %1367 = vmatprep.subr.mxu0 %v585
  %1368 = vmatpush1.msra.mxu0 %v584
  %1369 = vmatprep.subr.mxu0 %v601
  %1370 = vmatpush1.msra.mxu0 %v600
  %1371 = vmatprep.subr.mxu0 %v617
  %1372 = vmatpush1.msra.mxu0 %v616
  %1373 = vmatprep.subr.mxu0 %v633
  %1374 = vmatpush1.msra.mxu0 %v632
  %1375 = vmatprep.subr.mxu0 %v649
  %1376 = vmatpush1.msra.mxu0 %v648
  %1377 = vmatprep.subr.mxu0 %v665
  %1378 = vmatpush1.msra.mxu0 %v664
  %1379 = vmatprep.subr.mxu0 %v681
  %1380 = vmatpush1.msra.mxu0 %v680
  %1381 = vmatprep.subr.mxu0 %v697
  %1382 = vmatpush1.msra.mxu0 %v696
  %1383 = vmatprep.subr.mxu0 %v713
  %1384 = vmatpush1.msra.mxu0 %v712
  %1385 = vmatprep.subr.mxu0 %v729
  %1386 = vmatpush1.msra.mxu0 %v728
  %1387 = vmatprep.subr.mxu0 %v745
  %1388 = vmatpush1.msra.mxu0 %v744
  %1389 = vmatprep.subr.mxu0 %v761
  %1390 = vmatpush1.msra.mxu0 %v760
  %1391 = vmatprep.subr.mxu0 %v777
  %1392 = vmatpush1.msra.mxu0 %v776
  %1393 = vmatprep.subr.mxu0 %v793
  %1394 = vmatpush1.msra.mxu0 %v792
  %1395 = vmatprep.subr.mxu0 %v809
  %1396 = vmatpush1.msra.mxu0 %v808
  %1397 = vmatprep.subr.mxu0 %v825
  %1398 = vmatpush1.msra.mxu0 %v824
  %1399 = vmatprep.subr.mxu0 %v841
  %1400 = vmatpush1.msra.mxu0 %v840
  %1401 = vmatprep.subr.mxu0 %v857
  %1402 = vmatpush1.msra.mxu0 %v856
  %1403 = vmatprep.subr.mxu0 %v873
  %1404 = vmatpush1.msra.mxu0 %v872
  %1405 = vmatprep.subr.mxu0 %v889
  %1406 = vmatpush1.msra.mxu0 %v888
  %1407 = vmatprep.subr.mxu0 %v905
  %1408 = vmatpush1.msra.mxu0 %v904
  %1409 = vmatprep.subr.mxu0 %v921
  %1410 = vmatpush1.msra.mxu0 %v920
  %1411 = vmatprep.subr.mxu0 %v937
  %1412 = vmatpush1.msra.mxu0 %v936
  %1413 = vmatprep.subr.mxu0 %v953
  %1414 = vmatpush1.msra.mxu0 %v952
  %1415 = vmatprep.subr.mxu0 %v969
  %1416 = vmatpush1.msra.mxu0 %v968
  %1417 = vmatprep.subr.mxu0 %v985
  %1418 = vmatpush1.msra.mxu0 %v984
  %1419 = vmatprep.subr.mxu0 %v1001
  %1420 = vmatpush1.msra.mxu0 %v1000
  %1421 = vmatprep.subr.mxu0 %v1017
  %1422 = vmatpush1.msra.mxu0 %v1016
  %1423 = vmatprep.subr.mxu0 %v1033
  %1424 = vmatpush1.msra.mxu0 %v1032
  %1425 = vmatprep.mubr.f32.mxu0 %v17
  %1426 = vmatmul.mubr.f32.gmra.mrb[0].mxu0 %v16
  %v1427 = vpop.f32.mrb[0].mxu0
  %v1428 = vadd.f32 %v1351, %v1427
  %v1429 = vpop.f32.mrb[0].mxu0
  %v1430 = vadd.f32 %v1353, %v1429
  %1431 = vmatprep.mubr.f32.mxu0 %v21
  %1432 = vmatmul.mubr.f32.gmra.mrb[0].mxu0 %v20
  %v1433 = vpop.f32.mrb[0].mxu0
  %v1434 = vadd.f32 %v1357, %v1433
  %v1435 = vpop.f32.mrb[0].mxu0
  %v1436 = vadd.f32 %v1359, %v1435
  %1437 = vdwg.mxu0
  %1438 = vmatprep.subr.mxu0 %v27
  %1439 = vmatpush1.msra.mxu0 %v26
  %1440 = vmatprep.subr.mxu0 %v43
  %1441 = vmatpush1.msra.mxu0 %v42
  %1442 = vmatprep.subr.mxu0 %v59
  %1443 = vmatpush1.msra.mxu0 %v58
  %1444 = vmatprep.subr.mxu0 %v75
  %1445 = vmatpush1.msra.mxu0 %v74
  %1446 = vmatprep.subr.mxu0 %v91
  %1447 = vmatpush1.msra.mxu0 %v90
  %1448 = vmatprep.subr.mxu0 %v107
  %1449 = vmatpush1.msra.mxu0 %v106
  %1450 = vmatprep.subr.mxu0 %v123
  %1451 = vmatpush1.msra.mxu0 %v122
  %1452 = vmatprep.subr.mxu0 %v139
  %1453 = vmatpush1.msra.mxu0 %v138
  %1454 = vmatprep.subr.mxu0 %v155
  %1455 = vmatpush1.msra.mxu0 %v154
  %1456 = vmatprep.subr.mxu0 %v171
  %1457 = vmatpush1.msra.mxu0 %v170
  %1458 = vmatprep.subr.mxu0 %v187
  %1459 = vmatpush1.msra.mxu0 %v186
  %1460 = vmatprep.subr.mxu0 %v203
  %1461 = vmatpush1.msra.mxu0 %v202
  %1462 = vmatprep.subr.mxu0 %v219
  %1463 = vmatpush1.msra.mxu0 %v218
  %1464 = vmatprep.subr.mxu0 %v235
  %1465 = vmatpush1.msra.mxu0 %v234
  %1466 = vmatprep.subr.mxu0 %v251
  %1467 = vmatpush1.msra.mxu0 %v250
  %1468 = vmatprep.subr.mxu0 %v267
  %1469 = vmatpush1.msra.mxu0 %v266
  %1470 = vmatprep.subr.mxu0 %v283
  %1471 = vmatpush1.msra.mxu0 %v282
  %1472 = vmatprep.subr.mxu0 %v299
  %1473 = vmatpush1.msra.mxu0 %v298
  %1474 = vmatprep.subr.mxu0 %v315
  %1475 = vmatpush1.msra.mxu0 %v314
  %1476 = vmatprep.subr.mxu0 %v331
  %1477 = vmatpush1.msra.mxu0 %v330
  %1478 = vmatprep.subr.mxu0 %v347
  %1479 = vmatpush1.msra.mxu0 %v346
  %1480 = vmatprep.subr.mxu0 %v363
  %1481 = vmatpush1.msra.mxu0 %v362
  %1482 = vmatprep.subr.mxu0 %v379
  %1483 = vmatpush1.msra.mxu0 %v378
  %1484 = vmatprep.subr.mxu0 %v395
  %1485 = vmatpush1.msra.mxu0 %v394
  %1486 = vmatprep.subr.mxu0 %v411
  %1487 = vmatpush1.msra.mxu0 %v410
  %1488 = vmatprep.subr.mxu0 %v427
  %1489 = vmatpush1.msra.mxu0 %v426
  %1490 = vmatprep.subr.mxu0 %v443
  %1491 = vmatpush1.msra.mxu0 %v442
  %1492 = vmatprep.subr.mxu0 %v459
  %1493 = vmatpush1.msra.mxu0 %v458
  %1494 = vmatprep.subr.mxu0 %v475
  %1495 = vmatpush1.msra.mxu0 %v474
  %1496 = vmatprep.subr.mxu0 %v491
  %1497 = vmatpush1.msra.mxu0 %v490
  %1498 = vmatprep.subr.mxu0 %v507
  %1499 = vmatpush1.msra.mxu0 %v506
  %1500 = vmatprep.subr.mxu0 %v523
  %1501 = vmatpush1.msra.mxu0 %v522
  %1502 = vmatprep.mubr.f32.mxu0 %v15
  %1503 = vmatmul.mubr.f32.gmra.mrb[0].mxu0 %v14
  %v1504 = vpop.f32.mrb[0].mxu0
  %v1505 = vadd.f32 %v1069, %v1504
  %v1506 = vpop.f32.mrb[0].mxu0
  %v1507 = vadd.f32 %v1073, %v1506
  %1508 = vmatprep.mubr.f32.mxu0 %v19
  %1509 = vmatmul.mubr.f32.gmra.mrb[0].mxu0 %v18
  %v1510 = vpop.f32.mrb[0].mxu0
  %v1511 = vadd.f32 %v1069, %v1510
  %v1512 = vpop.f32.mrb[0].mxu0
  %v1513 = vadd.f32 %v1073, %v1512
  %1514 = vdwg.mxu0
  %1515 = vmatprep.subr.mxu0 %v539
  %1516 = vmatpush1.msra.mxu0 %v538
  %1517 = vmatprep.subr.mxu0 %v555
  %1518 = vmatpush1.msra.mxu0 %v554
  %1519 = vmatprep.subr.mxu0 %v571
  %1520 = vmatpush1.msra.mxu0 %v570
  %1521 = vmatprep.subr.mxu0 %v587
  %1522 = vmatpush1.msra.mxu0 %v586
  %1523 = vmatprep.subr.mxu0 %v603
  %1524 = vmatpush1.msra.mxu0 %v602
  %1525 = vmatprep.subr.mxu0 %v619
  %1526 = vmatpush1.msra.mxu0 %v618
  %1527 = vmatprep.subr.mxu0 %v635
  %1528 = vmatpush1.msra.mxu0 %v634
  %1529 = vmatprep.subr.mxu0 %v651
  %1530 = vmatpush1.msra.mxu0 %v650
  %1531 = vmatprep.subr.mxu0 %v667
  %1532 = vmatpush1.msra.mxu0 %v666
  %1533 = vmatprep.subr.mxu0 %v683
  %1534 = vmatpush1.msra.mxu0 %v682
  %1535 = vmatprep.subr.mxu0 %v699
  %1536 = vmatpush1.msra.mxu0 %v698
  %1537 = vmatprep.subr.mxu0 %v715
  %1538 = vmatpush1.msra.mxu0 %v714
  %1539 = vmatprep.subr.mxu0 %v731
  %1540 = vmatpush1.msra.mxu0 %v730
  %1541 = vmatprep.subr.mxu0 %v747
  %1542 = vmatpush1.msra.mxu0 %v746
  %1543 = vmatprep.subr.mxu0 %v763
  %1544 = vmatpush1.msra.mxu0 %v762
  %1545 = vmatprep.subr.mxu0 %v779
  %1546 = vmatpush1.msra.mxu0 %v778
  %1547 = vmatprep.subr.mxu0 %v795
  %1548 = vmatpush1.msra.mxu0 %v794
  %1549 = vmatprep.subr.mxu0 %v811
  %1550 = vmatpush1.msra.mxu0 %v810
  %1551 = vmatprep.subr.mxu0 %v827
  %1552 = vmatpush1.msra.mxu0 %v826
  %1553 = vmatprep.subr.mxu0 %v843
  %1554 = vmatpush1.msra.mxu0 %v842
  %1555 = vmatprep.subr.mxu0 %v859
  %1556 = vmatpush1.msra.mxu0 %v858
  %1557 = vmatprep.subr.mxu0 %v875
  %1558 = vmatpush1.msra.mxu0 %v874
  %1559 = vmatprep.subr.mxu0 %v891
  %1560 = vmatpush1.msra.mxu0 %v890
  %1561 = vmatprep.subr.mxu0 %v907
  %1562 = vmatpush1.msra.mxu0 %v906
  %1563 = vmatprep.subr.mxu0 %v923
  %1564 = vmatpush1.msra.mxu0 %v922
  %1565 = vmatprep.subr.mxu0 %v939
  %1566 = vmatpush1.msra.mxu0 %v938
  %1567 = vmatprep.subr.mxu0 %v955
  %1568 = vmatpush1.msra.mxu0 %v954
  %1569 = vmatprep.subr.mxu0 %v971
  %1570 = vmatpush1.msra.mxu0 %v970
  %1571 = vmatprep.subr.mxu0 %v987
  %1572 = vmatpush1.msra.mxu0 %v986
  %1573 = vmatprep.subr.mxu0 %v1003
  %1574 = vmatpush1.msra.mxu0 %v1002
  %1575 = vmatprep.subr.mxu0 %v1019
  %1576 = vmatpush1.msra.mxu0 %v1018
  %1577 = vmatprep.subr.mxu0 %v1035
  %1578 = vmatpush1.msra.mxu0 %v1034
  %1579 = vmatprep.mubr.f32.mxu0 %v17
  %1580 = vmatmul.mubr.f32.gmra.mrb[0].mxu0 %v16
  %v1581 = vpop.f32.mrb[0].mxu0
  %v1582 = vadd.f32 %v1505, %v1581
  %v1583 = vpop.f32.mrb[0].mxu0
  %v1584 = vadd.f32 %v1507, %v1583
  %1585 = vmatprep.mubr.f32.mxu0 %v21
  %1586 = vmatmul.mubr.f32.gmra.mrb[0].mxu0 %v20
  %v1587 = vpop.f32.mrb[0].mxu0
  %v1588 = vadd.f32 %v1511, %v1587
  %v1589 = vpop.f32.mrb[0].mxu0
  %v1590 = vadd.f32 %v1513, %v1589
  %1591 = vdwg.mxu0
  %1592 = vmatprep.subr.mxu0 %v29
  %1593 = vmatpush1.msra.mxu0 %v28
  %1594 = vmatprep.subr.mxu0 %v45
  %1595 = vmatpush1.msra.mxu0 %v44
  %1596 = vmatprep.subr.mxu0 %v61
  %1597 = vmatpush1.msra.mxu0 %v60
  %1598 = vmatprep.subr.mxu0 %v77
  %1599 = vmatpush1.msra.mxu0 %v76
  %1600 = vmatprep.subr.mxu0 %v93
  %1601 = vmatpush1.msra.mxu0 %v92
  %1602 = vmatprep.subr.mxu0 %v109
  %1603 = vmatpush1.msra.mxu0 %v108
  %1604 = vmatprep.subr.mxu0 %v125
  %1605 = vmatpush1.msra.mxu0 %v124
  %1606 = vmatprep.subr.mxu0 %v141
  %1607 = vmatpush1.msra.mxu0 %v140
  %1608 = vmatprep.subr.mxu0 %v157
  %1609 = vmatpush1.msra.mxu0 %v156
  %1610 = vmatprep.subr.mxu0 %v173
  %1611 = vmatpush1.msra.mxu0 %v172
  %1612 = vmatprep.subr.mxu0 %v189
  %1613 = vmatpush1.msra.mxu0 %v188
  %1614 = vmatprep.subr.mxu0 %v205
  %1615 = vmatpush1.msra.mxu0 %v204
  %1616 = vmatprep.subr.mxu0 %v221
  %1617 = vmatpush1.msra.mxu0 %v220
  %1618 = vmatprep.subr.mxu0 %v237
  %1619 = vmatpush1.msra.mxu0 %v236
  %1620 = vmatprep.subr.mxu0 %v253
  %1621 = vmatpush1.msra.mxu0 %v252
  %1622 = vmatprep.subr.mxu0 %v269
  %1623 = vmatpush1.msra.mxu0 %v268
  %1624 = vmatprep.subr.mxu0 %v285
  %1625 = vmatpush1.msra.mxu0 %v284
  %1626 = vmatprep.subr.mxu0 %v301
  %1627 = vmatpush1.msra.mxu0 %v300
  %1628 = vmatprep.subr.mxu0 %v317
  %1629 = vmatpush1.msra.mxu0 %v316
  %1630 = vmatprep.subr.mxu0 %v333
  %1631 = vmatpush1.msra.mxu0 %v332
  %1632 = vmatprep.subr.mxu0 %v349
  %1633 = vmatpush1.msra.mxu0 %v348
  %1634 = vmatprep.subr.mxu0 %v365
  %1635 = vmatpush1.msra.mxu0 %v364
  %1636 = vmatprep.subr.mxu0 %v381
  %1637 = vmatpush1.msra.mxu0 %v380
  %1638 = vmatprep.subr.mxu0 %v397
  %1639 = vmatpush1.msra.mxu0 %v396
  %1640 = vmatprep.subr.mxu0 %v413
  %1641 = vmatpush1.msra.mxu0 %v412
  %1642 = vmatprep.subr.mxu0 %v429
  %1643 = vmatpush1.msra.mxu0 %v428
  %1644 = vmatprep.subr.mxu0 %v445
  %1645 = vmatpush1.msra.mxu0 %v444
  %1646 = vmatprep.subr.mxu0 %v461
  %1647 = vmatpush1.msra.mxu0 %v460
  %1648 = vmatprep.subr.mxu0 %v477
  %1649 = vmatpush1.msra.mxu0 %v476
  %1650 = vmatprep.subr.mxu0 %v493
  %1651 = vmatpush1.msra.mxu0 %v492
  %1652 = vmatprep.subr.mxu0 %v509
  %1653 = vmatpush1.msra.mxu0 %v508
  %1654 = vmatprep.subr.mxu0 %v525
  %1655 = vmatpush1.msra.mxu0 %v524
  %1656 = vmatprep.mubr.f32.mxu0 %v15
  %1657 = vmatmul.mubr.f32.gmra.mrb[0].mxu0 %v14
  %v1658 = vpop.f32.mrb[0].mxu0
  %v1659 = vadd.f32 %v1077, %v1658
  %v1660 = vpop.f32.mrb[0].mxu0
  %v1661 = vadd.f32 %v1081, %v1660
  %1662 = vmatprep.mubr.f32.mxu0 %v19
  %1663 = vmatmul.mubr.f32.gmra.mrb[0].mxu0 %v18
  %v1664 = vpop.f32.mrb[0].mxu0
  %v1665 = vadd.f32 %v1077, %v1664
  %v1666 = vpop.f32.mrb[0].mxu0
  %v1667 = vadd.f32 %v1081, %v1666
  %1668 = vdwg.mxu0
  %1669 = vmatprep.subr.mxu0 %v541
  %1670 = vmatpush1.msra.mxu0 %v540
  %1671 = vmatprep.subr.mxu0 %v557
  %1672 = vmatpush1.msra.mxu0 %v556
  %1673 = vmatprep.subr.mxu0 %v573
  %1674 = vmatpush1.msra.mxu0 %v572
  %1675 = vmatprep.subr.mxu0 %v589
  %1676 = vmatpush1.msra.mxu0 %v588
  %1677 = vmatprep.subr.mxu0 %v605
  %1678 = vmatpush1.msra.mxu0 %v604
  %1679 = vmatprep.subr.mxu0 %v621
  %1680 = vmatpush1.msra.mxu0 %v620
  %1681 = vmatprep.subr.mxu0 %v637
  %1682 = vmatpush1.msra.mxu0 %v636
  %1683 = vmatprep.subr.mxu0 %v653
  %1684 = vmatpush1.msra.mxu0 %v652
  %1685 = vmatprep.subr.mxu0 %v669
  %1686 = vmatpush1.msra.mxu0 %v668
  %1687 = vmatprep.subr.mxu0 %v685
  %1688 = vmatpush1.msra.mxu0 %v684
  %1689 = vmatprep.subr.mxu0 %v701
  %1690 = vmatpush1.msra.mxu0 %v700
  %1691 = vmatprep.subr.mxu0 %v717
  %1692 = vmatpush1.msra.mxu0 %v716
  %1693 = vmatprep.subr.mxu0 %v733
  %1694 = vmatpush1.msra.mxu0 %v732
  %1695 = vmatprep.subr.mxu0 %v749
  %1696 = vmatpush1.msra.mxu0 %v748
  %1697 = vmatprep.subr.mxu0 %v765
  %1698 = vmatpush1.msra.mxu0 %v764
  %1699 = vmatprep.subr.mxu0 %v781
  %1700 = vmatpush1.msra.mxu0 %v780
  %1701 = vmatprep.subr.mxu0 %v797
  %1702 = vmatpush1.msra.mxu0 %v796
  %1703 = vmatprep.subr.mxu0 %v813
  %1704 = vmatpush1.msra.mxu0 %v812
  %1705 = vmatprep.subr.mxu0 %v829
  %1706 = vmatpush1.msra.mxu0 %v828
  %1707 = vmatprep.subr.mxu0 %v845
  %1708 = vmatpush1.msra.mxu0 %v844
  %1709 = vmatprep.subr.mxu0 %v861
  %1710 = vmatpush1.msra.mxu0 %v860
  %1711 = vmatprep.subr.mxu0 %v877
  %1712 = vmatpush1.msra.mxu0 %v876
  %1713 = vmatprep.subr.mxu0 %v893
  %1714 = vmatpush1.msra.mxu0 %v892
  %1715 = vmatprep.subr.mxu0 %v909
  %1716 = vmatpush1.msra.mxu0 %v908
  %1717 = vmatprep.subr.mxu0 %v925
  %1718 = vmatpush1.msra.mxu0 %v924
  %1719 = vmatprep.subr.mxu0 %v941
  %1720 = vmatpush1.msra.mxu0 %v940
  %1721 = vmatprep.subr.mxu0 %v957
  %1722 = vmatpush1.msra.mxu0 %v956
  %1723 = vmatprep.subr.mxu0 %v973
  %1724 = vmatpush1.msra.mxu0 %v972
  %1725 = vmatprep.subr.mxu0 %v989
  %1726 = vmatpush1.msra.mxu0 %v988
  %1727 = vmatprep.subr.mxu0 %v1005
  %1728 = vmatpush1.msra.mxu0 %v1004
  %1729 = vmatprep.subr.mxu0 %v1021
  %1730 = vmatpush1.msra.mxu0 %v1020
  %1731 = vmatprep.subr.mxu0 %v1037
  %1732 = vmatpush1.msra.mxu0 %v1036
  %1733 = vmatprep.mubr.f32.mxu0 %v17
  %1734 = vmatmul.mubr.f32.gmra.mrb[0].mxu0 %v16
  %v1735 = vpop.f32.mrb[0].mxu0
  %v1736 = vadd.f32 %v1659, %v1735
  %v1737 = vpop.f32.mrb[0].mxu0
  %v1738 = vadd.f32 %v1661, %v1737
  %1739 = vmatprep.mubr.f32.mxu0 %v21
  %1740 = vmatmul.mubr.f32.gmra.mrb[0].mxu0 %v20
  %v1741 = vpop.f32.mrb[0].mxu0
  %v1742 = vadd.f32 %v1665, %v1741
  %v1743 = vpop.f32.mrb[0].mxu0
  %v1744 = vadd.f32 %v1667, %v1743
  %1745 = vdwg.mxu0
  %1746 = vmatprep.subr.mxu0 %v31
  %1747 = vmatpush1.msra.mxu0 %v30
  %1748 = vmatprep.subr.mxu0 %v47
  %1749 = vmatpush1.msra.mxu0 %v46
  %1750 = vmatprep.subr.mxu0 %v63
  %1751 = vmatpush1.msra.mxu0 %v62
  %1752 = vmatprep.subr.mxu0 %v79
  %1753 = vmatpush1.msra.mxu0 %v78
  %1754 = vmatprep.subr.mxu0 %v95
  %1755 = vmatpush1.msra.mxu0 %v94
  %1756 = vmatprep.subr.mxu0 %v111
  %1757 = vmatpush1.msra.mxu0 %v110
  %1758 = vmatprep.subr.mxu0 %v127
  %1759 = vmatpush1.msra.mxu0 %v126
  %1760 = vmatprep.subr.mxu0 %v143
  %1761 = vmatpush1.msra.mxu0 %v142
  %1762 = vmatprep.subr.mxu0 %v159
  %1763 = vmatpush1.msra.mxu0 %v158
  %1764 = vmatprep.subr.mxu0 %v175
  %1765 = vmatpush1.msra.mxu0 %v174
  %1766 = vmatprep.subr.mxu0 %v191
  %1767 = vmatpush1.msra.mxu0 %v190
  %1768 = vmatprep.subr.mxu0 %v207
  %1769 = vmatpush1.msra.mxu0 %v206
  %1770 = vmatprep.subr.mxu0 %v223
  %1771 = vmatpush1.msra.mxu0 %v222
  %1772 = vmatprep.subr.mxu0 %v239
  %1773 = vmatpush1.msra.mxu0 %v238
  %1774 = vmatprep.subr.mxu0 %v255
  %1775 = vmatpush1.msra.mxu0 %v254
  %1776 = vmatprep.subr.mxu0 %v271
  %1777 = vmatpush1.msra.mxu0 %v270
  %1778 = vmatprep.subr.mxu0 %v287
  %1779 = vmatpush1.msra.mxu0 %v286
  %1780 = vmatprep.subr.mxu0 %v303
  %1781 = vmatpush1.msra.mxu0 %v302
  %1782 = vmatprep.subr.mxu0 %v319
  %1783 = vmatpush1.msra.mxu0 %v318
  %1784 = vmatprep.subr.mxu0 %v335
  %1785 = vmatpush1.msra.mxu0 %v334
  %1786 = vmatprep.subr.mxu0 %v351
  %1787 = vmatpush1.msra.mxu0 %v350
  %1788 = vmatprep.subr.mxu0 %v367
  %1789 = vmatpush1.msra.mxu0 %v366
  %1790 = vmatprep.subr.mxu0 %v383
  %1791 = vmatpush1.msra.mxu0 %v382
  %1792 = vmatprep.subr.mxu0 %v399
  %1793 = vmatpush1.msra.mxu0 %v398
  %1794 = vmatprep.subr.mxu0 %v415
  %1795 = vmatpush1.msra.mxu0 %v414
  %1796 = vmatprep.subr.mxu0 %v431
  %1797 = vmatpush1.msra.mxu0 %v430
  %1798 = vmatprep.subr.mxu0 %v447
  %1799 = vmatpush1.msra.mxu0 %v446
  %1800 = vmatprep.subr.mxu0 %v463
  %1801 = vmatpush1.msra.mxu0 %v462
  %1802 = vmatprep.subr.mxu0 %v479
  %1803 = vmatpush1.msra.mxu0 %v478
  %1804 = vmatprep.subr.mxu0 %v495
  %1805 = vmatpush1.msra.mxu0 %v494
  %1806 = vmatprep.subr.mxu0 %v511
  %1807 = vmatpush1.msra.mxu0 %v510
  %1808 = vmatprep.subr.mxu0 %v527
  %1809 = vmatpush1.msra.mxu0 %v526
  %1810 = vmatprep.mubr.f32.mxu0 %v15
  %1811 = vmatmul.mubr.f32.gmra.mrb[0].mxu0 %v14
  %v1812 = vpop.f32.mrb[0].mxu0
  %v1813 = vadd.f32 %v1085, %v1812
  %v1814 = vpop.f32.mrb[0].mxu0
  %v1815 = vadd.f32 %v1089, %v1814
  %1816 = vmatprep.mubr.f32.mxu0 %v19
  %1817 = vmatmul.mubr.f32.gmra.mrb[0].mxu0 %v18
  %v1818 = vpop.f32.mrb[0].mxu0
  %v1819 = vadd.f32 %v1085, %v1818
  %v1820 = vpop.f32.mrb[0].mxu0
  %v1821 = vadd.f32 %v1089, %v1820
  %1822 = vdwg.mxu0
  %1823 = vmatprep.subr.mxu0 %v543
  %1824 = vmatpush1.msra.mxu0 %v542
  %1825 = vmatprep.subr.mxu0 %v559
  %1826 = vmatpush1.msra.mxu0 %v558
  %1827 = vmatprep.subr.mxu0 %v575
  %1828 = vmatpush1.msra.mxu0 %v574
  %1829 = vmatprep.subr.mxu0 %v591
  %1830 = vmatpush1.msra.mxu0 %v590
  %1831 = vmatprep.subr.mxu0 %v607
  %1832 = vmatpush1.msra.mxu0 %v606
  %1833 = vmatprep.subr.mxu0 %v623
  %1834 = vmatpush1.msra.mxu0 %v622
  %1835 = vmatprep.subr.mxu0 %v639
  %1836 = vmatpush1.msra.mxu0 %v638
  %1837 = vmatprep.subr.mxu0 %v655
  %1838 = vmatpush1.msra.mxu0 %v654
  %1839 = vmatprep.subr.mxu0 %v671
  %1840 = vmatpush1.msra.mxu0 %v670
  %1841 = vmatprep.subr.mxu0 %v687
  %1842 = vmatpush1.msra.mxu0 %v686
  %1843 = vmatprep.subr.mxu0 %v703
  %1844 = vmatpush1.msra.mxu0 %v702
  %1845 = vmatprep.subr.mxu0 %v719
  %1846 = vmatpush1.msra.mxu0 %v718
  %1847 = vmatprep.subr.mxu0 %v735
  %1848 = vmatpush1.msra.mxu0 %v734
  %1849 = vmatprep.subr.mxu0 %v751
  %1850 = vmatpush1.msra.mxu0 %v750
  %1851 = vmatprep.subr.mxu0 %v767
  %1852 = vmatpush1.msra.mxu0 %v766
  %1853 = vmatprep.subr.mxu0 %v783
  %1854 = vmatpush1.msra.mxu0 %v782
  %1855 = vmatprep.subr.mxu0 %v799
  %1856 = vmatpush1.msra.mxu0 %v798
  %1857 = vmatprep.subr.mxu0 %v815
  %1858 = vmatpush1.msra.mxu0 %v814
  %1859 = vmatprep.subr.mxu0 %v831
  %1860 = vmatpush1.msra.mxu0 %v830
  %1861 = vmatprep.subr.mxu0 %v847
  %1862 = vmatpush1.msra.mxu0 %v846
  %1863 = vmatprep.subr.mxu0 %v863
  %1864 = vmatpush1.msra.mxu0 %v862
  %1865 = vmatprep.subr.mxu0 %v879
  %1866 = vmatpush1.msra.mxu0 %v878
  %1867 = vmatprep.subr.mxu0 %v895
  %1868 = vmatpush1.msra.mxu0 %v894
  %1869 = vmatprep.subr.mxu0 %v911
  %1870 = vmatpush1.msra.mxu0 %v910
  %1871 = vmatprep.subr.mxu0 %v927
  %1872 = vmatpush1.msra.mxu0 %v926
  %1873 = vmatprep.subr.mxu0 %v943
  %1874 = vmatpush1.msra.mxu0 %v942
  %1875 = vmatprep.subr.mxu0 %v959
  %1876 = vmatpush1.msra.mxu0 %v958
  %1877 = vmatprep.subr.mxu0 %v975
  %1878 = vmatpush1.msra.mxu0 %v974
  %1879 = vmatprep.subr.mxu0 %v991
  %1880 = vmatpush1.msra.mxu0 %v990
  %1881 = vmatprep.subr.mxu0 %v1007
  %1882 = vmatpush1.msra.mxu0 %v1006
  %1883 = vmatprep.subr.mxu0 %v1023
  %1884 = vmatpush1.msra.mxu0 %v1022
  %1885 = vmatprep.subr.mxu0 %v1039
  %1886 = vmatpush1.msra.mxu0 %v1038
  %1887 = vmatprep.mubr.f32.mxu0 %v17
  %1888 = vmatmul.mubr.f32.gmra.mrb[0].mxu0 %v16
  %v1889 = vpop.f32.mrb[0].mxu0
  %v1890 = vadd.f32 %v1813, %v1889
  %v1891 = vpop.f32.mrb[0].mxu0
  %v1892 = vadd.f32 %v1815, %v1891
  %1893 = vmatprep.mubr.f32.mxu0 %v21
  %1894 = vmatmul.mubr.f32.gmra.mrb[0].mxu0 %v20
  %v1895 = vpop.f32.mrb[0].mxu0
  %v1896 = vadd.f32 %v1819, %v1895
  %v1897 = vpop.f32.mrb[0].mxu0
  %v1898 = vadd.f32 %v1821, %v1897
  %1899 = vdwg.mxu0
  %1900 = vmatprep.subr.mxu0 %v33
  %1901 = vmatpush1.msra.mxu0 %v32
  %1902 = vmatprep.subr.mxu0 %v49
  %1903 = vmatpush1.msra.mxu0 %v48
  %1904 = vmatprep.subr.mxu0 %v65
  %1905 = vmatpush1.msra.mxu0 %v64
  %1906 = vmatprep.subr.mxu0 %v81
  %1907 = vmatpush1.msra.mxu0 %v80
  %1908 = vmatprep.subr.mxu0 %v97
  %1909 = vmatpush1.msra.mxu0 %v96
  %1910 = vmatprep.subr.mxu0 %v113
  %1911 = vmatpush1.msra.mxu0 %v112
  %1912 = vmatprep.subr.mxu0 %v129
  %1913 = vmatpush1.msra.mxu0 %v128
  %1914 = vmatprep.subr.mxu0 %v145
  %1915 = vmatpush1.msra.mxu0 %v144
  %1916 = vmatprep.subr.mxu0 %v161
  %1917 = vmatpush1.msra.mxu0 %v160
  %1918 = vmatprep.subr.mxu0 %v177
  %1919 = vmatpush1.msra.mxu0 %v176
  %1920 = vmatprep.subr.mxu0 %v193
  %1921 = vmatpush1.msra.mxu0 %v192
  %1922 = vmatprep.subr.mxu0 %v209
  %1923 = vmatpush1.msra.mxu0 %v208
  %1924 = vmatprep.subr.mxu0 %v225
  %1925 = vmatpush1.msra.mxu0 %v224
  %1926 = vmatprep.subr.mxu0 %v241
  %1927 = vmatpush1.msra.mxu0 %v240
  %1928 = vmatprep.subr.mxu0 %v257
  %1929 = vmatpush1.msra.mxu0 %v256
  %1930 = vmatprep.subr.mxu0 %v273
  %1931 = vmatpush1.msra.mxu0 %v272
  %1932 = vmatprep.subr.mxu0 %v289
  %1933 = vmatpush1.msra.mxu0 %v288
  %1934 = vmatprep.subr.mxu0 %v305
  %1935 = vmatpush1.msra.mxu0 %v304
  %1936 = vmatprep.subr.mxu0 %v321
  %1937 = vmatpush1.msra.mxu0 %v320
  %1938 = vmatprep.subr.mxu0 %v337
  %1939 = vmatpush1.msra.mxu0 %v336
  %1940 = vmatprep.subr.mxu0 %v353
  %1941 = vmatpush1.msra.mxu0 %v352
  %1942 = vmatprep.subr.mxu0 %v369
  %1943 = vmatpush1.msra.mxu0 %v368
  %1944 = vmatprep.subr.mxu0 %v385
  %1945 = vmatpush1.msra.mxu0 %v384
  %1946 = vmatprep.subr.mxu0 %v401
  %1947 = vmatpush1.msra.mxu0 %v400
  %1948 = vmatprep.subr.mxu0 %v417
  %1949 = vmatpush1.msra.mxu0 %v416
  %1950 = vmatprep.subr.mxu0 %v433
  %1951 = vmatpush1.msra.mxu0 %v432
  %1952 = vmatprep.subr.mxu0 %v449
  %1953 = vmatpush1.msra.mxu0 %v448
  %1954 = vmatprep.subr.mxu0 %v465
  %1955 = vmatpush1.msra.mxu0 %v464
  %1956 = vmatprep.subr.mxu0 %v481
  %1957 = vmatpush1.msra.mxu0 %v480
  %1958 = vmatprep.subr.mxu0 %v497
  %1959 = vmatpush1.msra.mxu0 %v496
  %1960 = vmatprep.subr.mxu0 %v513
  %1961 = vmatpush1.msra.mxu0 %v512
  %1962 = vmatprep.subr.mxu0 %v529
  %1963 = vmatpush1.msra.mxu0 %v528
  %1964 = vmatprep.mubr.f32.mxu0 %v15
  %1965 = vmatmul.mubr.f32.gmra.mrb[0].mxu0 %v14
  %v1966 = vpop.f32.mrb[0].mxu0
  %v1967 = vadd.f32 %v1093, %v1966
  %v1968 = vpop.f32.mrb[0].mxu0
  %v1969 = vadd.f32 %v1097, %v1968
  %1970 = vmatprep.mubr.f32.mxu0 %v19
  %1971 = vmatmul.mubr.f32.gmra.mrb[0].mxu0 %v18
  %v1972 = vpop.f32.mrb[0].mxu0
  %v1973 = vadd.f32 %v1093, %v1972
  %v1974 = vpop.f32.mrb[0].mxu0
  %v1975 = vadd.f32 %v1097, %v1974
  %1976 = vdwg.mxu0
  %1977 = vmatprep.subr.mxu0 %v545
  %1978 = vmatpush1.msra.mxu0 %v544
  %1979 = vmatprep.subr.mxu0 %v561
  %1980 = vmatpush1.msra.mxu0 %v560
  %1981 = vmatprep.subr.mxu0 %v577
  %1982 = vmatpush1.msra.mxu0 %v576
  %1983 = vmatprep.subr.mxu0 %v593
  %1984 = vmatpush1.msra.mxu0 %v592
  %1985 = vmatprep.subr.mxu0 %v609
  %1986 = vmatpush1.msra.mxu0 %v608
  %1987 = vmatprep.subr.mxu0 %v625
  %1988 = vmatpush1.msra.mxu0 %v624
  %1989 = vmatprep.subr.mxu0 %v641
  %1990 = vmatpush1.msra.mxu0 %v640
  %1991 = vmatprep.subr.mxu0 %v657
  %1992 = vmatpush1.msra.mxu0 %v656
  %1993 = vmatprep.subr.mxu0 %v673
  %1994 = vmatpush1.msra.mxu0 %v672
  %1995 = vmatprep.subr.mxu0 %v689
  %1996 = vmatpush1.msra.mxu0 %v688
  %1997 = vmatprep.subr.mxu0 %v705
  %1998 = vmatpush1.msra.mxu0 %v704
  %1999 = vmatprep.subr.mxu0 %v721
  %2000 = vmatpush1.msra.mxu0 %v720
  %2001 = vmatprep.subr.mxu0 %v737
  %2002 = vmatpush1.msra.mxu0 %v736
  %2003 = vmatprep.subr.mxu0 %v753
  %2004 = vmatpush1.msra.mxu0 %v752
  %2005 = vmatprep.subr.mxu0 %v769
  %2006 = vmatpush1.msra.mxu0 %v768
  %2007 = vmatprep.subr.mxu0 %v785
  %2008 = vmatpush1.msra.mxu0 %v784
  %2009 = vmatprep.subr.mxu0 %v801
  %2010 = vmatpush1.msra.mxu0 %v800
  %2011 = vmatprep.subr.mxu0 %v817
  %2012 = vmatpush1.msra.mxu0 %v816
  %2013 = vmatprep.subr.mxu0 %v833
  %2014 = vmatpush1.msra.mxu0 %v832
  %2015 = vmatprep.subr.mxu0 %v849
  %2016 = vmatpush1.msra.mxu0 %v848
  %2017 = vmatprep.subr.mxu0 %v865
  %2018 = vmatpush1.msra.mxu0 %v864
  %2019 = vmatprep.subr.mxu0 %v881
  %2020 = vmatpush1.msra.mxu0 %v880
  %2021 = vmatprep.subr.mxu0 %v897
  %2022 = vmatpush1.msra.mxu0 %v896
  %2023 = vmatprep.subr.mxu0 %v913
  %2024 = vmatpush1.msra.mxu0 %v912
  %2025 = vmatprep.subr.mxu0 %v929
  %2026 = vmatpush1.msra.mxu0 %v928
  %2027 = vmatprep.subr.mxu0 %v945
  %2028 = vmatpush1.msra.mxu0 %v944
  %2029 = vmatprep.subr.mxu0 %v961
  %2030 = vmatpush1.msra.mxu0 %v960
  %2031 = vmatprep.subr.mxu0 %v977
  %2032 = vmatpush1.msra.mxu0 %v976
  %2033 = vmatprep.subr.mxu0 %v993
  %2034 = vmatpush1.msra.mxu0 %v992
  %2035 = vmatprep.subr.mxu0 %v1009
  %2036 = vmatpush1.msra.mxu0 %v1008
  %2037 = vmatprep.subr.mxu0 %v1025
  %2038 = vmatpush1.msra.mxu0 %v1024
  %2039 = vmatprep.subr.mxu0 %v1041
  %2040 = vmatpush1.msra.mxu0 %v1040
  %2041 = vmatprep.mubr.f32.mxu0 %v17
  %2042 = vmatmul.mubr.f32.gmra.mrb[0].mxu0 %v16
  %v2043 = vpop.f32.mrb[0].mxu0
  %v2044 = vadd.f32 %v1967, %v2043
  %v2045 = vpop.f32.mrb[0].mxu0
  %v2046 = vadd.f32 %v1969, %v2045
  %2047 = vmatprep.mubr.f32.mxu0 %v21
  %2048 = vmatmul.mubr.f32.gmra.mrb[0].mxu0 %v20
  %v2049 = vpop.f32.mrb[0].mxu0
  %v2050 = vadd.f32 %v1973, %v2049
  %v2051 = vpop.f32.mrb[0].mxu0
  %v2052 = vadd.f32 %v1975, %v2051
  %2053 = vdwg.mxu0
  %2054 = vmatprep.subr.mxu0 %v35
  %2055 = vmatpush1.msra.mxu0 %v34
  %2056 = vmatprep.subr.mxu0 %v51
  %2057 = vmatpush1.msra.mxu0 %v50
  %2058 = vmatprep.subr.mxu0 %v67
  %2059 = vmatpush1.msra.mxu0 %v66
  %2060 = vmatprep.subr.mxu0 %v83
  %2061 = vmatpush1.msra.mxu0 %v82
  %2062 = vmatprep.subr.mxu0 %v99
  %2063 = vmatpush1.msra.mxu0 %v98
  %2064 = vmatprep.subr.mxu0 %v115
  %2065 = vmatpush1.msra.mxu0 %v114
  %2066 = vmatprep.subr.mxu0 %v131
  %2067 = vmatpush1.msra.mxu0 %v130
  %2068 = vmatprep.subr.mxu0 %v147
  %2069 = vmatpush1.msra.mxu0 %v146
  %2070 = vmatprep.subr.mxu0 %v163
  %2071 = vmatpush1.msra.mxu0 %v162
  %2072 = vmatprep.subr.mxu0 %v179
  %2073 = vmatpush1.msra.mxu0 %v178
  %2074 = vmatprep.subr.mxu0 %v195
  %2075 = vmatpush1.msra.mxu0 %v194
  %2076 = vmatprep.subr.mxu0 %v211
  %2077 = vmatpush1.msra.mxu0 %v210
  %2078 = vmatprep.subr.mxu0 %v227
  %2079 = vmatpush1.msra.mxu0 %v226
  %2080 = vmatprep.subr.mxu0 %v243
  %2081 = vmatpush1.msra.mxu0 %v242
  %2082 = vmatprep.subr.mxu0 %v259
  %2083 = vmatpush1.msra.mxu0 %v258
  %2084 = vmatprep.subr.mxu0 %v275
  %2085 = vmatpush1.msra.mxu0 %v274
  %2086 = vmatprep.subr.mxu0 %v291
  %2087 = vmatpush1.msra.mxu0 %v290
  %2088 = vmatprep.subr.mxu0 %v307
  %2089 = vmatpush1.msra.mxu0 %v306
  %2090 = vmatprep.subr.mxu0 %v323
  %2091 = vmatpush1.msra.mxu0 %v322
  %2092 = vmatprep.subr.mxu0 %v339
  %2093 = vmatpush1.msra.mxu0 %v338
  %2094 = vmatprep.subr.mxu0 %v355
  %2095 = vmatpush1.msra.mxu0 %v354
  %2096 = vmatprep.subr.mxu0 %v371
  %2097 = vmatpush1.msra.mxu0 %v370
  %2098 = vmatprep.subr.mxu0 %v387
  %2099 = vmatpush1.msra.mxu0 %v386
  %2100 = vmatprep.subr.mxu0 %v403
  %2101 = vmatpush1.msra.mxu0 %v402
  %2102 = vmatprep.subr.mxu0 %v419
  %2103 = vmatpush1.msra.mxu0 %v418
  %2104 = vmatprep.subr.mxu0 %v435
  %2105 = vmatpush1.msra.mxu0 %v434
  %2106 = vmatprep.subr.mxu0 %v451
  %2107 = vmatpush1.msra.mxu0 %v450
  %2108 = vmatprep.subr.mxu0 %v467
  %2109 = vmatpush1.msra.mxu0 %v466
  %2110 = vmatprep.subr.mxu0 %v483
  %2111 = vmatpush1.msra.mxu0 %v482
  %2112 = vmatprep.subr.mxu0 %v499
  %2113 = vmatpush1.msra.mxu0 %v498
  %2114 = vmatprep.subr.mxu0 %v515
  %2115 = vmatpush1.msra.mxu0 %v514
  %2116 = vmatprep.subr.mxu0 %v531
  %2117 = vmatpush1.msra.mxu0 %v530
  %2118 = vmatprep.mubr.f32.mxu0 %v15
  %2119 = vmatmul.mubr.f32.gmra.mrb[0].mxu0 %v14
  %v2120 = vpop.f32.mrb[0].mxu0
  %v2121 = vadd.f32 %v1101, %v2120
  %v2122 = vpop.f32.mrb[0].mxu0
  %v2123 = vadd.f32 %v1105, %v2122
  %2124 = vmatprep.mubr.f32.mxu0 %v19
  %2125 = vmatmul.mubr.f32.gmra.mrb[0].mxu0 %v18
  %v2126 = vpop.f32.mrb[0].mxu0
  %v2127 = vadd.f32 %v1101, %v2126
  %v2128 = vpop.f32.mrb[0].mxu0
  %v2129 = vadd.f32 %v1105, %v2128
  %2130 = vdwg.mxu0
  %2131 = vmatprep.subr.mxu0 %v547
  %2132 = vmatpush1.msra.mxu0 %v546
  %2133 = vmatprep.subr.mxu0 %v563
  %2134 = vmatpush1.msra.mxu0 %v562
  %2135 = vmatprep.subr.mxu0 %v579
  %2136 = vmatpush1.msra.mxu0 %v578
  %2137 = vmatprep.subr.mxu0 %v595
  %2138 = vmatpush1.msra.mxu0 %v594
  %2139 = vmatprep.subr.mxu0 %v611
  %2140 = vmatpush1.msra.mxu0 %v610
  %2141 = vmatprep.subr.mxu0 %v627
  %2142 = vmatpush1.msra.mxu0 %v626
  %2143 = vmatprep.subr.mxu0 %v643
  %2144 = vmatpush1.msra.mxu0 %v642
  %2145 = vmatprep.subr.mxu0 %v659
  %2146 = vmatpush1.msra.mxu0 %v658
  %2147 = vmatprep.subr.mxu0 %v675
  %2148 = vmatpush1.msra.mxu0 %v674
  %2149 = vmatprep.subr.mxu0 %v691
  %2150 = vmatpush1.msra.mxu0 %v690
  %2151 = vmatprep.subr.mxu0 %v707
  %2152 = vmatpush1.msra.mxu0 %v706
  %2153 = vmatprep.subr.mxu0 %v723
  %2154 = vmatpush1.msra.mxu0 %v722
  %2155 = vmatprep.subr.mxu0 %v739
  %2156 = vmatpush1.msra.mxu0 %v738
  %2157 = vmatprep.subr.mxu0 %v755
  %2158 = vmatpush1.msra.mxu0 %v754
  %2159 = vmatprep.subr.mxu0 %v771
  %2160 = vmatpush1.msra.mxu0 %v770
  %2161 = vmatprep.subr.mxu0 %v787
  %2162 = vmatpush1.msra.mxu0 %v786
  %2163 = vmatprep.subr.mxu0 %v803
  %2164 = vmatpush1.msra.mxu0 %v802
  %2165 = vmatprep.subr.mxu0 %v819
  %2166 = vmatpush1.msra.mxu0 %v818
  %2167 = vmatprep.subr.mxu0 %v835
  %2168 = vmatpush1.msra.mxu0 %v834
  %2169 = vmatprep.subr.mxu0 %v851
  %2170 = vmatpush1.msra.mxu0 %v850
  %2171 = vmatprep.subr.mxu0 %v867
  %2172 = vmatpush1.msra.mxu0 %v866
  %2173 = vmatprep.subr.mxu0 %v883
  %2174 = vmatpush1.msra.mxu0 %v882
  %2175 = vmatprep.subr.mxu0 %v899
  %2176 = vmatpush1.msra.mxu0 %v898
  %2177 = vmatprep.subr.mxu0 %v915
  %2178 = vmatpush1.msra.mxu0 %v914
  %2179 = vmatprep.subr.mxu0 %v931
  %2180 = vmatpush1.msra.mxu0 %v930
  %2181 = vmatprep.subr.mxu0 %v947
  %2182 = vmatpush1.msra.mxu0 %v946
  %2183 = vmatprep.subr.mxu0 %v963
  %2184 = vmatpush1.msra.mxu0 %v962
  %2185 = vmatprep.subr.mxu0 %v979
  %2186 = vmatpush1.msra.mxu0 %v978
  %2187 = vmatprep.subr.mxu0 %v995
  %2188 = vmatpush1.msra.mxu0 %v994
  %2189 = vmatprep.subr.mxu0 %v1011
  %2190 = vmatpush1.msra.mxu0 %v1010
  %2191 = vmatprep.subr.mxu0 %v1027
  %2192 = vmatpush1.msra.mxu0 %v1026
  %2193 = vmatprep.subr.mxu0 %v1043
  %2194 = vmatpush1.msra.mxu0 %v1042
  %2195 = vmatprep.mubr.f32.mxu0 %v17
  %2196 = vmatmul.mubr.f32.gmra.mrb[0].mxu0 %v16
  %v2197 = vpop.f32.mrb[0].mxu0
  %v2198 = vadd.f32 %v2121, %v2197
  %v2199 = vpop.f32.mrb[0].mxu0
  %v2200 = vadd.f32 %v2123, %v2199
  %2201 = vmatprep.mubr.f32.mxu0 %v21
  %2202 = vmatmul.mubr.f32.gmra.mrb[0].mxu0 %v20
  %v2203 = vpop.f32.mrb[0].mxu0
  %v2204 = vadd.f32 %v2127, %v2203
  %v2205 = vpop.f32.mrb[0].mxu0
  %v2206 = vadd.f32 %v2129, %v2205
  %2207 = vdwg.mxu0
  %2208 = vmatprep.subr.mxu0 %v37
  %2209 = vmatpush1.msra.mxu0 %v36
  %2210 = vmatprep.subr.mxu0 %v53
  %2211 = vmatpush1.msra.mxu0 %v52
  %2212 = vmatprep.subr.mxu0 %v69
  %2213 = vmatpush1.msra.mxu0 %v68
  %2214 = vmatprep.subr.mxu0 %v85
  %2215 = vmatpush1.msra.mxu0 %v84
  %2216 = vmatprep.subr.mxu0 %v101
  %2217 = vmatpush1.msra.mxu0 %v100
  %2218 = vmatprep.subr.mxu0 %v117
  %2219 = vmatpush1.msra.mxu0 %v116
  %2220 = vmatprep.subr.mxu0 %v133
  %2221 = vmatpush1.msra.mxu0 %v132
  %2222 = vmatprep.subr.mxu0 %v149
  %2223 = vmatpush1.msra.mxu0 %v148
  %2224 = vmatprep.subr.mxu0 %v165
  %2225 = vmatpush1.msra.mxu0 %v164
  %2226 = vmatprep.subr.mxu0 %v181
  %2227 = vmatpush1.msra.mxu0 %v180
  %2228 = vmatprep.subr.mxu0 %v197
  %2229 = vmatpush1.msra.mxu0 %v196
  %2230 = vmatprep.subr.mxu0 %v213
  %2231 = vmatpush1.msra.mxu0 %v212
  %2232 = vmatprep.subr.mxu0 %v229
  %2233 = vmatpush1.msra.mxu0 %v228
  %2234 = vmatprep.subr.mxu0 %v245
  %2235 = vmatpush1.msra.mxu0 %v244
  %2236 = vmatprep.subr.mxu0 %v261
  %2237 = vmatpush1.msra.mxu0 %v260
  %2238 = vmatprep.subr.mxu0 %v277
  %2239 = vmatpush1.msra.mxu0 %v276
  %2240 = vmatprep.subr.mxu0 %v293
  %2241 = vmatpush1.msra.mxu0 %v292
  %2242 = vmatprep.subr.mxu0 %v309
  %2243 = vmatpush1.msra.mxu0 %v308
  %2244 = vmatprep.subr.mxu0 %v325
  %2245 = vmatpush1.msra.mxu0 %v324
  %2246 = vmatprep.subr.mxu0 %v341
  %2247 = vmatpush1.msra.mxu0 %v340
  %2248 = vmatprep.subr.mxu0 %v357
  %2249 = vmatpush1.msra.mxu0 %v356
  %2250 = vmatprep.subr.mxu0 %v373
  %2251 = vmatpush1.msra.mxu0 %v372
  %2252 = vmatprep.subr.mxu0 %v389
  %2253 = vmatpush1.msra.mxu0 %v388
  %2254 = vmatprep.subr.mxu0 %v405
  %2255 = vmatpush1.msra.mxu0 %v404
  %2256 = vmatprep.subr.mxu0 %v421
  %2257 = vmatpush1.msra.mxu0 %v420
  %2258 = vmatprep.subr.mxu0 %v437
  %2259 = vmatpush1.msra.mxu0 %v436
  %2260 = vmatprep.subr.mxu0 %v453
  %2261 = vmatpush1.msra.mxu0 %v452
  %2262 = vmatprep.subr.mxu0 %v469
  %2263 = vmatpush1.msra.mxu0 %v468
  %2264 = vmatprep.subr.mxu0 %v485
  %2265 = vmatpush1.msra.mxu0 %v484
  %2266 = vmatprep.subr.mxu0 %v501
  %2267 = vmatpush1.msra.mxu0 %v500
  %2268 = vmatprep.subr.mxu0 %v517
  %2269 = vmatpush1.msra.mxu0 %v516
  %2270 = vmatprep.subr.mxu0 %v533
  %2271 = vmatpush1.msra.mxu0 %v532
  %2272 = vmatprep.mubr.f32.mxu0 %v15
  %2273 = vmatmul.mubr.f32.gmra.mrb[0].mxu0 %v14
  %v2274 = vpop.f32.mrb[0].mxu0
  %v2275 = vadd.f32 %v1109, %v2274
  %v2276 = vpop.f32.mrb[0].mxu0
  %v2277 = vadd.f32 %v1113, %v2276
  %2278 = vmatprep.mubr.f32.mxu0 %v19
  %2279 = vmatmul.mubr.f32.gmra.mrb[0].mxu0 %v18
  %v2280 = vpop.f32.mrb[0].mxu0
  %v2281 = vadd.f32 %v1109, %v2280
  %v2282 = vpop.f32.mrb[0].mxu0
  %v2283 = vadd.f32 %v1113, %v2282
  %2284 = vdwg.mxu0
  %2285 = vmatprep.subr.mxu0 %v549
  %2286 = vmatpush1.msra.mxu0 %v548
  %2287 = vmatprep.subr.mxu0 %v565
  %2288 = vmatpush1.msra.mxu0 %v564
  %2289 = vmatprep.subr.mxu0 %v581
  %2290 = vmatpush1.msra.mxu0 %v580
  %2291 = vmatprep.subr.mxu0 %v597
  %2292 = vmatpush1.msra.mxu0 %v596
  %2293 = vmatprep.subr.mxu0 %v613
  %2294 = vmatpush1.msra.mxu0 %v612
  %2295 = vmatprep.subr.mxu0 %v629
  %2296 = vmatpush1.msra.mxu0 %v628
  %2297 = vmatprep.subr.mxu0 %v645
  %2298 = vmatpush1.msra.mxu0 %v644
  %2299 = vmatprep.subr.mxu0 %v661
  %2300 = vmatpush1.msra.mxu0 %v660
  %2301 = vmatprep.subr.mxu0 %v677
  %2302 = vmatpush1.msra.mxu0 %v676
  %2303 = vmatprep.subr.mxu0 %v693
  %2304 = vmatpush1.msra.mxu0 %v692
  %2305 = vmatprep.subr.mxu0 %v709
  %2306 = vmatpush1.msra.mxu0 %v708
  %2307 = vmatprep.subr.mxu0 %v725
  %2308 = vmatpush1.msra.mxu0 %v724
  %2309 = vmatprep.subr.mxu0 %v741
  %2310 = vmatpush1.msra.mxu0 %v740
  %2311 = vmatprep.subr.mxu0 %v757
  %2312 = vmatpush1.msra.mxu0 %v756
  %2313 = vmatprep.subr.mxu0 %v773
  %2314 = vmatpush1.msra.mxu0 %v772
  %2315 = vmatprep.subr.mxu0 %v789
  %2316 = vmatpush1.msra.mxu0 %v788
  %2317 = vmatprep.subr.mxu0 %v805
  %2318 = vmatpush1.msra.mxu0 %v804
  %2319 = vmatprep.subr.mxu0 %v821
  %2320 = vmatpush1.msra.mxu0 %v820
  %2321 = vmatprep.subr.mxu0 %v837
  %2322 = vmatpush1.msra.mxu0 %v836
  %2323 = vmatprep.subr.mxu0 %v853
  %2324 = vmatpush1.msra.mxu0 %v852
  %2325 = vmatprep.subr.mxu0 %v869
  %2326 = vmatpush1.msra.mxu0 %v868
  %2327 = vmatprep.subr.mxu0 %v885
  %2328 = vmatpush1.msra.mxu0 %v884
  %2329 = vmatprep.subr.mxu0 %v901
  %2330 = vmatpush1.msra.mxu0 %v900
  %2331 = vmatprep.subr.mxu0 %v917
  %2332 = vmatpush1.msra.mxu0 %v916
  %2333 = vmatprep.subr.mxu0 %v933
  %2334 = vmatpush1.msra.mxu0 %v932
  %2335 = vmatprep.subr.mxu0 %v949
  %2336 = vmatpush1.msra.mxu0 %v948
  %2337 = vmatprep.subr.mxu0 %v965
  %2338 = vmatpush1.msra.mxu0 %v964
  %2339 = vmatprep.subr.mxu0 %v981
  %2340 = vmatpush1.msra.mxu0 %v980
  %2341 = vmatprep.subr.mxu0 %v997
  %2342 = vmatpush1.msra.mxu0 %v996
  %2343 = vmatprep.subr.mxu0 %v1013
  %2344 = vmatpush1.msra.mxu0 %v1012
  %2345 = vmatprep.subr.mxu0 %v1029
  %2346 = vmatpush1.msra.mxu0 %v1028
  %2347 = vmatprep.subr.mxu0 %v1045
  %2348 = vmatpush1.msra.mxu0 %v1044
  %2349 = vmatprep.mubr.f32.mxu0 %v17
  %2350 = vmatmul.mubr.f32.gmra.mrb[0].mxu0 %v16
  %v2351 = vpop.f32.mrb[0].mxu0
  %v2352 = vadd.f32 %v2275, %v2351
  %v2353 = vpop.f32.mrb[0].mxu0
  %v2354 = vadd.f32 %v2277, %v2353
  %2355 = vmatprep.mubr.f32.mxu0 %v21
  %2356 = vmatmul.mubr.f32.gmra.mrb[0].mxu0 %v20
  %v2357 = vpop.f32.mrb[0].mxu0
  %v2358 = vadd.f32 %v2281, %v2357
  %v2359 = vpop.f32.mrb[0].mxu0
  %v2360 = vadd.f32 %v2283, %v2359
  %2361 = vdwg.mxu0
  %v2362 = vmax.f32 %v1274, 0.0
  %v2363 = vmax.f32 %v1276, 0.0
  %v2364 = vmax.f32 %v1428, 0.0
  %v2365 = vmax.f32 %v1430, 0.0
  %v2366 = vmax.f32 %v1582, 0.0
  %v2367 = vmax.f32 %v1584, 0.0
  %v2368 = vmax.f32 %v1736, 0.0
  %v2369 = vmax.f32 %v1738, 0.0
  %v2370 = vmax.f32 %v1890, 0.0
  %v2371 = vmax.f32 %v1892, 0.0
  %v2372 = vmax.f32 %v2044, 0.0
  %v2373 = vmax.f32 %v2046, 0.0
  %v2374 = vmax.f32 %v2198, 0.0
  %v2375 = vmax.f32 %v2200, 0.0
  %v2376 = vmax.f32 %v2352, 0.0
  %v2377 = vmax.f32 %v2354, 0.0
  %v2378 = vmax.f32 %v1280, 0.0
  %v2379 = vmax.f32 %v1282, 0.0
  %v2380 = vmax.f32 %v1434, 0.0
  %v2381 = vmax.f32 %v1436, 0.0
  %v2382 = vmax.f32 %v1588, 0.0
  %v2383 = vmax.f32 %v1590, 0.0
  %v2384 = vmax.f32 %v1742, 0.0
  %v2385 = vmax.f32 %v1744, 0.0
  %v2386 = vmax.f32 %v1896, 0.0
  %v2387 = vmax.f32 %v1898, 0.0
  %v2388 = vmax.f32 %v2050, 0.0
  %v2389 = vmax.f32 %v2052, 0.0
  %v2390 = vmax.f32 %v2204, 0.0
  %v2391 = vmax.f32 %v2206, 0.0
  %v2392 = vmax.f32 %v2358, 0.0
  %v2393 = vmax.f32 %v2360, 0.0
  %2394 = vst [vmem:[%s3] sm:$0xff] %v2362
  %2395 = vst [vmem:[%s3 + $0x8] sm:$0xff] %v2363
  %2396 = vst [vmem:[%s3 + $0x10] sm:$0xff] %v2364
  %2397 = vst [vmem:[%s3 + $0x18] sm:$0xff] %v2365
  %2398 = vst [vmem:[%s3 + $0x20] sm:$0xff] %v2366
  %2399 = vst [vmem:[%s3 + $0x28] sm:$0xff] %v2367
  %2400 = vst [vmem:[%s3 + $0x30] sm:$0xff] %v2368
  %2401 = vst [vmem:[%s3 + $0x38] sm:$0xff] %v2369
  %2402 = vst [vmem:[%s3 + $0x40] sm:$0xff] %v2370
  %2403 = vst [vmem:[%s3 + $0x48] sm:$0xff] %v2371
  %2404 = vst [vmem:[%s3 + $0x50] sm:$0xff] %v2372
  %2405 = vst [vmem:[%s3 + $0x58] sm:$0xff] %v2373
  %2406 = vst [vmem:[%s3 + $0x60] sm:$0xff] %v2374
  %2407 = vst [vmem:[%s3 + $0x68] sm:$0xff] %v2375
  %2408 = vst [vmem:[%s3 + $0x70] sm:$0xff] %v2376
  %2409 = vst [vmem:[%s3 + $0x78] sm:$0xff] %v2377
  %2410 = vst [vmem:[%s3 + $0x80] sm:$0xff] %v2378
  %2411 = vst [vmem:[%s3 + $0x88] sm:$0xff] %v2379
  %2412 = vst [vmem:[%s3 + $0x90] sm:$0xff] %v2380
  %2413 = vst [vmem:[%s3 + $0x98] sm:$0xff] %v2381
  %2414 = vst [vmem:[%s3 + $0xa0] sm:$0xff] %v2382
  %2415 = vst [vmem:[%s3 + $0xa8] sm:$0xff] %v2383
  %2416 = vst [vmem:[%s3 + $0xb0] sm:$0xff] %v2384
  %2417 = vst [vmem:[%s3 + $0xb8] sm:$0xff] %v2385
  %2418 = vst [vmem:[%s3 + $0xc0] sm:$0xff] %v2386
  %2419 = vst [vmem:[%s3 + $0xc8] sm:$0xff] %v2387
  %2420 = vst [vmem:[%s3 + $0xd0] sm:$0xff] %v2388
  %2421 = vst [vmem:[%s3 + $0xd8] sm:$0xff] %v2389
  %2422 = vst [vmem:[%s3 + $0xe0] sm:$0xff] %v2390
  %2423 = vst [vmem:[%s3 + $0xe8] sm:$0xff] %v2391
  %2424 = vst [vmem:[%s3 + $0xf0] sm:$0xff] %v2392
  %2425 = vst [vmem:[%s3 + $0xf8] sm:$0xff] %v2393
  // Predicated region
  $region14: #{decoder_layer_forward.8} parent=0 // pred_check
    _
  $region15: #{decoder_layer_forward.8} parent=0 // pred_check_branch
    %2427 = sbr.rel (0) target = $region17
  $region16: #{decoder_layer_forward.8} parent=0 // pred_region
    _
  $region17: #{decoder_layer_forward.8} parent=0 // pred_fallthru
    _
  // Predicated region
  $region18: #{decoder_layer_forward.8} parent=0 // pred_check
    _
  $region19: #{decoder_layer_forward.8} parent=0 // pred_check_branch
    %2429 = sbr.rel (0) target = $region21
  $region20: #{decoder_layer_forward.8} parent=0 // pred_region
    _
  $region21: #{decoder_layer_forward.8} parent=0 // pred_fallthru
    _

// kernel: decoder_layer_forward.9
$region0: #{decoder_layer_forward.9}
  #allocation0 [shape = 'u32[]', space=smem, size = 0x4, offset = 0x4, fixed_abs, tag = 'smem constant byte address 0x4 - core index']
  #allocation1 [shape = 'u32[144,128]{1,0:T(1,128)}', space=vmem, size = 0x12000, scoped, tag = 'internal scratch']
  %s0 = inlined_call_operand.vmem [shape: f32[16,2048], index: 0, kind: input, shape index: {}]
  %s1 = inlined_call_operand.vmem [shape: f32[2048,512], index: 1, kind: input, shape index: {}]
  %s2 = inlined_call_operand.vmem [shape: f32[1,512], index: 2, kind: input, shape index: {}]
  %s3 = inlined_call_operand.vmem [shape: f32[16,512], index: 3, kind: input, shape index: {}]
  %s4 = inlined_call_operand.vmem [shape: f32[1,512], index: 4, kind: input, shape index: {}]
  %s5 = inlined_call_operand.vmem [shape: f32[1,512], index: 5, kind: input, shape index: {}]
  %s6 = inlined_call_operand.vmem [shape: f32[1,512], index: 6, kind: input, shape index: {}]
  %s7 = inlined_call_operand.vmem [shape: f32[1,512], index: 7, kind: input, shape index: {}]
  %s8 = inlined_call_operand.hbm [shape: f32[16,512], index: 8, kind: output, shape index: {}]
  %s9 = sld [smem:[#allocation0]]
  $region42: #{decoder_layer_forward.9} parent=0
    _
  %s11 = ssub.s32 1, %s9
  %s12 = scalar_select 0, %s11, %s9
  $region1: #{decoder_layer_forward.9} parent=0
    #allocation2 [shape = 'u8[32768]{0}', space=vmem, size = 0x8000, scoped, tag = 'output window, operand 0, single buffered']
    #allocation3 [shape = 's32[1]{0}', space=sflag, size = 0x4, scoped, tag = 'scoped memory for decoder_layer_forward.9']
    %13 = vsyncpa [#allocation3], 0
    // Predicated region
    $region2: #{decoder_layer_forward.9} parent=1 // pred_check
      _
    $region3: #{decoder_layer_forward.9} parent=1 // pred_check_branch
      %15 = sbr.rel (0) target = $region5
    $region4: #{decoder_layer_forward.9} parent=1 // pred_region
      _
    $region5: #{decoder_layer_forward.9} parent=1 // pred_fallthru
      _
    // Predicated region
    $region6: #{decoder_layer_forward.9} parent=1 // pred_check
      _
    $region7: #{decoder_layer_forward.9} parent=1 // pred_check_branch
      %17 = sbr.rel (0) target = $region9
    $region8: #{decoder_layer_forward.9} parent=1 // pred_region
      _
    $region9: #{decoder_layer_forward.9} parent=1 // pred_fallthru
      _
    // Predicated region
    $region10: #{decoder_layer_forward.9} parent=1 // pred_check
      _
    $region11: #{decoder_layer_forward.9} parent=1 // pred_check_branch
      %19 = sbr.rel (0) target = $region13
    $region12: #{decoder_layer_forward.9} parent=1 // pred_region
      _
    $region13: #{decoder_layer_forward.9} parent=1 // pred_fallthru
      _
    // Predicated region
    $region14: #{decoder_layer_forward.9} parent=1 // pred_check
      _
    $region15: #{decoder_layer_forward.9} parent=1 // pred_check_branch
      %21 = sbr.rel (0) target = $region17
    $region16: #{decoder_layer_forward.9} parent=1 // pred_region
      _
    $region17: #{decoder_layer_forward.9} parent=1 // pred_fallthru
      _
    // Predicated region
    $region18: #{decoder_layer_forward.9} parent=1 // pred_check
      _
    $region19: #{decoder_layer_forward.9} parent=1 // pred_check_branch
      %23 = sbr.rel (0) target = $region21
    $region20: #{decoder_layer_forward.9} parent=1 // pred_region
      _
    $region21: #{decoder_layer_forward.9} parent=1 // pred_fallthru
      _
    // Predicated region
    $region22: #{decoder_layer_forward.9} parent=1 // pred_check
      _
    $region23: #{decoder_layer_forward.9} parent=1 // pred_check_branch
      %25 = sbr.rel (0) target = $region25
    $region24: #{decoder_layer_forward.9} parent=1 // pred_region
      _
    $region25: #{decoder_layer_forward.9} parent=1 // pred_fallthru
      _
    // Predicated region
    $region26: #{decoder_layer_forward.9} parent=1 // pred_check
      _
    $region27: #{decoder_layer_forward.9} parent=1 // pred_check_branch
      %27 = sbr.rel (0) target = $region29
    $region28: #{decoder_layer_forward.9} parent=1 // pred_region
      _
    $region29: #{decoder_layer_forward.9} parent=1 // pred_fallthru
      _
    // Predicated region
    $region30: #{decoder_layer_forward.9} parent=1 // pred_check
      _
    $region31: #{decoder_layer_forward.9} parent=1 // pred_check_branch
      %29 = sbr.rel (0) target = $region33
    $region32: #{decoder_layer_forward.9} parent=1 // pred_region
      _
    $region33: #{decoder_layer_forward.9} parent=1 // pred_fallthru
      _
    %v30 = vld [vmem:[%s0] sm:$0xff]
    %v31 = vld [vmem:[%s0 + $0x8] sm:$0xff]
    %v32 = vld [vmem:[%s0 + $0x10] sm:$0xff]
    %v33 = vld [vmem:[%s0 + $0x18] sm:$0xff]
    %v34 = vld [vmem:[%s0 + $0x20] sm:$0xff]
    %v35 = vld [vmem:[%s0 + $0x28] sm:$0xff]
    %v36 = vld [vmem:[%s0 + $0x30] sm:$0xff]
    %v37 = vld [vmem:[%s0 + $0x38] sm:$0xff]
    %v38 = vld [vmem:[%s0 + $0x40] sm:$0xff]
    %v39 = vld [vmem:[%s0 + $0x48] sm:$0xff]
    %v40 = vld [vmem:[%s0 + $0x50] sm:$0xff]
    %v41 = vld [vmem:[%s0 + $0x58] sm:$0xff]
    %v42 = vld [vmem:[%s0 + $0x60] sm:$0xff]
    %v43 = vld [vmem:[%s0 + $0x68] sm:$0xff]
    %v44 = vld [vmem:[%s0 + $0x70] sm:$0xff]
    %v45 = vld [vmem:[%s0 + $0x78] sm:$0xff]
    %v46 = vld [vmem:[%s0 + $0x80] sm:$0xff]
    %v47 = vld [vmem:[%s0 + $0x88] sm:$0xff]
    %v48 = vld [vmem:[%s0 + $0x90] sm:$0xff]
    %v49 = vld [vmem:[%s0 + $0x98] sm:$0xff]
    %v50 = vld [vmem:[%s0 + $0xa0] sm:$0xff]
    %v51 = vld [vmem:[%s0 + $0xa8] sm:$0xff]
    %v52 = vld [vmem:[%s0 + $0xb0] sm:$0xff]
    %v53 = vld [vmem:[%s0 + $0xb8] sm:$0xff]
    %v54 = vld [vmem:[%s0 + $0xc0] sm:$0xff]
    %v55 = vld [vmem:[%s0 + $0xc8] sm:$0xff]
    %v56 = vld [vmem:[%s0 + $0xd0] sm:$0xff]
    %v57 = vld [vmem:[%s0 + $0xd8] sm:$0xff]
    %v58 = vld [vmem:[%s0 + $0xe0] sm:$0xff]
    %v59 = vld [vmem:[%s0 + $0xe8] sm:$0xff]
    %v60 = vld [vmem:[%s0 + $0xf0] sm:$0xff]
    %v61 = vld [vmem:[%s0 + $0xf8] sm:$0xff]
    %v62 = vld [vmem:[%s1] sm:$0xff]
    %v63 = vld [vmem:[%s1 + $0x8] sm:$0xff]
    %v64 = vld [vmem:[%s1 + $0x10] sm:$0xff]
    %v65 = vld [vmem:[%s1 + $0x18] sm:$0xff]
    %v66 = vld [vmem:[%s1 + $0x20] sm:$0xff]
    %v67 = vld [vmem:[%s1 + $0x28] sm:$0xff]
    %v68 = vld [vmem:[%s1 + $0x30] sm:$0xff]
    %v69 = vld [vmem:[%s1 + $0x38] sm:$0xff]
    %v70 = vld [vmem:[%s1 + $0x40] sm:$0xff]
    %v71 = vld [vmem:[%s1 + $0x48] sm:$0xff]
    %v72 = vld [vmem:[%s1 + $0x50] sm:$0xff]
    %v73 = vld [vmem:[%s1 + $0x58] sm:$0xff]
    %v74 = vld [vmem:[%s1 + $0x60] sm:$0xff]
    %v75 = vld [vmem:[%s1 + $0x68] sm:$0xff]
    %v76 = vld [vmem:[%s1 + $0x70] sm:$0xff]
    %v77 = vld [vmem:[%s1 + $0x78] sm:$0xff]
    %v78 = vld [vmem:[%s1 + $0x80] sm:$0xff]
    %v79 = vld [vmem:[%s1 + $0x88] sm:$0xff]
    %v80 = vld [vmem:[%s1 + $0x90] sm:$0xff]
    %v81 = vld [vmem:[%s1 + $0x98] sm:$0xff]
    %v82 = vld [vmem:[%s1 + $0xa0] sm:$0xff]
    %v83 = vld [vmem:[%s1 + $0xa8] sm:$0xff]
    %v84 = vld [vmem:[%s1 + $0xb0] sm:$0xff]
    %v85 = vld [vmem:[%s1 + $0xb8] sm:$0xff]
    %v86 = vld [vmem:[%s1 + $0xc0] sm:$0xff]
    %v87 = vld [vmem:[%s1 + $0xc8] sm:$0xff]
    %v88 = vld [vmem:[%s1 + $0xd0] sm:$0xff]
    %v89 = vld [vmem:[%s1 + $0xd8] sm:$0xff]
    %v90 = vld [vmem:[%s1 + $0xe0] sm:$0xff]
    %v91 = vld [vmem:[%s1 + $0xe8] sm:$0xff]
    %v92 = vld [vmem:[%s1 + $0xf0] sm:$0xff]
    %v93 = vld [vmem:[%s1 + $0xf8] sm:$0xff]
    %v94 = vld [vmem:[%s1 + $0x100] sm:$0xff]
    %v95 = vld [vmem:[%s1 + $0x108] sm:$0xff]
    %v96 = vld [vmem:[%s1 + $0x110] sm:$0xff]
    %v97 = vld [vmem:[%s1 + $0x118] sm:$0xff]
    %v98 = vld [vmem:[%s1 + $0x120] sm:$0xff]
    %v99 = vld [vmem:[%s1 + $0x128] sm:$0xff]
    %v100 = vld [vmem:[%s1 + $0x130] sm:$0xff]
    %v101 = vld [vmem:[%s1 + $0x138] sm:$0xff]
    %v102 = vld [vmem:[%s1 + $0x140] sm:$0xff]
    %v103 = vld [vmem:[%s1 + $0x148] sm:$0xff]
    %v104 = vld [vmem:[%s1 + $0x150] sm:$0xff]
    %v105 = vld [vmem:[%s1 + $0x158] sm:$0xff]
    %v106 = vld [vmem:[%s1 + $0x160] sm:$0xff]
    %v107 = vld [vmem:[%s1 + $0x168] sm:$0xff]
    %v108 = vld [vmem:[%s1 + $0x170] sm:$0xff]
    %v109 = vld [vmem:[%s1 + $0x178] sm:$0xff]
    %v110 = vld [vmem:[%s1 + $0x180] sm:$0xff]
    %v111 = vld [vmem:[%s1 + $0x188] sm:$0xff]
    %v112 = vld [vmem:[%s1 + $0x190] sm:$0xff]
    %v113 = vld [vmem:[%s1 + $0x198] sm:$0xff]
    %v114 = vld [vmem:[%s1 + $0x1a0] sm:$0xff]
    %v115 = vld [vmem:[%s1 + $0x1a8] sm:$0xff]
    %v116 = vld [vmem:[%s1 + $0x1b0] sm:$0xff]
    %v117 = vld [vmem:[%s1 + $0x1b8] sm:$0xff]
    %v118 = vld [vmem:[%s1 + $0x1c0] sm:$0xff]
    %v119 = vld [vmem:[%s1 + $0x1c8] sm:$0xff]
    %v120 = vld [vmem:[%s1 + $0x1d0] sm:$0xff]
    %v121 = vld [vmem:[%s1 + $0x1d8] sm:$0xff]
    %v122 = vld [vmem:[%s1 + $0x1e0] sm:$0xff]
    %v123 = vld [vmem:[%s1 + $0x1e8] sm:$0xff]
    %v124 = vld [vmem:[%s1 + $0x1f0] sm:$0xff]
    %v125 = vld [vmem:[%s1 + $0x1f8] sm:$0xff]
    %v126 = vld [vmem:[%s1 + $0x200] sm:$0xff]
    %v127 = vld [vmem:[%s1 + $0x208] sm:$0xff]
    %v128 = vld [vmem:[%s1 + $0x210] sm:$0xff]
    %v129 = vld [vmem:[%s1 + $0x218] sm:$0xff]
    %v130 = vld [vmem:[%s1 + $0x220] sm:$0xff]
    %v131 = vld [vmem:[%s1 + $0x228] sm:$0xff]
    %v132 = vld [vmem:[%s1 + $0x230] sm:$0xff]
    %v133 = vld [vmem:[%s1 + $0x238] sm:$0xff]
    %v134 = vld [vmem:[%s1 + $0x240] sm:$0xff]
    %v135 = vld [vmem:[%s1 + $0x248] sm:$0xff]
    %v136 = vld [vmem:[%s1 + $0x250] sm:$0xff]
    %v137 = vld [vmem:[%s1 + $0x258] sm:$0xff]
    %v138 = vld [vmem:[%s1 + $0x260] sm:$0xff]
    %v139 = vld [vmem:[%s1 + $0x268] sm:$0xff]
    %v140 = vld [vmem:[%s1 + $0x270] sm:$0xff]
    %v141 = vld [vmem:[%s1 + $0x278] sm:$0xff]
    %v142 = vld [vmem:[%s1 + $0x280] sm:$0xff]
    %v143 = vld [vmem:[%s1 + $0x288] sm:$0xff]
    %v144 = vld [vmem:[%s1 + $0x290] sm:$0xff]
    %v145 = vld [vmem:[%s1 + $0x298] sm:$0xff]
    %v146 = vld [vmem:[%s1 + $0x2a0] sm:$0xff]
    %v147 = vld [vmem:[%s1 + $0x2a8] sm:$0xff]
    %v148 = vld [vmem:[%s1 + $0x2b0] sm:$0xff]
    %v149 = vld [vmem:[%s1 + $0x2b8] sm:$0xff]
    %v150 = vld [vmem:[%s1 + $0x2c0] sm:$0xff]
    %v151 = vld [vmem:[%s1 + $0x2c8] sm:$0xff]
    %v152 = vld [vmem:[%s1 + $0x2d0] sm:$0xff]
    %v153 = vld [vmem:[%s1 + $0x2d8] sm:$0xff]
    %v154 = vld [vmem:[%s1 + $0x2e0] sm:$0xff]
    %v155 = vld [vmem:[%s1 + $0x2e8] sm:$0xff]
    %v156 = vld [vmem:[%s1 + $0x2f0] sm:$0xff]
    %v157 = vld [vmem:[%s1 + $0x2f8] sm:$0xff]
    %v158 = vld [vmem:[%s1 + $0x300] sm:$0xff]
    %v159 = vld [vmem:[%s1 + $0x308] sm:$0xff]
    %v160 = vld [vmem:[%s1 + $0x310] sm:$0xff]
    %v161 = vld [vmem:[%s1 + $0x318] sm:$0xff]
    %v162 = vld [vmem:[%s1 + $0x320] sm:$0xff]
    %v163 = vld [vmem:[%s1 + $0x328] sm:$0xff]
    %v164 = vld [vmem:[%s1 + $0x330] sm:$0xff]
    %v165 = vld [vmem:[%s1 + $0x338] sm:$0xff]
    %v166 = vld [vmem:[%s1 + $0x340] sm:$0xff]
    %v167 = vld [vmem:[%s1 + $0x348] sm:$0xff]
    %v168 = vld [vmem:[%s1 + $0x350] sm:$0xff]
    %v169 = vld [vmem:[%s1 + $0x358] sm:$0xff]
    %v170 = vld [vmem:[%s1 + $0x360] sm:$0xff]
    %v171 = vld [vmem:[%s1 + $0x368] sm:$0xff]
    %v172 = vld [vmem:[%s1 + $0x370] sm:$0xff]
    %v173 = vld [vmem:[%s1 + $0x378] sm:$0xff]
    %v174 = vld [vmem:[%s1 + $0x380] sm:$0xff]
    %v175 = vld [vmem:[%s1 + $0x388] sm:$0xff]
    %v176 = vld [vmem:[%s1 + $0x390] sm:$0xff]
    %v177 = vld [vmem:[%s1 + $0x398] sm:$0xff]
    %v178 = vld [vmem:[%s1 + $0x3a0] sm:$0xff]
    %v179 = vld [vmem:[%s1 + $0x3a8] sm:$0xff]
    %v180 = vld [vmem:[%s1 + $0x3b0] sm:$0xff]
    %v181 = vld [vmem:[%s1 + $0x3b8] sm:$0xff]
    %v182 = vld [vmem:[%s1 + $0x3c0] sm:$0xff]
    %v183 = vld [vmem:[%s1 + $0x3c8] sm:$0xff]
    %v184 = vld [vmem:[%s1 + $0x3d0] sm:$0xff]
    %v185 = vld [vmem:[%s1 + $0x3d8] sm:$0xff]
    %v186 = vld [vmem:[%s1 + $0x3e0] sm:$0xff]
    %v187 = vld [vmem:[%s1 + $0x3e8] sm:$0xff]
    %v188 = vld [vmem:[%s1 + $0x3f0] sm:$0xff]
    %v189 = vld [vmem:[%s1 + $0x3f8] sm:$0xff]
    %v190 = vld [vmem:[%s1 + $0x400] sm:$0xff]
    %v191 = vld [vmem:[%s1 + $0x408] sm:$0xff]
    %v192 = vld [vmem:[%s1 + $0x410] sm:$0xff]
    %v193 = vld [vmem:[%s1 + $0x418] sm:$0xff]
    %v194 = vld [vmem:[%s1 + $0x420] sm:$0xff]
    %v195 = vld [vmem:[%s1 + $0x428] sm:$0xff]
    %v196 = vld [vmem:[%s1 + $0x430] sm:$0xff]
    %v197 = vld [vmem:[%s1 + $0x438] sm:$0xff]
    %v198 = vld [vmem:[%s1 + $0x440] sm:$0xff]
    %v199 = vld [vmem:[%s1 + $0x448] sm:$0xff]
    %v200 = vld [vmem:[%s1 + $0x450] sm:$0xff]
    %v201 = vld [vmem:[%s1 + $0x458] sm:$0xff]
    %v202 = vld [vmem:[%s1 + $0x460] sm:$0xff]
    %v203 = vld [vmem:[%s1 + $0x468] sm:$0xff]
    %v204 = vld [vmem:[%s1 + $0x470] sm:$0xff]
    %v205 = vld [vmem:[%s1 + $0x478] sm:$0xff]
    %v206 = vld [vmem:[%s1 + $0x480] sm:$0xff]
    %v207 = vld [vmem:[%s1 + $0x488] sm:$0xff]
    %v208 = vld [vmem:[%s1 + $0x490] sm:$0xff]
    %v209 = vld [vmem:[%s1 + $0x498] sm:$0xff]
    %v210 = vld [vmem:[%s1 + $0x4a0] sm:$0xff]
    %v211 = vld [vmem:[%s1 + $0x4a8] sm:$0xff]
    %v212 = vld [vmem:[%s1 + $0x4b0] sm:$0xff]
    %v213 = vld [vmem:[%s1 + $0x4b8] sm:$0xff]
    %v214 = vld [vmem:[%s1 + $0x4c0] sm:$0xff]
    %v215 = vld [vmem:[%s1 + $0x4c8] sm:$0xff]
    %v216 = vld [vmem:[%s1 + $0x4d0] sm:$0xff]
    %v217 = vld [vmem:[%s1 + $0x4d8] sm:$0xff]
    %v218 = vld [vmem:[%s1 + $0x4e0] sm:$0xff]
    %v219 = vld [vmem:[%s1 + $0x4e8] sm:$0xff]
    %v220 = vld [vmem:[%s1 + $0x4f0] sm:$0xff]
    %v221 = vld [vmem:[%s1 + $0x4f8] sm:$0xff]
    %v222 = vld [vmem:[%s1 + $0x500] sm:$0xff]
    %v223 = vld [vmem:[%s1 + $0x508] sm:$0xff]
    %v224 = vld [vmem:[%s1 + $0x510] sm:$0xff]
    %v225 = vld [vmem:[%s1 + $0x518] sm:$0xff]
    %v226 = vld [vmem:[%s1 + $0x520] sm:$0xff]
    %v227 = vld [vmem:[%s1 + $0x528] sm:$0xff]
    %v228 = vld [vmem:[%s1 + $0x530] sm:$0xff]
    %v229 = vld [vmem:[%s1 + $0x538] sm:$0xff]
    %v230 = vld [vmem:[%s1 + $0x540] sm:$0xff]
    %v231 = vld [vmem:[%s1 + $0x548] sm:$0xff]
    %v232 = vld [vmem:[%s1 + $0x550] sm:$0xff]
    %v233 = vld [vmem:[%s1 + $0x558] sm:$0xff]
    %v234 = vld [vmem:[%s1 + $0x560] sm:$0xff]
    %v235 = vld [vmem:[%s1 + $0x568] sm:$0xff]
    %v236 = vld [vmem:[%s1 + $0x570] sm:$0xff]
    %v237 = vld [vmem:[%s1 + $0x578] sm:$0xff]
    %v238 = vld [vmem:[%s1 + $0x580] sm:$0xff]
    %v239 = vld [vmem:[%s1 + $0x588] sm:$0xff]
    %v240 = vld [vmem:[%s1 + $0x590] sm:$0xff]
    %v241 = vld [vmem:[%s1 + $0x598] sm:$0xff]
    %v242 = vld [vmem:[%s1 + $0x5a0] sm:$0xff]
    %v243 = vld [vmem:[%s1 + $0x5a8] sm:$0xff]
    %v244 = vld [vmem:[%s1 + $0x5b0] sm:$0xff]
    %v245 = vld [vmem:[%s1 + $0x5b8] sm:$0xff]
    %v246 = vld [vmem:[%s1 + $0x5c0] sm:$0xff]
    %v247 = vld [vmem:[%s1 + $0x5c8] sm:$0xff]
    %v248 = vld [vmem:[%s1 + $0x5d0] sm:$0xff]
    %v249 = vld [vmem:[%s1 + $0x5d8] sm:$0xff]
    %v250 = vld [vmem:[%s1 + $0x5e0] sm:$0xff]
    %v251 = vld [vmem:[%s1 + $0x5e8] sm:$0xff]
    %v252 = vld [vmem:[%s1 + $0x5f0] sm:$0xff]
    %v253 = vld [vmem:[%s1 + $0x5f8] sm:$0xff]
    %v254 = vld [vmem:[%s1 + $0x600] sm:$0xff]
    %v255 = vld [vmem:[%s1 + $0x608] sm:$0xff]
    %v256 = vld [vmem:[%s1 + $0x610] sm:$0xff]
    %v257 = vld [vmem:[%s1 + $0x618] sm:$0xff]
    %v258 = vld [vmem:[%s1 + $0x620] sm:$0xff]
    %v259 = vld [vmem:[%s1 + $0x628] sm:$0xff]
    %v260 = vld [vmem:[%s1 + $0x630] sm:$0xff]
    %v261 = vld [vmem:[%s1 + $0x638] sm:$0xff]
    %v262 = vld [vmem:[%s1 + $0x640] sm:$0xff]
    %v263 = vld [vmem:[%s1 + $0x648] sm:$0xff]
    %v264 = vld [vmem:[%s1 + $0x650] sm:$0xff]
    %v265 = vld [vmem:[%s1 + $0x658] sm:$0xff]
    %v266 = vld [vmem:[%s1 + $0x660] sm:$0xff]
    %v267 = vld [vmem:[%s1 + $0x668] sm:$0xff]
    %v268 = vld [vmem:[%s1 + $0x670] sm:$0xff]
    %v269 = vld [vmem:[%s1 + $0x678] sm:$0xff]
    %v270 = vld [vmem:[%s1 + $0x680] sm:$0xff]
    %v271 = vld [vmem:[%s1 + $0x688] sm:$0xff]
    %v272 = vld [vmem:[%s1 + $0x690] sm:$0xff]
    %v273 = vld [vmem:[%s1 + $0x698] sm:$0xff]
    %v274 = vld [vmem:[%s1 + $0x6a0] sm:$0xff]
    %v275 = vld [vmem:[%s1 + $0x6a8] sm:$0xff]
    %v276 = vld [vmem:[%s1 + $0x6b0] sm:$0xff]
    %v277 = vld [vmem:[%s1 + $0x6b8] sm:$0xff]
    %v278 = vld [vmem:[%s1 + $0x6c0] sm:$0xff]
    %v279 = vld [vmem:[%s1 + $0x6c8] sm:$0xff]
    %v280 = vld [vmem:[%s1 + $0x6d0] sm:$0xff]
    %v281 = vld [vmem:[%s1 + $0x6d8] sm:$0xff]
    %v282 = vld [vmem:[%s1 + $0x6e0] sm:$0xff]
    %v283 = vld [vmem:[%s1 + $0x6e8] sm:$0xff]
    %v284 = vld [vmem:[%s1 + $0x6f0] sm:$0xff]
    %v285 = vld [vmem:[%s1 + $0x6f8] sm:$0xff]
    %v286 = vld [vmem:[%s1 + $0x700] sm:$0xff]
    %v287 = vld [vmem:[%s1 + $0x708] sm:$0xff]
    %v288 = vld [vmem:[%s1 + $0x710] sm:$0xff]
    %v289 = vld [vmem:[%s1 + $0x718] sm:$0xff]
    %v290 = vld [vmem:[%s1 + $0x720] sm:$0xff]
    %v291 = vld [vmem:[%s1 + $0x728] sm:$0xff]
    %v292 = vld [vmem:[%s1 + $0x730] sm:$0xff]
    %v293 = vld [vmem:[%s1 + $0x738] sm:$0xff]
    %v294 = vld [vmem:[%s1 + $0x740] sm:$0xff]
    %v295 = vld [vmem:[%s1 + $0x748] sm:$0xff]
    %v296 = vld [vmem:[%s1 + $0x750] sm:$0xff]
    %v297 = vld [vmem:[%s1 + $0x758] sm:$0xff]
    %v298 = vld [vmem:[%s1 + $0x760] sm:$0xff]
    %v299 = vld [vmem:[%s1 + $0x768] sm:$0xff]
    %v300 = vld [vmem:[%s1 + $0x770] sm:$0xff]
    %v301 = vld [vmem:[%s1 + $0x778] sm:$0xff]
    %v302 = vld [vmem:[%s1 + $0x780] sm:$0xff]
    %v303 = vld [vmem:[%s1 + $0x788] sm:$0xff]
    %v304 = vld [vmem:[%s1 + $0x790] sm:$0xff]
    %v305 = vld [vmem:[%s1 + $0x798] sm:$0xff]
    %v306 = vld [vmem:[%s1 + $0x7a0] sm:$0xff]
    %v307 = vld [vmem:[%s1 + $0x7a8] sm:$0xff]
    %v308 = vld [vmem:[%s1 + $0x7b0] sm:$0xff]
    %v309 = vld [vmem:[%s1 + $0x7b8] sm:$0xff]
    %v310 = vld [vmem:[%s1 + $0x7c0] sm:$0xff]
    %v311 = vld [vmem:[%s1 + $0x7c8] sm:$0xff]
    %v312 = vld [vmem:[%s1 + $0x7d0] sm:$0xff]
    %v313 = vld [vmem:[%s1 + $0x7d8] sm:$0xff]
    %v314 = vld [vmem:[%s1 + $0x7e0] sm:$0xff]
    %v315 = vld [vmem:[%s1 + $0x7e8] sm:$0xff]
    %v316 = vld [vmem:[%s1 + $0x7f0] sm:$0xff]
    %v317 = vld [vmem:[%s1 + $0x7f8] sm:$0xff]
    %v318 = vld [vmem:[%s1 + $0x800] sm:$0xff]
    %v319 = vld [vmem:[%s1 + $0x808] sm:$0xff]
    %v320 = vld [vmem:[%s1 + $0x810] sm:$0xff]
    %v321 = vld [vmem:[%s1 + $0x818] sm:$0xff]
    %v322 = vld [vmem:[%s1 + $0x820] sm:$0xff]
    %v323 = vld [vmem:[%s1 + $0x828] sm:$0xff]
    %v324 = vld [vmem:[%s1 + $0x830] sm:$0xff]
    %v325 = vld [vmem:[%s1 + $0x838] sm:$0xff]
    %v326 = vld [vmem:[%s1 + $0x840] sm:$0xff]
    %v327 = vld [vmem:[%s1 + $0x848] sm:$0xff]
    %v328 = vld [vmem:[%s1 + $0x850] sm:$0xff]
    %v329 = vld [vmem:[%s1 + $0x858] sm:$0xff]
    %v330 = vld [vmem:[%s1 + $0x860] sm:$0xff]
    %v331 = vld [vmem:[%s1 + $0x868] sm:$0xff]
    %v332 = vld [vmem:[%s1 + $0x870] sm:$0xff]
    %v333 = vld [vmem:[%s1 + $0x878] sm:$0xff]
    %v334 = vld [vmem:[%s1 + $0x880] sm:$0xff]
    %v335 = vld [vmem:[%s1 + $0x888] sm:$0xff]
    %v336 = vld [vmem:[%s1 + $0x890] sm:$0xff]
    %v337 = vld [vmem:[%s1 + $0x898] sm:$0xff]
    %v338 = vld [vmem:[%s1 + $0x8a0] sm:$0xff]
    %v339 = vld [vmem:[%s1 + $0x8a8] sm:$0xff]
    %v340 = vld [vmem:[%s1 + $0x8b0] sm:$0xff]
    %v341 = vld [vmem:[%s1 + $0x8b8] sm:$0xff]
    %v342 = vld [vmem:[%s1 + $0x8c0] sm:$0xff]
    %v343 = vld [vmem:[%s1 + $0x8c8] sm:$0xff]
    %v344 = vld [vmem:[%s1 + $0x8d0] sm:$0xff]
    %v345 = vld [vmem:[%s1 + $0x8d8] sm:$0xff]
    %v346 = vld [vmem:[%s1 + $0x8e0] sm:$0xff]
    %v347 = vld [vmem:[%s1 + $0x8e8] sm:$0xff]
    %v348 = vld [vmem:[%s1 + $0x8f0] sm:$0xff]
    %v349 = vld [vmem:[%s1 + $0x8f8] sm:$0xff]
    %v350 = vld [vmem:[%s1 + $0x900] sm:$0xff]
    %v351 = vld [vmem:[%s1 + $0x908] sm:$0xff]
    %v352 = vld [vmem:[%s1 + $0x910] sm:$0xff]
    %v353 = vld [vmem:[%s1 + $0x918] sm:$0xff]
    %v354 = vld [vmem:[%s1 + $0x920] sm:$0xff]
    %v355 = vld [vmem:[%s1 + $0x928] sm:$0xff]
    %v356 = vld [vmem:[%s1 + $0x930] sm:$0xff]
    %v357 = vld [vmem:[%s1 + $0x938] sm:$0xff]
    %v358 = vld [vmem:[%s1 + $0x940] sm:$0xff]
    %v359 = vld [vmem:[%s1 + $0x948] sm:$0xff]
    %v360 = vld [vmem:[%s1 + $0x950] sm:$0xff]
    %v361 = vld [vmem:[%s1 + $0x958] sm:$0xff]
    %v362 = vld [vmem:[%s1 + $0x960] sm:$0xff]
    %v363 = vld [vmem:[%s1 + $0x968] sm:$0xff]
    %v364 = vld [vmem:[%s1 + $0x970] sm:$0xff]
    %v365 = vld [vmem:[%s1 + $0x978] sm:$0xff]
    %v366 = vld [vmem:[%s1 + $0x980] sm:$0xff]
    %v367 = vld [vmem:[%s1 + $0x988] sm:$0xff]
    %v368 = vld [vmem:[%s1 + $0x990] sm:$0xff]
    %v369 = vld [vmem:[%s1 + $0x998] sm:$0xff]
    %v370 = vld [vmem:[%s1 + $0x9a0] sm:$0xff]
    %v371 = vld [vmem:[%s1 + $0x9a8] sm:$0xff]
    %v372 = vld [vmem:[%s1 + $0x9b0] sm:$0xff]
    %v373 = vld [vmem:[%s1 + $0x9b8] sm:$0xff]
    %v374 = vld [vmem:[%s1 + $0x9c0] sm:$0xff]
    %v375 = vld [vmem:[%s1 + $0x9c8] sm:$0xff]
    %v376 = vld [vmem:[%s1 + $0x9d0] sm:$0xff]
    %v377 = vld [vmem:[%s1 + $0x9d8] sm:$0xff]
    %v378 = vld [vmem:[%s1 + $0x9e0] sm:$0xff]
    %v379 = vld [vmem:[%s1 + $0x9e8] sm:$0xff]
    %v380 = vld [vmem:[%s1 + $0x9f0] sm:$0xff]
    %v381 = vld [vmem:[%s1 + $0x9f8] sm:$0xff]
    %v382 = vld [vmem:[%s1 + $0xa00] sm:$0xff]
    %v383 = vld [vmem:[%s1 + $0xa08] sm:$0xff]
    %v384 = vld [vmem:[%s1 + $0xa10] sm:$0xff]
    %v385 = vld [vmem:[%s1 + $0xa18] sm:$0xff]
    %v386 = vld [vmem:[%s1 + $0xa20] sm:$0xff]
    %v387 = vld [vmem:[%s1 + $0xa28] sm:$0xff]
    %v388 = vld [vmem:[%s1 + $0xa30] sm:$0xff]
    %v389 = vld [vmem:[%s1 + $0xa38] sm:$0xff]
    %v390 = vld [vmem:[%s1 + $0xa40] sm:$0xff]
    %v391 = vld [vmem:[%s1 + $0xa48] sm:$0xff]
    %v392 = vld [vmem:[%s1 + $0xa50] sm:$0xff]
    %v393 = vld [vmem:[%s1 + $0xa58] sm:$0xff]
    %v394 = vld [vmem:[%s1 + $0xa60] sm:$0xff]
    %v395 = vld [vmem:[%s1 + $0xa68] sm:$0xff]
    %v396 = vld [vmem:[%s1 + $0xa70] sm:$0xff]
    %v397 = vld [vmem:[%s1 + $0xa78] sm:$0xff]
    %v398 = vld [vmem:[%s1 + $0xa80] sm:$0xff]
    %v399 = vld [vmem:[%s1 + $0xa88] sm:$0xff]
    %v400 = vld [vmem:[%s1 + $0xa90] sm:$0xff]
    %v401 = vld [vmem:[%s1 + $0xa98] sm:$0xff]
    %v402 = vld [vmem:[%s1 + $0xaa0] sm:$0xff]
    %v403 = vld [vmem:[%s1 + $0xaa8] sm:$0xff]
    %v404 = vld [vmem:[%s1 + $0xab0] sm:$0xff]
    %v405 = vld [vmem:[%s1 + $0xab8] sm:$0xff]
    %v406 = vld [vmem:[%s1 + $0xac0] sm:$0xff]
    %v407 = vld [vmem:[%s1 + $0xac8] sm:$0xff]
    %v408 = vld [vmem:[%s1 + $0xad0] sm:$0xff]
    %v409 = vld [vmem:[%s1 + $0xad8] sm:$0xff]
    %v410 = vld [vmem:[%s1 + $0xae0] sm:$0xff]
    %v411 = vld [vmem:[%s1 + $0xae8] sm:$0xff]
    %v412 = vld [vmem:[%s1 + $0xaf0] sm:$0xff]
    %v413 = vld [vmem:[%s1 + $0xaf8] sm:$0xff]
    %v414 = vld [vmem:[%s1 + $0xb00] sm:$0xff]
    %v415 = vld [vmem:[%s1 + $0xb08] sm:$0xff]
    %v416 = vld [vmem:[%s1 + $0xb10] sm:$0xff]
    %v417 = vld [vmem:[%s1 + $0xb18] sm:$0xff]
    %v418 = vld [vmem:[%s1 + $0xb20] sm:$0xff]
    %v419 = vld [vmem:[%s1 + $0xb28] sm:$0xff]
    %v420 = vld [vmem:[%s1 + $0xb30] sm:$0xff]
    %v421 = vld [vmem:[%s1 + $0xb38] sm:$0xff]
    %v422 = vld [vmem:[%s1 + $0xb40] sm:$0xff]
    %v423 = vld [vmem:[%s1 + $0xb48] sm:$0xff]
    %v424 = vld [vmem:[%s1 + $0xb50] sm:$0xff]
    %v425 = vld [vmem:[%s1 + $0xb58] sm:$0xff]
    %v426 = vld [vmem:[%s1 + $0xb60] sm:$0xff]
    %v427 = vld [vmem:[%s1 + $0xb68] sm:$0xff]
    %v428 = vld [vmem:[%s1 + $0xb70] sm:$0xff]
    %v429 = vld [vmem:[%s1 + $0xb78] sm:$0xff]
    %v430 = vld [vmem:[%s1 + $0xb80] sm:$0xff]
    %v431 = vld [vmem:[%s1 + $0xb88] sm:$0xff]
    %v432 = vld [vmem:[%s1 + $0xb90] sm:$0xff]
    %v433 = vld [vmem:[%s1 + $0xb98] sm:$0xff]
    %v434 = vld [vmem:[%s1 + $0xba0] sm:$0xff]
    %v435 = vld [vmem:[%s1 + $0xba8] sm:$0xff]
    %v436 = vld [vmem:[%s1 + $0xbb0] sm:$0xff]
    %v437 = vld [vmem:[%s1 + $0xbb8] sm:$0xff]
    %v438 = vld [vmem:[%s1 + $0xbc0] sm:$0xff]
    %v439 = vld [vmem:[%s1 + $0xbc8] sm:$0xff]
    %v440 = vld [vmem:[%s1 + $0xbd0] sm:$0xff]
    %v441 = vld [vmem:[%s1 + $0xbd8] sm:$0xff]
    %v442 = vld [vmem:[%s1 + $0xbe0] sm:$0xff]
    %v443 = vld [vmem:[%s1 + $0xbe8] sm:$0xff]
    %v444 = vld [vmem:[%s1 + $0xbf0] sm:$0xff]
    %v445 = vld [vmem:[%s1 + $0xbf8] sm:$0xff]
    %v446 = vld [vmem:[%s1 + $0xc00] sm:$0xff]
    %v447 = vld [vmem:[%s1 + $0xc08] sm:$0xff]
    %v448 = vld [vmem:[%s1 + $0xc10] sm:$0xff]
    %v449 = vld [vmem:[%s1 + $0xc18] sm:$0xff]
    %v450 = vld [vmem:[%s1 + $0xc20] sm:$0xff]
    %v451 = vld [vmem:[%s1 + $0xc28] sm:$0xff]
    %v452 = vld [vmem:[%s1 + $0xc30] sm:$0xff]
    %v453 = vld [vmem:[%s1 + $0xc38] sm:$0xff]
    %v454 = vld [vmem:[%s1 + $0xc40] sm:$0xff]
    %v455 = vld [vmem:[%s1 + $0xc48] sm:$0xff]
    %v456 = vld [vmem:[%s1 + $0xc50] sm:$0xff]
    %v457 = vld [vmem:[%s1 + $0xc58] sm:$0xff]
    %v458 = vld [vmem:[%s1 + $0xc60] sm:$0xff]
    %v459 = vld [vmem:[%s1 + $0xc68] sm:$0xff]
    %v460 = vld [vmem:[%s1 + $0xc70] sm:$0xff]
    %v461 = vld [vmem:[%s1 + $0xc78] sm:$0xff]
    %v462 = vld [vmem:[%s1 + $0xc80] sm:$0xff]
    %v463 = vld [vmem:[%s1 + $0xc88] sm:$0xff]
    %v464 = vld [vmem:[%s1 + $0xc90] sm:$0xff]
    %v465 = vld [vmem:[%s1 + $0xc98] sm:$0xff]
    %v466 = vld [vmem:[%s1 + $0xca0] sm:$0xff]
    %v467 = vld [vmem:[%s1 + $0xca8] sm:$0xff]
    %v468 = vld [vmem:[%s1 + $0xcb0] sm:$0xff]
    %v469 = vld [vmem:[%s1 + $0xcb8] sm:$0xff]
    %v470 = vld [vmem:[%s1 + $0xcc0] sm:$0xff]
    %v471 = vld [vmem:[%s1 + $0xcc8] sm:$0xff]
    %v472 = vld [vmem:[%s1 + $0xcd0] sm:$0xff]
    %v473 = vld [vmem:[%s1 + $0xcd8] sm:$0xff]
    %v474 = vld [vmem:[%s1 + $0xce0] sm:$0xff]
    %v475 = vld [vmem:[%s1 + $0xce8] sm:$0xff]
    %v476 = vld [vmem:[%s1 + $0xcf0] sm:$0xff]
    %v477 = vld [vmem:[%s1 + $0xcf8] sm:$0xff]
    %v478 = vld [vmem:[%s1 + $0xd00] sm:$0xff]
    %v479 = vld [vmem:[%s1 + $0xd08] sm:$0xff]
    %v480 = vld [vmem:[%s1 + $0xd10] sm:$0xff]
    %v481 = vld [vmem:[%s1 + $0xd18] sm:$0xff]
    %v482 = vld [vmem:[%s1 + $0xd20] sm:$0xff]
    %v483 = vld [vmem:[%s1 + $0xd28] sm:$0xff]
    %v484 = vld [vmem:[%s1 + $0xd30] sm:$0xff]
    %v485 = vld [vmem:[%s1 + $0xd38] sm:$0xff]
    %v486 = vld [vmem:[%s1 + $0xd40] sm:$0xff]
    %v487 = vld [vmem:[%s1 + $0xd48] sm:$0xff]
    %v488 = vld [vmem:[%s1 + $0xd50] sm:$0xff]
    %v489 = vld [vmem:[%s1 + $0xd58] sm:$0xff]
    %v490 = vld [vmem:[%s1 + $0xd60] sm:$0xff]
    %v491 = vld [vmem:[%s1 + $0xd68] sm:$0xff]
    %v492 = vld [vmem:[%s1 + $0xd70] sm:$0xff]
    %v493 = vld [vmem:[%s1 + $0xd78] sm:$0xff]
    %v494 = vld [vmem:[%s1 + $0xd80] sm:$0xff]
    %v495 = vld [vmem:[%s1 + $0xd88] sm:$0xff]
    %v496 = vld [vmem:[%s1 + $0xd90] sm:$0xff]
    %v497 = vld [vmem:[%s1 + $0xd98] sm:$0xff]
    %v498 = vld [vmem:[%s1 + $0xda0] sm:$0xff]
    %v499 = vld [vmem:[%s1 + $0xda8] sm:$0xff]
    %v500 = vld [vmem:[%s1 + $0xdb0] sm:$0xff]
    %v501 = vld [vmem:[%s1 + $0xdb8] sm:$0xff]
    %v502 = vld [vmem:[%s1 + $0xdc0] sm:$0xff]
    %v503 = vld [vmem:[%s1 + $0xdc8] sm:$0xff]
    %v504 = vld [vmem:[%s1 + $0xdd0] sm:$0xff]
    %v505 = vld [vmem:[%s1 + $0xdd8] sm:$0xff]
    %v506 = vld [vmem:[%s1 + $0xde0] sm:$0xff]
    %v507 = vld [vmem:[%s1 + $0xde8] sm:$0xff]
    %v508 = vld [vmem:[%s1 + $0xdf0] sm:$0xff]
    %v509 = vld [vmem:[%s1 + $0xdf8] sm:$0xff]
    %v510 = vld [vmem:[%s1 + $0xe00] sm:$0xff]
    %v511 = vld [vmem:[%s1 + $0xe08] sm:$0xff]
    %v512 = vld [vmem:[%s1 + $0xe10] sm:$0xff]
    %v513 = vld [vmem:[%s1 + $0xe18] sm:$0xff]
    %v514 = vld [vmem:[%s1 + $0xe20] sm:$0xff]
    %v515 = vld [vmem:[%s1 + $0xe28] sm:$0xff]
    %v516 = vld [vmem:[%s1 + $0xe30] sm:$0xff]
    %v517 = vld [vmem:[%s1 + $0xe38] sm:$0xff]
    %v518 = vld [vmem:[%s1 + $0xe40] sm:$0xff]
    %v519 = vld [vmem:[%s1 + $0xe48] sm:$0xff]
    %v520 = vld [vmem:[%s1 + $0xe50] sm:$0xff]
    %v521 = vld [vmem:[%s1 + $0xe58] sm:$0xff]
    %v522 = vld [vmem:[%s1 + $0xe60] sm:$0xff]
    %v523 = vld [vmem:[%s1 + $0xe68] sm:$0xff]
    %v524 = vld [vmem:[%s1 + $0xe70] sm:$0xff]
    %v525 = vld [vmem:[%s1 + $0xe78] sm:$0xff]
    %v526 = vld [vmem:[%s1 + $0xe80] sm:$0xff]
    %v527 = vld [vmem:[%s1 + $0xe88] sm:$0xff]
    %v528 = vld [vmem:[%s1 + $0xe90] sm:$0xff]
    %v529 = vld [vmem:[%s1 + $0xe98] sm:$0xff]
    %v530 = vld [vmem:[%s1 + $0xea0] sm:$0xff]
    %v531 = vld [vmem:[%s1 + $0xea8] sm:$0xff]
    %v532 = vld [vmem:[%s1 + $0xeb0] sm:$0xff]
    %v533 = vld [vmem:[%s1 + $0xeb8] sm:$0xff]
    %v534 = vld [vmem:[%s1 + $0xec0] sm:$0xff]
    %v535 = vld [vmem:[%s1 + $0xec8] sm:$0xff]
    %v536 = vld [vmem:[%s1 + $0xed0] sm:$0xff]
    %v537 = vld [vmem:[%s1 + $0xed8] sm:$0xff]
    %v538 = vld [vmem:[%s1 + $0xee0] sm:$0xff]
    %v539 = vld [vmem:[%s1 + $0xee8] sm:$0xff]
    %v540 = vld [vmem:[%s1 + $0xef0] sm:$0xff]
    %v541 = vld [vmem:[%s1 + $0xef8] sm:$0xff]
    %v542 = vld [vmem:[%s1 + $0xf00] sm:$0xff]
    %v543 = vld [vmem:[%s1 + $0xf08] sm:$0xff]
    %v544 = vld [vmem:[%s1 + $0xf10] sm:$0xff]
    %v545 = vld [vmem:[%s1 + $0xf18] sm:$0xff]
    %v546 = vld [vmem:[%s1 + $0xf20] sm:$0xff]
    %v547 = vld [vmem:[%s1 + $0xf28] sm:$0xff]
    %v548 = vld [vmem:[%s1 + $0xf30] sm:$0xff]
    %v549 = vld [vmem:[%s1 + $0xf38] sm:$0xff]
    %v550 = vld [vmem:[%s1 + $0xf40] sm:$0xff]
    %v551 = vld [vmem:[%s1 + $0xf48] sm:$0xff]
    %v552 = vld [vmem:[%s1 + $0xf50] sm:$0xff]
    %v553 = vld [vmem:[%s1 + $0xf58] sm:$0xff]
    %v554 = vld [vmem:[%s1 + $0xf60] sm:$0xff]
    %v555 = vld [vmem:[%s1 + $0xf68] sm:$0xff]
    %v556 = vld [vmem:[%s1 + $0xf70] sm:$0xff]
    %v557 = vld [vmem:[%s1 + $0xf78] sm:$0xff]
    %v558 = vld [vmem:[%s1 + $0xf80] sm:$0xff]
    %v559 = vld [vmem:[%s1 + $0xf88] sm:$0xff]
    %v560 = vld [vmem:[%s1 + $0xf90] sm:$0xff]
    %v561 = vld [vmem:[%s1 + $0xf98] sm:$0xff]
    %v562 = vld [vmem:[%s1 + $0xfa0] sm:$0xff]
    %v563 = vld [vmem:[%s1 + $0xfa8] sm:$0xff]
    %v564 = vld [vmem:[%s1 + $0xfb0] sm:$0xff]
    %v565 = vld [vmem:[%s1 + $0xfb8] sm:$0xff]
    %v566 = vld [vmem:[%s1 + $0xfc0] sm:$0xff]
    %v567 = vld [vmem:[%s1 + $0xfc8] sm:$0xff]
    %v568 = vld [vmem:[%s1 + $0xfd0] sm:$0xff]
    %v569 = vld [vmem:[%s1 + $0xfd8] sm:$0xff]
    %v570 = vld [vmem:[%s1 + $0xfe0] sm:$0xff]
    %v571 = vld [vmem:[%s1 + $0xfe8] sm:$0xff]
    %v572 = vld [vmem:[%s1 + $0xff0] sm:$0xff]
    %v573 = vld [vmem:[%s1 + $0xff8] sm:$0xff]
    %v574 = vld [vmem:[%s1 + $0x1000] sm:$0xff]
    %v575 = vld [vmem:[%s1 + $0x1008] sm:$0xff]
    %v576 = vld [vmem:[%s1 + $0x1010] sm:$0xff]
    %v577 = vld [vmem:[%s1 + $0x1018] sm:$0xff]
    %v578 = vld [vmem:[%s1 + $0x1020] sm:$0xff]
    %v579 = vld [vmem:[%s1 + $0x1028] sm:$0xff]
    %v580 = vld [vmem:[%s1 + $0x1030] sm:$0xff]
    %v581 = vld [vmem:[%s1 + $0x1038] sm:$0xff]
    %v582 = vld [vmem:[%s1 + $0x1040] sm:$0xff]
    %v583 = vld [vmem:[%s1 + $0x1048] sm:$0xff]
    %v584 = vld [vmem:[%s1 + $0x1050] sm:$0xff]
    %v585 = vld [vmem:[%s1 + $0x1058] sm:$0xff]
    %v586 = vld [vmem:[%s1 + $0x1060] sm:$0xff]
    %v587 = vld [vmem:[%s1 + $0x1068] sm:$0xff]
    %v588 = vld [vmem:[%s1 + $0x1070] sm:$0xff]
    %v589 = vld [vmem:[%s1 + $0x1078] sm:$0xff]
    %v590 = vld [vmem:[%s1 + $0x1080] sm:$0xff]
    %v591 = vld [vmem:[%s1 + $0x1088] sm:$0xff]
    %v592 = vld [vmem:[%s1 + $0x1090] sm:$0xff]
    %v593 = vld [vmem:[%s1 + $0x1098] sm:$0xff]
    %v594 = vld [vmem:[%s1 + $0x10a0] sm:$0xff]
    %v595 = vld [vmem:[%s1 + $0x10a8] sm:$0xff]
    %v596 = vld [vmem:[%s1 + $0x10b0] sm:$0xff]
    %v597 = vld [vmem:[%s1 + $0x10b8] sm:$0xff]
    %v598 = vld [vmem:[%s1 + $0x10c0] sm:$0xff]
    %v599 = vld [vmem:[%s1 + $0x10c8] sm:$0xff]
    %v600 = vld [vmem:[%s1 + $0x10d0] sm:$0xff]
    %v601 = vld [vmem:[%s1 + $0x10d8] sm:$0xff]
    %v602 = vld [vmem:[%s1 + $0x10e0] sm:$0xff]
    %v603 = vld [vmem:[%s1 + $0x10e8] sm:$0xff]
    %v604 = vld [vmem:[%s1 + $0x10f0] sm:$0xff]
    %v605 = vld [vmem:[%s1 + $0x10f8] sm:$0xff]
    %v606 = vld [vmem:[%s1 + $0x1100] sm:$0xff]
    %v607 = vld [vmem:[%s1 + $0x1108] sm:$0xff]
    %v608 = vld [vmem:[%s1 + $0x1110] sm:$0xff]
    %v609 = vld [vmem:[%s1 + $0x1118] sm:$0xff]
    %v610 = vld [vmem:[%s1 + $0x1120] sm:$0xff]
    %v611 = vld [vmem:[%s1 + $0x1128] sm:$0xff]
    %v612 = vld [vmem:[%s1 + $0x1130] sm:$0xff]
    %v613 = vld [vmem:[%s1 + $0x1138] sm:$0xff]
    %v614 = vld [vmem:[%s1 + $0x1140] sm:$0xff]
    %v615 = vld [vmem:[%s1 + $0x1148] sm:$0xff]
    %v616 = vld [vmem:[%s1 + $0x1150] sm:$0xff]
    %v617 = vld [vmem:[%s1 + $0x1158] sm:$0xff]
    %v618 = vld [vmem:[%s1 + $0x1160] sm:$0xff]
    %v619 = vld [vmem:[%s1 + $0x1168] sm:$0xff]
    %v620 = vld [vmem:[%s1 + $0x1170] sm:$0xff]
    %v621 = vld [vmem:[%s1 + $0x1178] sm:$0xff]
    %v622 = vld [vmem:[%s1 + $0x1180] sm:$0xff]
    %v623 = vld [vmem:[%s1 + $0x1188] sm:$0xff]
    %v624 = vld [vmem:[%s1 + $0x1190] sm:$0xff]
    %v625 = vld [vmem:[%s1 + $0x1198] sm:$0xff]
    %v626 = vld [vmem:[%s1 + $0x11a0] sm:$0xff]
    %v627 = vld [vmem:[%s1 + $0x11a8] sm:$0xff]
    %v628 = vld [vmem:[%s1 + $0x11b0] sm:$0xff]
    %v629 = vld [vmem:[%s1 + $0x11b8] sm:$0xff]
    %v630 = vld [vmem:[%s1 + $0x11c0] sm:$0xff]
    %v631 = vld [vmem:[%s1 + $0x11c8] sm:$0xff]
    %v632 = vld [vmem:[%s1 + $0x11d0] sm:$0xff]
    %v633 = vld [vmem:[%s1 + $0x11d8] sm:$0xff]
    %v634 = vld [vmem:[%s1 + $0x11e0] sm:$0xff]
    %v635 = vld [vmem:[%s1 + $0x11e8] sm:$0xff]
    %v636 = vld [vmem:[%s1 + $0x11f0] sm:$0xff]
    %v637 = vld [vmem:[%s1 + $0x11f8] sm:$0xff]
    %v638 = vld [vmem:[%s1 + $0x1200] sm:$0xff]
    %v639 = vld [vmem:[%s1 + $0x1208] sm:$0xff]
    %v640 = vld [vmem:[%s1 + $0x1210] sm:$0xff]
    %v641 = vld [vmem:[%s1 + $0x1218] sm:$0xff]
    %v642 = vld [vmem:[%s1 + $0x1220] sm:$0xff]
    %v643 = vld [vmem:[%s1 + $0x1228] sm:$0xff]
    %v644 = vld [vmem:[%s1 + $0x1230] sm:$0xff]
    %v645 = vld [vmem:[%s1 + $0x1238] sm:$0xff]
    %v646 = vld [vmem:[%s1 + $0x1240] sm:$0xff]
    %v647 = vld [vmem:[%s1 + $0x1248] sm:$0xff]
    %v648 = vld [vmem:[%s1 + $0x1250] sm:$0xff]
    %v649 = vld [vmem:[%s1 + $0x1258] sm:$0xff]
    %v650 = vld [vmem:[%s1 + $0x1260] sm:$0xff]
    %v651 = vld [vmem:[%s1 + $0x1268] sm:$0xff]
    %v652 = vld [vmem:[%s1 + $0x1270] sm:$0xff]
    %v653 = vld [vmem:[%s1 + $0x1278] sm:$0xff]
    %v654 = vld [vmem:[%s1 + $0x1280] sm:$0xff]
    %v655 = vld [vmem:[%s1 + $0x1288] sm:$0xff]
    %v656 = vld [vmem:[%s1 + $0x1290] sm:$0xff]
    %v657 = vld [vmem:[%s1 + $0x1298] sm:$0xff]
    %v658 = vld [vmem:[%s1 + $0x12a0] sm:$0xff]
    %v659 = vld [vmem:[%s1 + $0x12a8] sm:$0xff]
    %v660 = vld [vmem:[%s1 + $0x12b0] sm:$0xff]
    %v661 = vld [vmem:[%s1 + $0x12b8] sm:$0xff]
    %v662 = vld [vmem:[%s1 + $0x12c0] sm:$0xff]
    %v663 = vld [vmem:[%s1 + $0x12c8] sm:$0xff]
    %v664 = vld [vmem:[%s1 + $0x12d0] sm:$0xff]
    %v665 = vld [vmem:[%s1 + $0x12d8] sm:$0xff]
    %v666 = vld [vmem:[%s1 + $0x12e0] sm:$0xff]
    %v667 = vld [vmem:[%s1 + $0x12e8] sm:$0xff]
    %v668 = vld [vmem:[%s1 + $0x12f0] sm:$0xff]
    %v669 = vld [vmem:[%s1 + $0x12f8] sm:$0xff]
    %v670 = vld [vmem:[%s1 + $0x1300] sm:$0xff]
    %v671 = vld [vmem:[%s1 + $0x1308] sm:$0xff]
    %v672 = vld [vmem:[%s1 + $0x1310] sm:$0xff]
    %v673 = vld [vmem:[%s1 + $0x1318] sm:$0xff]
    %v674 = vld [vmem:[%s1 + $0x1320] sm:$0xff]
    %v675 = vld [vmem:[%s1 + $0x1328] sm:$0xff]
    %v676 = vld [vmem:[%s1 + $0x1330] sm:$0xff]
    %v677 = vld [vmem:[%s1 + $0x1338] sm:$0xff]
    %v678 = vld [vmem:[%s1 + $0x1340] sm:$0xff]
    %v679 = vld [vmem:[%s1 + $0x1348] sm:$0xff]
    %v680 = vld [vmem:[%s1 + $0x1350] sm:$0xff]
    %v681 = vld [vmem:[%s1 + $0x1358] sm:$0xff]
    %v682 = vld [vmem:[%s1 + $0x1360] sm:$0xff]
    %v683 = vld [vmem:[%s1 + $0x1368] sm:$0xff]
    %v684 = vld [vmem:[%s1 + $0x1370] sm:$0xff]
    %v685 = vld [vmem:[%s1 + $0x1378] sm:$0xff]
    %v686 = vld [vmem:[%s1 + $0x1380] sm:$0xff]
    %v687 = vld [vmem:[%s1 + $0x1388] sm:$0xff]
    %v688 = vld [vmem:[%s1 + $0x1390] sm:$0xff]
    %v689 = vld [vmem:[%s1 + $0x1398] sm:$0xff]
    %v690 = vld [vmem:[%s1 + $0x13a0] sm:$0xff]
    %v691 = vld [vmem:[%s1 + $0x13a8] sm:$0xff]
    %v692 = vld [vmem:[%s1 + $0x13b0] sm:$0xff]
    %v693 = vld [vmem:[%s1 + $0x13b8] sm:$0xff]
    %v694 = vld [vmem:[%s1 + $0x13c0] sm:$0xff]
    %v695 = vld [vmem:[%s1 + $0x13c8] sm:$0xff]
    %v696 = vld [vmem:[%s1 + $0x13d0] sm:$0xff]
    %v697 = vld [vmem:[%s1 + $0x13d8] sm:$0xff]
    %v698 = vld [vmem:[%s1 + $0x13e0] sm:$0xff]
    %v699 = vld [vmem:[%s1 + $0x13e8] sm:$0xff]
    %v700 = vld [vmem:[%s1 + $0x13f0] sm:$0xff]
    %v701 = vld [vmem:[%s1 + $0x13f8] sm:$0xff]
    %v702 = vld [vmem:[%s1 + $0x1400] sm:$0xff]
    %v703 = vld [vmem:[%s1 + $0x1408] sm:$0xff]
    %v704 = vld [vmem:[%s1 + $0x1410] sm:$0xff]
    %v705 = vld [vmem:[%s1 + $0x1418] sm:$0xff]
    %v706 = vld [vmem:[%s1 + $0x1420] sm:$0xff]
    %v707 = vld [vmem:[%s1 + $0x1428] sm:$0xff]
    %v708 = vld [vmem:[%s1 + $0x1430] sm:$0xff]
    %v709 = vld [vmem:[%s1 + $0x1438] sm:$0xff]
    %v710 = vld [vmem:[%s1 + $0x1440] sm:$0xff]
    %v711 = vld [vmem:[%s1 + $0x1448] sm:$0xff]
    %v712 = vld [vmem:[%s1 + $0x1450] sm:$0xff]
    %v713 = vld [vmem:[%s1 + $0x1458] sm:$0xff]
    %v714 = vld [vmem:[%s1 + $0x1460] sm:$0xff]
    %v715 = vld [vmem:[%s1 + $0x1468] sm:$0xff]
    %v716 = vld [vmem:[%s1 + $0x1470] sm:$0xff]
    %v717 = vld [vmem:[%s1 + $0x1478] sm:$0xff]
    %v718 = vld [vmem:[%s1 + $0x1480] sm:$0xff]
    %v719 = vld [vmem:[%s1 + $0x1488] sm:$0xff]
    %v720 = vld [vmem:[%s1 + $0x1490] sm:$0xff]
    %v721 = vld [vmem:[%s1 + $0x1498] sm:$0xff]
    %v722 = vld [vmem:[%s1 + $0x14a0] sm:$0xff]
    %v723 = vld [vmem:[%s1 + $0x14a8] sm:$0xff]
    %v724 = vld [vmem:[%s1 + $0x14b0] sm:$0xff]
    %v725 = vld [vmem:[%s1 + $0x14b8] sm:$0xff]
    %v726 = vld [vmem:[%s1 + $0x14c0] sm:$0xff]
    %v727 = vld [vmem:[%s1 + $0x14c8] sm:$0xff]
    %v728 = vld [vmem:[%s1 + $0x14d0] sm:$0xff]
    %v729 = vld [vmem:[%s1 + $0x14d8] sm:$0xff]
    %v730 = vld [vmem:[%s1 + $0x14e0] sm:$0xff]
    %v731 = vld [vmem:[%s1 + $0x14e8] sm:$0xff]
    %v732 = vld [vmem:[%s1 + $0x14f0] sm:$0xff]
    %v733 = vld [vmem:[%s1 + $0x14f8] sm:$0xff]
    %v734 = vld [vmem:[%s1 + $0x1500] sm:$0xff]
    %v735 = vld [vmem:[%s1 + $0x1508] sm:$0xff]
    %v736 = vld [vmem:[%s1 + $0x1510] sm:$0xff]
    %v737 = vld [vmem:[%s1 + $0x1518] sm:$0xff]
    %v738 = vld [vmem:[%s1 + $0x1520] sm:$0xff]
    %v739 = vld [vmem:[%s1 + $0x1528] sm:$0xff]
    %v740 = vld [vmem:[%s1 + $0x1530] sm:$0xff]
    %v741 = vld [vmem:[%s1 + $0x1538] sm:$0xff]
    %v742 = vld [vmem:[%s1 + $0x1540] sm:$0xff]
    %v743 = vld [vmem:[%s1 + $0x1548] sm:$0xff]
    %v744 = vld [vmem:[%s1 + $0x1550] sm:$0xff]
    %v745 = vld [vmem:[%s1 + $0x1558] sm:$0xff]
    %v746 = vld [vmem:[%s1 + $0x1560] sm:$0xff]
    %v747 = vld [vmem:[%s1 + $0x1568] sm:$0xff]
    %v748 = vld [vmem:[%s1 + $0x1570] sm:$0xff]
    %v749 = vld [vmem:[%s1 + $0x1578] sm:$0xff]
    %v750 = vld [vmem:[%s1 + $0x1580] sm:$0xff]
    %v751 = vld [vmem:[%s1 + $0x1588] sm:$0xff]
    %v752 = vld [vmem:[%s1 + $0x1590] sm:$0xff]
    %v753 = vld [vmem:[%s1 + $0x1598] sm:$0xff]
    %v754 = vld [vmem:[%s1 + $0x15a0] sm:$0xff]
    %v755 = vld [vmem:[%s1 + $0x15a8] sm:$0xff]
    %v756 = vld [vmem:[%s1 + $0x15b0] sm:$0xff]
    %v757 = vld [vmem:[%s1 + $0x15b8] sm:$0xff]
    %v758 = vld [vmem:[%s1 + $0x15c0] sm:$0xff]
    %v759 = vld [vmem:[%s1 + $0x15c8] sm:$0xff]
    %v760 = vld [vmem:[%s1 + $0x15d0] sm:$0xff]
    %v761 = vld [vmem:[%s1 + $0x15d8] sm:$0xff]
    %v762 = vld [vmem:[%s1 + $0x15e0] sm:$0xff]
    %v763 = vld [vmem:[%s1 + $0x15e8] sm:$0xff]
    %v764 = vld [vmem:[%s1 + $0x15f0] sm:$0xff]
    %v765 = vld [vmem:[%s1 + $0x15f8] sm:$0xff]
    %v766 = vld [vmem:[%s1 + $0x1600] sm:$0xff]
    %v767 = vld [vmem:[%s1 + $0x1608] sm:$0xff]
    %v768 = vld [vmem:[%s1 + $0x1610] sm:$0xff]
    %v769 = vld [vmem:[%s1 + $0x1618] sm:$0xff]
    %v770 = vld [vmem:[%s1 + $0x1620] sm:$0xff]
    %v771 = vld [vmem:[%s1 + $0x1628] sm:$0xff]
    %v772 = vld [vmem:[%s1 + $0x1630] sm:$0xff]
    %v773 = vld [vmem:[%s1 + $0x1638] sm:$0xff]
    %v774 = vld [vmem:[%s1 + $0x1640] sm:$0xff]
    %v775 = vld [vmem:[%s1 + $0x1648] sm:$0xff]
    %v776 = vld [vmem:[%s1 + $0x1650] sm:$0xff]
    %v777 = vld [vmem:[%s1 + $0x1658] sm:$0xff]
    %v778 = vld [vmem:[%s1 + $0x1660] sm:$0xff]
    %v779 = vld [vmem:[%s1 + $0x1668] sm:$0xff]
    %v780 = vld [vmem:[%s1 + $0x1670] sm:$0xff]
    %v781 = vld [vmem:[%s1 + $0x1678] sm:$0xff]
    %v782 = vld [vmem:[%s1 + $0x1680] sm:$0xff]
    %v783 = vld [vmem:[%s1 + $0x1688] sm:$0xff]
    %v784 = vld [vmem:[%s1 + $0x1690] sm:$0xff]
    %v785 = vld [vmem:[%s1 + $0x1698] sm:$0xff]
    %v786 = vld [vmem:[%s1 + $0x16a0] sm:$0xff]
    %v787 = vld [vmem:[%s1 + $0x16a8] sm:$0xff]
    %v788 = vld [vmem:[%s1 + $0x16b0] sm:$0xff]
    %v789 = vld [vmem:[%s1 + $0x16b8] sm:$0xff]
    %v790 = vld [vmem:[%s1 + $0x16c0] sm:$0xff]
    %v791 = vld [vmem:[%s1 + $0x16c8] sm:$0xff]
    %v792 = vld [vmem:[%s1 + $0x16d0] sm:$0xff]
    %v793 = vld [vmem:[%s1 + $0x16d8] sm:$0xff]
    %v794 = vld [vmem:[%s1 + $0x16e0] sm:$0xff]
    %v795 = vld [vmem:[%s1 + $0x16e8] sm:$0xff]
    %v796 = vld [vmem:[%s1 + $0x16f0] sm:$0xff]
    %v797 = vld [vmem:[%s1 + $0x16f8] sm:$0xff]
    %v798 = vld [vmem:[%s1 + $0x1700] sm:$0xff]
    %v799 = vld [vmem:[%s1 + $0x1708] sm:$0xff]
    %v800 = vld [vmem:[%s1 + $0x1710] sm:$0xff]
    %v801 = vld [vmem:[%s1 + $0x1718] sm:$0xff]
    %v802 = vld [vmem:[%s1 + $0x1720] sm:$0xff]
    %v803 = vld [vmem:[%s1 + $0x1728] sm:$0xff]
    %v804 = vld [vmem:[%s1 + $0x1730] sm:$0xff]
    %v805 = vld [vmem:[%s1 + $0x1738] sm:$0xff]
    %v806 = vld [vmem:[%s1 + $0x1740] sm:$0xff]
    %v807 = vld [vmem:[%s1 + $0x1748] sm:$0xff]
    %v808 = vld [vmem:[%s1 + $0x1750] sm:$0xff]
    %v809 = vld [vmem:[%s1 + $0x1758] sm:$0xff]
    %v810 = vld [vmem:[%s1 + $0x1760] sm:$0xff]
    %v811 = vld [vmem:[%s1 + $0x1768] sm:$0xff]
    %v812 = vld [vmem:[%s1 + $0x1770] sm:$0xff]
    %v813 = vld [vmem:[%s1 + $0x1778] sm:$0xff]
    %v814 = vld [vmem:[%s1 + $0x1780] sm:$0xff]
    %v815 = vld [vmem:[%s1 + $0x1788] sm:$0xff]
    %v816 = vld [vmem:[%s1 + $0x1790] sm:$0xff]
    %v817 = vld [vmem:[%s1 + $0x1798] sm:$0xff]
    %v818 = vld [vmem:[%s1 + $0x17a0] sm:$0xff]
    %v819 = vld [vmem:[%s1 + $0x17a8] sm:$0xff]
    %v820 = vld [vmem:[%s1 + $0x17b0] sm:$0xff]
    %v821 = vld [vmem:[%s1 + $0x17b8] sm:$0xff]
    %v822 = vld [vmem:[%s1 + $0x17c0] sm:$0xff]
    %v823 = vld [vmem:[%s1 + $0x17c8] sm:$0xff]
    %v824 = vld [vmem:[%s1 + $0x17d0] sm:$0xff]
    %v825 = vld [vmem:[%s1 + $0x17d8] sm:$0xff]
    %v826 = vld [vmem:[%s1 + $0x17e0] sm:$0xff]
    %v827 = vld [vmem:[%s1 + $0x17e8] sm:$0xff]
    %v828 = vld [vmem:[%s1 + $0x17f0] sm:$0xff]
    %v829 = vld [vmem:[%s1 + $0x17f8] sm:$0xff]
    %v830 = vld [vmem:[%s1 + $0x1800] sm:$0xff]
    %v831 = vld [vmem:[%s1 + $0x1808] sm:$0xff]
    %v832 = vld [vmem:[%s1 + $0x1810] sm:$0xff]
    %v833 = vld [vmem:[%s1 + $0x1818] sm:$0xff]
    %v834 = vld [vmem:[%s1 + $0x1820] sm:$0xff]
    %v835 = vld [vmem:[%s1 + $0x1828] sm:$0xff]
    %v836 = vld [vmem:[%s1 + $0x1830] sm:$0xff]
    %v837 = vld [vmem:[%s1 + $0x1838] sm:$0xff]
    %v838 = vld [vmem:[%s1 + $0x1840] sm:$0xff]
    %v839 = vld [vmem:[%s1 + $0x1848] sm:$0xff]
    %v840 = vld [vmem:[%s1 + $0x1850] sm:$0xff]
    %v841 = vld [vmem:[%s1 + $0x1858] sm:$0xff]
    %v842 = vld [vmem:[%s1 + $0x1860] sm:$0xff]
    %v843 = vld [vmem:[%s1 + $0x1868] sm:$0xff]
    %v844 = vld [vmem:[%s1 + $0x1870] sm:$0xff]
    %v845 = vld [vmem:[%s1 + $0x1878] sm:$0xff]
    %v846 = vld [vmem:[%s1 + $0x1880] sm:$0xff]
    %v847 = vld [vmem:[%s1 + $0x1888] sm:$0xff]
    %v848 = vld [vmem:[%s1 + $0x1890] sm:$0xff]
    %v849 = vld [vmem:[%s1 + $0x1898] sm:$0xff]
    %v850 = vld [vmem:[%s1 + $0x18a0] sm:$0xff]
    %v851 = vld [vmem:[%s1 + $0x18a8] sm:$0xff]
    %v852 = vld [vmem:[%s1 + $0x18b0] sm:$0xff]
    %v853 = vld [vmem:[%s1 + $0x18b8] sm:$0xff]
    %v854 = vld [vmem:[%s1 + $0x18c0] sm:$0xff]
    %v855 = vld [vmem:[%s1 + $0x18c8] sm:$0xff]
    %v856 = vld [vmem:[%s1 + $0x18d0] sm:$0xff]
    %v857 = vld [vmem:[%s1 + $0x18d8] sm:$0xff]
    %v858 = vld [vmem:[%s1 + $0x18e0] sm:$0xff]
    %v859 = vld [vmem:[%s1 + $0x18e8] sm:$0xff]
    %v860 = vld [vmem:[%s1 + $0x18f0] sm:$0xff]
    %v861 = vld [vmem:[%s1 + $0x18f8] sm:$0xff]
    %v862 = vld [vmem:[%s1 + $0x1900] sm:$0xff]
    %v863 = vld [vmem:[%s1 + $0x1908] sm:$0xff]
    %v864 = vld [vmem:[%s1 + $0x1910] sm:$0xff]
    %v865 = vld [vmem:[%s1 + $0x1918] sm:$0xff]
    %v866 = vld [vmem:[%s1 + $0x1920] sm:$0xff]
    %v867 = vld [vmem:[%s1 + $0x1928] sm:$0xff]
    %v868 = vld [vmem:[%s1 + $0x1930] sm:$0xff]
    %v869 = vld [vmem:[%s1 + $0x1938] sm:$0xff]
    %v870 = vld [vmem:[%s1 + $0x1940] sm:$0xff]
    %v871 = vld [vmem:[%s1 + $0x1948] sm:$0xff]
    %v872 = vld [vmem:[%s1 + $0x1950] sm:$0xff]
    %v873 = vld [vmem:[%s1 + $0x1958] sm:$0xff]
    %v874 = vld [vmem:[%s1 + $0x1960] sm:$0xff]
    %v875 = vld [vmem:[%s1 + $0x1968] sm:$0xff]
    %v876 = vld [vmem:[%s1 + $0x1970] sm:$0xff]
    %v877 = vld [vmem:[%s1 + $0x1978] sm:$0xff]
    %v878 = vld [vmem:[%s1 + $0x1980] sm:$0xff]
    %v879 = vld [vmem:[%s1 + $0x1988] sm:$0xff]
    %v880 = vld [vmem:[%s1 + $0x1990] sm:$0xff]
    %v881 = vld [vmem:[%s1 + $0x1998] sm:$0xff]
    %v882 = vld [vmem:[%s1 + $0x19a0] sm:$0xff]
    %v883 = vld [vmem:[%s1 + $0x19a8] sm:$0xff]
    %v884 = vld [vmem:[%s1 + $0x19b0] sm:$0xff]
    %v885 = vld [vmem:[%s1 + $0x19b8] sm:$0xff]
    %v886 = vld [vmem:[%s1 + $0x19c0] sm:$0xff]
    %v887 = vld [vmem:[%s1 + $0x19c8] sm:$0xff]
    %v888 = vld [vmem:[%s1 + $0x19d0] sm:$0xff]
    %v889 = vld [vmem:[%s1 + $0x19d8] sm:$0xff]
    %v890 = vld [vmem:[%s1 + $0x19e0] sm:$0xff]
    %v891 = vld [vmem:[%s1 + $0x19e8] sm:$0xff]
    %v892 = vld [vmem:[%s1 + $0x19f0] sm:$0xff]
    %v893 = vld [vmem:[%s1 + $0x19f8] sm:$0xff]
    %v894 = vld [vmem:[%s1 + $0x1a00] sm:$0xff]
    %v895 = vld [vmem:[%s1 + $0x1a08] sm:$0xff]
    %v896 = vld [vmem:[%s1 + $0x1a10] sm:$0xff]
    %v897 = vld [vmem:[%s1 + $0x1a18] sm:$0xff]
    %v898 = vld [vmem:[%s1 + $0x1a20] sm:$0xff]
    %v899 = vld [vmem:[%s1 + $0x1a28] sm:$0xff]
    %v900 = vld [vmem:[%s1 + $0x1a30] sm:$0xff]
    %v901 = vld [vmem:[%s1 + $0x1a38] sm:$0xff]
    %v902 = vld [vmem:[%s1 + $0x1a40] sm:$0xff]
    %v903 = vld [vmem:[%s1 + $0x1a48] sm:$0xff]
    %v904 = vld [vmem:[%s1 + $0x1a50] sm:$0xff]
    %v905 = vld [vmem:[%s1 + $0x1a58] sm:$0xff]
    %v906 = vld [vmem:[%s1 + $0x1a60] sm:$0xff]
    %v907 = vld [vmem:[%s1 + $0x1a68] sm:$0xff]
    %v908 = vld [vmem:[%s1 + $0x1a70] sm:$0xff]
    %v909 = vld [vmem:[%s1 + $0x1a78] sm:$0xff]
    %v910 = vld [vmem:[%s1 + $0x1a80] sm:$0xff]
    %v911 = vld [vmem:[%s1 + $0x1a88] sm:$0xff]
    %v912 = vld [vmem:[%s1 + $0x1a90] sm:$0xff]
    %v913 = vld [vmem:[%s1 + $0x1a98] sm:$0xff]
    %v914 = vld [vmem:[%s1 + $0x1aa0] sm:$0xff]
    %v915 = vld [vmem:[%s1 + $0x1aa8] sm:$0xff]
    %v916 = vld [vmem:[%s1 + $0x1ab0] sm:$0xff]
    %v917 = vld [vmem:[%s1 + $0x1ab8] sm:$0xff]
    %v918 = vld [vmem:[%s1 + $0x1ac0] sm:$0xff]
    %v919 = vld [vmem:[%s1 + $0x1ac8] sm:$0xff]
    %v920 = vld [vmem:[%s1 + $0x1ad0] sm:$0xff]
    %v921 = vld [vmem:[%s1 + $0x1ad8] sm:$0xff]
    %v922 = vld [vmem:[%s1 + $0x1ae0] sm:$0xff]
    %v923 = vld [vmem:[%s1 + $0x1ae8] sm:$0xff]
    %v924 = vld [vmem:[%s1 + $0x1af0] sm:$0xff]
    %v925 = vld [vmem:[%s1 + $0x1af8] sm:$0xff]
    %v926 = vld [vmem:[%s1 + $0x1b00] sm:$0xff]
    %v927 = vld [vmem:[%s1 + $0x1b08] sm:$0xff]
    %v928 = vld [vmem:[%s1 + $0x1b10] sm:$0xff]
    %v929 = vld [vmem:[%s1 + $0x1b18] sm:$0xff]
    %v930 = vld [vmem:[%s1 + $0x1b20] sm:$0xff]
    %v931 = vld [vmem:[%s1 + $0x1b28] sm:$0xff]
    %v932 = vld [vmem:[%s1 + $0x1b30] sm:$0xff]
    %v933 = vld [vmem:[%s1 + $0x1b38] sm:$0xff]
    %v934 = vld [vmem:[%s1 + $0x1b40] sm:$0xff]
    %v935 = vld [vmem:[%s1 + $0x1b48] sm:$0xff]
    %v936 = vld [vmem:[%s1 + $0x1b50] sm:$0xff]
    %v937 = vld [vmem:[%s1 + $0x1b58] sm:$0xff]
    %v938 = vld [vmem:[%s1 + $0x1b60] sm:$0xff]
    %v939 = vld [vmem:[%s1 + $0x1b68] sm:$0xff]
    %v940 = vld [vmem:[%s1 + $0x1b70] sm:$0xff]
    %v941 = vld [vmem:[%s1 + $0x1b78] sm:$0xff]
    %v942 = vld [vmem:[%s1 + $0x1b80] sm:$0xff]
    %v943 = vld [vmem:[%s1 + $0x1b88] sm:$0xff]
    %v944 = vld [vmem:[%s1 + $0x1b90] sm:$0xff]
    %v945 = vld [vmem:[%s1 + $0x1b98] sm:$0xff]
    %v946 = vld [vmem:[%s1 + $0x1ba0] sm:$0xff]
    %v947 = vld [vmem:[%s1 + $0x1ba8] sm:$0xff]
    %v948 = vld [vmem:[%s1 + $0x1bb0] sm:$0xff]
    %v949 = vld [vmem:[%s1 + $0x1bb8] sm:$0xff]
    %v950 = vld [vmem:[%s1 + $0x1bc0] sm:$0xff]
    %v951 = vld [vmem:[%s1 + $0x1bc8] sm:$0xff]
    %v952 = vld [vmem:[%s1 + $0x1bd0] sm:$0xff]
    %v953 = vld [vmem:[%s1 + $0x1bd8] sm:$0xff]
    %v954 = vld [vmem:[%s1 + $0x1be0] sm:$0xff]
    %v955 = vld [vmem:[%s1 + $0x1be8] sm:$0xff]
    %v956 = vld [vmem:[%s1 + $0x1bf0] sm:$0xff]
    %v957 = vld [vmem:[%s1 + $0x1bf8] sm:$0xff]
    %v958 = vld [vmem:[%s1 + $0x1c00] sm:$0xff]
    %v959 = vld [vmem:[%s1 + $0x1c08] sm:$0xff]
    %v960 = vld [vmem:[%s1 + $0x1c10] sm:$0xff]
    %v961 = vld [vmem:[%s1 + $0x1c18] sm:$0xff]
    %v962 = vld [vmem:[%s1 + $0x1c20] sm:$0xff]
    %v963 = vld [vmem:[%s1 + $0x1c28] sm:$0xff]
    %v964 = vld [vmem:[%s1 + $0x1c30] sm:$0xff]
    %v965 = vld [vmem:[%s1 + $0x1c38] sm:$0xff]
    %v966 = vld [vmem:[%s1 + $0x1c40] sm:$0xff]
    %v967 = vld [vmem:[%s1 + $0x1c48] sm:$0xff]
    %v968 = vld [vmem:[%s1 + $0x1c50] sm:$0xff]
    %v969 = vld [vmem:[%s1 + $0x1c58] sm:$0xff]
    %v970 = vld [vmem:[%s1 + $0x1c60] sm:$0xff]
    %v971 = vld [vmem:[%s1 + $0x1c68] sm:$0xff]
    %v972 = vld [vmem:[%s1 + $0x1c70] sm:$0xff]
    %v973 = vld [vmem:[%s1 + $0x1c78] sm:$0xff]
    %v974 = vld [vmem:[%s1 + $0x1c80] sm:$0xff]
    %v975 = vld [vmem:[%s1 + $0x1c88] sm:$0xff]
    %v976 = vld [vmem:[%s1 + $0x1c90] sm:$0xff]
    %v977 = vld [vmem:[%s1 + $0x1c98] sm:$0xff]
    %v978 = vld [vmem:[%s1 + $0x1ca0] sm:$0xff]
    %v979 = vld [vmem:[%s1 + $0x1ca8] sm:$0xff]
    %v980 = vld [vmem:[%s1 + $0x1cb0] sm:$0xff]
    %v981 = vld [vmem:[%s1 + $0x1cb8] sm:$0xff]
    %v982 = vld [vmem:[%s1 + $0x1cc0] sm:$0xff]
    %v983 = vld [vmem:[%s1 + $0x1cc8] sm:$0xff]
    %v984 = vld [vmem:[%s1 + $0x1cd0] sm:$0xff]
    %v985 = vld [vmem:[%s1 + $0x1cd8] sm:$0xff]
    %v986 = vld [vmem:[%s1 + $0x1ce0] sm:$0xff]
    %v987 = vld [vmem:[%s1 + $0x1ce8] sm:$0xff]
    %v988 = vld [vmem:[%s1 + $0x1cf0] sm:$0xff]
    %v989 = vld [vmem:[%s1 + $0x1cf8] sm:$0xff]
    %v990 = vld [vmem:[%s1 + $0x1d00] sm:$0xff]
    %v991 = vld [vmem:[%s1 + $0x1d08] sm:$0xff]
    %v992 = vld [vmem:[%s1 + $0x1d10] sm:$0xff]
    %v993 = vld [vmem:[%s1 + $0x1d18] sm:$0xff]
    %v994 = vld [vmem:[%s1 + $0x1d20] sm:$0xff]
    %v995 = vld [vmem:[%s1 + $0x1d28] sm:$0xff]
    %v996 = vld [vmem:[%s1 + $0x1d30] sm:$0xff]
    %v997 = vld [vmem:[%s1 + $0x1d38] sm:$0xff]
    %v998 = vld [vmem:[%s1 + $0x1d40] sm:$0xff]
    %v999 = vld [vmem:[%s1 + $0x1d48] sm:$0xff]
    %v1000 = vld [vmem:[%s1 + $0x1d50] sm:$0xff]
    %v1001 = vld [vmem:[%s1 + $0x1d58] sm:$0xff]
    %v1002 = vld [vmem:[%s1 + $0x1d60] sm:$0xff]
    %v1003 = vld [vmem:[%s1 + $0x1d68] sm:$0xff]
    %v1004 = vld [vmem:[%s1 + $0x1d70] sm:$0xff]
    %v1005 = vld [vmem:[%s1 + $0x1d78] sm:$0xff]
    %v1006 = vld [vmem:[%s1 + $0x1d80] sm:$0xff]
    %v1007 = vld [vmem:[%s1 + $0x1d88] sm:$0xff]
    %v1008 = vld [vmem:[%s1 + $0x1d90] sm:$0xff]
    %v1009 = vld [vmem:[%s1 + $0x1d98] sm:$0xff]
    %v1010 = vld [vmem:[%s1 + $0x1da0] sm:$0xff]
    %v1011 = vld [vmem:[%s1 + $0x1da8] sm:$0xff]
    %v1012 = vld [vmem:[%s1 + $0x1db0] sm:$0xff]
    %v1013 = vld [vmem:[%s1 + $0x1db8] sm:$0xff]
    %v1014 = vld [vmem:[%s1 + $0x1dc0] sm:$0xff]
    %v1015 = vld [vmem:[%s1 + $0x1dc8] sm:$0xff]
    %v1016 = vld [vmem:[%s1 + $0x1dd0] sm:$0xff]
    %v1017 = vld [vmem:[%s1 + $0x1dd8] sm:$0xff]
    %v1018 = vld [vmem:[%s1 + $0x1de0] sm:$0xff]
    %v1019 = vld [vmem:[%s1 + $0x1de8] sm:$0xff]
    %v1020 = vld [vmem:[%s1 + $0x1df0] sm:$0xff]
    %v1021 = vld [vmem:[%s1 + $0x1df8] sm:$0xff]
    %v1022 = vld [vmem:[%s1 + $0x1e00] sm:$0xff]
    %v1023 = vld [vmem:[%s1 + $0x1e08] sm:$0xff]
    %v1024 = vld [vmem:[%s1 + $0x1e10] sm:$0xff]
    %v1025 = vld [vmem:[%s1 + $0x1e18] sm:$0xff]
    %v1026 = vld [vmem:[%s1 + $0x1e20] sm:$0xff]
    %v1027 = vld [vmem:[%s1 + $0x1e28] sm:$0xff]
    %v1028 = vld [vmem:[%s1 + $0x1e30] sm:$0xff]
    %v1029 = vld [vmem:[%s1 + $0x1e38] sm:$0xff]
    %v1030 = vld [vmem:[%s1 + $0x1e40] sm:$0xff]
    %v1031 = vld [vmem:[%s1 + $0x1e48] sm:$0xff]
    %v1032 = vld [vmem:[%s1 + $0x1e50] sm:$0xff]
    %v1033 = vld [vmem:[%s1 + $0x1e58] sm:$0xff]
    %v1034 = vld [vmem:[%s1 + $0x1e60] sm:$0xff]
    %v1035 = vld [vmem:[%s1 + $0x1e68] sm:$0xff]
    %v1036 = vld [vmem:[%s1 + $0x1e70] sm:$0xff]
    %v1037 = vld [vmem:[%s1 + $0x1e78] sm:$0xff]
    %v1038 = vld [vmem:[%s1 + $0x1e80] sm:$0xff]
    %v1039 = vld [vmem:[%s1 + $0x1e88] sm:$0xff]
    %v1040 = vld [vmem:[%s1 + $0x1e90] sm:$0xff]
    %v1041 = vld [vmem:[%s1 + $0x1e98] sm:$0xff]
    %v1042 = vld [vmem:[%s1 + $0x1ea0] sm:$0xff]
    %v1043 = vld [vmem:[%s1 + $0x1ea8] sm:$0xff]
    %v1044 = vld [vmem:[%s1 + $0x1eb0] sm:$0xff]
    %v1045 = vld [vmem:[%s1 + $0x1eb8] sm:$0xff]
    %v1046 = vld [vmem:[%s1 + $0x1ec0] sm:$0xff]
    %v1047 = vld [vmem:[%s1 + $0x1ec8] sm:$0xff]
    %v1048 = vld [vmem:[%s1 + $0x1ed0] sm:$0xff]
    %v1049 = vld [vmem:[%s1 + $0x1ed8] sm:$0xff]
    %v1050 = vld [vmem:[%s1 + $0x1ee0] sm:$0xff]
    %v1051 = vld [vmem:[%s1 + $0x1ee8] sm:$0xff]
    %v1052 = vld [vmem:[%s1 + $0x1ef0] sm:$0xff]
    %v1053 = vld [vmem:[%s1 + $0x1ef8] sm:$0xff]
    %v1054 = vld [vmem:[%s1 + $0x1f00] sm:$0xff]
    %v1055 = vld [vmem:[%s1 + $0x1f08] sm:$0xff]
    %v1056 = vld [vmem:[%s1 + $0x1f10] sm:$0xff]
    %v1057 = vld [vmem:[%s1 + $0x1f18] sm:$0xff]
    %v1058 = vld [vmem:[%s1 + $0x1f20] sm:$0xff]
    %v1059 = vld [vmem:[%s1 + $0x1f28] sm:$0xff]
    %v1060 = vld [vmem:[%s1 + $0x1f30] sm:$0xff]
    %v1061 = vld [vmem:[%s1 + $0x1f38] sm:$0xff]
    %v1062 = vld [vmem:[%s1 + $0x1f40] sm:$0xff]
    %v1063 = vld [vmem:[%s1 + $0x1f48] sm:$0xff]
    %v1064 = vld [vmem:[%s1 + $0x1f50] sm:$0xff]
    %v1065 = vld [vmem:[%s1 + $0x1f58] sm:$0xff]
    %v1066 = vld [vmem:[%s1 + $0x1f60] sm:$0xff]
    %v1067 = vld [vmem:[%s1 + $0x1f68] sm:$0xff]
    %v1068 = vld [vmem:[%s1 + $0x1f70] sm:$0xff]
    %v1069 = vld [vmem:[%s1 + $0x1f78] sm:$0xff]
    %v1070 = vld [vmem:[%s1 + $0x1f80] sm:$0xff]
    %v1071 = vld [vmem:[%s1 + $0x1f88] sm:$0xff]
    %v1072 = vld [vmem:[%s1 + $0x1f90] sm:$0xff]
    %v1073 = vld [vmem:[%s1 + $0x1f98] sm:$0xff]
    %v1074 = vld [vmem:[%s1 + $0x1fa0] sm:$0xff]
    %v1075 = vld [vmem:[%s1 + $0x1fa8] sm:$0xff]
    %v1076 = vld [vmem:[%s1 + $0x1fb0] sm:$0xff]
    %v1077 = vld [vmem:[%s1 + $0x1fb8] sm:$0xff]
    %v1078 = vld [vmem:[%s1 + $0x1fc0] sm:$0xff]
    %v1079 = vld [vmem:[%s1 + $0x1fc8] sm:$0xff]
    %v1080 = vld [vmem:[%s1 + $0x1fd0] sm:$0xff]
    %v1081 = vld [vmem:[%s1 + $0x1fd8] sm:$0xff]
    %v1082 = vld [vmem:[%s1 + $0x1fe0] sm:$0xff]
    %v1083 = vld [vmem:[%s1 + $0x1fe8] sm:$0xff]
    %v1084 = vld [vmem:[%s1 + $0x1ff0] sm:$0xff]
    %v1085 = vld [vmem:[%s1 + $0x1ff8] sm:$0xff]
    %v1086 = vld [vmem:[%s2] sm:$0xf]
    %v1088 = vlaneseq
    %v1089 = vshrl.u32 %v1088, 7
    %v1090 = vsub.s32 0, %v1089
    %v1091 = vrot.slane %v1086, %v1090
    %v1092 = vlaneseq
    %v1093 = vshrl.u32 %v1092, 7
    %v1094 = vsub.s32 1, %v1093
    %v1095 = vrot.slane %v1086, %v1094
    %v1096 = vlaneseq
    %v1097 = vshrl.u32 %v1096, 7
    %v1098 = vsub.s32 2, %v1097
    %v1099 = vrot.slane %v1086, %v1098
    %v1100 = vlaneseq
    %v1101 = vshrl.u32 %v1100, 7
    %v1102 = vsub.s32 3, %v1101
    %v1103 = vrot.slane %v1086, %v1102
    %1108 = vmatprep.subr.mxu0 %v63
    %1109 = vmatpush1.msra.mxu0 %v62
    %1110 = vmatprep.subr.mxu0 %v67
    %1111 = vmatpush1.msra.mxu0 %v66
    %1112 = vmatprep.subr.mxu0 %v71
    %1113 = vmatpush1.msra.mxu0 %v70
    %1114 = vmatprep.subr.mxu0 %v75
    %1115 = vmatpush1.msra.mxu0 %v74
    %1116 = vmatprep.subr.mxu0 %v79
    %1117 = vmatpush1.msra.mxu0 %v78
    %1118 = vmatprep.subr.mxu0 %v83
    %1119 = vmatpush1.msra.mxu0 %v82
    %1120 = vmatprep.subr.mxu0 %v87
    %1121 = vmatpush1.msra.mxu0 %v86
    %1122 = vmatprep.subr.mxu0 %v91
    %1123 = vmatpush1.msra.mxu0 %v90
    %1124 = vmatprep.subr.mxu0 %v95
    %1125 = vmatpush1.msra.mxu0 %v94
    %1126 = vmatprep.subr.mxu0 %v99
    %1127 = vmatpush1.msra.mxu0 %v98
    %1128 = vmatprep.subr.mxu0 %v103
    %1129 = vmatpush1.msra.mxu0 %v102
    %1130 = vmatprep.subr.mxu0 %v107
    %1131 = vmatpush1.msra.mxu0 %v106
    %1132 = vmatprep.subr.mxu0 %v111
    %1133 = vmatpush1.msra.mxu0 %v110
    %1134 = vmatprep.subr.mxu0 %v115
    %1135 = vmatpush1.msra.mxu0 %v114
    %1136 = vmatprep.subr.mxu0 %v119
    %1137 = vmatpush1.msra.mxu0 %v118
    %1138 = vmatprep.subr.mxu0 %v123
    %1139 = vmatpush1.msra.mxu0 %v122
    %1140 = vmatprep.subr.mxu0 %v127
    %1141 = vmatpush1.msra.mxu0 %v126
    %1142 = vmatprep.subr.mxu0 %v131
    %1143 = vmatpush1.msra.mxu0 %v130
    %1144 = vmatprep.subr.mxu0 %v135
    %1145 = vmatpush1.msra.mxu0 %v134
    %1146 = vmatprep.subr.mxu0 %v139
    %1147 = vmatpush1.msra.mxu0 %v138
    %1148 = vmatprep.subr.mxu0 %v143
    %1149 = vmatpush1.msra.mxu0 %v142
    %1150 = vmatprep.subr.mxu0 %v147
    %1151 = vmatpush1.msra.mxu0 %v146
    %1152 = vmatprep.subr.mxu0 %v151
    %1153 = vmatpush1.msra.mxu0 %v150
    %1154 = vmatprep.subr.mxu0 %v155
    %1155 = vmatpush1.msra.mxu0 %v154
    %1156 = vmatprep.subr.mxu0 %v159
    %1157 = vmatpush1.msra.mxu0 %v158
    %1158 = vmatprep.subr.mxu0 %v163
    %1159 = vmatpush1.msra.mxu0 %v162
    %1160 = vmatprep.subr.mxu0 %v167
    %1161 = vmatpush1.msra.mxu0 %v166
    %1162 = vmatprep.subr.mxu0 %v171
    %1163 = vmatpush1.msra.mxu0 %v170
    %1164 = vmatprep.subr.mxu0 %v175
    %1165 = vmatpush1.msra.mxu0 %v174
    %1166 = vmatprep.subr.mxu0 %v179
    %1167 = vmatpush1.msra.mxu0 %v178
    %1168 = vmatprep.subr.mxu0 %v183
    %1169 = vmatpush1.msra.mxu0 %v182
    %1170 = vmatprep.subr.mxu0 %v187
    %1171 = vmatpush1.msra.mxu0 %v186
    %1172 = vmatprep.mubr.f32.mxu0 %v31
    %1173 = vmatmul.mubr.f32.gmra.mrb[0].mxu0 %v30
    %v1174 = vpop.f32.mrb[0].mxu0
    %v1175 = vadd.f32 %v1091, %v1174
    %v1176 = vpop.f32.mrb[0].mxu0
    %v1177 = vadd.f32 %v1095, %v1176
    %1178 = vmatprep.mubr.f32.mxu0 %v47
    %1179 = vmatmul.mubr.f32.gmra.mrb[0].mxu0 %v46
    %v1180 = vpop.f32.mrb[0].mxu0
    %v1181 = vadd.f32 %v1091, %v1180
    %v1182 = vpop.f32.mrb[0].mxu0
    %v1183 = vadd.f32 %v1095, %v1182
    %1184 = vdwg.mxu0
    %1185 = vmatprep.subr.mxu0 %v191
    %1186 = vmatpush1.msra.mxu0 %v190
    %1187 = vmatprep.subr.mxu0 %v195
    %1188 = vmatpush1.msra.mxu0 %v194
    %1189 = vmatprep.subr.mxu0 %v199
    %1190 = vmatpush1.msra.mxu0 %v198
    %1191 = vmatprep.subr.mxu0 %v203
    %1192 = vmatpush1.msra.mxu0 %v202
    %1193 = vmatprep.subr.mxu0 %v207
    %1194 = vmatpush1.msra.mxu0 %v206
    %1195 = vmatprep.subr.mxu0 %v211
    %1196 = vmatpush1.msra.mxu0 %v210
    %1197 = vmatprep.subr.mxu0 %v215
    %1198 = vmatpush1.msra.mxu0 %v214
    %1199 = vmatprep.subr.mxu0 %v219
    %1200 = vmatpush1.msra.mxu0 %v218
    %1201 = vmatprep.subr.mxu0 %v223
    %1202 = vmatpush1.msra.mxu0 %v222
    %1203 = vmatprep.subr.mxu0 %v227
    %1204 = vmatpush1.msra.mxu0 %v226
    %1205 = vmatprep.subr.mxu0 %v231
    %1206 = vmatpush1.msra.mxu0 %v230
    %1207 = vmatprep.subr.mxu0 %v235
    %1208 = vmatpush1.msra.mxu0 %v234
    %1209 = vmatprep.subr.mxu0 %v239
    %1210 = vmatpush1.msra.mxu0 %v238
    %1211 = vmatprep.subr.mxu0 %v243
    %1212 = vmatpush1.msra.mxu0 %v242
    %1213 = vmatprep.subr.mxu0 %v247
    %1214 = vmatpush1.msra.mxu0 %v246
    %1215 = vmatprep.subr.mxu0 %v251
    %1216 = vmatpush1.msra.mxu0 %v250
    %1217 = vmatprep.subr.mxu0 %v255
    %1218 = vmatpush1.msra.mxu0 %v254
    %1219 = vmatprep.subr.mxu0 %v259
    %1220 = vmatpush1.msra.mxu0 %v258
    %1221 = vmatprep.subr.mxu0 %v263
    %1222 = vmatpush1.msra.mxu0 %v262
    %1223 = vmatprep.subr.mxu0 %v267
    %1224 = vmatpush1.msra.mxu0 %v266
    %1225 = vmatprep.subr.mxu0 %v271
    %1226 = vmatpush1.msra.mxu0 %v270
    %1227 = vmatprep.subr.mxu0 %v275
    %1228 = vmatpush1.msra.mxu0 %v274
    %1229 = vmatprep.subr.mxu0 %v279
    %1230 = vmatpush1.msra.mxu0 %v278
    %1231 = vmatprep.subr.mxu0 %v283
    %1232 = vmatpush1.msra.mxu0 %v282
    %1233 = vmatprep.subr.mxu0 %v287
    %1234 = vmatpush1.msra.mxu0 %v286
    %1235 = vmatprep.subr.mxu0 %v291
    %1236 = vmatpush1.msra.mxu0 %v290
    %1237 = vmatprep.subr.mxu0 %v295
    %1238 = vmatpush1.msra.mxu0 %v294
    %1239 = vmatprep.subr.mxu0 %v299
    %1240 = vmatpush1.msra.mxu0 %v298
    %1241 = vmatprep.subr.mxu0 %v303
    %1242 = vmatpush1.msra.mxu0 %v302
    %1243 = vmatprep.subr.mxu0 %v307
    %1244 = vmatpush1.msra.mxu0 %v306
    %1245 = vmatprep.subr.mxu0 %v311
    %1246 = vmatpush1.msra.mxu0 %v310
    %1247 = vmatprep.subr.mxu0 %v315
    %1248 = vmatpush1.msra.mxu0 %v314
    %1249 = vmatprep.mubr.f32.mxu0 %v33
    %1250 = vmatmul.mubr.f32.gmra.mrb[0].mxu0 %v32
    %v1251 = vpop.f32.mrb[0].mxu0
    %v1252 = vadd.f32 %v1175, %v1251
    %v1253 = vpop.f32.mrb[0].mxu0
    %v1254 = vadd.f32 %v1177, %v1253
    %1255 = vmatprep.mubr.f32.mxu0 %v49
    %1256 = vmatmul.mubr.f32.gmra.mrb[0].mxu0 %v48
    %v1257 = vpop.f32.mrb[0].mxu0
    %v1258 = vadd.f32 %v1181, %v1257
    %v1259 = vpop.f32.mrb[0].mxu0
    %v1260 = vadd.f32 %v1183, %v1259
    %1261 = vdwg.mxu0
    %1262 = vmatprep.subr.mxu0 %v319
    %1263 = vmatpush1.msra.mxu0 %v318
    %1264 = vmatprep.subr.mxu0 %v323
    %1265 = vmatpush1.msra.mxu0 %v322
    %1266 = vmatprep.subr.mxu0 %v327
    %1267 = vmatpush1.msra.mxu0 %v326
    %1268 = vmatprep.subr.mxu0 %v331
    %1269 = vmatpush1.msra.mxu0 %v330
    %1270 = vmatprep.subr.mxu0 %v335
    %1271 = vmatpush1.msra.mxu0 %v334
    %1272 = vmatprep.subr.mxu0 %v339
    %1273 = vmatpush1.msra.mxu0 %v338
    %1274 = vmatprep.subr.mxu0 %v343
    %1275 = vmatpush1.msra.mxu0 %v342
    %1276 = vmatprep.subr.mxu0 %v347
    %1277 = vmatpush1.msra.mxu0 %v346
    %1278 = vmatprep.subr.mxu0 %v351
    %1279 = vmatpush1.msra.mxu0 %v350
    %1280 = vmatprep.subr.mxu0 %v355
    %1281 = vmatpush1.msra.mxu0 %v354
    %1282 = vmatprep.subr.mxu0 %v359
    %1283 = vmatpush1.msra.mxu0 %v358
    %1284 = vmatprep.subr.mxu0 %v363
    %1285 = vmatpush1.msra.mxu0 %v362
    %1286 = vmatprep.subr.mxu0 %v367
    %1287 = vmatpush1.msra.mxu0 %v366
    %1288 = vmatprep.subr.mxu0 %v371
    %1289 = vmatpush1.msra.mxu0 %v370
    %1290 = vmatprep.subr.mxu0 %v375
    %1291 = vmatpush1.msra.mxu0 %v374
    %1292 = vmatprep.subr.mxu0 %v379
    %1293 = vmatpush1.msra.mxu0 %v378
    %1294 = vmatprep.subr.mxu0 %v383
    %1295 = vmatpush1.msra.mxu0 %v382
    %1296 = vmatprep.subr.mxu0 %v387
    %1297 = vmatpush1.msra.mxu0 %v386
    %1298 = vmatprep.subr.mxu0 %v391
    %1299 = vmatpush1.msra.mxu0 %v390
    %1300 = vmatprep.subr.mxu0 %v395
    %1301 = vmatpush1.msra.mxu0 %v394
    %1302 = vmatprep.subr.mxu0 %v399
    %1303 = vmatpush1.msra.mxu0 %v398
    %1304 = vmatprep.subr.mxu0 %v403
    %1305 = vmatpush1.msra.mxu0 %v402
    %1306 = vmatprep.subr.mxu0 %v407
    %1307 = vmatpush1.msra.mxu0 %v406
    %1308 = vmatprep.subr.mxu0 %v411
    %1309 = vmatpush1.msra.mxu0 %v410
    %1310 = vmatprep.subr.mxu0 %v415
    %1311 = vmatpush1.msra.mxu0 %v414
    %1312 = vmatprep.subr.mxu0 %v419
    %1313 = vmatpush1.msra.mxu0 %v418
    %1314 = vmatprep.subr.mxu0 %v423
    %1315 = vmatpush1.msra.mxu0 %v422
    %1316 = vmatprep.subr.mxu0 %v427
    %1317 = vmatpush1.msra.mxu0 %v426
    %1318 = vmatprep.subr.mxu0 %v431
    %1319 = vmatpush1.msra.mxu0 %v430
    %1320 = vmatprep.subr.mxu0 %v435
    %1321 = vmatpush1.msra.mxu0 %v434
    %1322 = vmatprep.subr.mxu0 %v439
    %1323 = vmatpush1.msra.mxu0 %v438
    %1324 = vmatprep.subr.mxu0 %v443
    %1325 = vmatpush1.msra.mxu0 %v442
    %1326 = vmatprep.mubr.f32.mxu0 %v35
    %1327 = vmatmul.mubr.f32.gmra.mrb[0].mxu0 %v34
    %v1328 = vpop.f32.mrb[0].mxu0
    %v1329 = vadd.f32 %v1252, %v1328
    %v1330 = vpop.f32.mrb[0].mxu0
    %v1331 = vadd.f32 %v1254, %v1330
    %1332 = vmatprep.mubr.f32.mxu0 %v51
    %1333 = vmatmul.mubr.f32.gmra.mrb[0].mxu0 %v50
    %v1334 = vpop.f32.mrb[0].mxu0
    %v1335 = vadd.f32 %v1258, %v1334
    %v1336 = vpop.f32.mrb[0].mxu0
    %v1337 = vadd.f32 %v1260, %v1336
    %1338 = vdwg.mxu0
    %1339 = vmatprep.subr.mxu0 %v447
    %1340 = vmatpush1.msra.mxu0 %v446
    %1341 = vmatprep.subr.mxu0 %v451
    %1342 = vmatpush1.msra.mxu0 %v450
    %1343 = vmatprep.subr.mxu0 %v455
    %1344 = vmatpush1.msra.mxu0 %v454
    %1345 = vmatprep.subr.mxu0 %v459
    %1346 = vmatpush1.msra.mxu0 %v458
    %1347 = vmatprep.subr.mxu0 %v463
    %1348 = vmatpush1.msra.mxu0 %v462
    %1349 = vmatprep.subr.mxu0 %v467
    %1350 = vmatpush1.msra.mxu0 %v466
    %1351 = vmatprep.subr.mxu0 %v471
    %1352 = vmatpush1.msra.mxu0 %v470
    %1353 = vmatprep.subr.mxu0 %v475
    %1354 = vmatpush1.msra.mxu0 %v474
    %1355 = vmatprep.subr.mxu0 %v479
    %1356 = vmatpush1.msra.mxu0 %v478
    %1357 = vmatprep.subr.mxu0 %v483
    %1358 = vmatpush1.msra.mxu0 %v482
    %1359 = vmatprep.subr.mxu0 %v487
    %1360 = vmatpush1.msra.mxu0 %v486
    %1361 = vmatprep.subr.mxu0 %v491
    %1362 = vmatpush1.msra.mxu0 %v490
    %1363 = vmatprep.subr.mxu0 %v495
    %1364 = vmatpush1.msra.mxu0 %v494
    %1365 = vmatprep.subr.mxu0 %v499
    %1366 = vmatpush1.msra.mxu0 %v498
    %1367 = vmatprep.subr.mxu0 %v503
    %1368 = vmatpush1.msra.mxu0 %v502
    %1369 = vmatprep.subr.mxu0 %v507
    %1370 = vmatpush1.msra.mxu0 %v506
    %1371 = vmatprep.subr.mxu0 %v511
    %1372 = vmatpush1.msra.mxu0 %v510
    %1373 = vmatprep.subr.mxu0 %v515
    %1374 = vmatpush1.msra.mxu0 %v514
    %1375 = vmatprep.subr.mxu0 %v519
    %1376 = vmatpush1.msra.mxu0 %v518
    %1377 = vmatprep.subr.mxu0 %v523
    %1378 = vmatpush1.msra.mxu0 %v522
    %1379 = vmatprep.subr.mxu0 %v527
    %1380 = vmatpush1.msra.mxu0 %v526
    %1381 = vmatprep.subr.mxu0 %v531
    %1382 = vmatpush1.msra.mxu0 %v530
    %1383 = vmatprep.subr.mxu0 %v535
    %1384 = vmatpush1.msra.mxu0 %v534
    %1385 = vmatprep.subr.mxu0 %v539
    %1386 = vmatpush1.msra.mxu0 %v538
    %1387 = vmatprep.subr.mxu0 %v543
    %1388 = vmatpush1.msra.mxu0 %v542
    %1389 = vmatprep.subr.mxu0 %v547
    %1390 = vmatpush1.msra.mxu0 %v546
    %1391 = vmatprep.subr.mxu0 %v551
    %1392 = vmatpush1.msra.mxu0 %v550
    %1393 = vmatprep.subr.mxu0 %v555
    %1394 = vmatpush1.msra.mxu0 %v554
    %1395 = vmatprep.subr.mxu0 %v559
    %1396 = vmatpush1.msra.mxu0 %v558
    %1397 = vmatprep.subr.mxu0 %v563
    %1398 = vmatpush1.msra.mxu0 %v562
    %1399 = vmatprep.subr.mxu0 %v567
    %1400 = vmatpush1.msra.mxu0 %v566
    %1401 = vmatprep.subr.mxu0 %v571
    %1402 = vmatpush1.msra.mxu0 %v570
    %1403 = vmatprep.mubr.f32.mxu0 %v37
    %1404 = vmatmul.mubr.f32.gmra.mrb[0].mxu0 %v36
    %v1405 = vpop.f32.mrb[0].mxu0
    %v1406 = vadd.f32 %v1329, %v1405
    %v1407 = vpop.f32.mrb[0].mxu0
    %v1408 = vadd.f32 %v1331, %v1407
    %1409 = vmatprep.mubr.f32.mxu0 %v53
    %1410 = vmatmul.mubr.f32.gmra.mrb[0].mxu0 %v52
    %v1411 = vpop.f32.mrb[0].mxu0
    %v1412 = vadd.f32 %v1335, %v1411
    %v1413 = vpop.f32.mrb[0].mxu0
    %v1414 = vadd.f32 %v1337, %v1413
    %1415 = vdwg.mxu0
    %1416 = vmatprep.subr.mxu0 %v575
    %1417 = vmatpush1.msra.mxu0 %v574
    %1418 = vmatprep.subr.mxu0 %v579
    %1419 = vmatpush1.msra.mxu0 %v578
    %1420 = vmatprep.subr.mxu0 %v583
    %1421 = vmatpush1.msra.mxu0 %v582
    %1422 = vmatprep.subr.mxu0 %v587
    %1423 = vmatpush1.msra.mxu0 %v586
    %1424 = vmatprep.subr.mxu0 %v591
    %1425 = vmatpush1.msra.mxu0 %v590
    %1426 = vmatprep.subr.mxu0 %v595
    %1427 = vmatpush1.msra.mxu0 %v594
    %1428 = vmatprep.subr.mxu0 %v599
    %1429 = vmatpush1.msra.mxu0 %v598
    %1430 = vmatprep.subr.mxu0 %v603
    %1431 = vmatpush1.msra.mxu0 %v602
    %1432 = vmatprep.subr.mxu0 %v607
    %1433 = vmatpush1.msra.mxu0 %v606
    %1434 = vmatprep.subr.mxu0 %v611
    %1435 = vmatpush1.msra.mxu0 %v610
    %1436 = vmatprep.subr.mxu0 %v615
    %1437 = vmatpush1.msra.mxu0 %v614
    %1438 = vmatprep.subr.mxu0 %v619
    %1439 = vmatpush1.msra.mxu0 %v618
    %1440 = vmatprep.subr.mxu0 %v623
    %1441 = vmatpush1.msra.mxu0 %v622
    %1442 = vmatprep.subr.mxu0 %v627
    %1443 = vmatpush1.msra.mxu0 %v626
    %1444 = vmatprep.subr.mxu0 %v631
    %1445 = vmatpush1.msra.mxu0 %v630
    %1446 = vmatprep.subr.mxu0 %v635
    %1447 = vmatpush1.msra.mxu0 %v634
    %1448 = vmatprep.subr.mxu0 %v639
    %1449 = vmatpush1.msra.mxu0 %v638
    %1450 = vmatprep.subr.mxu0 %v643
    %1451 = vmatpush1.msra.mxu0 %v642
    %1452 = vmatprep.subr.mxu0 %v647
    %1453 = vmatpush1.msra.mxu0 %v646
    %1454 = vmatprep.subr.mxu0 %v651
    %1455 = vmatpush1.msra.mxu0 %v650
    %1456 = vmatprep.subr.mxu0 %v655
    %1457 = vmatpush1.msra.mxu0 %v654
    %1458 = vmatprep.subr.mxu0 %v659
    %1459 = vmatpush1.msra.mxu0 %v658
    %1460 = vmatprep.subr.mxu0 %v663
    %1461 = vmatpush1.msra.mxu0 %v662
    %1462 = vmatprep.subr.mxu0 %v667
    %1463 = vmatpush1.msra.mxu0 %v666
    %1464 = vmatprep.subr.mxu0 %v671
    %1465 = vmatpush1.msra.mxu0 %v670
    %1466 = vmatprep.subr.mxu0 %v675
    %1467 = vmatpush1.msra.mxu0 %v674
    %1468 = vmatprep.subr.mxu0 %v679
    %1469 = vmatpush1.msra.mxu0 %v678
    %1470 = vmatprep.subr.mxu0 %v683
    %1471 = vmatpush1.msra.mxu0 %v682
    %1472 = vmatprep.subr.mxu0 %v687
    %1473 = vmatpush1.msra.mxu0 %v686
    %1474 = vmatprep.subr.mxu0 %v691
    %1475 = vmatpush1.msra.mxu0 %v690
    %1476 = vmatprep.subr.mxu0 %v695
    %1477 = vmatpush1.msra.mxu0 %v694
    %1478 = vmatprep.subr.mxu0 %v699
    %1479 = vmatpush1.msra.mxu0 %v698
    %1480 = vmatprep.mubr.f32.mxu0 %v39
    %1481 = vmatmul.mubr.f32.gmra.mrb[0].mxu0 %v38
    %v1482 = vpop.f32.mrb[0].mxu0
    %v1483 = vadd.f32 %v1406, %v1482
    %v1484 = vpop.f32.mrb[0].mxu0
    %v1485 = vadd.f32 %v1408, %v1484
    %1486 = vmatprep.mubr.f32.mxu0 %v55
    %1487 = vmatmul.mubr.f32.gmra.mrb[0].mxu0 %v54
    %v1488 = vpop.f32.mrb[0].mxu0
    %v1489 = vadd.f32 %v1412, %v1488
    %v1490 = vpop.f32.mrb[0].mxu0
    %v1491 = vadd.f32 %v1414, %v1490
    %1492 = vdwg.mxu0
    %1493 = vmatprep.subr.mxu0 %v703
    %1494 = vmatpush1.msra.mxu0 %v702
    %1495 = vmatprep.subr.mxu0 %v707
    %1496 = vmatpush1.msra.mxu0 %v706
    %1497 = vmatprep.subr.mxu0 %v711
    %1498 = vmatpush1.msra.mxu0 %v710
    %1499 = vmatprep.subr.mxu0 %v715
    %1500 = vmatpush1.msra.mxu0 %v714
    %1501 = vmatprep.subr.mxu0 %v719
    %1502 = vmatpush1.msra.mxu0 %v718
    %1503 = vmatprep.subr.mxu0 %v723
    %1504 = vmatpush1.msra.mxu0 %v722
    %1505 = vmatprep.subr.mxu0 %v727
    %1506 = vmatpush1.msra.mxu0 %v726
    %1507 = vmatprep.subr.mxu0 %v731
    %1508 = vmatpush1.msra.mxu0 %v730
    %1509 = vmatprep.subr.mxu0 %v735
    %1510 = vmatpush1.msra.mxu0 %v734
    %1511 = vmatprep.subr.mxu0 %v739
    %1512 = vmatpush1.msra.mxu0 %v738
    %1513 = vmatprep.subr.mxu0 %v743
    %1514 = vmatpush1.msra.mxu0 %v742
    %1515 = vmatprep.subr.mxu0 %v747
    %1516 = vmatpush1.msra.mxu0 %v746
    %1517 = vmatprep.subr.mxu0 %v751
    %1518 = vmatpush1.msra.mxu0 %v750
    %1519 = vmatprep.subr.mxu0 %v755
    %1520 = vmatpush1.msra.mxu0 %v754
    %1521 = vmatprep.subr.mxu0 %v759
    %1522 = vmatpush1.msra.mxu0 %v758
    %1523 = vmatprep.subr.mxu0 %v763
    %1524 = vmatpush1.msra.mxu0 %v762
    %1525 = vmatprep.subr.mxu0 %v767
    %1526 = vmatpush1.msra.mxu0 %v766
    %1527 = vmatprep.subr.mxu0 %v771
    %1528 = vmatpush1.msra.mxu0 %v770
    %1529 = vmatprep.subr.mxu0 %v775
    %1530 = vmatpush1.msra.mxu0 %v774
    %1531 = vmatprep.subr.mxu0 %v779
    %1532 = vmatpush1.msra.mxu0 %v778
    %1533 = vmatprep.subr.mxu0 %v783
    %1534 = vmatpush1.msra.mxu0 %v782
    %1535 = vmatprep.subr.mxu0 %v787
    %1536 = vmatpush1.msra.mxu0 %v786
    %1537 = vmatprep.subr.mxu0 %v791
    %1538 = vmatpush1.msra.mxu0 %v790
    %1539 = vmatprep.subr.mxu0 %v795
    %1540 = vmatpush1.msra.mxu0 %v794
    %1541 = vmatprep.subr.mxu0 %v799
    %1542 = vmatpush1.msra.mxu0 %v798
    %1543 = vmatprep.subr.mxu0 %v803
    %1544 = vmatpush1.msra.mxu0 %v802
    %1545 = vmatprep.subr.mxu0 %v807
    %1546 = vmatpush1.msra.mxu0 %v806
    %1547 = vmatprep.subr.mxu0 %v811
    %1548 = vmatpush1.msra.mxu0 %v810
    %1549 = vmatprep.subr.mxu0 %v815
    %1550 = vmatpush1.msra.mxu0 %v814
    %1551 = vmatprep.subr.mxu0 %v819
    %1552 = vmatpush1.msra.mxu0 %v818
    %1553 = vmatprep.subr.mxu0 %v823
    %1554 = vmatpush1.msra.mxu0 %v822
    %1555 = vmatprep.subr.mxu0 %v827
    %1556 = vmatpush1.msra.mxu0 %v826
    %1557 = vmatprep.mubr.f32.mxu0 %v41
    %1558 = vmatmul.mubr.f32.gmra.mrb[0].mxu0 %v40
    %v1559 = vpop.f32.mrb[0].mxu0
    %v1560 = vadd.f32 %v1483, %v1559
    %v1561 = vpop.f32.mrb[0].mxu0
    %v1562 = vadd.f32 %v1485, %v1561
    %1563 = vmatprep.mubr.f32.mxu0 %v57
    %1564 = vmatmul.mubr.f32.gmra.mrb[0].mxu0 %v56
    %v1565 = vpop.f32.mrb[0].mxu0
    %v1566 = vadd.f32 %v1489, %v1565
    %v1567 = vpop.f32.mrb[0].mxu0
    %v1568 = vadd.f32 %v1491, %v1567
    %1569 = vdwg.mxu0
    %1570 = vmatprep.subr.mxu0 %v831
    %1571 = vmatpush1.msra.mxu0 %v830
    %1572 = vmatprep.subr.mxu0 %v835
    %1573 = vmatpush1.msra.mxu0 %v834
    %1574 = vmatprep.subr.mxu0 %v839
    %1575 = vmatpush1.msra.mxu0 %v838
    %1576 = vmatprep.subr.mxu0 %v843
    %1577 = vmatpush1.msra.mxu0 %v842
    %1578 = vmatprep.subr.mxu0 %v847
    %1579 = vmatpush1.msra.mxu0 %v846
    %1580 = vmatprep.subr.mxu0 %v851
    %1581 = vmatpush1.msra.mxu0 %v850
    %1582 = vmatprep.subr.mxu0 %v855
    %1583 = vmatpush1.msra.mxu0 %v854
    %1584 = vmatprep.subr.mxu0 %v859
    %1585 = vmatpush1.msra.mxu0 %v858
    %1586 = vmatprep.subr.mxu0 %v863
    %1587 = vmatpush1.msra.mxu0 %v862
    %1588 = vmatprep.subr.mxu0 %v867
    %1589 = vmatpush1.msra.mxu0 %v866
    %1590 = vmatprep.subr.mxu0 %v871
    %1591 = vmatpush1.msra.mxu0 %v870
    %1592 = vmatprep.subr.mxu0 %v875
    %1593 = vmatpush1.msra.mxu0 %v874
    %1594 = vmatprep.subr.mxu0 %v879
    %1595 = vmatpush1.msra.mxu0 %v878
    %1596 = vmatprep.subr.mxu0 %v883
    %1597 = vmatpush1.msra.mxu0 %v882
    %1598 = vmatprep.subr.mxu0 %v887
    %1599 = vmatpush1.msra.mxu0 %v886
    %1600 = vmatprep.subr.mxu0 %v891
    %1601 = vmatpush1.msra.mxu0 %v890
    %1602 = vmatprep.subr.mxu0 %v895
    %1603 = vmatpush1.msra.mxu0 %v894
    %1604 = vmatprep.subr.mxu0 %v899
    %1605 = vmatpush1.msra.mxu0 %v898
    %1606 = vmatprep.subr.mxu0 %v903
    %1607 = vmatpush1.msra.mxu0 %v902
    %1608 = vmatprep.subr.mxu0 %v907
    %1609 = vmatpush1.msra.mxu0 %v906
    %1610 = vmatprep.subr.mxu0 %v911
    %1611 = vmatpush1.msra.mxu0 %v910
    %1612 = vmatprep.subr.mxu0 %v915
    %1613 = vmatpush1.msra.mxu0 %v914
    %1614 = vmatprep.subr.mxu0 %v919
    %1615 = vmatpush1.msra.mxu0 %v918
    %1616 = vmatprep.subr.mxu0 %v923
    %1617 = vmatpush1.msra.mxu0 %v922
    %1618 = vmatprep.subr.mxu0 %v927
    %1619 = vmatpush1.msra.mxu0 %v926
    %1620 = vmatprep.subr.mxu0 %v931
    %1621 = vmatpush1.msra.mxu0 %v930
    %1622 = vmatprep.subr.mxu0 %v935
    %1623 = vmatpush1.msra.mxu0 %v934
    %1624 = vmatprep.subr.mxu0 %v939
    %1625 = vmatpush1.msra.mxu0 %v938
    %1626 = vmatprep.subr.mxu0 %v943
    %1627 = vmatpush1.msra.mxu0 %v942
    %1628 = vmatprep.subr.mxu0 %v947
    %1629 = vmatpush1.msra.mxu0 %v946
    %1630 = vmatprep.subr.mxu0 %v951
    %1631 = vmatpush1.msra.mxu0 %v950
    %1632 = vmatprep.subr.mxu0 %v955
    %1633 = vmatpush1.msra.mxu0 %v954
    %1634 = vmatprep.mubr.f32.mxu0 %v43
    %1635 = vmatmul.mubr.f32.gmra.mrb[0].mxu0 %v42
    %v1636 = vpop.f32.mrb[0].mxu0
    %v1637 = vadd.f32 %v1560, %v1636
    %v1638 = vpop.f32.mrb[0].mxu0
    %v1639 = vadd.f32 %v1562, %v1638
    %1640 = vmatprep.mubr.f32.mxu0 %v59
    %1641 = vmatmul.mubr.f32.gmra.mrb[0].mxu0 %v58
    %v1642 = vpop.f32.mrb[0].mxu0
    %v1643 = vadd.f32 %v1566, %v1642
    %v1644 = vpop.f32.mrb[0].mxu0
    %v1645 = vadd.f32 %v1568, %v1644
    %1646 = vdwg.mxu0
    %1647 = vmatprep.subr.mxu0 %v959
    %1648 = vmatpush1.msra.mxu0 %v958
    %1649 = vmatprep.subr.mxu0 %v963
    %1650 = vmatpush1.msra.mxu0 %v962
    %1651 = vmatprep.subr.mxu0 %v967
    %1652 = vmatpush1.msra.mxu0 %v966
    %1653 = vmatprep.subr.mxu0 %v971
    %1654 = vmatpush1.msra.mxu0 %v970
    %1655 = vmatprep.subr.mxu0 %v975
    %1656 = vmatpush1.msra.mxu0 %v974
    %1657 = vmatprep.subr.mxu0 %v979
    %1658 = vmatpush1.msra.mxu0 %v978
    %1659 = vmatprep.subr.mxu0 %v983
    %1660 = vmatpush1.msra.mxu0 %v982
    %1661 = vmatprep.subr.mxu0 %v987
    %1662 = vmatpush1.msra.mxu0 %v986
    %1663 = vmatprep.subr.mxu0 %v991
    %1664 = vmatpush1.msra.mxu0 %v990
    %1665 = vmatprep.subr.mxu0 %v995
    %1666 = vmatpush1.msra.mxu0 %v994
    %1667 = vmatprep.subr.mxu0 %v999
    %1668 = vmatpush1.msra.mxu0 %v998
    %1669 = vmatprep.subr.mxu0 %v1003
    %1670 = vmatpush1.msra.mxu0 %v1002
    %1671 = vmatprep.subr.mxu0 %v1007
    %1672 = vmatpush1.msra.mxu0 %v1006
    %1673 = vmatprep.subr.mxu0 %v1011
    %1674 = vmatpush1.msra.mxu0 %v1010
    %1675 = vmatprep.subr.mxu0 %v1015
    %1676 = vmatpush1.msra.mxu0 %v1014
    %1677 = vmatprep.subr.mxu0 %v1019
    %1678 = vmatpush1.msra.mxu0 %v1018
    %1679 = vmatprep.subr.mxu0 %v1023
    %1680 = vmatpush1.msra.mxu0 %v1022
    %1681 = vmatprep.subr.mxu0 %v1027
    %1682 = vmatpush1.msra.mxu0 %v1026
    %1683 = vmatprep.subr.mxu0 %v1031
    %1684 = vmatpush1.msra.mxu0 %v1030
    %1685 = vmatprep.subr.mxu0 %v1035
    %1686 = vmatpush1.msra.mxu0 %v1034
    %1687 = vmatprep.subr.mxu0 %v1039
    %1688 = vmatpush1.msra.mxu0 %v1038
    %1689 = vmatprep.subr.mxu0 %v1043
    %1690 = vmatpush1.msra.mxu0 %v1042
    %1691 = vmatprep.subr.mxu0 %v1047
    %1692 = vmatpush1.msra.mxu0 %v1046
    %1693 = vmatprep.subr.mxu0 %v1051
    %1694 = vmatpush1.msra.mxu0 %v1050
    %1695 = vmatprep.subr.mxu0 %v1055
    %1696 = vmatpush1.msra.mxu0 %v1054
    %1697 = vmatprep.subr.mxu0 %v1059
    %1698 = vmatpush1.msra.mxu0 %v1058
    %1699 = vmatprep.subr.mxu0 %v1063
    %1700 = vmatpush1.msra.mxu0 %v1062
    %1701 = vmatprep.subr.mxu0 %v1067
    %1702 = vmatpush1.msra.mxu0 %v1066
    %1703 = vmatprep.subr.mxu0 %v1071
    %1704 = vmatpush1.msra.mxu0 %v1070
    %1705 = vmatprep.subr.mxu0 %v1075
    %1706 = vmatpush1.msra.mxu0 %v1074
    %1707 = vmatprep.subr.mxu0 %v1079
    %1708 = vmatpush1.msra.mxu0 %v1078
    %1709 = vmatprep.subr.mxu0 %v1083
    %1710 = vmatpush1.msra.mxu0 %v1082
    %1711 = vmatprep.mubr.f32.mxu0 %v45
    %1712 = vmatmul.mubr.f32.gmra.mrb[0].mxu0 %v44
    %v1713 = vpop.f32.mrb[0].mxu0
    %v1714 = vadd.f32 %v1637, %v1713
    %v1715 = vpop.f32.mrb[0].mxu0
    %v1716 = vadd.f32 %v1639, %v1715
    %1717 = vmatprep.mubr.f32.mxu0 %v61
    %1718 = vmatmul.mubr.f32.gmra.mrb[0].mxu0 %v60
    %v1719 = vpop.f32.mrb[0].mxu0
    %v1720 = vadd.f32 %v1643, %v1719
    %v1721 = vpop.f32.mrb[0].mxu0
    %v1722 = vadd.f32 %v1645, %v1721
    %1723 = vdwg.mxu0
    %1724 = vmatprep.subr.mxu0 %v65
    %1725 = vmatpush1.msra.mxu0 %v64
    %1726 = vmatprep.subr.mxu0 %v69
    %1727 = vmatpush1.msra.mxu0 %v68
    %1728 = vmatprep.subr.mxu0 %v73
    %1729 = vmatpush1.msra.mxu0 %v72
    %1730 = vmatprep.subr.mxu0 %v77
    %1731 = vmatpush1.msra.mxu0 %v76
    %1732 = vmatprep.subr.mxu0 %v81
    %1733 = vmatpush1.msra.mxu0 %v80
    %1734 = vmatprep.subr.mxu0 %v85
    %1735 = vmatpush1.msra.mxu0 %v84
    %1736 = vmatprep.subr.mxu0 %v89
    %1737 = vmatpush1.msra.mxu0 %v88
    %1738 = vmatprep.subr.mxu0 %v93
    %1739 = vmatpush1.msra.mxu0 %v92
    %1740 = vmatprep.subr.mxu0 %v97
    %1741 = vmatpush1.msra.mxu0 %v96
    %1742 = vmatprep.subr.mxu0 %v101
    %1743 = vmatpush1.msra.mxu0 %v100
    %1744 = vmatprep.subr.mxu0 %v105
    %1745 = vmatpush1.msra.mxu0 %v104
    %1746 = vmatprep.subr.mxu0 %v109
    %1747 = vmatpush1.msra.mxu0 %v108
    %1748 = vmatprep.subr.mxu0 %v113
    %1749 = vmatpush1.msra.mxu0 %v112
    %1750 = vmatprep.subr.mxu0 %v117
    %1751 = vmatpush1.msra.mxu0 %v116
    %1752 = vmatprep.subr.mxu0 %v121
    %1753 = vmatpush1.msra.mxu0 %v120
    %1754 = vmatprep.subr.mxu0 %v125
    %1755 = vmatpush1.msra.mxu0 %v124
    %1756 = vmatprep.subr.mxu0 %v129
    %1757 = vmatpush1.msra.mxu0 %v128
    %1758 = vmatprep.subr.mxu0 %v133
    %1759 = vmatpush1.msra.mxu0 %v132
    %1760 = vmatprep.subr.mxu0 %v137
    %1761 = vmatpush1.msra.mxu0 %v136
    %1762 = vmatprep.subr.mxu0 %v141
    %1763 = vmatpush1.msra.mxu0 %v140
    %1764 = vmatprep.subr.mxu0 %v145
    %1765 = vmatpush1.msra.mxu0 %v144
    %1766 = vmatprep.subr.mxu0 %v149
    %1767 = vmatpush1.msra.mxu0 %v148
    %1768 = vmatprep.subr.mxu0 %v153
    %1769 = vmatpush1.msra.mxu0 %v152
    %1770 = vmatprep.subr.mxu0 %v157
    %1771 = vmatpush1.msra.mxu0 %v156
    %1772 = vmatprep.subr.mxu0 %v161
    %1773 = vmatpush1.msra.mxu0 %v160
    %1774 = vmatprep.subr.mxu0 %v165
    %1775 = vmatpush1.msra.mxu0 %v164
    %1776 = vmatprep.subr.mxu0 %v169
    %1777 = vmatpush1.msra.mxu0 %v168
    %1778 = vmatprep.subr.mxu0 %v173
    %1779 = vmatpush1.msra.mxu0 %v172
    %1780 = vmatprep.subr.mxu0 %v177
    %1781 = vmatpush1.msra.mxu0 %v176
    %1782 = vmatprep.subr.mxu0 %v181
    %1783 = vmatpush1.msra.mxu0 %v180
    %1784 = vmatprep.subr.mxu0 %v185
    %1785 = vmatpush1.msra.mxu0 %v184
    %1786 = vmatprep.subr.mxu0 %v189
    %1787 = vmatpush1.msra.mxu0 %v188
    %1788 = vmatprep.mubr.f32.mxu0 %v31
    %1789 = vmatmul.mubr.f32.gmra.mrb[0].mxu0 %v30
    %v1790 = vpop.f32.mrb[0].mxu0
    %v1791 = vadd.f32 %v1099, %v1790
    %v1792 = vpop.f32.mrb[0].mxu0
    %v1793 = vadd.f32 %v1103, %v1792
    %1794 = vmatprep.mubr.f32.mxu0 %v47
    %1795 = vmatmul.mubr.f32.gmra.mrb[0].mxu0 %v46
    %v1796 = vpop.f32.mrb[0].mxu0
    %v1797 = vadd.f32 %v1099, %v1796
    %v1798 = vpop.f32.mrb[0].mxu0
    %v1799 = vadd.f32 %v1103, %v1798
    %1800 = vdwg.mxu0
    %1801 = vmatprep.subr.mxu0 %v193
    %1802 = vmatpush1.msra.mxu0 %v192
    %1803 = vmatprep.subr.mxu0 %v197
    %1804 = vmatpush1.msra.mxu0 %v196
    %1805 = vmatprep.subr.mxu0 %v201
    %1806 = vmatpush1.msra.mxu0 %v200
    %1807 = vmatprep.subr.mxu0 %v205
    %1808 = vmatpush1.msra.mxu0 %v204
    %1809 = vmatprep.subr.mxu0 %v209
    %1810 = vmatpush1.msra.mxu0 %v208
    %1811 = vmatprep.subr.mxu0 %v213
    %1812 = vmatpush1.msra.mxu0 %v212
    %1813 = vmatprep.subr.mxu0 %v217
    %1814 = vmatpush1.msra.mxu0 %v216
    %1815 = vmatprep.subr.mxu0 %v221
    %1816 = vmatpush1.msra.mxu0 %v220
    %1817 = vmatprep.subr.mxu0 %v225
    %1818 = vmatpush1.msra.mxu0 %v224
    %1819 = vmatprep.subr.mxu0 %v229
    %1820 = vmatpush1.msra.mxu0 %v228
    %1821 = vmatprep.subr.mxu0 %v233
    %1822 = vmatpush1.msra.mxu0 %v232
    %1823 = vmatprep.subr.mxu0 %v237
    %1824 = vmatpush1.msra.mxu0 %v236
    %1825 = vmatprep.subr.mxu0 %v241
    %1826 = vmatpush1.msra.mxu0 %v240
    %1827 = vmatprep.subr.mxu0 %v245
    %1828 = vmatpush1.msra.mxu0 %v244
    %1829 = vmatprep.subr.mxu0 %v249
    %1830 = vmatpush1.msra.mxu0 %v248
    %1831 = vmatprep.subr.mxu0 %v253
    %1832 = vmatpush1.msra.mxu0 %v252
    %1833 = vmatprep.subr.mxu0 %v257
    %1834 = vmatpush1.msra.mxu0 %v256
    %1835 = vmatprep.subr.mxu0 %v261
    %1836 = vmatpush1.msra.mxu0 %v260
    %1837 = vmatprep.subr.mxu0 %v265
    %1838 = vmatpush1.msra.mxu0 %v264
    %1839 = vmatprep.subr.mxu0 %v269
    %1840 = vmatpush1.msra.mxu0 %v268
    %1841 = vmatprep.subr.mxu0 %v273
    %1842 = vmatpush1.msra.mxu0 %v272
    %1843 = vmatprep.subr.mxu0 %v277
    %1844 = vmatpush1.msra.mxu0 %v276
    %1845 = vmatprep.subr.mxu0 %v281
    %1846 = vmatpush1.msra.mxu0 %v280
    %1847 = vmatprep.subr.mxu0 %v285
    %1848 = vmatpush1.msra.mxu0 %v284
    %1849 = vmatprep.subr.mxu0 %v289
    %1850 = vmatpush1.msra.mxu0 %v288
    %1851 = vmatprep.subr.mxu0 %v293
    %1852 = vmatpush1.msra.mxu0 %v292
    %1853 = vmatprep.subr.mxu0 %v297
    %1854 = vmatpush1.msra.mxu0 %v296
    %1855 = vmatprep.subr.mxu0 %v301
    %1856 = vmatpush1.msra.mxu0 %v300
    %1857 = vmatprep.subr.mxu0 %v305
    %1858 = vmatpush1.msra.mxu0 %v304
    %1859 = vmatprep.subr.mxu0 %v309
    %1860 = vmatpush1.msra.mxu0 %v308
    %1861 = vmatprep.subr.mxu0 %v313
    %1862 = vmatpush1.msra.mxu0 %v312
    %1863 = vmatprep.subr.mxu0 %v317
    %1864 = vmatpush1.msra.mxu0 %v316
    %1865 = vmatprep.mubr.f32.mxu0 %v33
    %1866 = vmatmul.mubr.f32.gmra.mrb[0].mxu0 %v32
    %v1867 = vpop.f32.mrb[0].mxu0
    %v1868 = vadd.f32 %v1791, %v1867
    %v1869 = vpop.f32.mrb[0].mxu0
    %v1870 = vadd.f32 %v1793, %v1869
    %1871 = vmatprep.mubr.f32.mxu0 %v49
    %1872 = vmatmul.mubr.f32.gmra.mrb[0].mxu0 %v48
    %v1873 = vpop.f32.mrb[0].mxu0
    %v1874 = vadd.f32 %v1797, %v1873
    %v1875 = vpop.f32.mrb[0].mxu0
    %v1876 = vadd.f32 %v1799, %v1875
    %1877 = vdwg.mxu0
    %1878 = vmatprep.subr.mxu0 %v321
    %1879 = vmatpush1.msra.mxu0 %v320
    %1880 = vmatprep.subr.mxu0 %v325
    %1881 = vmatpush1.msra.mxu0 %v324
    %1882 = vmatprep.subr.mxu0 %v329
    %1883 = vmatpush1.msra.mxu0 %v328
    %1884 = vmatprep.subr.mxu0 %v333
    %1885 = vmatpush1.msra.mxu0 %v332
    %1886 = vmatprep.subr.mxu0 %v337
    %1887 = vmatpush1.msra.mxu0 %v336
    %1888 = vmatprep.subr.mxu0 %v341
    %1889 = vmatpush1.msra.mxu0 %v340
    %1890 = vmatprep.subr.mxu0 %v345
    %1891 = vmatpush1.msra.mxu0 %v344
    %1892 = vmatprep.subr.mxu0 %v349
    %1893 = vmatpush1.msra.mxu0 %v348
    %1894 = vmatprep.subr.mxu0 %v353
    %1895 = vmatpush1.msra.mxu0 %v352
    %1896 = vmatprep.subr.mxu0 %v357
    %1897 = vmatpush1.msra.mxu0 %v356
    %1898 = vmatprep.subr.mxu0 %v361
    %1899 = vmatpush1.msra.mxu0 %v360
    %1900 = vmatprep.subr.mxu0 %v365
    %1901 = vmatpush1.msra.mxu0 %v364
    %1902 = vmatprep.subr.mxu0 %v369
    %1903 = vmatpush1.msra.mxu0 %v368
    %1904 = vmatprep.subr.mxu0 %v373
    %1905 = vmatpush1.msra.mxu0 %v372
    %1906 = vmatprep.subr.mxu0 %v377
    %1907 = vmatpush1.msra.mxu0 %v376
    %1908 = vmatprep.subr.mxu0 %v381
    %1909 = vmatpush1.msra.mxu0 %v380
    %1910 = vmatprep.subr.mxu0 %v385
    %1911 = vmatpush1.msra.mxu0 %v384
    %1912 = vmatprep.subr.mxu0 %v389
    %1913 = vmatpush1.msra.mxu0 %v388
    %1914 = vmatprep.subr.mxu0 %v393
    %1915 = vmatpush1.msra.mxu0 %v392
    %1916 = vmatprep.subr.mxu0 %v397
    %1917 = vmatpush1.msra.mxu0 %v396
    %1918 = vmatprep.subr.mxu0 %v401
    %1919 = vmatpush1.msra.mxu0 %v400
    %1920 = vmatprep.subr.mxu0 %v405
    %1921 = vmatpush1.msra.mxu0 %v404
    %1922 = vmatprep.subr.mxu0 %v409
    %1923 = vmatpush1.msra.mxu0 %v408
    %1924 = vmatprep.subr.mxu0 %v413
    %1925 = vmatpush1.msra.mxu0 %v412
    %1926 = vmatprep.subr.mxu0 %v417
    %1927 = vmatpush1.msra.mxu0 %v416
    %1928 = vmatprep.subr.mxu0 %v421
    %1929 = vmatpush1.msra.mxu0 %v420
    %1930 = vmatprep.subr.mxu0 %v425
    %1931 = vmatpush1.msra.mxu0 %v424
    %1932 = vmatprep.subr.mxu0 %v429
    %1933 = vmatpush1.msra.mxu0 %v428
    %1934 = vmatprep.subr.mxu0 %v433
    %1935 = vmatpush1.msra.mxu0 %v432
    %1936 = vmatprep.subr.mxu0 %v437
    %1937 = vmatpush1.msra.mxu0 %v436
    %1938 = vmatprep.subr.mxu0 %v441
    %1939 = vmatpush1.msra.mxu0 %v440
    %1940 = vmatprep.subr.mxu0 %v445
    %1941 = vmatpush1.msra.mxu0 %v444
    %1942 = vmatprep.mubr.f32.mxu0 %v35
    %1943 = vmatmul.mubr.f32.gmra.mrb[0].mxu0 %v34
    %v1944 = vpop.f32.mrb[0].mxu0
    %v1945 = vadd.f32 %v1868, %v1944
    %v1946 = vpop.f32.mrb[0].mxu0
    %v1947 = vadd.f32 %v1870, %v1946
    %1948 = vmatprep.mubr.f32.mxu0 %v51
    %1949 = vmatmul.mubr.f32.gmra.mrb[0].mxu0 %v50
    %v1950 = vpop.f32.mrb[0].mxu0
    %v1951 = vadd.f32 %v1874, %v1950
    %v1952 = vpop.f32.mrb[0].mxu0
    %v1953 = vadd.f32 %v1876, %v1952
    %1954 = vdwg.mxu0
    %1955 = vmatprep.subr.mxu0 %v449
    %1956 = vmatpush1.msra.mxu0 %v448
    %1957 = vmatprep.subr.mxu0 %v453
    %1958 = vmatpush1.msra.mxu0 %v452
    %1959 = vmatprep.subr.mxu0 %v457
    %1960 = vmatpush1.msra.mxu0 %v456
    %1961 = vmatprep.subr.mxu0 %v461
    %1962 = vmatpush1.msra.mxu0 %v460
    %1963 = vmatprep.subr.mxu0 %v465
    %1964 = vmatpush1.msra.mxu0 %v464
    %1965 = vmatprep.subr.mxu0 %v469
    %1966 = vmatpush1.msra.mxu0 %v468
    %1967 = vmatprep.subr.mxu0 %v473
    %1968 = vmatpush1.msra.mxu0 %v472
    %1969 = vmatprep.subr.mxu0 %v477
    %1970 = vmatpush1.msra.mxu0 %v476
    %1971 = vmatprep.subr.mxu0 %v481
    %1972 = vmatpush1.msra.mxu0 %v480
    %1973 = vmatprep.subr.mxu0 %v485
    %1974 = vmatpush1.msra.mxu0 %v484
    %1975 = vmatprep.subr.mxu0 %v489
    %1976 = vmatpush1.msra.mxu0 %v488
    %1977 = vmatprep.subr.mxu0 %v493
    %1978 = vmatpush1.msra.mxu0 %v492
    %1979 = vmatprep.subr.mxu0 %v497
    %1980 = vmatpush1.msra.mxu0 %v496
    %1981 = vmatprep.subr.mxu0 %v501
    %1982 = vmatpush1.msra.mxu0 %v500
    %1983 = vmatprep.subr.mxu0 %v505
    %1984 = vmatpush1.msra.mxu0 %v504
    %1985 = vmatprep.subr.mxu0 %v509
    %1986 = vmatpush1.msra.mxu0 %v508
    %1987 = vmatprep.subr.mxu0 %v513
    %1988 = vmatpush1.msra.mxu0 %v512
    %1989 = vmatprep.subr.mxu0 %v517
    %1990 = vmatpush1.msra.mxu0 %v516
    %1991 = vmatprep.subr.mxu0 %v521
    %1992 = vmatpush1.msra.mxu0 %v520
    %1993 = vmatprep.subr.mxu0 %v525
    %1994 = vmatpush1.msra.mxu0 %v524
    %1995 = vmatprep.subr.mxu0 %v529
    %1996 = vmatpush1.msra.mxu0 %v528
    %1997 = vmatprep.subr.mxu0 %v533
    %1998 = vmatpush1.msra.mxu0 %v532
    %1999 = vmatprep.subr.mxu0 %v537
    %2000 = vmatpush1.msra.mxu0 %v536
    %2001 = vmatprep.subr.mxu0 %v541
    %2002 = vmatpush1.msra.mxu0 %v540
    %2003 = vmatprep.subr.mxu0 %v545
    %2004 = vmatpush1.msra.mxu0 %v544
    %2005 = vmatprep.subr.mxu0 %v549
    %2006 = vmatpush1.msra.mxu0 %v548
    %2007 = vmatprep.subr.mxu0 %v553
    %2008 = vmatpush1.msra.mxu0 %v552
    %2009 = vmatprep.subr.mxu0 %v557
    %2010 = vmatpush1.msra.mxu0 %v556
    %2011 = vmatprep.subr.mxu0 %v561
    %2012 = vmatpush1.msra.mxu0 %v560
    %2013 = vmatprep.subr.mxu0 %v565
    %2014 = vmatpush1.msra.mxu0 %v564
    %2015 = vmatprep.subr.mxu0 %v569
    %2016 = vmatpush1.msra.mxu0 %v568
    %2017 = vmatprep.subr.mxu0 %v573
    %2018 = vmatpush1.msra.mxu0 %v572
    %2019 = vmatprep.mubr.f32.mxu0 %v37
    %2020 = vmatmul.mubr.f32.gmra.mrb[0].mxu0 %v36
    %v2021 = vpop.f32.mrb[0].mxu0
    %v2022 = vadd.f32 %v1945, %v2021
    %v2023 = vpop.f32.mrb[0].mxu0
    %v2024 = vadd.f32 %v1947, %v2023
    %2025 = vmatprep.mubr.f32.mxu0 %v53
    %2026 = vmatmul.mubr.f32.gmra.mrb[0].mxu0 %v52
    %v2027 = vpop.f32.mrb[0].mxu0
    %v2028 = vadd.f32 %v1951, %v2027
    %v2029 = vpop.f32.mrb[0].mxu0
    %v2030 = vadd.f32 %v1953, %v2029
    %2031 = vdwg.mxu0
    %2032 = vmatprep.subr.mxu0 %v577
    %2033 = vmatpush1.msra.mxu0 %v576
    %2034 = vmatprep.subr.mxu0 %v581
    %2035 = vmatpush1.msra.mxu0 %v580
    %2036 = vmatprep.subr.mxu0 %v585
    %2037 = vmatpush1.msra.mxu0 %v584
    %2038 = vmatprep.subr.mxu0 %v589
    %2039 = vmatpush1.msra.mxu0 %v588
    %2040 = vmatprep.subr.mxu0 %v593
    %2041 = vmatpush1.msra.mxu0 %v592
    %2042 = vmatprep.subr.mxu0 %v597
    %2043 = vmatpush1.msra.mxu0 %v596
    %2044 = vmatprep.subr.mxu0 %v601
    %2045 = vmatpush1.msra.mxu0 %v600
    %2046 = vmatprep.subr.mxu0 %v605
    %2047 = vmatpush1.msra.mxu0 %v604
    %2048 = vmatprep.subr.mxu0 %v609
    %2049 = vmatpush1.msra.mxu0 %v608
    %2050 = vmatprep.subr.mxu0 %v613
    %2051 = vmatpush1.msra.mxu0 %v612
    %2052 = vmatprep.subr.mxu0 %v617
    %2053 = vmatpush1.msra.mxu0 %v616
    %2054 = vmatprep.subr.mxu0 %v621
    %2055 = vmatpush1.msra.mxu0 %v620
    %2056 = vmatprep.subr.mxu0 %v625
    %2057 = vmatpush1.msra.mxu0 %v624
    %2058 = vmatprep.subr.mxu0 %v629
    %2059 = vmatpush1.msra.mxu0 %v628
    %2060 = vmatprep.subr.mxu0 %v633
    %2061 = vmatpush1.msra.mxu0 %v632
    %2062 = vmatprep.subr.mxu0 %v637
    %2063 = vmatpush1.msra.mxu0 %v636
    %2064 = vmatprep.subr.mxu0 %v641
    %2065 = vmatpush1.msra.mxu0 %v640
    %2066 = vmatprep.subr.mxu0 %v645
    %2067 = vmatpush1.msra.mxu0 %v644
    %2068 = vmatprep.subr.mxu0 %v649
    %2069 = vmatpush1.msra.mxu0 %v648
    %2070 = vmatprep.subr.mxu0 %v653
    %2071 = vmatpush1.msra.mxu0 %v652
    %2072 = vmatprep.subr.mxu0 %v657
    %2073 = vmatpush1.msra.mxu0 %v656
    %2074 = vmatprep.subr.mxu0 %v661
    %2075 = vmatpush1.msra.mxu0 %v660
    %2076 = vmatprep.subr.mxu0 %v665
    %2077 = vmatpush1.msra.mxu0 %v664
    %2078 = vmatprep.subr.mxu0 %v669
    %2079 = vmatpush1.msra.mxu0 %v668
    %2080 = vmatprep.subr.mxu0 %v673
    %2081 = vmatpush1.msra.mxu0 %v672
    %2082 = vmatprep.subr.mxu0 %v677
    %2083 = vmatpush1.msra.mxu0 %v676
    %2084 = vmatprep.subr.mxu0 %v681
    %2085 = vmatpush1.msra.mxu0 %v680
    %2086 = vmatprep.subr.mxu0 %v685
    %2087 = vmatpush1.msra.mxu0 %v684
    %2088 = vmatprep.subr.mxu0 %v689
    %2089 = vmatpush1.msra.mxu0 %v688
    %2090 = vmatprep.subr.mxu0 %v693
    %2091 = vmatpush1.msra.mxu0 %v692
    %2092 = vmatprep.subr.mxu0 %v697
    %2093 = vmatpush1.msra.mxu0 %v696
    %2094 = vmatprep.subr.mxu0 %v701
    %2095 = vmatpush1.msra.mxu0 %v700
    %2096 = vmatprep.mubr.f32.mxu0 %v39
    %2097 = vmatmul.mubr.f32.gmra.mrb[0].mxu0 %v38
    %v2098 = vpop.f32.mrb[0].mxu0
    %v2099 = vadd.f32 %v2022, %v2098
    %v2100 = vpop.f32.mrb[0].mxu0
    %v2101 = vadd.f32 %v2024, %v2100
    %2102 = vmatprep.mubr.f32.mxu0 %v55
    %2103 = vmatmul.mubr.f32.gmra.mrb[0].mxu0 %v54
    %v2104 = vpop.f32.mrb[0].mxu0
    %v2105 = vadd.f32 %v2028, %v2104
    %v2106 = vpop.f32.mrb[0].mxu0
    %v2107 = vadd.f32 %v2030, %v2106
    %2108 = vdwg.mxu0
    %2109 = vmatprep.subr.mxu0 %v705
    %2110 = vmatpush1.msra.mxu0 %v704
    %2111 = vmatprep.subr.mxu0 %v709
    %2112 = vmatpush1.msra.mxu0 %v708
    %2113 = vmatprep.subr.mxu0 %v713
    %2114 = vmatpush1.msra.mxu0 %v712
    %2115 = vmatprep.subr.mxu0 %v717
    %2116 = vmatpush1.msra.mxu0 %v716
    %2117 = vmatprep.subr.mxu0 %v721
    %2118 = vmatpush1.msra.mxu0 %v720
    %2119 = vmatprep.subr.mxu0 %v725
    %2120 = vmatpush1.msra.mxu0 %v724
    %2121 = vmatprep.subr.mxu0 %v729
    %2122 = vmatpush1.msra.mxu0 %v728
    %2123 = vmatprep.subr.mxu0 %v733
    %2124 = vmatpush1.msra.mxu0 %v732
    %2125 = vmatprep.subr.mxu0 %v737
    %2126 = vmatpush1.msra.mxu0 %v736
    %2127 = vmatprep.subr.mxu0 %v741
    %2128 = vmatpush1.msra.mxu0 %v740
    %2129 = vmatprep.subr.mxu0 %v745
    %2130 = vmatpush1.msra.mxu0 %v744
    %2131 = vmatprep.subr.mxu0 %v749
    %2132 = vmatpush1.msra.mxu0 %v748
    %2133 = vmatprep.subr.mxu0 %v753
    %2134 = vmatpush1.msra.mxu0 %v752
    %2135 = vmatprep.subr.mxu0 %v757
    %2136 = vmatpush1.msra.mxu0 %v756
    %2137 = vmatprep.subr.mxu0 %v761
    %2138 = vmatpush1.msra.mxu0 %v760
    %2139 = vmatprep.subr.mxu0 %v765
    %2140 = vmatpush1.msra.mxu0 %v764
    %2141 = vmatprep.subr.mxu0 %v769
    %2142 = vmatpush1.msra.mxu0 %v768
    %2143 = vmatprep.subr.mxu0 %v773
    %2144 = vmatpush1.msra.mxu0 %v772
    %2145 = vmatprep.subr.mxu0 %v777
    %2146 = vmatpush1.msra.mxu0 %v776
    %2147 = vmatprep.subr.mxu0 %v781
    %2148 = vmatpush1.msra.mxu0 %v780
    %2149 = vmatprep.subr.mxu0 %v785
    %2150 = vmatpush1.msra.mxu0 %v784
    %2151 = vmatprep.subr.mxu0 %v789
    %2152 = vmatpush1.msra.mxu0 %v788
    %2153 = vmatprep.subr.mxu0 %v793
    %2154 = vmatpush1.msra.mxu0 %v792
    %2155 = vmatprep.subr.mxu0 %v797
    %2156 = vmatpush1.msra.mxu0 %v796
    %2157 = vmatprep.subr.mxu0 %v801
    %2158 = vmatpush1.msra.mxu0 %v800
    %2159 = vmatprep.subr.mxu0 %v805
    %2160 = vmatpush1.msra.mxu0 %v804
    %2161 = vmatprep.subr.mxu0 %v809
    %2162 = vmatpush1.msra.mxu0 %v808
    %2163 = vmatprep.subr.mxu0 %v813
    %2164 = vmatpush1.msra.mxu0 %v812
    %2165 = vmatprep.subr.mxu0 %v817
    %2166 = vmatpush1.msra.mxu0 %v816
    %2167 = vmatprep.subr.mxu0 %v821
    %2168 = vmatpush1.msra.mxu0 %v820
    %2169 = vmatprep.subr.mxu0 %v825
    %2170 = vmatpush1.msra.mxu0 %v824
    %2171 = vmatprep.subr.mxu0 %v829
    %2172 = vmatpush1.msra.mxu0 %v828
    %2173 = vmatprep.mubr.f32.mxu0 %v41
    %2174 = vmatmul.mubr.f32.gmra.mrb[0].mxu0 %v40
    %v2175 = vpop.f32.mrb[0].mxu0
    %v2176 = vadd.f32 %v2099, %v2175
    %v2177 = vpop.f32.mrb[0].mxu0
    %v2178 = vadd.f32 %v2101, %v2177
    %2179 = vmatprep.mubr.f32.mxu0 %v57
    %2180 = vmatmul.mubr.f32.gmra.mrb[0].mxu0 %v56
    %v2181 = vpop.f32.mrb[0].mxu0
    %v2182 = vadd.f32 %v2105, %v2181
    %v2183 = vpop.f32.mrb[0].mxu0
    %v2184 = vadd.f32 %v2107, %v2183
    %2185 = vdwg.mxu0
    %2186 = vmatprep.subr.mxu0 %v833
    %2187 = vmatpush1.msra.mxu0 %v832
    %2188 = vmatprep.subr.mxu0 %v837
    %2189 = vmatpush1.msra.mxu0 %v836
    %2190 = vmatprep.subr.mxu0 %v841
    %2191 = vmatpush1.msra.mxu0 %v840
    %2192 = vmatprep.subr.mxu0 %v845
    %2193 = vmatpush1.msra.mxu0 %v844
    %2194 = vmatprep.subr.mxu0 %v849
    %2195 = vmatpush1.msra.mxu0 %v848
    %2196 = vmatprep.subr.mxu0 %v853
    %2197 = vmatpush1.msra.mxu0 %v852
    %2198 = vmatprep.subr.mxu0 %v857
    %2199 = vmatpush1.msra.mxu0 %v856
    %2200 = vmatprep.subr.mxu0 %v861
    %2201 = vmatpush1.msra.mxu0 %v860
    %2202 = vmatprep.subr.mxu0 %v865
    %2203 = vmatpush1.msra.mxu0 %v864
    %2204 = vmatprep.subr.mxu0 %v869
    %2205 = vmatpush1.msra.mxu0 %v868
    %2206 = vmatprep.subr.mxu0 %v873
    %2207 = vmatpush1.msra.mxu0 %v872
    %2208 = vmatprep.subr.mxu0 %v877
    %2209 = vmatpush1.msra.mxu0 %v876
    %2210 = vmatprep.subr.mxu0 %v881
    %2211 = vmatpush1.msra.mxu0 %v880
    %2212 = vmatprep.subr.mxu0 %v885
    %2213 = vmatpush1.msra.mxu0 %v884
    %2214 = vmatprep.subr.mxu0 %v889
    %2215 = vmatpush1.msra.mxu0 %v888
    %2216 = vmatprep.subr.mxu0 %v893
    %2217 = vmatpush1.msra.mxu0 %v892
    %2218 = vmatprep.subr.mxu0 %v897
    %2219 = vmatpush1.msra.mxu0 %v896
    %2220 = vmatprep.subr.mxu0 %v901
    %2221 = vmatpush1.msra.mxu0 %v900
    %2222 = vmatprep.subr.mxu0 %v905
    %2223 = vmatpush1.msra.mxu0 %v904
    %2224 = vmatprep.subr.mxu0 %v909
    %2225 = vmatpush1.msra.mxu0 %v908
    %2226 = vmatprep.subr.mxu0 %v913
    %2227 = vmatpush1.msra.mxu0 %v912
    %2228 = vmatprep.subr.mxu0 %v917
    %2229 = vmatpush1.msra.mxu0 %v916
    %2230 = vmatprep.subr.mxu0 %v921
    %2231 = vmatpush1.msra.mxu0 %v920
    %2232 = vmatprep.subr.mxu0 %v925
    %2233 = vmatpush1.msra.mxu0 %v924
    %2234 = vmatprep.subr.mxu0 %v929
    %2235 = vmatpush1.msra.mxu0 %v928
    %2236 = vmatprep.subr.mxu0 %v933
    %2237 = vmatpush1.msra.mxu0 %v932
    %2238 = vmatprep.subr.mxu0 %v937
    %2239 = vmatpush1.msra.mxu0 %v936
    %2240 = vmatprep.subr.mxu0 %v941
    %2241 = vmatpush1.msra.mxu0 %v940
    %2242 = vmatprep.subr.mxu0 %v945
    %2243 = vmatpush1.msra.mxu0 %v944
    %2244 = vmatprep.subr.mxu0 %v949
    %2245 = vmatpush1.msra.mxu0 %v948
    %2246 = vmatprep.subr.mxu0 %v953
    %2247 = vmatpush1.msra.mxu0 %v952
    %2248 = vmatprep.subr.mxu0 %v957
    %2249 = vmatpush1.msra.mxu0 %v956
    %2250 = vmatprep.mubr.f32.mxu0 %v43
    %2251 = vmatmul.mubr.f32.gmra.mrb[0].mxu0 %v42
    %v2252 = vpop.f32.mrb[0].mxu0
    %v2253 = vadd.f32 %v2176, %v2252
    %v2254 = vpop.f32.mrb[0].mxu0
    %v2255 = vadd.f32 %v2178, %v2254
    %2256 = vmatprep.mubr.f32.mxu0 %v59
    %2257 = vmatmul.mubr.f32.gmra.mrb[0].mxu0 %v58
    %v2258 = vpop.f32.mrb[0].mxu0
    %v2259 = vadd.f32 %v2182, %v2258
    %v2260 = vpop.f32.mrb[0].mxu0
    %v2261 = vadd.f32 %v2184, %v2260
    %2262 = vdwg.mxu0
    %2263 = vmatprep.subr.mxu0 %v961
    %2264 = vmatpush1.msra.mxu0 %v960
    %2265 = vmatprep.subr.mxu0 %v965
    %2266 = vmatpush1.msra.mxu0 %v964
    %2267 = vmatprep.subr.mxu0 %v969
    %2268 = vmatpush1.msra.mxu0 %v968
    %2269 = vmatprep.subr.mxu0 %v973
    %2270 = vmatpush1.msra.mxu0 %v972
    %2271 = vmatprep.subr.mxu0 %v977
    %2272 = vmatpush1.msra.mxu0 %v976
    %2273 = vmatprep.subr.mxu0 %v981
    %2274 = vmatpush1.msra.mxu0 %v980
    %2275 = vmatprep.subr.mxu0 %v985
    %2276 = vmatpush1.msra.mxu0 %v984
    %2277 = vmatprep.subr.mxu0 %v989
    %2278 = vmatpush1.msra.mxu0 %v988
    %2279 = vmatprep.subr.mxu0 %v993
    %2280 = vmatpush1.msra.mxu0 %v992
    %2281 = vmatprep.subr.mxu0 %v997
    %2282 = vmatpush1.msra.mxu0 %v996
    %2283 = vmatprep.subr.mxu0 %v1001
    %2284 = vmatpush1.msra.mxu0 %v1000
    %2285 = vmatprep.subr.mxu0 %v1005
    %2286 = vmatpush1.msra.mxu0 %v1004
    %2287 = vmatprep.subr.mxu0 %v1009
    %2288 = vmatpush1.msra.mxu0 %v1008
    %2289 = vmatprep.subr.mxu0 %v1013
    %2290 = vmatpush1.msra.mxu0 %v1012
    %2291 = vmatprep.subr.mxu0 %v1017
    %2292 = vmatpush1.msra.mxu0 %v1016
    %2293 = vmatprep.subr.mxu0 %v1021
    %2294 = vmatpush1.msra.mxu0 %v1020
    %2295 = vmatprep.subr.mxu0 %v1025
    %2296 = vmatpush1.msra.mxu0 %v1024
    %2297 = vmatprep.subr.mxu0 %v1029
    %2298 = vmatpush1.msra.mxu0 %v1028
    %2299 = vmatprep.subr.mxu0 %v1033
    %2300 = vmatpush1.msra.mxu0 %v1032
    %2301 = vmatprep.subr.mxu0 %v1037
    %2302 = vmatpush1.msra.mxu0 %v1036
    %2303 = vmatprep.subr.mxu0 %v1041
    %2304 = vmatpush1.msra.mxu0 %v1040
    %2305 = vmatprep.subr.mxu0 %v1045
    %2306 = vmatpush1.msra.mxu0 %v1044
    %2307 = vmatprep.subr.mxu0 %v1049
    %2308 = vmatpush1.msra.mxu0 %v1048
    %2309 = vmatprep.subr.mxu0 %v1053
    %2310 = vmatpush1.msra.mxu0 %v1052
    %2311 = vmatprep.subr.mxu0 %v1057
    %2312 = vmatpush1.msra.mxu0 %v1056
    %2313 = vmatprep.subr.mxu0 %v1061
    %2314 = vmatpush1.msra.mxu0 %v1060
    %2315 = vmatprep.subr.mxu0 %v1065
    %2316 = vmatpush1.msra.mxu0 %v1064
    %2317 = vmatprep.subr.mxu0 %v1069
    %2318 = vmatpush1.msra.mxu0 %v1068
    %2319 = vmatprep.subr.mxu0 %v1073
    %2320 = vmatpush1.msra.mxu0 %v1072
    %2321 = vmatprep.subr.mxu0 %v1077
    %2322 = vmatpush1.msra.mxu0 %v1076
    %2323 = vmatprep.subr.mxu0 %v1081
    %2324 = vmatpush1.msra.mxu0 %v1080
    %2325 = vmatprep.subr.mxu0 %v1085
    %2326 = vmatpush1.msra.mxu0 %v1084
    %2327 = vmatprep.mubr.f32.mxu0 %v45
    %2328 = vmatmul.mubr.f32.gmra.mrb[0].mxu0 %v44
    %v2329 = vpop.f32.mrb[0].mxu0
    %v2330 = vadd.f32 %v2253, %v2329
    %v2331 = vpop.f32.mrb[0].mxu0
    %v2332 = vadd.f32 %v2255, %v2331
    %2333 = vmatprep.mubr.f32.mxu0 %v61
    %2334 = vmatmul.mubr.f32.gmra.mrb[0].mxu0 %v60
    %v2335 = vpop.f32.mrb[0].mxu0
    %v2336 = vadd.f32 %v2259, %v2335
    %v2337 = vpop.f32.mrb[0].mxu0
    %v2338 = vadd.f32 %v2261, %v2337
    %2339 = vdwg.mxu0
    %v2340 = vld [vmem:[%s3] sm:$0xff]
    %v2341 = vld [vmem:[%s3 + $0x8] sm:$0xff]
    %v2342 = vld [vmem:[%s3 + $0x10] sm:$0xff]
    %v2343 = vld [vmem:[%s3 + $0x18] sm:$0xff]
    %v2344 = vld [vmem:[%s3 + $0x20] sm:$0xff]
    %v2345 = vld [vmem:[%s3 + $0x28] sm:$0xff]
    %v2346 = vld [vmem:[%s3 + $0x30] sm:$0xff]
    %v2347 = vld [vmem:[%s3 + $0x38] sm:$0xff]
    %v2348 = vadd.f32 %v1714, %v2340
    %v2349 = vadd.f32 %v1716, %v2341
    %v2350 = vadd.f32 %v2330, %v2342
    %v2351 = vadd.f32 %v2332, %v2343
    %v2352 = vadd.f32 %v1720, %v2344
    %v2353 = vadd.f32 %v1722, %v2345
    %v2354 = vadd.f32 %v2336, %v2346
    %v2355 = vadd.f32 %v2338, %v2347
    %v2356 = vld [vmem:[%s4] sm:$0xf]
    %v2357 = vld [vmem:[%s5] sm:$0xf]
    %v2358 = vadd.f32 %v2348, %v2349
    %v2359 = vadd.f32 %v2358, %v2350
    %v2360 = vadd.f32 %v2359, %v2351
    %2361 = vadd.xlane.f32.xlu0 %v2360
    %v2362 = vpop.xlane.xlu0 %2361
    %v2363 = vadd.f32 %v2352, %v2353
    %v2364 = vadd.f32 %v2363, %v2354
    %v2365 = vadd.f32 %v2364, %v2355
    %2366 = vadd.xlane.f32.xlu0 %v2365
    %v2367 = vpop.xlane.xlu0 %2366
    %v2368 = vrcp.pop 512.0
    %v2369 = vmul.f32 %v2362, %v2368
    %v2370 = vmul.f32 %v2367, %v2368
    %v2371 = vsub.f32 %v2348, %v2369
    %v2372 = vsub.f32 %v2349, %v2369
    %v2373 = vsub.f32 %v2350, %v2369
    %v2374 = vsub.f32 %v2351, %v2369
    %v2375 = vsub.f32 %v2352, %v2370
    %v2376 = vsub.f32 %v2353, %v2370
    %v2377 = vsub.f32 %v2354, %v2370
    %v2378 = vsub.f32 %v2355, %v2370
    %v2379 = vmul.f32 %v2371, %v2371
    %v2380 = vmul.f32 %v2372, %v2372
    %v2381 = vmul.f32 %v2373, %v2373
    %v2382 = vmul.f32 %v2374, %v2374
    %v2383 = vmul.f32 %v2375, %v2375
    %v2384 = vmul.f32 %v2376, %v2376
    %v2385 = vmul.f32 %v2377, %v2377
    %v2386 = vmul.f32 %v2378, %v2378
    %v2387 = vadd.f32 %v2379, %v2380
    %v2388 = vadd.f32 %v2387, %v2381
    %v2389 = vadd.f32 %v2388, %v2382
    %2390 = vadd.xlane.f32.xlu0 %v2389
    %v2391 = vpop.xlane.xlu0 %2390
    %v2392 = vadd.f32 %v2383, %v2384
    %v2393 = vadd.f32 %v2392, %v2385
    %v2394 = vadd.f32 %v2393, %v2386
    %2395 = vadd.xlane.f32.xlu0 %v2394
    %v2396 = vpop.xlane.xlu0 %2395
    %v2397 = vmul.f32 %v2391, %v2368
    %v2398 = vmul.f32 %v2396, %v2368
    %v2399 = vadd.f32 %v2397, 1e-05
    %v2400 = vadd.f32 %v2398, 1e-05
    %v2401 = vrsqrt.pop %v2399
    %v2402 = vrsqrt.pop %v2400
    %v2403 = vmul.f32 %v2371, %v2401
    %v2404 = vmul.f32 %v2372, %v2401
    %v2405 = vmul.f32 %v2373, %v2401
    %v2406 = vmul.f32 %v2374, %v2401
    %v2407 = vmul.f32 %v2375, %v2402
    %v2408 = vmul.f32 %v2376, %v2402
    %v2409 = vmul.f32 %v2377, %v2402
    %v2410 = vmul.f32 %v2378, %v2402
    %v2412 = vlaneseq
    %v2413 = vshrl.u32 %v2412, 7
    %v2414 = vsub.s32 0, %v2413
    %v2415 = vrot.slane %v2356, %v2414
    %v2416 = vlaneseq
    %v2417 = vshrl.u32 %v2416, 7
    %v2418 = vsub.s32 1, %v2417
    %v2419 = vrot.slane %v2356, %v2418
    %v2420 = vlaneseq
    %v2421 = vshrl.u32 %v2420, 7
    %v2422 = vsub.s32 2, %v2421
    %v2423 = vrot.slane %v2356, %v2422
    %v2424 = vlaneseq
    %v2425 = vshrl.u32 %v2424, 7
    %v2426 = vsub.s32 3, %v2425
    %v2427 = vrot.slane %v2356, %v2426
    %v2432 = vmul.f32 %v2403, %v2415
    %v2433 = vmul.f32 %v2404, %v2419
    %v2434 = vmul.f32 %v2405, %v2423
    %v2435 = vmul.f32 %v2406, %v2427
    %v2436 = vmul.f32 %v2407, %v2415
    %v2437 = vmul.f32 %v2408, %v2419
    %v2438 = vmul.f32 %v2409, %v2423
    %v2439 = vmul.f32 %v2410, %v2427
    %v2441 = vlaneseq
    %v2442 = vshrl.u32 %v2441, 7
    %v2443 = vsub.s32 0, %v2442
    %v2444 = vrot.slane %v2357, %v2443
    %v2445 = vlaneseq
    %v2446 = vshrl.u32 %v2445, 7
    %v2447 = vsub.s32 1, %v2446
    %v2448 = vrot.slane %v2357, %v2447
    %v2449 = vlaneseq
    %v2450 = vshrl.u32 %v2449, 7
    %v2451 = vsub.s32 2, %v2450
    %v2452 = vrot.slane %v2357, %v2451
    %v2453 = vlaneseq
    %v2454 = vshrl.u32 %v2453, 7
    %v2455 = vsub.s32 3, %v2454
    %v2456 = vrot.slane %v2357, %v2455
    %v2461 = vadd.f32 %v2432, %v2444
    %v2462 = vadd.f32 %v2433, %v2448
    %v2463 = vadd.f32 %v2434, %v2452
    %v2464 = vadd.f32 %v2435, %v2456
    %v2465 = vadd.f32 %v2436, %v2444
    %v2466 = vadd.f32 %v2437, %v2448
    %v2467 = vadd.f32 %v2438, %v2452
    %v2468 = vadd.f32 %v2439, %v2456
    %v2469 = vadd.f32 %v2340, %v2461
    %v2470 = vadd.f32 %v2341, %v2462
    %v2471 = vadd.f32 %v2342, %v2463
    %v2472 = vadd.f32 %v2343, %v2464
    %v2473 = vadd.f32 %v2344, %v2465
    %v2474 = vadd.f32 %v2345, %v2466
    %v2475 = vadd.f32 %v2346, %v2467
    %v2476 = vadd.f32 %v2347, %v2468
    %v2477 = vld [vmem:[%s6] sm:$0xf]
    %v2478 = vld [vmem:[%s7] sm:$0xf]
    %v2479 = vadd.f32 %v2469, %v2470
    %v2480 = vadd.f32 %v2479, %v2471
    %v2481 = vadd.f32 %v2480, %v2472
    %2482 = vadd.xlane.f32.xlu0 %v2481
    %v2483 = vpop.xlane.xlu0 %2482
    %v2484 = vadd.f32 %v2473, %v2474
    %v2485 = vadd.f32 %v2484, %v2475
    %v2486 = vadd.f32 %v2485, %v2476
    %2487 = vadd.xlane.f32.xlu0 %v2486
    %v2488 = vpop.xlane.xlu0 %2487
    %v2489 = vmul.f32 %v2483, %v2368
    %v2490 = vmul.f32 %v2488, %v2368
    %v2491 = vsub.f32 %v2469, %v2489
    %v2492 = vsub.f32 %v2470, %v2489
    %v2493 = vsub.f32 %v2471, %v2489
    %v2494 = vsub.f32 %v2472, %v2489
    %v2495 = vsub.f32 %v2473, %v2490
    %v2496 = vsub.f32 %v2474, %v2490
    %v2497 = vsub.f32 %v2475, %v2490
    %v2498 = vsub.f32 %v2476, %v2490
    %v2499 = vmul.f32 %v2491, %v2491
    %v2500 = vmul.f32 %v2492, %v2492
    %v2501 = vmul.f32 %v2493, %v2493
    %v2502 = vmul.f32 %v2494, %v2494
    %v2503 = vmul.f32 %v2495, %v2495
    %v2504 = vmul.f32 %v2496, %v2496
    %v2505 = vmul.f32 %v2497, %v2497
    %v2506 = vmul.f32 %v2498, %v2498
    %v2507 = vadd.f32 %v2499, %v2500
    %v2508 = vadd.f32 %v2507, %v2501
    %v2509 = vadd.f32 %v2508, %v2502
    %2510 = vadd.xlane.f32.xlu0 %v2509
    %v2511 = vpop.xlane.xlu0 %2510
    %v2512 = vadd.f32 %v2503, %v2504
    %v2513 = vadd.f32 %v2512, %v2505
    %v2514 = vadd.f32 %v2513, %v2506
    %2515 = vadd.xlane.f32.xlu0 %v2514
    %v2516 = vpop.xlane.xlu0 %2515
    %v2517 = vmul.f32 %v2511, %v2368
    %v2518 = vmul.f32 %v2516, %v2368
    %v2519 = vadd.f32 %v2517, 1e-05
    %v2520 = vadd.f32 %v2518, 1e-05
    %v2521 = vrsqrt.pop %v2519
    %v2522 = vrsqrt.pop %v2520
    %v2523 = vmul.f32 %v2491, %v2521
    %v2524 = vmul.f32 %v2492, %v2521
    %v2525 = vmul.f32 %v2493, %v2521
    %v2526 = vmul.f32 %v2494, %v2521
    %v2527 = vmul.f32 %v2495, %v2522
    %v2528 = vmul.f32 %v2496, %v2522
    %v2529 = vmul.f32 %v2497, %v2522
    %v2530 = vmul.f32 %v2498, %v2522
    %v2532 = vlaneseq
    %v2533 = vshrl.u32 %v2532, 7
    %v2534 = vsub.s32 0, %v2533
    %v2535 = vrot.slane %v2477, %v2534
    %v2536 = vlaneseq
    %v2537 = vshrl.u32 %v2536, 7
    %v2538 = vsub.s32 1, %v2537
    %v2539 = vrot.slane %v2477, %v2538
    %v2540 = vlaneseq
    %v2541 = vshrl.u32 %v2540, 7
    %v2542 = vsub.s32 2, %v2541
    %v2543 = vrot.slane %v2477, %v2542
    %v2544 = vlaneseq
    %v2545 = vshrl.u32 %v2544, 7
    %v2546 = vsub.s32 3, %v2545
    %v2547 = vrot.slane %v2477, %v2546
    %v2552 = vmul.f32 %v2523, %v2535
    %v2553 = vmul.f32 %v2524, %v2539
    %v2554 = vmul.f32 %v2525, %v2543
    %v2555 = vmul.f32 %v2526, %v2547
    %v2556 = vmul.f32 %v2527, %v2535
    %v2557 = vmul.f32 %v2528, %v2539
    %v2558 = vmul.f32 %v2529, %v2543
    %v2559 = vmul.f32 %v2530, %v2547
    %v2561 = vlaneseq
    %v2562 = vshrl.u32 %v2561, 7
    %v2563 = vsub.s32 0, %v2562
    %v2564 = vrot.slane %v2478, %v2563
    %v2565 = vlaneseq
    %v2566 = vshrl.u32 %v2565, 7
    %v2567 = vsub.s32 1, %v2566
    %v2568 = vrot.slane %v2478, %v2567
    %v2569 = vlaneseq
    %v2570 = vshrl.u32 %v2569, 7
    %v2571 = vsub.s32 2, %v2570
    %v2572 = vrot.slane %v2478, %v2571
    %v2573 = vlaneseq
    %v2574 = vshrl.u32 %v2573, 7
    %v2575 = vsub.s32 3, %v2574
    %v2576 = vrot.slane %v2478, %v2575
    %v2581 = vadd.f32 %v2552, %v2564
    %v2582 = vadd.f32 %v2553, %v2568
    %v2583 = vadd.f32 %v2554, %v2572
    %v2584 = vadd.f32 %v2555, %v2576
    %v2585 = vadd.f32 %v2556, %v2564
    %v2586 = vadd.f32 %v2557, %v2568
    %v2587 = vadd.f32 %v2558, %v2572
    %v2588 = vadd.f32 %v2559, %v2576
    %2589 = vst [vmem:[#allocation2] sm:$0xff] %v2581
    %2590 = vst [vmem:[#allocation2 + $0x8] sm:$0xff] %v2582
    %2591 = vst [vmem:[#allocation2 + $0x10] sm:$0xff] %v2583
    %2592 = vst [vmem:[#allocation2 + $0x18] sm:$0xff] %v2584
    %2593 = vst [vmem:[#allocation2 + $0x20] sm:$0xff] %v2585
    %2594 = vst [vmem:[#allocation2 + $0x28] sm:$0xff] %v2586
    %2595 = vst [vmem:[#allocation2 + $0x30] sm:$0xff] %v2587
    %2596 = vst [vmem:[#allocation2 + $0x38] sm:$0xff] %v2588
    // Predicated region
    $region34: #{decoder_layer_forward.9} parent=1 // pred_check
      _
    $region35: #{decoder_layer_forward.9} parent=1 // pred_check_branch
      %2598 = sbr.rel (0) target = $region37
    $region36: #{decoder_layer_forward.9} parent=1 // pred_region
      %s2600 = ssub.s32 1024, 1024
      %2601 = vsyncadd [#allocation3], %s2600
      %s2602 = sshll.u32 [#allocation2], 4
      %s2603 = int_to_ptr.vmem [resolvable:$true] %s2602
      %2608 = dma.vmem_to_hbm [thread:$0]  %s2603, 1024, %s8, [#allocation3], 512, 512, 32
    $region37: #{decoder_layer_forward.9} parent=1 // pred_fallthru
      _
    // Predicated region
    $region38: #{decoder_layer_forward.9} parent=1 // pred_check
      _
    $region39: #{decoder_layer_forward.9} parent=1 // pred_check_branch
      %2610 = sbr.rel (0) target = $region41
    $region40: #{decoder_layer_forward.9} parent=1 // pred_region
      %2611 = dma.done [#allocation3], 1024
    $region41: #{decoder_layer_forward.9} parent=1 // pred_fallthru
      _
    %2612 = vsyncpa [#allocation3], 1

</llo_original>
